<compile_context>
chip_gen: v7x
topology: tpu7x:2x2x1
jax: 0.10.0
libtpu: 0.0.40
codegen_flags: <defaults>
</compile_context>

<pallas_src>
import functools

import jax
import jax.numpy as jnp
import numpy as np
from jax import lax
from jax.experimental import pallas as pl
from jax.experimental.pallas import tpu as pltpu

_LANE = 128


def _cdiv(a, b):
    return -(-a // b)


def _round_up(x, m):
    return _cdiv(x, m) * m


# --------------------------------------------------------------------------
# Pallas kernel
# --------------------------------------------------------------------------
def _basic_block_kernel(*refs, s, NB, Ho, Wo, Cp, Pp, has_proj):
    if has_proj:
        (x_ref, w1_ref, b1_ref, w2_ref, b2_ref, wsc_ref, bsc_ref,
         out_ref, pad_ref) = refs
    else:
        (x_ref, w1_ref, b1_ref, w2_ref, b2_ref,
         out_ref, pad_ref) = refs

    M = NB * Ho * Wo
    cdt = pad_ref.dtype

    # conv1 taps: contiguous slices of the phase-decomposed padded input.
    # tap(ky,kx)[n,y,x] == x_padded[n, s*y+ky, s*x+kx]
    def conv1_patch(t):
        ky, kx = divmod(t, 3)
        p = (ky % s) * s + (kx % s)
        r, c = ky // s, kx // s
        return x_ref[:, p, r:r + Ho, c:c + Wo, :].reshape(M, Cp)

    # conv2 taps: contiguous slices of the zero-haloed out1 scratch.
    def conv2_patch(t):
        ky, kx = divmod(t, 3)
        return pad_ref[:, ky:ky + Ho, kx:kx + Wo, :].reshape(M, Pp)

    def conv3x3(get_patch, w_ref, cin, acc):
        # 9 K=cin dots into one f32 accumulator.  No tap concatenation: the
        # lane-concat was an extra (M, g*cin) VMEM copy per group and only
        # helps when MXU is the saturated slot (never on v5e's 128-wide MXU).
        for t in range(9):
            acc = acc + jnp.dot(get_patch(t), w_ref[t * cin:(t + 1) * cin, :],
                                preferred_element_type=jnp.float32)
        return acc

    # ---- conv1 (3x3, stride s, BN1 scale folded into weights) + relu ------
    acc1 = conv3x3(conv1_patch, w1_ref, Cp, jnp.zeros((M, Pp), jnp.float32))
    out1 = jnp.maximum(acc1 + b1_ref[...], 0.0)

    # ---- shortcut: its input is exactly conv1's centre tap (ky=kx=1).  It
    # seeds conv2's accumulator (together with bn2's bias) so no separate
    # residual-add pass / extra M x Pp temp is needed at the end.
    sc_in = conv1_patch(4)
    if has_proj:
        acc2 = (jnp.dot(sc_in, wsc_ref[...],
                        preferred_element_type=jnp.float32)
                + (bsc_ref[...] + b2_ref[...]))
    else:
        acc2 = sc_in.astype(jnp.float32) + b2_ref[...]

    # ---- stage out1 into the conv2 halo scratch: the interior is fully
    # overwritten every step; only the 1-pixel halo is (re-)zeroed (cheap
    # masked strip stores), which keeps the kernel correct under any megacore
    # split of the "parallel" grid axis.
    pad_ref[:, 0:1, :, :] = jnp.zeros((NB, 1, Wo + 2, Pp), cdt)
    pad_ref[:, Ho + 1:Ho + 2, :, :] = jnp.zeros((NB, 1, Wo + 2, Pp), cdt)
    pad_ref[:, :, 0:1, :] = jnp.zeros((NB, Ho + 2, 1, Pp), cdt)
    pad_ref[:, :, Wo + 1:Wo + 2, :] = jnp.zeros((NB, Ho + 2, 1, Pp), cdt)
    pad_ref[:, 1:1 + Ho, 1:1 + Wo, :] = out1.reshape(NB, Ho, Wo, Pp).astype(cdt)

    # ---- conv2 (3x3, stride 1) + bn2, accumulated on top of the shortcut --
    out = conv3x3(conv2_patch, w2_ref, Pp, acc2)

    # ---- final relu; store in compute dtype (halves output HBM writeback) -
    out_ref[...] = jnp.maximum(out, 0.0).reshape(NB, Ho, Wo, Pp).astype(
        out_ref.dtype)


# --------------------------------------------------------------------------
# Wrapper (layout glue: channel padding, spatial pad, stride-phase split,
# BN folding).  All glue is 1x data movement — no im2col expansion.
# --------------------------------------------------------------------------
def _vmem_capacity_bytes():
    try:
        cap = getattr(pltpu.get_tpu_info(), "vmem_capacity_bytes", None)
        if cap:
            return int(cap)
    except Exception:
        pass
    return 128 * 2 ** 20          # v5e/v6e capacity as a safe default


def _prep_conv_bn(conv_w, gamma, beta, mean, var, ci_pad, co_pad,
                  compute_dtype, eps=1e-5):
    """Fold BN (running stats) scale into conv weights; pad channels.

    Note: on the bf16 fast path the scaled weights are quantized to bf16; for
    extreme gamma/sqrt(var) ratios fold the scale into the f32 accumulator
    instead if accuracy-sensitive.
    """
    scale = (gamma / jnp.sqrt(var + eps)).astype(jnp.float32)        # (Cout,)
    bias = (beta - mean * scale).astype(jnp.float32)                 # (Cout,)
    w = jnp.transpose(conv_w, (2, 3, 1, 0)).astype(jnp.float32) * scale
    kh, kw, ci, co = w.shape
    w = jnp.pad(w, ((0, 0), (0, 0), (0, ci_pad - ci), (0, co_pad - co)))
    w = w.reshape(kh * kw * ci_pad, co_pad).astype(compute_dtype)
    bias = jnp.pad(bias, (0, co_pad - co)).reshape(1, co_pad)        # f32
    return w, bias


def to_padded_nhwc(x_nchw, compute_dtype=jnp.bfloat16):
    """NCHW f32 -> channel-padded NHWC in compute_dtype (network entry)."""
    C = x_nchw.shape[1]
    Cp = _round_up(C, _LANE)
    x = jnp.transpose(x_nchw, (0, 2, 3, 1))
    x = jnp.pad(x, ((0, 0), (0, 0), (0, 0), (0, Cp - C)))
    return x.astype(compute_dtype)


def from_padded_nhwc(y_nhwc, planes):
    """Channel-padded NHWC -> NCHW f32 (network exit)."""
    return jnp.transpose(y_nhwc[..., :planes], (0, 3, 1, 2)).astype(jnp.float32)


def basic_block_forward(x, params, stride, compute_dtype=jnp.bfloat16,
                        input_format="nchw", output_format="nchw"):
    """Fused BasicBlock forward.

    input_format / output_format:
      "nchw": PyTorch layout (f32 in / f32 out) — network entry/exit.
      "nhwc": channel-padded NHWC activations in compute_dtype — use this to
              chain consecutive blocks without per-block layout round trips.
    """
    P, Cin = params["conv1_w"].shape[:2]
    s = int(stride)
    Cp = _round_up(Cin, _LANE)    # lane-dense input channels
    Pp = _round_up(P, _LANE)      # lane-dense output channels
    has_proj = (s != 1) or (Cin != P)

    if input_format == "nchw":
        assert x.shape[1] == Cin
        x = to_padded_nhwc(x, compute_dtype)
    else:
        assert x.shape[-1] == Cp
        x = x.astype(compute_dtype)
    N, H, W, _ = x.shape
    Ho = (H + 2 - 3) // s + 1
    Wo = (W + 2 - 3) // s + 1

    # Spatial pad of 1 (conv padding), rounded up so the stride-phase
    # decomposition is an exact reshape and every conv1 tap stays in bounds.
    Hp = max(_cdiv(H + 2, s), (Ho - 1) + _cdiv(3, s))
    Wp = max(_cdiv(W + 2, s), (Wo - 1) + _cdiv(3, s))
    assert Hp * s >= s * (Ho - 1) + 3 and Hp >= Ho + (2 // s) and Hp * s >= H + 1
    assert Wp * s >= s * (Wo - 1) + 3 and Wp >= Wo + (2 // s) and Wp * s >= W + 1
    Hs, Ws = Hp * s, Wp * s

    x = jnp.pad(x, ((0, 0), (1, Hs - H - 1), (1, Ws - W - 1), (0, 0)))
    # phase split: x_phase[n, py*s+px, i, j, c] == x_padded[n, s*i+py, s*j+px, c]
    x_phase = (x.reshape(N, Hp, s, Wp, s, Cp)
                 .transpose(0, 2, 4, 1, 3, 5)
                 .reshape(N, s * s, Hp, Wp, Cp))

    w1, b1 = _prep_conv_bn(params["conv1_w"], params["bn1_g"], params["bn1_b"],
                           params["bn1_m"], params["bn1_v"], Cp, Pp,
                           compute_dtype)
    w2, b2 = _prep_conv_bn(params["conv2_w"], params["bn2_g"], params["bn2_b"],
                           params["bn2_m"], params["bn2_v"], Pp, Pp,
                           compute_dtype)

    # ---- batch blocking: stack NB images along the matmul M dim per grid
    # step for small feature maps (amortizes ~0.35us/step overhead and raises
    # M toward MXU-friendly sizes) but keep >= 2 grid steps when N > 1 so the
    # "parallel" batch axis can still be split across TensorCores.
    itemsize = jnp.dtype(compute_dtype).itemsize
    per_img = (s * s * Hp * Wp * Cp + Ho * Wo * Pp
               + (Ho + 2) * (Wo + 2) * Pp) * itemsize
    NB = 1
    for cand in range(2, N // 2 + 1):
        if N % cand:
            continue
        if cand * Ho * Wo > 1024 or 2 * cand * per_img > (24 << 20):
            break
        NB = cand
    grid = (N // NB,)

    args = [x_phase, w1, b1, w2, b2]
    in_specs = [
        pl.BlockSpec((NB, s * s, Hp, Wp, Cp), lambda n: (n, 0, 0, 0, 0)),
        # constant index maps: weights/biases DMA'd once and stay resident
        pl.BlockSpec((9 * Cp, Pp), lambda n: (0, 0)),
        pl.BlockSpec((1, Pp), lambda n: (0, 0)),
        pl.BlockSpec((9 * Pp, Pp), lambda n: (0, 0)),
        pl.BlockSpec((1, Pp), lambda n: (0, 0)),
    ]
    if has_proj:
        wsc, bsc = _prep_conv_bn(params["sc_w"], params["sc_g"], params["sc_b"],
                                 params["sc_m"], params["sc_v"], Cp, Pp,
                                 compute_dtype)
        args += [wsc, bsc]
        in_specs += [pl.BlockSpec((Cp, Pp), lambda n: (0, 0)),
                     pl.BlockSpec((1, Pp), lambda n: (0, 0))]

    out_specs = pl.BlockSpec((NB, Ho, Wo, Pp), lambda n: (n, 0, 0, 0))
    scratch = pltpu.VMEM((NB, Ho + 2, Wo + 2, Pp), compute_dtype)

    # ---- generation-aware VMEM budget: double-buffered act/weight blocks +
    # resident scratch + headroom.  May exceed 64 MiB on v5e/v6e (128 MiB
    # parts) but always leaves >= 8 MiB of physical capacity free (v7x).
    weight_bytes = ((9 * Cp + 9 * Pp + (Cp if has_proj else 0)) * Pp * itemsize
                    + 3 * Pp * 4)
    act_bytes = NB * (s * s * Hp * Wp * Cp + Ho * Wo * Pp) * itemsize
    scratch_bytes = NB * (Ho + 2) * (Wo + 2) * Pp * itemsize
    required = 2 * (act_bytes + weight_bytes) + scratch_bytes
    cap = _vmem_capacity_bytes()
    vmem_limit = int(min(max(required + (8 << 20), 32 << 20), cap - (8 << 20)))

    kernel = functools.partial(_basic_block_kernel, s=s, NB=NB, Ho=Ho, Wo=Wo,
                               Cp=Cp, Pp=Pp, has_proj=has_proj)

    out = pl.pallas_call(
        kernel,
        out_shape=jax.ShapeDtypeStruct((N, Ho, Wo, Pp), compute_dtype),
        grid=grid,
        in_specs=in_specs,
        out_specs=out_specs,
        scratch_shapes=[scratch],
        compiler_params=pltpu.CompilerParams(
            dimension_semantics=("parallel",),
            vmem_limit_bytes=vmem_limit),
    )(*args)

    if output_format == "nchw":
        return from_padded_nhwc(out, P)
    return out


# --------------------------------------------------------------------------
# Pure-JAX reference (same semantics as the PyTorch module in eval mode)
# --------------------------------------------------------------------------
def _conv(x, w, stride, pad):
    return lax.conv_general_dilated(
        x, w, (stride, stride), [(pad, pad), (pad, pad)],
        dimension_numbers=("NCHW", "OIHW", "NCHW"))


def _bn(x, g, b, m, v, eps=1e-5):
    g = g[None, :, None, None]
    b = b[None, :, None, None]
    m = m[None, :, None, None]
    v = v[None, :, None, None]
    return (x - m) / jnp.sqrt(v + eps) * g + b


def basic_block_reference(x, p, stride):
    out = jax.nn.relu(_bn(_conv(x, p["conv1_w"], stride, 1),
                          p["bn1_g"], p["bn1_b"], p["bn1_m"], p["bn1_v"]))
    out = _bn(_conv(out, p["conv2_w"], 1, 1),
              p["bn2_g"], p["bn2_b"], p["bn2_m"], p["bn2_v"])
    if "sc_w" in p:
        sc = _bn(_conv(x, p["sc_w"], stride, 0),
                 p["sc_g"], p["sc_b"], p["sc_m"], p["sc_v"])
    else:
        sc = x
    return jax.nn.relu(out + sc)


# --------------------------------------------------------------------------
# Deterministic parameter construction
# --------------------------------------------------------------------------
def make_params(key, in_planes, planes, stride):
    ks = jax.random.split(key, 15)
    p = {
        "conv1_w": jax.random.normal(ks[0], (planes, in_planes, 3, 3), jnp.float32) * 0.1,
        "bn1_g": jax.random.uniform(ks[1], (planes,), jnp.float32, 0.5, 1.5),
        "bn1_b": jax.random.normal(ks[2], (planes,), jnp.float32) * 0.1,
        "bn1_m": jax.random.normal(ks[3], (planes,), jnp.float32) * 0.1,
        "bn1_v": jax.random.uniform(ks[4], (planes,), jnp.float32, 0.5, 1.5),
        "conv2_w": jax.random.normal(ks[5], (planes, planes, 3, 3), jnp.float32) * 0.1,
        "bn2_g": jax.random.uniform(ks[6], (planes,), jnp.float32, 0.5, 1.5),
        "bn2_b": jax.random.normal(ks[7], (planes,), jnp.float32) * 0.1,
        "bn2_m": jax.random.normal(ks[8], (planes,), jnp.float32) * 0.1,
        "bn2_v": jax.random.uniform(ks[9], (planes,), jnp.float32, 0.5, 1.5),
    }
    if stride != 1 or in_planes != planes:
        p.update({
            "sc_w": jax.random.normal(ks[10], (planes, in_planes, 1, 1), jnp.float32) * 0.1,
            "sc_g": jax.random.uniform(ks[11], (planes,), jnp.float32, 0.5, 1.5),
            "sc_b": jax.random.normal(ks[12], (planes,), jnp.float32) * 0.1,
            "sc_m": jax.random.normal(ks[13], (planes,), jnp.float32) * 0.1,
            "sc_v": jax.random.uniform(ks[14], (planes,), jnp.float32, 0.5, 1.5),
        })
    return p


# --------------------------------------------------------------------------
if __name__ == "__main__":
    key = jax.random.PRNGKey(0)
    kx, kp1, kp2 = jax.random.split(key, 3)
    x = jax.random.normal(kx, (2, 4, 16, 16), jnp.float32)   # NCHW like PyTorch

    # Case 1: identity shortcut (stride=1, in_planes == planes)
    p1 = make_params(kp1, 4, 4, 1)
    # Case 2: projection shortcut (stride=2, in_planes != planes)
    p2 = make_params(kp2, 4, 8, 2)

    # exactness path (f32 compute, f32 kernel output)
    y1 = basic_block_forward(x, p1, stride=1, compute_dtype=jnp.float32)
    y2 = basic_block_forward(x, p2, stride=2, compute_dtype=jnp.float32)
    # fast path (bf16 activations/weights/output, f32 MXU accumulation)
    y1b = basic_block_forward(x, p1, stride=1, compute_dtype=jnp.bfloat16)
    y2b = basic_block_forward(x, p2, stride=2, compute_dtype=jnp.bfloat16)

    # chained blocks with padded-NHWC hand-off (no per-block layout round trip)
    h = basic_block_forward(x, p1, stride=1, compute_dtype=jnp.float32,
                            output_format="nhwc")
    ychain = basic_block_forward(h, p2, stride=2, compute_dtype=jnp.float32,
                                 input_format="nhwc")

    jax.block_until_ready((y1, y2, y1b, y2b, ychain))

    r1 = basic_block_reference(x, p1, 1)
    r2 = basic_block_reference(x, p2, 2)
    rchain = basic_block_reference(r1, p2, 2)

    np.testing.assert_allclose(np.asarray(y1), np.asarray(r1), rtol=1e-4, atol=1e-4)
    np.testing.assert_allclose(np.asarray(y2), np.asarray(r2), rtol=1e-4, atol=1e-4)
    np.testing.assert_allclose(np.asarray(y1b), np.asarray(r1), rtol=5e-2, atol=5e-2)
    np.testing.assert_allclose(np.asarray(y2b), np.asarray(r2), rtol=5e-2, atol=5e-2)
    np.testing.assert_allclose(np.asarray(ychain), np.asarray(rchain), rtol=1e-3, atol=1e-3)
    assert y1.shape == (2, 4, 16, 16) and y2.shape == (2, 8, 8, 8)
    assert ychain.shape == (2, 8, 8, 8)

    print("KERNEL_OK")
</pallas_src>

<mosaic_0001>
module attributes {stable_mosaic.version = 11 : i64} {
  func.func @_basic_block_kernel(%arg0: i32, %arg1: memref<1x1x18x18x128xf32, #tpu.memory_space<vmem>>, %arg2: memref<1152x128xf32, #tpu.memory_space<vmem>>, %arg3: memref<1x128xf32, #tpu.memory_space<vmem>>, %arg4: memref<1152x128xf32, #tpu.memory_space<vmem>>, %arg5: memref<1x128xf32, #tpu.memory_space<vmem>>, %arg6: memref<1x16x16x128xf32, #tpu.memory_space<vmem>>, %arg7: memref<1x18x18x128xf32, #tpu.memory_space<vmem>>) attributes {dimension_semantics = [#tpu.dimension_semantics<parallel>], iteration_bounds = array<i64: 2>, scalar_prefetch = 0 : i64, scratch_operands = 1 : i64, tpu.core_type = #tpu.core_type<tc>, window_params = [{transform_indices = @transform_0, window_bounds = array<i64: 1, 1, 18, 18, 128>}, {pipeline_mode = #tpu.pipeline_mode<synchronous>, transform_indices = @transform_1, window_bounds = array<i64: 1152, 128>}, {pipeline_mode = #tpu.pipeline_mode<synchronous>, transform_indices = @transform_2, window_bounds = array<i64: 1, 128>}, {pipeline_mode = #tpu.pipeline_mode<synchronous>, transform_indices = @transform_3, window_bounds = array<i64: 1152, 128>}, {pipeline_mode = #tpu.pipeline_mode<synchronous>, transform_indices = @transform_4, window_bounds = array<i64: 1, 128>}, {transform_indices = @transform_5, window_bounds = array<i64: 1, 16, 16, 128>}]} {
    %cst = arith.constant 0.000000e+00 : f32
    %0 = vector.broadcast %cst : f32 to vector<256x128xf32>
    %c0 = arith.constant 0 : index
    %c0_0 = arith.constant 0 : index
    %c0_1 = arith.constant 0 : index
    %c0_2 = arith.constant 0 : index
    %c0_3 = arith.constant 0 : index
    %1 = vector.load %arg1[%c0, %c0_0, %c0_1, %c0_2, %c0_3] : memref<1x1x18x18x128xf32, #tpu.memory_space<vmem>>, vector<1x1x16x16x128xf32>
    %2 = vector.shape_cast %1 : vector<1x1x16x16x128xf32> to vector<1x16x16x128xf32>
    %3 = vector.shape_cast %2 : vector<1x16x16x128xf32> to vector<256x128xf32>
    %c0_4 = arith.constant 0 : index
    %c0_5 = arith.constant 0 : index
    %4 = vector.load %arg2[%c0_4, %c0_5] : memref<1152x128xf32, #tpu.memory_space<vmem>>, vector<128x128xf32>
    %cst_6 = arith.constant dense<0.000000e+00> : vector<256x128xf32>
    %5 = tpu.matmul %3, %4, %cst_6 {dimension_numbers = #tpu.dot_dimension_numbers<[1], [0], [0], [1], [0, 0, 1, 1], [], []>} : vector<256x128xf32>, vector<128x128xf32>, vector<256x128xf32> -> vector<256x128xf32>
    %6 = arith.addf %0, %5 : vector<256x128xf32>
    %c0_7 = arith.constant 0 : index
    %c0_8 = arith.constant 0 : index
    %c0_9 = arith.constant 0 : index
    %c1 = arith.constant 1 : index
    %c0_10 = arith.constant 0 : index
    %7 = vector.load %arg1[%c0_7, %c0_8, %c0_9, %c1, %c0_10] : memref<1x1x18x18x128xf32, #tpu.memory_space<vmem>>, vector<1x1x16x16x128xf32>
    %8 = vector.shape_cast %7 : vector<1x1x16x16x128xf32> to vector<1x16x16x128xf32>
    %9 = vector.shape_cast %8 : vector<1x16x16x128xf32> to vector<256x128xf32>
    %c128 = arith.constant 128 : index
    %c0_11 = arith.constant 0 : index
    %10 = vector.load %arg2[%c128, %c0_11] : memref<1152x128xf32, #tpu.memory_space<vmem>>, vector<128x128xf32>
    %cst_12 = arith.constant dense<0.000000e+00> : vector<256x128xf32>
    %11 = tpu.matmul %9, %10, %cst_12 {dimension_numbers = #tpu.dot_dimension_numbers<[1], [0], [0], [1], [0, 0, 1, 1], [], []>} : vector<256x128xf32>, vector<128x128xf32>, vector<256x128xf32> -> vector<256x128xf32>
    %12 = arith.addf %6, %11 : vector<256x128xf32>
    %c0_13 = arith.constant 0 : index
    %c0_14 = arith.constant 0 : index
    %c0_15 = arith.constant 0 : index
    %c2 = arith.constant 2 : index
    %c0_16 = arith.constant 0 : index
    %13 = vector.load %arg1[%c0_13, %c0_14, %c0_15, %c2, %c0_16] : memref<1x1x18x18x128xf32, #tpu.memory_space<vmem>>, vector<1x1x16x16x128xf32>
    %14 = vector.shape_cast %13 : vector<1x1x16x16x128xf32> to vector<1x16x16x128xf32>
    %15 = vector.shape_cast %14 : vector<1x16x16x128xf32> to vector<256x128xf32>
    %c256 = arith.constant 256 : index
    %c0_17 = arith.constant 0 : index
    %16 = vector.load %arg2[%c256, %c0_17] : memref<1152x128xf32, #tpu.memory_space<vmem>>, vector<128x128xf32>
    %cst_18 = arith.constant dense<0.000000e+00> : vector<256x128xf32>
    %17 = tpu.matmul %15, %16, %cst_18 {dimension_numbers = #tpu.dot_dimension_numbers<[1], [0], [0], [1], [0, 0, 1, 1], [], []>} : vector<256x128xf32>, vector<128x128xf32>, vector<256x128xf32> -> vector<256x128xf32>
    %18 = arith.addf %12, %17 : vector<256x128xf32>
    %c0_19 = arith.constant 0 : index
    %c0_20 = arith.constant 0 : index
    %c1_21 = arith.constant 1 : index
    %c0_22 = arith.constant 0 : index
    %c0_23 = arith.constant 0 : index
    %19 = vector.load %arg1[%c0_19, %c0_20, %c1_21, %c0_22, %c0_23] : memref<1x1x18x18x128xf32, #tpu.memory_space<vmem>>, vector<1x1x16x16x128xf32>
    %20 = vector.shape_cast %19 : vector<1x1x16x16x128xf32> to vector<1x16x16x128xf32>
    %21 = vector.shape_cast %20 : vector<1x16x16x128xf32> to vector<256x128xf32>
    %c384 = arith.constant 384 : index
    %c0_24 = arith.constant 0 : index
    %22 = vector.load %arg2[%c384, %c0_24] : memref<1152x128xf32, #tpu.memory_space<vmem>>, vector<128x128xf32>
    %cst_25 = arith.constant dense<0.000000e+00> : vector<256x128xf32>
    %23 = tpu.matmul %21, %22, %cst_25 {dimension_numbers = #tpu.dot_dimension_numbers<[1], [0], [0], [1], [0, 0, 1, 1], [], []>} : vector<256x128xf32>, vector<128x128xf32>, vector<256x128xf32> -> vector<256x128xf32>
    %24 = arith.addf %18, %23 : vector<256x128xf32>
    %c0_26 = arith.constant 0 : index
    %c0_27 = arith.constant 0 : index
    %c1_28 = arith.constant 1 : index
    %c1_29 = arith.constant 1 : index
    %c0_30 = arith.constant 0 : index
    %25 = vector.load %arg1[%c0_26, %c0_27, %c1_28, %c1_29, %c0_30] : memref<1x1x18x18x128xf32, #tpu.memory_space<vmem>>, vector<1x1x16x16x128xf32>
    %26 = vector.shape_cast %25 : vector<1x1x16x16x128xf32> to vector<1x16x16x128xf32>
    %27 = vector.shape_cast %26 : vector<1x16x16x128xf32> to vector<256x128xf32>
    %c512 = arith.constant 512 : index
    %c0_31 = arith.constant 0 : index
    %28 = vector.load %arg2[%c512, %c0_31] : memref<1152x128xf32, #tpu.memory_space<vmem>>, vector<128x128xf32>
    %cst_32 = arith.constant dense<0.000000e+00> : vector<256x128xf32>
    %29 = tpu.matmul %27, %28, %cst_32 {dimension_numbers = #tpu.dot_dimension_numbers<[1], [0], [0], [1], [0, 0, 1, 1], [], []>} : vector<256x128xf32>, vector<128x128xf32>, vector<256x128xf32> -> vector<256x128xf32>
    %30 = arith.addf %24, %29 : vector<256x128xf32>
    %c0_33 = arith.constant 0 : index
    %c0_34 = arith.constant 0 : index
    %c1_35 = arith.constant 1 : index
    %c2_36 = arith.constant 2 : index
    %c0_37 = arith.constant 0 : index
    %31 = vector.load %arg1[%c0_33, %c0_34, %c1_35, %c2_36, %c0_37] : memref<1x1x18x18x128xf32, #tpu.memory_space<vmem>>, vector<1x1x16x16x128xf32>
    %32 = vector.shape_cast %31 : vector<1x1x16x16x128xf32> to vector<1x16x16x128xf32>
    %33 = vector.shape_cast %32 : vector<1x16x16x128xf32> to vector<256x128xf32>
    %c640 = arith.constant 640 : index
    %c0_38 = arith.constant 0 : index
    %34 = vector.load %arg2[%c640, %c0_38] : memref<1152x128xf32, #tpu.memory_space<vmem>>, vector<128x128xf32>
    %cst_39 = arith.constant dense<0.000000e+00> : vector<256x128xf32>
    %35 = tpu.matmul %33, %34, %cst_39 {dimension_numbers = #tpu.dot_dimension_numbers<[1], [0], [0], [1], [0, 0, 1, 1], [], []>} : vector<256x128xf32>, vector<128x128xf32>, vector<256x128xf32> -> vector<256x128xf32>
    %36 = arith.addf %30, %35 : vector<256x128xf32>
    %c0_40 = arith.constant 0 : index
    %c0_41 = arith.constant 0 : index
    %c2_42 = arith.constant 2 : index
    %c0_43 = arith.constant 0 : index
    %c0_44 = arith.constant 0 : index
    %37 = vector.load %arg1[%c0_40, %c0_41, %c2_42, %c0_43, %c0_44] : memref<1x1x18x18x128xf32, #tpu.memory_space<vmem>>, vector<1x1x16x16x128xf32>
    %38 = vector.shape_cast %37 : vector<1x1x16x16x128xf32> to vector<1x16x16x128xf32>
    %39 = vector.shape_cast %38 : vector<1x16x16x128xf32> to vector<256x128xf32>
    %c768 = arith.constant 768 : index
    %c0_45 = arith.constant 0 : index
    %40 = vector.load %arg2[%c768, %c0_45] : memref<1152x128xf32, #tpu.memory_space<vmem>>, vector<128x128xf32>
    %cst_46 = arith.constant dense<0.000000e+00> : vector<256x128xf32>
    %41 = tpu.matmul %39, %40, %cst_46 {dimension_numbers = #tpu.dot_dimension_numbers<[1], [0], [0], [1], [0, 0, 1, 1], [], []>} : vector<256x128xf32>, vector<128x128xf32>, vector<256x128xf32> -> vector<256x128xf32>
    %42 = arith.addf %36, %41 : vector<256x128xf32>
    %c0_47 = arith.constant 0 : index
    %c0_48 = arith.constant 0 : index
    %c2_49 = arith.constant 2 : index
    %c1_50 = arith.constant 1 : index
    %c0_51 = arith.constant 0 : index
    %43 = vector.load %arg1[%c0_47, %c0_48, %c2_49, %c1_50, %c0_51] : memref<1x1x18x18x128xf32, #tpu.memory_space<vmem>>, vector<1x1x16x16x128xf32>
    %44 = vector.shape_cast %43 : vector<1x1x16x16x128xf32> to vector<1x16x16x128xf32>
    %45 = vector.shape_cast %44 : vector<1x16x16x128xf32> to vector<256x128xf32>
    %c896 = arith.constant 896 : index
    %c0_52 = arith.constant 0 : index
    %46 = vector.load %arg2[%c896, %c0_52] : memref<1152x128xf32, #tpu.memory_space<vmem>>, vector<128x128xf32>
    %cst_53 = arith.constant dense<0.000000e+00> : vector<256x128xf32>
    %47 = tpu.matmul %45, %46, %cst_53 {dimension_numbers = #tpu.dot_dimension_numbers<[1], [0], [0], [1], [0, 0, 1, 1], [], []>} : vector<256x128xf32>, vector<128x128xf32>, vector<256x128xf32> -> vector<256x128xf32>
    %48 = arith.addf %42, %47 : vector<256x128xf32>
    %c0_54 = arith.constant 0 : index
    %c0_55 = arith.constant 0 : index
    %c2_56 = arith.constant 2 : index
    %c2_57 = arith.constant 2 : index
    %c0_58 = arith.constant 0 : index
    %49 = vector.load %arg1[%c0_54, %c0_55, %c2_56, %c2_57, %c0_58] : memref<1x1x18x18x128xf32, #tpu.memory_space<vmem>>, vector<1x1x16x16x128xf32>
    %50 = vector.shape_cast %49 : vector<1x1x16x16x128xf32> to vector<1x16x16x128xf32>
    %51 = vector.shape_cast %50 : vector<1x16x16x128xf32> to vector<256x128xf32>
    %c1024 = arith.constant 1024 : index
    %c0_59 = arith.constant 0 : index
    %52 = vector.load %arg2[%c1024, %c0_59] : memref<1152x128xf32, #tpu.memory_space<vmem>>, vector<128x128xf32>
    %cst_60 = arith.constant dense<0.000000e+00> : vector<256x128xf32>
    %53 = tpu.matmul %51, %52, %cst_60 {dimension_numbers = #tpu.dot_dimension_numbers<[1], [0], [0], [1], [0, 0, 1, 1], [], []>} : vector<256x128xf32>, vector<128x128xf32>, vector<256x128xf32> -> vector<256x128xf32>
    %54 = arith.addf %48, %53 : vector<256x128xf32>
    %c0_61 = arith.constant 0 : index
    %c0_62 = arith.constant 0 : index
    %55 = vector.load %arg3[%c0_61, %c0_62] : memref<1x128xf32, #tpu.memory_space<vmem>>, vector<1x128xf32>
    %56 = vector.broadcast %55 : vector<1x128xf32> to vector<256x128xf32>
    %57 = arith.addf %54, %56 : vector<256x128xf32>
    %cst_63 = arith.constant 0.000000e+00 : f32
    %58 = vector.broadcast %cst_63 : f32 to vector<256x128xf32>
    %59 = arith.maximumf %57, %58 : vector<256x128xf32>
    %c0_64 = arith.constant 0 : index
    %c0_65 = arith.constant 0 : index
    %c1_66 = arith.constant 1 : index
    %c1_67 = arith.constant 1 : index
    %c0_68 = arith.constant 0 : index
    %60 = vector.load %arg1[%c0_64, %c0_65, %c1_66, %c1_67, %c0_68] : memref<1x1x18x18x128xf32, #tpu.memory_space<vmem>>, vector<1x1x16x16x128xf32>
    %61 = vector.shape_cast %60 : vector<1x1x16x16x128xf32> to vector<1x16x16x128xf32>
    %62 = vector.shape_cast %61 : vector<1x16x16x128xf32> to vector<256x128xf32>
    %c0_69 = arith.constant 0 : index
    %c0_70 = arith.constant 0 : index
    %63 = vector.load %arg5[%c0_69, %c0_70] : memref<1x128xf32, #tpu.memory_space<vmem>>, vector<1x128xf32>
    %64 = vector.broadcast %63 : vector<1x128xf32> to vector<256x128xf32>
    %65 = arith.addf %62, %64 : vector<256x128xf32>
    %cst_71 = arith.constant 0.000000e+00 : f32
    %66 = vector.broadcast %cst_71 : f32 to vector<1x1x18x128xf32>
    %c0_72 = arith.constant 0 : index
    %c0_73 = arith.constant 0 : index
    %c0_74 = arith.constant 0 : index
    %c0_75 = arith.constant 0 : index
    %67 = vector.load %arg7[%c0_72, %c0_73, %c0_74, %c0_75] : memref<1x18x18x128xf32, #tpu.memory_space<vmem>>, vector<1x1x18x128xf32>
    tpu.vector_store %arg7[%c0_72, %c0_73, %c0_74, %c0_75], %66 {strides = array<i32>} : memref<1x18x18x128xf32, #tpu.memory_space<vmem>>, vector<1x1x18x128xf32>,
    %cst_76 = arith.constant 0.000000e+00 : f32
    %68 = vector.broadcast %cst_76 : f32 to vector<1x1x18x128xf32>
    %c0_77 = arith.constant 0 : index
    %c17 = arith.constant 17 : index
    %c0_78 = arith.constant 0 : index
    %c0_79 = arith.constant 0 : index
    %69 = vector.load %arg7[%c0_77, %c17, %c0_78, %c0_79] : memref<1x18x18x128xf32, #tpu.memory_space<vmem>>, vector<1x1x18x128xf32>
    tpu.vector_store %arg7[%c0_77, %c17, %c0_78, %c0_79], %68 {strides = array<i32>} : memref<1x18x18x128xf32, #tpu.memory_space<vmem>>, vector<1x1x18x128xf32>,
    %cst_80 = arith.constant 0.000000e+00 : f32
    %70 = vector.broadcast %cst_80 : f32 to vector<1x18x1x128xf32>
    %c0_81 = arith.constant 0 : index
    %c0_82 = arith.constant 0 : index
    %c0_83 = arith.constant 0 : index
    %c0_84 = arith.constant 0 : index
    %71 = vector.load %arg7[%c0_81, %c0_82, %c0_83, %c0_84] : memref<1x18x18x128xf32, #tpu.memory_space<vmem>>, vector<1x18x1x128xf32>
    tpu.vector_store %arg7[%c0_81, %c0_82, %c0_83, %c0_84], %70 {strides = array<i32>} : memref<1x18x18x128xf32, #tpu.memory_space<vmem>>, vector<1x18x1x128xf32>,
    %cst_85 = arith.constant 0.000000e+00 : f32
    %72 = vector.broadcast %cst_85 : f32 to vector<1x18x1x128xf32>
    %c0_86 = arith.constant 0 : index
    %c0_87 = arith.constant 0 : index
    %c17_88 = arith.constant 17 : index
    %c0_89 = arith.constant 0 : index
    %73 = vector.load %arg7[%c0_86, %c0_87, %c17_88, %c0_89] : memref<1x18x18x128xf32, #tpu.memory_space<vmem>>, vector<1x18x1x128xf32>
    tpu.vector_store %arg7[%c0_86, %c0_87, %c17_88, %c0_89], %72 {strides = array<i32>} : memref<1x18x18x128xf32, #tpu.memory_space<vmem>>, vector<1x18x1x128xf32>,
    %74 = vector.shape_cast %59 : vector<256x128xf32> to vector<1x16x16x128xf32>
    %c0_90 = arith.constant 0 : index
    %c1_91 = arith.constant 1 : index
    %c1_92 = arith.constant 1 : index
    %c0_93 = arith.constant 0 : index
    %75 = vector.load %arg7[%c0_90, %c1_91, %c1_92, %c0_93] : memref<1x18x18x128xf32, #tpu.memory_space<vmem>>, vector<1x16x16x128xf32>
    tpu.vector_store %arg7[%c0_90, %c1_91, %c1_92, %c0_93], %74 {strides = array<i32>} : memref<1x18x18x128xf32, #tpu.memory_space<vmem>>, vector<1x16x16x128xf32>,
    %c0_94 = arith.constant 0 : index
    %c0_95 = arith.constant 0 : index
    %c0_96 = arith.constant 0 : index
    %c0_97 = arith.constant 0 : index
    %76 = vector.load %arg7[%c0_94, %c0_95, %c0_96, %c0_97] : memref<1x18x18x128xf32, #tpu.memory_space<vmem>>, vector<1x16x16x128xf32>
    %77 = vector.shape_cast %76 : vector<1x16x16x128xf32> to vector<256x128xf32>
    %c0_98 = arith.constant 0 : index
    %c0_99 = arith.constant 0 : index
    %78 = vector.load %arg4[%c0_98, %c0_99] : memref<1152x128xf32, #tpu.memory_space<vmem>>, vector<128x128xf32>
    %cst_100 = arith.constant dense<0.000000e+00> : vector<256x128xf32>
    %79 = tpu.matmul %77, %78, %cst_100 {dimension_numbers = #tpu.dot_dimension_numbers<[1], [0], [0], [1], [0, 0, 1, 1], [], []>} : vector<256x128xf32>, vector<128x128xf32>, vector<256x128xf32> -> vector<256x128xf32>
    %80 = arith.addf %65, %79 : vector<256x128xf32>
    %c0_101 = arith.constant 0 : index
    %c0_102 = arith.constant 0 : index
    %c1_103 = arith.constant 1 : index
    %c0_104 = arith.constant 0 : index
    %81 = vector.load %arg7[%c0_101, %c0_102, %c1_103, %c0_104] : memref<1x18x18x128xf32, #tpu.memory_space<vmem>>, vector<1x16x16x128xf32>
    %82 = vector.shape_cast %81 : vector<1x16x16x128xf32> to vector<256x128xf32>
    %c128_105 = arith.constant 128 : index
    %c0_106 = arith.constant 0 : index
    %83 = vector.load %arg4[%c128_105, %c0_106] : memref<1152x128xf32, #tpu.memory_space<vmem>>, vector<128x128xf32>
    %cst_107 = arith.constant dense<0.000000e+00> : vector<256x128xf32>
    %84 = tpu.matmul %82, %83, %cst_107 {dimension_numbers = #tpu.dot_dimension_numbers<[1], [0], [0], [1], [0, 0, 1, 1], [], []>} : vector<256x128xf32>, vector<128x128xf32>, vector<256x128xf32> -> vector<256x128xf32>
    %85 = arith.addf %80, %84 : vector<256x128xf32>
    %c0_108 = arith.constant 0 : index
    %c0_109 = arith.constant 0 : index
    %c2_110 = arith.constant 2 : index
    %c0_111 = arith.constant 0 : index
    %86 = vector.load %arg7[%c0_108, %c0_109, %c2_110, %c0_111] : memref<1x18x18x128xf32, #tpu.memory_space<vmem>>, vector<1x16x16x128xf32>
    %87 = vector.shape_cast %86 : vector<1x16x16x128xf32> to vector<256x128xf32>
    %c256_112 = arith.constant 256 : index
    %c0_113 = arith.constant 0 : index
    %88 = vector.load %arg4[%c256_112, %c0_113] : memref<1152x128xf32, #tpu.memory_space<vmem>>, vector<128x128xf32>
    %cst_114 = arith.constant dense<0.000000e+00> : vector<256x128xf32>
    %89 = tpu.matmul %87, %88, %cst_114 {dimension_numbers = #tpu.dot_dimension_numbers<[1], [0], [0], [1], [0, 0, 1, 1], [], []>} : vector<256x128xf32>, vector<128x128xf32>, vector<256x128xf32> -> vector<256x128xf32>
    %90 = arith.addf %85, %89 : vector<256x128xf32>
    %c0_115 = arith.constant 0 : index
    %c1_116 = arith.constant 1 : index
    %c0_117 = arith.constant 0 : index
    %c0_118 = arith.constant 0 : index
    %91 = vector.load %arg7[%c0_115, %c1_116, %c0_117, %c0_118] : memref<1x18x18x128xf32, #tpu.memory_space<vmem>>, vector<1x16x16x128xf32>
    %92 = vector.shape_cast %91 : vector<1x16x16x128xf32> to vector<256x128xf32>
    %c384_119 = arith.constant 384 : index
    %c0_120 = arith.constant 0 : index
    %93 = vector.load %arg4[%c384_119, %c0_120] : memref<1152x128xf32, #tpu.memory_space<vmem>>, vector<128x128xf32>
    %cst_121 = arith.constant dense<0.000000e+00> : vector<256x128xf32>
    %94 = tpu.matmul %92, %93, %cst_121 {dimension_numbers = #tpu.dot_dimension_numbers<[1], [0], [0], [1], [0, 0, 1, 1], [], []>} : vector<256x128xf32>, vector<128x128xf32>, vector<256x128xf32> -> vector<256x128xf32>
    %95 = arith.addf %90, %94 : vector<256x128xf32>
    %c0_122 = arith.constant 0 : index
    %c1_123 = arith.constant 1 : index
    %c1_124 = arith.constant 1 : index
    %c0_125 = arith.constant 0 : index
    %96 = vector.load %arg7[%c0_122, %c1_123, %c1_124, %c0_125] : memref<1x18x18x128xf32, #tpu.memory_space<vmem>>, vector<1x16x16x128xf32>
    %97 = vector.shape_cast %96 : vector<1x16x16x128xf32> to vector<256x128xf32>
    %c512_126 = arith.constant 512 : index
    %c0_127 = arith.constant 0 : index
    %98 = vector.load %arg4[%c512_126, %c0_127] : memref<1152x128xf32, #tpu.memory_space<vmem>>, vector<128x128xf32>
    %cst_128 = arith.constant dense<0.000000e+00> : vector<256x128xf32>
    %99 = tpu.matmul %97, %98, %cst_128 {dimension_numbers = #tpu.dot_dimension_numbers<[1], [0], [0], [1], [0, 0, 1, 1], [], []>} : vector<256x128xf32>, vector<128x128xf32>, vector<256x128xf32> -> vector<256x128xf32>
    %100 = arith.addf %95, %99 : vector<256x128xf32>
    %c0_129 = arith.constant 0 : index
    %c1_130 = arith.constant 1 : index
    %c2_131 = arith.constant 2 : index
    %c0_132 = arith.constant 0 : index
    %101 = vector.load %arg7[%c0_129, %c1_130, %c2_131, %c0_132] : memref<1x18x18x128xf32, #tpu.memory_space<vmem>>, vector<1x16x16x128xf32>
    %102 = vector.shape_cast %101 : vector<1x16x16x128xf32> to vector<256x128xf32>
    %c640_133 = arith.constant 640 : index
    %c0_134 = arith.constant 0 : index
    %103 = vector.load %arg4[%c640_133, %c0_134] : memref<1152x128xf32, #tpu.memory_space<vmem>>, vector<128x128xf32>
    %cst_135 = arith.constant dense<0.000000e+00> : vector<256x128xf32>
    %104 = tpu.matmul %102, %103, %cst_135 {dimension_numbers = #tpu.dot_dimension_numbers<[1], [0], [0], [1], [0, 0, 1, 1], [], []>} : vector<256x128xf32>, vector<128x128xf32>, vector<256x128xf32> -> vector<256x128xf32>
    %105 = arith.addf %100, %104 : vector<256x128xf32>
    %c0_136 = arith.constant 0 : index
    %c2_137 = arith.constant 2 : index
    %c0_138 = arith.constant 0 : index
    %c0_139 = arith.constant 0 : index
    %106 = vector.load %arg7[%c0_136, %c2_137, %c0_138, %c0_139] : memref<1x18x18x128xf32, #tpu.memory_space<vmem>>, vector<1x16x16x128xf32>
    %107 = vector.shape_cast %106 : vector<1x16x16x128xf32> to vector<256x128xf32>
    %c768_140 = arith.constant 768 : index
    %c0_141 = arith.constant 0 : index
    %108 = vector.load %arg4[%c768_140, %c0_141] : memref<1152x128xf32, #tpu.memory_space<vmem>>, vector<128x128xf32>
    %cst_142 = arith.constant dense<0.000000e+00> : vector<256x128xf32>
    %109 = tpu.matmul %107, %108, %cst_142 {dimension_numbers = #tpu.dot_dimension_numbers<[1], [0], [0], [1], [0, 0, 1, 1], [], []>} : vector<256x128xf32>, vector<128x128xf32>, vector<256x128xf32> -> vector<256x128xf32>
    %110 = arith.addf %105, %109 : vector<256x128xf32>
    %c0_143 = arith.constant 0 : index
    %c2_144 = arith.constant 2 : index
    %c1_145 = arith.constant 1 : index
    %c0_146 = arith.constant 0 : index
    %111 = vector.load %arg7[%c0_143, %c2_144, %c1_145, %c0_146] : memref<1x18x18x128xf32, #tpu.memory_space<vmem>>, vector<1x16x16x128xf32>
    %112 = vector.shape_cast %111 : vector<1x16x16x128xf32> to vector<256x128xf32>
    %c896_147 = arith.constant 896 : index
    %c0_148 = arith.constant 0 : index
    %113 = vector.load %arg4[%c896_147, %c0_148] : memref<1152x128xf32, #tpu.memory_space<vmem>>, vector<128x128xf32>
    %cst_149 = arith.constant dense<0.000000e+00> : vector<256x128xf32>
    %114 = tpu.matmul %112, %113, %cst_149 {dimension_numbers = #tpu.dot_dimension_numbers<[1], [0], [0], [1], [0, 0, 1, 1], [], []>} : vector<256x128xf32>, vector<128x128xf32>, vector<256x128xf32> -> vector<256x128xf32>
    %115 = arith.addf %110, %114 : vector<256x128xf32>
    %c0_150 = arith.constant 0 : index
    %c2_151 = arith.constant 2 : index
    %c2_152 = arith.constant 2 : index
    %c0_153 = arith.constant 0 : index
    %116 = vector.load %arg7[%c0_150, %c2_151, %c2_152, %c0_153] : memref<1x18x18x128xf32, #tpu.memory_space<vmem>>, vector<1x16x16x128xf32>
    %117 = vector.shape_cast %116 : vector<1x16x16x128xf32> to vector<256x128xf32>
    %c1024_154 = arith.constant 1024 : index
    %c0_155 = arith.constant 0 : index
    %118 = vector.load %arg4[%c1024_154, %c0_155] : memref<1152x128xf32, #tpu.memory_space<vmem>>, vector<128x128xf32>
    %cst_156 = arith.constant dense<0.000000e+00> : vector<256x128xf32>
    %119 = tpu.matmul %117, %118, %cst_156 {dimension_numbers = #tpu.dot_dimension_numbers<[1], [0], [0], [1], [0, 0, 1, 1], [], []>} : vector<256x128xf32>, vector<128x128xf32>, vector<256x128xf32> -> vector<256x128xf32>
    %120 = arith.addf %115, %119 : vector<256x128xf32>
    %cst_157 = arith.constant 0.000000e+00 : f32
    %121 = vector.broadcast %cst_157 : f32 to vector<256x128xf32>
    %122 = arith.maximumf %120, %121 : vector<256x128xf32>
    %123 = vector.shape_cast %122 : vector<256x128xf32> to vector<1x16x16x128xf32>
    %c0_158 = arith.constant 0 : index
    %c0_159 = arith.constant 0 : index
    %c0_160 = arith.constant 0 : index
    %c0_161 = arith.constant 0 : index
    %124 = vector.load %arg6[%c0_158, %c0_159, %c0_160, %c0_161] : memref<1x16x16x128xf32, #tpu.memory_space<vmem>>, vector<1x16x16x128xf32>
    tpu.vector_store %arg6[%c0_158, %c0_159, %c0_160, %c0_161], %123 {strides = array<i32>} : memref<1x16x16x128xf32, #tpu.memory_space<vmem>>, vector<1x16x16x128xf32>,
    return
  }
  func.func @transform_0(%arg0: i32) -> (i32, i32, i32, i32, i32) {
    %c0_i32 = arith.constant 0 : i32
    %c0_i32_0 = arith.constant 0 : i32
    %c0_i32_1 = arith.constant 0 : i32
    %c0_i32_2 = arith.constant 0 : i32
    %c0_i32_3 = arith.constant 0 : i32
    return %arg0, %c0_i32, %c0_i32_0, %c0_i32_1, %c0_i32_2 : i32, i32, i32, i32, i32
  }
  func.func @transform_1(%arg0: i32) -> (i32, i32) {
    %c0_i32 = arith.constant 0 : i32
    %c0_i32_0 = arith.constant 0 : i32
    %c0_i32_1 = arith.constant 0 : i32
    return %c0_i32, %c0_i32_0 : i32, i32
  }
  func.func @transform_2(%arg0: i32) -> (i32, i32) {
    %c0_i32 = arith.constant 0 : i32
    %c0_i32_0 = arith.constant 0 : i32
    %c0_i32_1 = arith.constant 0 : i32
    return %c0_i32, %c0_i32_0 : i32, i32
  }
  func.func @transform_3(%arg0: i32) -> (i32, i32) {
    %c0_i32 = arith.constant 0 : i32
    %c0_i32_0 = arith.constant 0 : i32
    %c0_i32_1 = arith.constant 0 : i32
    return %c0_i32, %c0_i32_0 : i32, i32
  }
  func.func @transform_4(%arg0: i32) -> (i32, i32) {
    %c0_i32 = arith.constant 0 : i32
    %c0_i32_0 = arith.constant 0 : i32
    %c0_i32_1 = arith.constant 0 : i32
    return %c0_i32, %c0_i32_0 : i32, i32
  }
  func.func @transform_5(%arg0: i32) -> (i32, i32, i32, i32) {
    %c0_i32 = arith.constant 0 : i32
    %c0_i32_0 = arith.constant 0 : i32
    %c0_i32_1 = arith.constant 0 : i32
    %c0_i32_2 = arith.constant 0 : i32
    return %arg0, %c0_i32, %c0_i32_0, %c0_i32_1 : i32, i32, i32, i32
  }
}

</mosaic_0001>

<llo_original>
// kernel: tpu_custom_call.1
$region0: #{tpu_custom_call.1}
  #allocation0 [shape = 'u32[]', space=smem, size = 0x4, offset = 0x4, fixed_abs, tag = 'smem constant byte address 0x4 - core index']
  #allocation1 [shape = 'u32[144,128]{1,0:T(1,128)}', space=vmem, size = 0x12000, scoped, tag = 'internal scratch']
  #allocation2 [shape = 'f32[1,18,18,128]{3,2,1,0:T(8,128)}', space=vmem, size = 0x36000, scoped, tag = 'scratch operand']
  %s0 = inlined_call_operand.vmem [shape: f32[2,1,18,18,128], index: 0, kind: input, shape index: {}]
  %s1 = inlined_call_operand.vmem [shape: f32[1152,128], index: 1, kind: input, shape index: {}]
  %s2 = inlined_call_operand.vmem [shape: f32[1,128], index: 2, kind: input, shape index: {}]
  %s3 = inlined_call_operand.hbm [shape: f32[1152,128], index: 3, kind: input, shape index: {}]
  %s4 = inlined_call_operand.vmem [shape: f32[1,128], index: 4, kind: input, shape index: {}]
  %s5 = inlined_call_operand.hbm [shape: f32[2,16,16,128], index: 5, kind: output, shape index: {}]
  %s6 = sld [smem:[#allocation0]]
  $region57: #{tpu_custom_call.1} parent=0
    _
  %s8 = ssub.s32 1, %s6
  %s9 = scalar_select 0, %s8, %s6
  $region1: #{tpu_custom_call.1} parent=0
    #allocation3 [shape = 'u8[589824]{0}', space=vmem, size = 0x90000, scoped, tag = 'input window, operand 3, single buffered']
    #allocation4 [shape = 's32[2]{0}', space=sflag, size = 0x8, scoped, tag = 'scoped memory for tpu_custom_call.1']
    #allocation5 [shape = 's32[2]{0}', space=sflag, size = 0x8, scoped, tag = 'scoped memory for tpu_custom_call.1']
    #allocation6 [shape = 'u8[262144]{0}', space=vmem, size = 0x40000, scoped, tag = 'output window, operand 0']
    %10 = vsyncpa [#allocation4], 0
    %11 = vsyncpa [#allocation5], 0
    %s12 = scalar_lea.sflag [#allocation5], 1
    %13 = vsyncpa %s12, 0
    loop: start=0, step=1, limit=4
    $region2: #{tpu_custom_call.1} parent=1 // loop_pre_header
      _
    $region3: #{tpu_custom_call.1} parent=1 // loop_header
      %s15 = sphi 0, %s19
      %p16 = scmp.ge.s32.totalorder %s15, 4
      %s25 = sphi 0, %s27
      %s28 = sphi 0, %s25
      %s29 = sphi 0, %s28
      %s45 = sphi 0, %s29
      %s49 = sphi 0, %s49
      %s51 = sphi 0, %s49
      %s52 = sphi 0, %s51
      %s66 = sphi 0, %s52
      %s70 = sphi 0, %s70
      %s72 = sphi 0, %s70
      %s73 = sphi 0, %s72
      %s87 = sphi 0, %s73
      %s91 = sphi 0, %s91
      %s93 = sphi 0, %s91
      %s94 = sphi 0, %s93
      %s108 = sphi 0, %s94
      %s112 = sphi 0, %s112
      %s114 = sphi 0, %s112
      %s115 = sphi 0, %s114
      %s129 = sphi 0, %s115
      %s135 = sphi 0, %s137
      %s138 = sphi 0, %s135
      %s139 = sphi 0, %s138
      %s155 = sphi 0, %s139
    $region4: #{tpu_custom_call.1} parent=1 // loop_header_branch
      %18 = sbr.rel (%p16) target = $region8
    $region5: #{tpu_custom_call.1} parent=1 // loop_body
      %s20 = ssub.s32 %s15, 1
      %s21 = ssub.s32 %s15, 2
      %s22 = sadd.s32 %s15, 1
      %s23 = ssub.s32 %s15, %s22
      %p24 = scmp.eq.s32.totalorder %s23, 0
      %s26 = sadd.s32 %s25, 1
      %s27 = scalar_select %p24, %s25, %s26
      %p30 = pneg %p24
      %p31 = scmp.eq.s32.totalorder %s15, 1
      %p32 = por %p30, %p31
      %p33 = scmp.ne.s32.totalorder %s25, %s28
      %p34 = scmp.eq.s32.totalorder %s15, 0
      %p35 = por %p33, %p34
      %p36 = scmp.ne.s32.totalorder %s25, %s28
      %p37 = scmp.eq.s32.totalorder %s20, 1
      %p38 = por %p36, %p37
      %p39 = scmp.ne.s32.totalorder %s28, %s29
      %p40 = scmp.eq.s32.totalorder %s20, 0
      %p41 = por %p39, %p40
      %p42 = scmp.ne.s32.totalorder %s28, %s29
      %p43 = scmp.eq.s32.totalorder %s21, 1
      %p44 = por %p42, %p43
      %p46 = scmp.ne.s32.totalorder %s29, %s45
      %p47 = scmp.eq.s32.totalorder %s21, 0
      %p48 = por %p46, %p47
      %s50 = sadd.s32 %s49, 1
      %p53 = scmp.eq.s32.totalorder %s15, 1
      %p54 = scmp.ne.s32.totalorder %s49, %s51
      %p55 = scmp.eq.s32.totalorder %s15, 0
      %p56 = por %p54, %p55
      %p57 = scmp.ne.s32.totalorder %s49, %s51
      %p58 = scmp.eq.s32.totalorder %s20, 1
      %p59 = por %p57, %p58
      %p60 = scmp.ne.s32.totalorder %s51, %s52
      %p61 = scmp.eq.s32.totalorder %s20, 0
      %p62 = por %p60, %p61
      %p63 = scmp.ne.s32.totalorder %s51, %s52
      %p64 = scmp.eq.s32.totalorder %s21, 1
      %p65 = por %p63, %p64
      %p67 = scmp.ne.s32.totalorder %s52, %s66
      %p68 = scmp.eq.s32.totalorder %s21, 0
      %p69 = por %p67, %p68
      %s71 = sadd.s32 %s70, 1
      %p74 = scmp.eq.s32.totalorder %s15, 1
      %p75 = scmp.ne.s32.totalorder %s70, %s72
      %p76 = scmp.eq.s32.totalorder %s15, 0
      %p77 = por %p75, %p76
      %p78 = scmp.ne.s32.totalorder %s70, %s72
      %p79 = scmp.eq.s32.totalorder %s20, 1
      %p80 = por %p78, %p79
      %p81 = scmp.ne.s32.totalorder %s72, %s73
      %p82 = scmp.eq.s32.totalorder %s20, 0
      %p83 = por %p81, %p82
      %p84 = scmp.ne.s32.totalorder %s72, %s73
      %p85 = scmp.eq.s32.totalorder %s21, 1
      %p86 = por %p84, %p85
      %p88 = scmp.ne.s32.totalorder %s73, %s87
      %p89 = scmp.eq.s32.totalorder %s21, 0
      %p90 = por %p88, %p89
      %s92 = sadd.s32 %s91, 1
      %p95 = scmp.eq.s32.totalorder %s15, 1
      %p96 = scmp.ne.s32.totalorder %s91, %s93
      %p97 = scmp.eq.s32.totalorder %s15, 0
      %p98 = por %p96, %p97
      %p99 = scmp.ne.s32.totalorder %s91, %s93
      %p100 = scmp.eq.s32.totalorder %s20, 1
      %p101 = por %p99, %p100
      %p102 = scmp.ne.s32.totalorder %s93, %s94
      %p103 = scmp.eq.s32.totalorder %s20, 0
      %p104 = por %p102, %p103
      %p105 = scmp.ne.s32.totalorder %s93, %s94
      %p106 = scmp.eq.s32.totalorder %s21, 1
      %p107 = por %p105, %p106
      %p109 = scmp.ne.s32.totalorder %s94, %s108
      %p110 = scmp.eq.s32.totalorder %s21, 0
      %p111 = por %p109, %p110
      %s113 = sadd.s32 %s112, 1
      %p116 = scmp.eq.s32.totalorder %s15, 1
      %p117 = scmp.ne.s32.totalorder %s112, %s114
      %p118 = scmp.eq.s32.totalorder %s15, 0
      %p119 = por %p117, %p118
      %p120 = scmp.ne.s32.totalorder %s112, %s114
      %p121 = scmp.eq.s32.totalorder %s20, 1
      %p122 = por %p120, %p121
      %p123 = scmp.ne.s32.totalorder %s114, %s115
      %p124 = scmp.eq.s32.totalorder %s20, 0
      %p125 = por %p123, %p124
      %p126 = scmp.ne.s32.totalorder %s114, %s115
      %p127 = scmp.eq.s32.totalorder %s21, 1
      %p128 = por %p126, %p127
      %p130 = scmp.ne.s32.totalorder %s115, %s129
      %p131 = scmp.eq.s32.totalorder %s21, 0
      %p132 = por %p130, %p131
      %s133 = ssub.s32 %s15, %s22
      %p134 = scmp.eq.s32.totalorder %s133, 0
      %s136 = sadd.s32 %s135, 1
      %s137 = scalar_select %p134, %s135, %s136
      %p140 = pneg %p134
      %p141 = scmp.eq.s32.totalorder %s15, 1
      %p142 = por %p140, %p141
      %p143 = scmp.ne.s32.totalorder %s135, %s138
      %p144 = scmp.eq.s32.totalorder %s15, 0
      %p145 = por %p143, %p144
      %p146 = scmp.ne.s32.totalorder %s135, %s138
      %p147 = scmp.eq.s32.totalorder %s20, 1
      %p148 = por %p146, %p147
      %p149 = scmp.ne.s32.totalorder %s138, %s139
      %p150 = scmp.eq.s32.totalorder %s20, 0
      %p151 = por %p149, %p150
      %p152 = scmp.ne.s32.totalorder %s138, %s139
      %p153 = scmp.eq.s32.totalorder %s21, 1
      %p154 = por %p152, %p153
      %p156 = scmp.ne.s32.totalorder %s139, %s155
      %p157 = scmp.eq.s32.totalorder %s21, 0
      %p158 = por %p156, %p157
      %p159 = scmp.le.s32.totalorder 1, %s15
      %p160 = scmp.lt.s32.totalorder %s15, 3
      %p161 = pnand %p159, %p160
      %p162 = pneg %p161
      // Predicated region
      $region9: #{tpu_custom_call.1} parent=5 // pred_check
        _
      $region10: #{tpu_custom_call.1} parent=5 // pred_check_branch
        %164 = sbr.rel (%p161) target = $region12
      $region11: #{tpu_custom_call.1} parent=5 // pred_region
        %s165 = ssub.s32 %s15, 1
        // Predicated region
        $region13: #{tpu_custom_call.1} parent=11 // pred_check
          %p166 = pneg %p62
        $region14: #{tpu_custom_call.1} parent=11 // pred_check_branch
          %168 = sbr.rel (%p166) target = $region16
        $region15: #{tpu_custom_call.1} parent=11 // pred_region
          _
        $region16: #{tpu_custom_call.1} parent=11 // pred_fallthru
          _
        // Predicated region
        $region17: #{tpu_custom_call.1} parent=11 // pred_check
          %p169 = pneg %p83
        $region18: #{tpu_custom_call.1} parent=11 // pred_check_branch
          %171 = sbr.rel (%p169) target = $region20
        $region19: #{tpu_custom_call.1} parent=11 // pred_region
          _
        $region20: #{tpu_custom_call.1} parent=11 // pred_fallthru
          _
        // Predicated region
        $region21: #{tpu_custom_call.1} parent=11 // pred_check
          %p172 = pneg %p104
        $region22: #{tpu_custom_call.1} parent=11 // pred_check_branch
          %174 = sbr.rel (%p172) target = $region24
        $region23: #{tpu_custom_call.1} parent=11 // pred_region
          %s176 = ssub.s32 18432, 18432
          %177 = vsyncadd [#allocation4], %s176
          %s178 = sshll.u32 [#allocation3], 4
          %s179 = int_to_ptr.vmem [resolvable:$true] %s178
          %184 = dma.hbm_to_vmem [thread:$0]  %s3, 18432, %s179, [#allocation4], 128, 128, 8
        $region24: #{tpu_custom_call.1} parent=11 // pred_fallthru
          _
        // Predicated region
        $region25: #{tpu_custom_call.1} parent=11 // pred_check
          %p185 = pneg %p125
        $region26: #{tpu_custom_call.1} parent=11 // pred_check_branch
          %187 = sbr.rel (%p185) target = $region28
        $region27: #{tpu_custom_call.1} parent=11 // pred_region
          _
        $region28: #{tpu_custom_call.1} parent=11 // pred_fallthru
          _
      $region12: #{tpu_custom_call.1} parent=5 // pred_fallthru
        _
      %p188 = scmp.lt.s32.totalorder %s15, 2
      // Predicated region
      $region29: #{tpu_custom_call.1} parent=5 // pred_check
        %p189 = pneg %p188
      $region30: #{tpu_custom_call.1} parent=5 // pred_check_branch
        %191 = sbr.rel (%p189) target = $region32
      $region31: #{tpu_custom_call.1} parent=5 // pred_region
        // Predicated region
        $region33: #{tpu_custom_call.1} parent=31 // pred_check
          %p192 = pneg %p35
        $region34: #{tpu_custom_call.1} parent=31 // pred_check_branch
          %194 = sbr.rel (%p192) target = $region36
        $region35: #{tpu_custom_call.1} parent=31 // pred_region
          %p195 = scmp.lt.s32.totalorder %s15, 1
          %s196 = scalar_select %p195, %s15, 1
          %s197 = smul.addr %s196, 54
          %s198 = smul.addr %s197, 8
          %s199 = scalar_lea.vmem %s0, %s198
        $region36: #{tpu_custom_call.1} parent=31 // pred_fallthru
          _
      $region32: #{tpu_custom_call.1} parent=5 // pred_fallthru
        _
      %p200 = scmp.le.s32.totalorder 1, %s15
      %p201 = scmp.lt.s32.totalorder %s15, 3
      %p202 = pnand %p200, %p201
      %p203 = pneg %p202
      // Predicated region
      $region37: #{tpu_custom_call.1} parent=5 // pred_check
        _
      $region38: #{tpu_custom_call.1} parent=5 // pred_check_branch
        %205 = sbr.rel (%p202) target = $region40
      $region39: #{tpu_custom_call.1} parent=5 // pred_region
        %s206 = ssub.s32 %s15, 1
        // Predicated region
        $region41: #{tpu_custom_call.1} parent=39 // pred_check
          %p207 = pneg %p104
        $region42: #{tpu_custom_call.1} parent=39 // pred_check_branch
          %209 = sbr.rel (%p207) target = $region44
        $region43: #{tpu_custom_call.1} parent=39 // pred_region
          %210 = dma.done [#allocation4], 18432
        $region44: #{tpu_custom_call.1} parent=39 // pred_fallthru
          _
        %p211 = scmp.lt.s32.totalorder %s20, 1
        %s212 = scalar_select %p211, %s20, 1
        %s213 = smul.addr %s212, 54
        %s214 = smul.addr %s213, 8
        %s215 = scalar_lea.vmem %s0, %s214
        %p216 = pneg %p41
        %p217 = pneg %p38
        %p218 = pneg %p62
        %p219 = pneg %p59
        %p220 = pneg %p83
        %p221 = pneg %p80
        %p222 = pneg %p104
        %p223 = pneg %p101
        %p224 = pneg %p125
        %p225 = pneg %p122
        %p226 = pneg %p151
        %p227 = pneg %p148
        %s228 = sand.u32 %s138, 1
        %s229 = scalar_lea.sflag [#allocation5], %s228
        %s230 = sand.u32 %s138, 1
        %s231 = smul.addr %s230, 256
        %s232 = scalar_lea.vmem [#allocation6], %s231
        %p233 = scmp.lt.s32.totalorder %s20, 1
        %s234 = scalar_select %p233, %s20, 1
        %s235 = smul.addr %s234, 54
        %s236 = smul.addr %s235, 8
        %s237 = scalar_lea.vmem %s0, %s236
        %v238 = vld [vmem:[%s237] sm:$0xff]
        %v239 = vld [vmem:[%s237 + $0x8] sm:$0xff]
        %v240 = vld [vmem:[%s237 + $0x18] sm:$0xff]
        %v241 = vld [vmem:[%s237 + $0x20] sm:$0xff]
        %v242 = vld [vmem:[%s237 + $0x30] sm:$0xff]
        %v243 = vld [vmem:[%s237 + $0x38] sm:$0xff]
        %v244 = vld [vmem:[%s237 + $0x48] sm:$0xff]
        %v245 = vld [vmem:[%s237 + $0x50] sm:$0xff]
        %v246 = vld [vmem:[%s237 + $0x60] sm:$0xff]
        %v247 = vld [vmem:[%s237 + $0x68] sm:$0xff]
        %v248 = vld [vmem:[%s237 + $0x78] sm:$0xff]
        %v249 = vld [vmem:[%s237 + $0x80] sm:$0xff]
        %v250 = vld [vmem:[%s237 + $0x90] sm:$0xff]
        %v251 = vld [vmem:[%s237 + $0x98] sm:$0xff]
        %v252 = vld [vmem:[%s237 + $0xa8] sm:$0xff]
        %v253 = vld [vmem:[%s237 + $0xb0] sm:$0xff]
        %v254 = vld [vmem:[%s237 + $0xc0] sm:$0xff]
        %v255 = vld [vmem:[%s237 + $0xc8] sm:$0xff]
        %v256 = vld [vmem:[%s237 + $0xd8] sm:$0xff]
        %v257 = vld [vmem:[%s237 + $0xe0] sm:$0xff]
        %v258 = vld [vmem:[%s237 + $0xf0] sm:$0xff]
        %v259 = vld [vmem:[%s237 + $0xf8] sm:$0xff]
        %v260 = vld [vmem:[%s237 + $0x108] sm:$0xff]
        %v261 = vld [vmem:[%s237 + $0x110] sm:$0xff]
        %v262 = vld [vmem:[%s237 + $0x120] sm:$0xff]
        %v263 = vld [vmem:[%s237 + $0x128] sm:$0xff]
        %v264 = vld [vmem:[%s237 + $0x138] sm:$0xff]
        %v265 = vld [vmem:[%s237 + $0x140] sm:$0xff]
        %v266 = vld [vmem:[%s237 + $0x150] sm:$0xff]
        %v267 = vld [vmem:[%s237 + $0x158] sm:$0xff]
        %v268 = vld [vmem:[%s237 + $0x168] sm:$0xff]
        %v269 = vld [vmem:[%s237 + $0x170] sm:$0xff]
        %v270 = vld [vmem:[%s1] sm:$0xff]
        %v271 = vld [vmem:[%s1 + $0x8] sm:$0xff]
        %v272 = vld [vmem:[%s1 + $0x10] sm:$0xff]
        %v273 = vld [vmem:[%s1 + $0x18] sm:$0xff]
        %v274 = vld [vmem:[%s1 + $0x20] sm:$0xff]
        %v275 = vld [vmem:[%s1 + $0x28] sm:$0xff]
        %v276 = vld [vmem:[%s1 + $0x30] sm:$0xff]
        %v277 = vld [vmem:[%s1 + $0x38] sm:$0xff]
        %v278 = vld [vmem:[%s1 + $0x40] sm:$0xff]
        %v279 = vld [vmem:[%s1 + $0x48] sm:$0xff]
        %v280 = vld [vmem:[%s1 + $0x50] sm:$0xff]
        %v281 = vld [vmem:[%s1 + $0x58] sm:$0xff]
        %v282 = vld [vmem:[%s1 + $0x60] sm:$0xff]
        %v283 = vld [vmem:[%s1 + $0x68] sm:$0xff]
        %v284 = vld [vmem:[%s1 + $0x70] sm:$0xff]
        %v285 = vld [vmem:[%s1 + $0x78] sm:$0xff]
        %v286 = vld [vmem:[%s237 + $0x1] sm:$0xff]
        %v287 = vld [vmem:[%s237 + $0x9] sm:$0xff]
        %v288 = vld [vmem:[%s237 + $0x19] sm:$0xff]
        %v289 = vld [vmem:[%s237 + $0x21] sm:$0xff]
        %v290 = vld [vmem:[%s237 + $0x31] sm:$0xff]
        %v291 = vld [vmem:[%s237 + $0x39] sm:$0xff]
        %v292 = vld [vmem:[%s237 + $0x49] sm:$0xff]
        %v293 = vld [vmem:[%s237 + $0x51] sm:$0xff]
        %v294 = vld [vmem:[%s237 + $0x61] sm:$0xff]
        %v295 = vld [vmem:[%s237 + $0x69] sm:$0xff]
        %v296 = vld [vmem:[%s237 + $0x79] sm:$0xff]
        %v297 = vld [vmem:[%s237 + $0x81] sm:$0xff]
        %v298 = vld [vmem:[%s237 + $0x91] sm:$0xff]
        %v299 = vld [vmem:[%s237 + $0x99] sm:$0xff]
        %v300 = vld [vmem:[%s237 + $0xa9] sm:$0xff]
        %v301 = vld [vmem:[%s237 + $0xb1] sm:$0xff]
        %v302 = vld [vmem:[%s237 + $0xc1] sm:$0xff]
        %v303 = vld [vmem:[%s237 + $0xc9] sm:$0xff]
        %v304 = vld [vmem:[%s237 + $0xd9] sm:$0xff]
        %v305 = vld [vmem:[%s237 + $0xe1] sm:$0xff]
        %v306 = vld [vmem:[%s237 + $0xf1] sm:$0xff]
        %v307 = vld [vmem:[%s237 + $0xf9] sm:$0xff]
        %v308 = vld [vmem:[%s237 + $0x109] sm:$0xff]
        %v309 = vld [vmem:[%s237 + $0x111] sm:$0xff]
        %v310 = vld [vmem:[%s237 + $0x121] sm:$0xff]
        %v311 = vld [vmem:[%s237 + $0x129] sm:$0xff]
        %v312 = vld [vmem:[%s237 + $0x139] sm:$0xff]
        %v313 = vld [vmem:[%s237 + $0x141] sm:$0xff]
        %v314 = vld [vmem:[%s237 + $0x151] sm:$0xff]
        %v315 = vld [vmem:[%s237 + $0x159] sm:$0xff]
        %v316 = vld [vmem:[%s237 + $0x169] sm:$0xff]
        %v317 = vld [vmem:[%s237 + $0x171] sm:$0xff]
        %v318 = vld [vmem:[%s1 + $0x80] sm:$0xff]
        %v319 = vld [vmem:[%s1 + $0x88] sm:$0xff]
        %v320 = vld [vmem:[%s1 + $0x90] sm:$0xff]
        %v321 = vld [vmem:[%s1 + $0x98] sm:$0xff]
        %v322 = vld [vmem:[%s1 + $0xa0] sm:$0xff]
        %v323 = vld [vmem:[%s1 + $0xa8] sm:$0xff]
        %v324 = vld [vmem:[%s1 + $0xb0] sm:$0xff]
        %v325 = vld [vmem:[%s1 + $0xb8] sm:$0xff]
        %v326 = vld [vmem:[%s1 + $0xc0] sm:$0xff]
        %v327 = vld [vmem:[%s1 + $0xc8] sm:$0xff]
        %v328 = vld [vmem:[%s1 + $0xd0] sm:$0xff]
        %v329 = vld [vmem:[%s1 + $0xd8] sm:$0xff]
        %v330 = vld [vmem:[%s1 + $0xe0] sm:$0xff]
        %v331 = vld [vmem:[%s1 + $0xe8] sm:$0xff]
        %v332 = vld [vmem:[%s1 + $0xf0] sm:$0xff]
        %v333 = vld [vmem:[%s1 + $0xf8] sm:$0xff]
        %334 = vmatprep.subr.mxu0 0.0
        %335 = vmatpush1.msra.mxu0 %v318
        %336 = vmatprep.subr.mxu0 0.0
        %337 = vmatpush1.msra.mxu0 %v319
        %338 = vmatprep.subr.mxu0 0.0
        %339 = vmatpush1.msra.mxu0 %v320
        %340 = vmatprep.subr.mxu0 0.0
        %341 = vmatpush1.msra.mxu0 %v321
        %342 = vmatprep.subr.mxu0 0.0
        %343 = vmatpush1.msra.mxu0 %v322
        %344 = vmatprep.subr.mxu0 0.0
        %345 = vmatpush1.msra.mxu0 %v323
        %346 = vmatprep.subr.mxu0 0.0
        %347 = vmatpush1.msra.mxu0 %v324
        %348 = vmatprep.subr.mxu0 0.0
        %349 = vmatpush1.msra.mxu0 %v325
        %350 = vmatprep.subr.mxu0 0.0
        %351 = vmatpush1.msra.mxu0 %v326
        %352 = vmatprep.subr.mxu0 0.0
        %353 = vmatpush1.msra.mxu0 %v327
        %354 = vmatprep.subr.mxu0 0.0
        %355 = vmatpush1.msra.mxu0 %v328
        %356 = vmatprep.subr.mxu0 0.0
        %357 = vmatpush1.msra.mxu0 %v329
        %358 = vmatprep.subr.mxu0 0.0
        %359 = vmatpush1.msra.mxu0 %v330
        %360 = vmatprep.subr.mxu0 0.0
        %361 = vmatpush1.msra.mxu0 %v331
        %362 = vmatprep.subr.mxu0 0.0
        %363 = vmatpush1.msra.mxu0 %v332
        %364 = vmatprep.subr.mxu0 0.0
        %365 = vmatpush1.msra.mxu0 %v333
        %366 = vmatprep.subr.mxu0 0.0
        %367 = vmatpush1.msra.mxu0 0.0
        %368 = vmatprep.subr.mxu0 0.0
        %369 = vmatpush1.msra.mxu0 0.0
        %370 = vmatprep.subr.mxu0 0.0
        %371 = vmatpush1.msra.mxu0 0.0
        %372 = vmatprep.subr.mxu0 0.0
        %373 = vmatpush1.msra.mxu0 0.0
        %374 = vmatprep.subr.mxu0 0.0
        %375 = vmatpush1.msra.mxu0 0.0
        %376 = vmatprep.subr.mxu0 0.0
        %377 = vmatpush1.msra.mxu0 0.0
        %378 = vmatprep.subr.mxu0 0.0
        %379 = vmatpush1.msra.mxu0 0.0
        %380 = vmatprep.subr.mxu0 0.0
        %381 = vmatpush1.msra.mxu0 0.0
        %382 = vmatprep.subr.mxu0 0.0
        %383 = vmatpush1.msra.mxu0 0.0
        %384 = vmatprep.subr.mxu0 0.0
        %385 = vmatpush1.msra.mxu0 0.0
        %386 = vmatprep.subr.mxu0 0.0
        %387 = vmatpush1.msra.mxu0 0.0
        %388 = vmatprep.subr.mxu0 0.0
        %389 = vmatpush1.msra.mxu0 0.0
        %390 = vmatprep.subr.mxu0 0.0
        %391 = vmatpush1.msra.mxu0 0.0
        %392 = vmatprep.subr.mxu0 0.0
        %393 = vmatpush1.msra.mxu0 0.0
        %394 = vmatprep.subr.mxu0 0.0
        %395 = vmatpush1.msra.mxu0 0.0
        %396 = vmatprep.subr.mxu0 0.0
        %397 = vmatpush1.msra.mxu0 0.0
        %398 = vmatprep.mubr.f32.mxu0 0.0
        %399 = vmatmul.mubr.f32.gmra.mrb[0].mxu0 %v286
        %v400 = vpop.f32.mrb[0].mxu0
        %v401 = vadd.f32 0.0, %v400
        %v402 = vpop.f32.mrb[0].mxu0
        %403 = vmatprep.mubr.f32.mxu0 0.0
        %404 = vmatmul.mubr.f32.gmra.mrb[0].mxu0 %v287
        %v405 = vpop.f32.mrb[0].mxu0
        %v406 = vadd.f32 0.0, %v405
        %v407 = vpop.f32.mrb[0].mxu0
        %408 = vmatprep.mubr.f32.mxu0 0.0
        %409 = vmatmul.mubr.f32.gmra.mrb[0].mxu0 %v288
        %v410 = vpop.f32.mrb[0].mxu0
        %v411 = vadd.f32 0.0, %v410
        %v412 = vpop.f32.mrb[0].mxu0
        %413 = vmatprep.mubr.f32.mxu0 0.0
        %414 = vmatmul.mubr.f32.gmra.mrb[0].mxu0 %v289
        %v415 = vpop.f32.mrb[0].mxu0
        %v416 = vadd.f32 0.0, %v415
        %v417 = vpop.f32.mrb[0].mxu0
        %418 = vmatprep.mubr.f32.mxu0 0.0
        %419 = vmatmul.mubr.f32.gmra.mrb[0].mxu0 %v290
        %v420 = vpop.f32.mrb[0].mxu0
        %v421 = vadd.f32 0.0, %v420
        %v422 = vpop.f32.mrb[0].mxu0
        %423 = vmatprep.mubr.f32.mxu0 0.0
        %424 = vmatmul.mubr.f32.gmra.mrb[0].mxu0 %v291
        %v425 = vpop.f32.mrb[0].mxu0
        %v426 = vadd.f32 0.0, %v425
        %v427 = vpop.f32.mrb[0].mxu0
        %428 = vmatprep.mubr.f32.mxu0 0.0
        %429 = vmatmul.mubr.f32.gmra.mrb[0].mxu0 %v292
        %v430 = vpop.f32.mrb[0].mxu0
        %v431 = vadd.f32 0.0, %v430
        %v432 = vpop.f32.mrb[0].mxu0
        %433 = vmatprep.mubr.f32.mxu0 0.0
        %434 = vmatmul.mubr.f32.gmra.mrb[0].mxu0 %v293
        %v435 = vpop.f32.mrb[0].mxu0
        %v436 = vadd.f32 0.0, %v435
        %v437 = vpop.f32.mrb[0].mxu0
        %438 = vmatprep.mubr.f32.mxu0 0.0
        %439 = vmatmul.mubr.f32.gmra.mrb[0].mxu0 %v294
        %v440 = vpop.f32.mrb[0].mxu0
        %v441 = vadd.f32 0.0, %v440
        %v442 = vpop.f32.mrb[0].mxu0
        %443 = vmatprep.mubr.f32.mxu0 0.0
        %444 = vmatmul.mubr.f32.gmra.mrb[0].mxu0 %v295
        %v445 = vpop.f32.mrb[0].mxu0
        %v446 = vadd.f32 0.0, %v445
        %v447 = vpop.f32.mrb[0].mxu0
        %448 = vmatprep.mubr.f32.mxu0 0.0
        %449 = vmatmul.mubr.f32.gmra.mrb[0].mxu0 %v296
        %v450 = vpop.f32.mrb[0].mxu0
        %v451 = vadd.f32 0.0, %v450
        %v452 = vpop.f32.mrb[0].mxu0
        %453 = vmatprep.mubr.f32.mxu0 0.0
        %454 = vmatmul.mubr.f32.gmra.mrb[0].mxu0 %v297
        %v455 = vpop.f32.mrb[0].mxu0
        %v456 = vadd.f32 0.0, %v455
        %v457 = vpop.f32.mrb[0].mxu0
        %458 = vmatprep.mubr.f32.mxu0 0.0
        %459 = vmatmul.mubr.f32.gmra.mrb[0].mxu0 %v298
        %v460 = vpop.f32.mrb[0].mxu0
        %v461 = vadd.f32 0.0, %v460
        %v462 = vpop.f32.mrb[0].mxu0
        %463 = vmatprep.mubr.f32.mxu0 0.0
        %464 = vmatmul.mubr.f32.gmra.mrb[0].mxu0 %v299
        %v465 = vpop.f32.mrb[0].mxu0
        %v466 = vadd.f32 0.0, %v465
        %v467 = vpop.f32.mrb[0].mxu0
        %468 = vmatprep.mubr.f32.mxu0 0.0
        %469 = vmatmul.mubr.f32.gmra.mrb[0].mxu0 %v300
        %v470 = vpop.f32.mrb[0].mxu0
        %v471 = vadd.f32 0.0, %v470
        %v472 = vpop.f32.mrb[0].mxu0
        %473 = vmatprep.mubr.f32.mxu0 0.0
        %474 = vmatmul.mubr.f32.gmra.mrb[0].mxu0 %v301
        %v475 = vpop.f32.mrb[0].mxu0
        %v476 = vadd.f32 0.0, %v475
        %v477 = vpop.f32.mrb[0].mxu0
        %478 = vmatprep.mubr.f32.mxu0 0.0
        %479 = vmatmul.mubr.f32.gmra.mrb[0].mxu0 %v302
        %v480 = vpop.f32.mrb[0].mxu0
        %v481 = vadd.f32 0.0, %v480
        %v482 = vpop.f32.mrb[0].mxu0
        %483 = vmatprep.mubr.f32.mxu0 0.0
        %484 = vmatmul.mubr.f32.gmra.mrb[0].mxu0 %v303
        %v485 = vpop.f32.mrb[0].mxu0
        %v486 = vadd.f32 0.0, %v485
        %v487 = vpop.f32.mrb[0].mxu0
        %488 = vmatprep.mubr.f32.mxu0 0.0
        %489 = vmatmul.mubr.f32.gmra.mrb[0].mxu0 %v304
        %v490 = vpop.f32.mrb[0].mxu0
        %v491 = vadd.f32 0.0, %v490
        %v492 = vpop.f32.mrb[0].mxu0
        %493 = vmatprep.mubr.f32.mxu0 0.0
        %494 = vmatmul.mubr.f32.gmra.mrb[0].mxu0 %v305
        %v495 = vpop.f32.mrb[0].mxu0
        %v496 = vadd.f32 0.0, %v495
        %v497 = vpop.f32.mrb[0].mxu0
        %498 = vmatprep.mubr.f32.mxu0 0.0
        %499 = vmatmul.mubr.f32.gmra.mrb[0].mxu0 %v306
        %v500 = vpop.f32.mrb[0].mxu0
        %v501 = vadd.f32 0.0, %v500
        %v502 = vpop.f32.mrb[0].mxu0
        %503 = vmatprep.mubr.f32.mxu0 0.0
        %504 = vmatmul.mubr.f32.gmra.mrb[0].mxu0 %v307
        %v505 = vpop.f32.mrb[0].mxu0
        %v506 = vadd.f32 0.0, %v505
        %v507 = vpop.f32.mrb[0].mxu0
        %508 = vmatprep.mubr.f32.mxu0 0.0
        %509 = vmatmul.mubr.f32.gmra.mrb[0].mxu0 %v308
        %v510 = vpop.f32.mrb[0].mxu0
        %v511 = vadd.f32 0.0, %v510
        %v512 = vpop.f32.mrb[0].mxu0
        %513 = vmatprep.mubr.f32.mxu0 0.0
        %514 = vmatmul.mubr.f32.gmra.mrb[0].mxu0 %v309
        %v515 = vpop.f32.mrb[0].mxu0
        %v516 = vadd.f32 0.0, %v515
        %v517 = vpop.f32.mrb[0].mxu0
        %518 = vmatprep.mubr.f32.mxu0 0.0
        %519 = vmatmul.mubr.f32.gmra.mrb[0].mxu0 %v310
        %v520 = vpop.f32.mrb[0].mxu0
        %v521 = vadd.f32 0.0, %v520
        %v522 = vpop.f32.mrb[0].mxu0
        %523 = vmatprep.mubr.f32.mxu0 0.0
        %524 = vmatmul.mubr.f32.gmra.mrb[0].mxu0 %v311
        %v525 = vpop.f32.mrb[0].mxu0
        %v526 = vadd.f32 0.0, %v525
        %v527 = vpop.f32.mrb[0].mxu0
        %528 = vmatprep.mubr.f32.mxu0 0.0
        %529 = vmatmul.mubr.f32.gmra.mrb[0].mxu0 %v312
        %v530 = vpop.f32.mrb[0].mxu0
        %v531 = vadd.f32 0.0, %v530
        %v532 = vpop.f32.mrb[0].mxu0
        %533 = vmatprep.mubr.f32.mxu0 0.0
        %534 = vmatmul.mubr.f32.gmra.mrb[0].mxu0 %v313
        %v535 = vpop.f32.mrb[0].mxu0
        %v536 = vadd.f32 0.0, %v535
        %v537 = vpop.f32.mrb[0].mxu0
        %538 = vmatprep.mubr.f32.mxu0 0.0
        %539 = vmatmul.mubr.f32.gmra.mrb[0].mxu0 %v314
        %v540 = vpop.f32.mrb[0].mxu0
        %v541 = vadd.f32 0.0, %v540
        %v542 = vpop.f32.mrb[0].mxu0
        %543 = vmatprep.mubr.f32.mxu0 0.0
        %544 = vmatmul.mubr.f32.gmra.mrb[0].mxu0 %v315
        %v545 = vpop.f32.mrb[0].mxu0
        %v546 = vadd.f32 0.0, %v545
        %v547 = vpop.f32.mrb[0].mxu0
        %548 = vmatprep.mubr.f32.mxu0 0.0
        %549 = vmatmul.mubr.f32.gmra.mrb[0].mxu0 %v316
        %v550 = vpop.f32.mrb[0].mxu0
        %v551 = vadd.f32 0.0, %v550
        %v552 = vpop.f32.mrb[0].mxu0
        %553 = vmatprep.mubr.f32.mxu0 0.0
        %554 = vmatmul.mubr.f32.gmra.mrb[0].mxu0 %v317
        %v555 = vpop.f32.mrb[0].mxu0
        %v556 = vadd.f32 0.0, %v555
        %v557 = vpop.f32.mrb[0].mxu0
        %558 = vdwg.mxu0
        %559 = vmatprep.subr.mxu0 0.0
        %560 = vmatpush1.msra.mxu0 %v270
        %561 = vmatprep.subr.mxu0 0.0
        %562 = vmatpush1.msra.mxu0 %v271
        %563 = vmatprep.subr.mxu0 0.0
        %564 = vmatpush1.msra.mxu0 %v272
        %565 = vmatprep.subr.mxu0 0.0
        %566 = vmatpush1.msra.mxu0 %v273
        %567 = vmatprep.subr.mxu0 0.0
        %568 = vmatpush1.msra.mxu0 %v274
        %569 = vmatprep.subr.mxu0 0.0
        %570 = vmatpush1.msra.mxu0 %v275
        %571 = vmatprep.subr.mxu0 0.0
        %572 = vmatpush1.msra.mxu0 %v276
        %573 = vmatprep.subr.mxu0 0.0
        %574 = vmatpush1.msra.mxu0 %v277
        %575 = vmatprep.subr.mxu0 0.0
        %576 = vmatpush1.msra.mxu0 %v278
        %577 = vmatprep.subr.mxu0 0.0
        %578 = vmatpush1.msra.mxu0 %v279
        %579 = vmatprep.subr.mxu0 0.0
        %580 = vmatpush1.msra.mxu0 %v280
        %581 = vmatprep.subr.mxu0 0.0
        %582 = vmatpush1.msra.mxu0 %v281
        %583 = vmatprep.subr.mxu0 0.0
        %584 = vmatpush1.msra.mxu0 %v282
        %585 = vmatprep.subr.mxu0 0.0
        %586 = vmatpush1.msra.mxu0 %v283
        %587 = vmatprep.subr.mxu0 0.0
        %588 = vmatpush1.msra.mxu0 %v284
        %589 = vmatprep.subr.mxu0 0.0
        %590 = vmatpush1.msra.mxu0 %v285
        %591 = vmatprep.subr.mxu0 0.0
        %592 = vmatpush1.msra.mxu0 0.0
        %593 = vmatprep.subr.mxu0 0.0
        %594 = vmatpush1.msra.mxu0 0.0
        %595 = vmatprep.subr.mxu0 0.0
        %596 = vmatpush1.msra.mxu0 0.0
        %597 = vmatprep.subr.mxu0 0.0
        %598 = vmatpush1.msra.mxu0 0.0
        %599 = vmatprep.subr.mxu0 0.0
        %600 = vmatpush1.msra.mxu0 0.0
        %601 = vmatprep.subr.mxu0 0.0
        %602 = vmatpush1.msra.mxu0 0.0
        %603 = vmatprep.subr.mxu0 0.0
        %604 = vmatpush1.msra.mxu0 0.0
        %605 = vmatprep.subr.mxu0 0.0
        %606 = vmatpush1.msra.mxu0 0.0
        %607 = vmatprep.subr.mxu0 0.0
        %608 = vmatpush1.msra.mxu0 0.0
        %609 = vmatprep.subr.mxu0 0.0
        %610 = vmatpush1.msra.mxu0 0.0
        %611 = vmatprep.subr.mxu0 0.0
        %612 = vmatpush1.msra.mxu0 0.0
        %613 = vmatprep.subr.mxu0 0.0
        %614 = vmatpush1.msra.mxu0 0.0
        %615 = vmatprep.subr.mxu0 0.0
        %616 = vmatpush1.msra.mxu0 0.0
        %617 = vmatprep.subr.mxu0 0.0
        %618 = vmatpush1.msra.mxu0 0.0
        %619 = vmatprep.subr.mxu0 0.0
        %620 = vmatpush1.msra.mxu0 0.0
        %621 = vmatprep.subr.mxu0 0.0
        %622 = vmatpush1.msra.mxu0 0.0
        %623 = vmatprep.mubr.f32.mxu0 0.0
        %624 = vmatmul.mubr.f32.gmra.mrb[0].mxu0 %v238
        %v625 = vpop.f32.mrb[0].mxu0
        %v626 = vadd.f32 %v401, %v625
        %v627 = vpop.f32.mrb[0].mxu0
        %628 = vmatprep.mubr.f32.mxu0 0.0
        %629 = vmatmul.mubr.f32.gmra.mrb[0].mxu0 %v239
        %v630 = vpop.f32.mrb[0].mxu0
        %v631 = vadd.f32 %v406, %v630
        %v632 = vpop.f32.mrb[0].mxu0
        %633 = vmatprep.mubr.f32.mxu0 0.0
        %634 = vmatmul.mubr.f32.gmra.mrb[0].mxu0 %v240
        %v635 = vpop.f32.mrb[0].mxu0
        %v636 = vadd.f32 %v411, %v635
        %v637 = vpop.f32.mrb[0].mxu0
        %638 = vmatprep.mubr.f32.mxu0 0.0
        %639 = vmatmul.mubr.f32.gmra.mrb[0].mxu0 %v241
        %v640 = vpop.f32.mrb[0].mxu0
        %v641 = vadd.f32 %v416, %v640
        %v642 = vpop.f32.mrb[0].mxu0
        %643 = vmatprep.mubr.f32.mxu0 0.0
        %644 = vmatmul.mubr.f32.gmra.mrb[0].mxu0 %v242
        %v645 = vpop.f32.mrb[0].mxu0
        %v646 = vadd.f32 %v421, %v645
        %v647 = vpop.f32.mrb[0].mxu0
        %648 = vmatprep.mubr.f32.mxu0 0.0
        %649 = vmatmul.mubr.f32.gmra.mrb[0].mxu0 %v243
        %v650 = vpop.f32.mrb[0].mxu0
        %v651 = vadd.f32 %v426, %v650
        %v652 = vpop.f32.mrb[0].mxu0
        %653 = vmatprep.mubr.f32.mxu0 0.0
        %654 = vmatmul.mubr.f32.gmra.mrb[0].mxu0 %v244
        %v655 = vpop.f32.mrb[0].mxu0
        %v656 = vadd.f32 %v431, %v655
        %v657 = vpop.f32.mrb[0].mxu0
        %658 = vmatprep.mubr.f32.mxu0 0.0
        %659 = vmatmul.mubr.f32.gmra.mrb[0].mxu0 %v245
        %v660 = vpop.f32.mrb[0].mxu0
        %v661 = vadd.f32 %v436, %v660
        %v662 = vpop.f32.mrb[0].mxu0
        %663 = vmatprep.mubr.f32.mxu0 0.0
        %664 = vmatmul.mubr.f32.gmra.mrb[0].mxu0 %v246
        %v665 = vpop.f32.mrb[0].mxu0
        %v666 = vadd.f32 %v441, %v665
        %v667 = vpop.f32.mrb[0].mxu0
        %668 = vmatprep.mubr.f32.mxu0 0.0
        %669 = vmatmul.mubr.f32.gmra.mrb[0].mxu0 %v247
        %v670 = vpop.f32.mrb[0].mxu0
        %v671 = vadd.f32 %v446, %v670
        %v672 = vpop.f32.mrb[0].mxu0
        %673 = vmatprep.mubr.f32.mxu0 0.0
        %674 = vmatmul.mubr.f32.gmra.mrb[0].mxu0 %v248
        %v675 = vpop.f32.mrb[0].mxu0
        %v676 = vadd.f32 %v451, %v675
        %v677 = vpop.f32.mrb[0].mxu0
        %678 = vmatprep.mubr.f32.mxu0 0.0
        %679 = vmatmul.mubr.f32.gmra.mrb[0].mxu0 %v249
        %v680 = vpop.f32.mrb[0].mxu0
        %v681 = vadd.f32 %v456, %v680
        %v682 = vpop.f32.mrb[0].mxu0
        %683 = vmatprep.mubr.f32.mxu0 0.0
        %684 = vmatmul.mubr.f32.gmra.mrb[0].mxu0 %v250
        %v685 = vpop.f32.mrb[0].mxu0
        %v686 = vadd.f32 %v461, %v685
        %v687 = vpop.f32.mrb[0].mxu0
        %688 = vmatprep.mubr.f32.mxu0 0.0
        %689 = vmatmul.mubr.f32.gmra.mrb[0].mxu0 %v251
        %v690 = vpop.f32.mrb[0].mxu0
        %v691 = vadd.f32 %v466, %v690
        %v692 = vpop.f32.mrb[0].mxu0
        %693 = vmatprep.mubr.f32.mxu0 0.0
        %694 = vmatmul.mubr.f32.gmra.mrb[0].mxu0 %v252
        %v695 = vpop.f32.mrb[0].mxu0
        %v696 = vadd.f32 %v471, %v695
        %v697 = vpop.f32.mrb[0].mxu0
        %698 = vmatprep.mubr.f32.mxu0 0.0
        %699 = vmatmul.mubr.f32.gmra.mrb[0].mxu0 %v253
        %v700 = vpop.f32.mrb[0].mxu0
        %v701 = vadd.f32 %v476, %v700
        %v702 = vpop.f32.mrb[0].mxu0
        %703 = vmatprep.mubr.f32.mxu0 0.0
        %704 = vmatmul.mubr.f32.gmra.mrb[0].mxu0 %v254
        %v705 = vpop.f32.mrb[0].mxu0
        %v706 = vadd.f32 %v481, %v705
        %v707 = vpop.f32.mrb[0].mxu0
        %708 = vmatprep.mubr.f32.mxu0 0.0
        %709 = vmatmul.mubr.f32.gmra.mrb[0].mxu0 %v255
        %v710 = vpop.f32.mrb[0].mxu0
        %v711 = vadd.f32 %v486, %v710
        %v712 = vpop.f32.mrb[0].mxu0
        %713 = vmatprep.mubr.f32.mxu0 0.0
        %714 = vmatmul.mubr.f32.gmra.mrb[0].mxu0 %v256
        %v715 = vpop.f32.mrb[0].mxu0
        %v716 = vadd.f32 %v491, %v715
        %v717 = vpop.f32.mrb[0].mxu0
        %718 = vmatprep.mubr.f32.mxu0 0.0
        %719 = vmatmul.mubr.f32.gmra.mrb[0].mxu0 %v257
        %v720 = vpop.f32.mrb[0].mxu0
        %v721 = vadd.f32 %v496, %v720
        %v722 = vpop.f32.mrb[0].mxu0
        %723 = vmatprep.mubr.f32.mxu0 0.0
        %724 = vmatmul.mubr.f32.gmra.mrb[0].mxu0 %v258
        %v725 = vpop.f32.mrb[0].mxu0
        %v726 = vadd.f32 %v501, %v725
        %v727 = vpop.f32.mrb[0].mxu0
        %728 = vmatprep.mubr.f32.mxu0 0.0
        %729 = vmatmul.mubr.f32.gmra.mrb[0].mxu0 %v259
        %v730 = vpop.f32.mrb[0].mxu0
        %v731 = vadd.f32 %v506, %v730
        %v732 = vpop.f32.mrb[0].mxu0
        %733 = vmatprep.mubr.f32.mxu0 0.0
        %734 = vmatmul.mubr.f32.gmra.mrb[0].mxu0 %v260
        %v735 = vpop.f32.mrb[0].mxu0
        %v736 = vadd.f32 %v511, %v735
        %v737 = vpop.f32.mrb[0].mxu0
        %738 = vmatprep.mubr.f32.mxu0 0.0
        %739 = vmatmul.mubr.f32.gmra.mrb[0].mxu0 %v261
        %v740 = vpop.f32.mrb[0].mxu0
        %v741 = vadd.f32 %v516, %v740
        %v742 = vpop.f32.mrb[0].mxu0
        %743 = vmatprep.mubr.f32.mxu0 0.0
        %744 = vmatmul.mubr.f32.gmra.mrb[0].mxu0 %v262
        %v745 = vpop.f32.mrb[0].mxu0
        %v746 = vadd.f32 %v521, %v745
        %v747 = vpop.f32.mrb[0].mxu0
        %748 = vmatprep.mubr.f32.mxu0 0.0
        %749 = vmatmul.mubr.f32.gmra.mrb[0].mxu0 %v263
        %v750 = vpop.f32.mrb[0].mxu0
        %v751 = vadd.f32 %v526, %v750
        %v752 = vpop.f32.mrb[0].mxu0
        %753 = vmatprep.mubr.f32.mxu0 0.0
        %754 = vmatmul.mubr.f32.gmra.mrb[0].mxu0 %v264
        %v755 = vpop.f32.mrb[0].mxu0
        %v756 = vadd.f32 %v531, %v755
        %v757 = vpop.f32.mrb[0].mxu0
        %758 = vmatprep.mubr.f32.mxu0 0.0
        %759 = vmatmul.mubr.f32.gmra.mrb[0].mxu0 %v265
        %v760 = vpop.f32.mrb[0].mxu0
        %v761 = vadd.f32 %v536, %v760
        %v762 = vpop.f32.mrb[0].mxu0
        %763 = vmatprep.mubr.f32.mxu0 0.0
        %764 = vmatmul.mubr.f32.gmra.mrb[0].mxu0 %v266
        %v765 = vpop.f32.mrb[0].mxu0
        %v766 = vadd.f32 %v541, %v765
        %v767 = vpop.f32.mrb[0].mxu0
        %768 = vmatprep.mubr.f32.mxu0 0.0
        %769 = vmatmul.mubr.f32.gmra.mrb[0].mxu0 %v267
        %v770 = vpop.f32.mrb[0].mxu0
        %v771 = vadd.f32 %v546, %v770
        %v772 = vpop.f32.mrb[0].mxu0
        %773 = vmatprep.mubr.f32.mxu0 0.0
        %774 = vmatmul.mubr.f32.gmra.mrb[0].mxu0 %v268
        %v775 = vpop.f32.mrb[0].mxu0
        %v776 = vadd.f32 %v551, %v775
        %v777 = vpop.f32.mrb[0].mxu0
        %778 = vmatprep.mubr.f32.mxu0 0.0
        %779 = vmatmul.mubr.f32.gmra.mrb[0].mxu0 %v269
        %v780 = vpop.f32.mrb[0].mxu0
        %v781 = vadd.f32 %v556, %v780
        %v782 = vpop.f32.mrb[0].mxu0
        %783 = vdwg.mxu0
        %v784 = vld [vmem:[%s237 + $0x2] sm:$0xff]
        %v785 = vld [vmem:[%s237 + $0xa] sm:$0xff]
        %v786 = vld [vmem:[%s237 + $0x1a] sm:$0xff]
        %v787 = vld [vmem:[%s237 + $0x22] sm:$0xff]
        %v788 = vld [vmem:[%s237 + $0x32] sm:$0xff]
        %v789 = vld [vmem:[%s237 + $0x3a] sm:$0xff]
        %v790 = vld [vmem:[%s237 + $0x4a] sm:$0xff]
        %v791 = vld [vmem:[%s237 + $0x52] sm:$0xff]
        %v792 = vld [vmem:[%s237 + $0x62] sm:$0xff]
        %v793 = vld [vmem:[%s237 + $0x6a] sm:$0xff]
        %v794 = vld [vmem:[%s237 + $0x7a] sm:$0xff]
        %v795 = vld [vmem:[%s237 + $0x82] sm:$0xff]
        %v796 = vld [vmem:[%s237 + $0x92] sm:$0xff]
        %v797 = vld [vmem:[%s237 + $0x9a] sm:$0xff]
        %v798 = vld [vmem:[%s237 + $0xaa] sm:$0xff]
        %v799 = vld [vmem:[%s237 + $0xb2] sm:$0xff]
        %v800 = vld [vmem:[%s237 + $0xc2] sm:$0xff]
        %v801 = vld [vmem:[%s237 + $0xca] sm:$0xff]
        %v802 = vld [vmem:[%s237 + $0xda] sm:$0xff]
        %v803 = vld [vmem:[%s237 + $0xe2] sm:$0xff]
        %v804 = vld [vmem:[%s237 + $0xf2] sm:$0xff]
        %v805 = vld [vmem:[%s237 + $0xfa] sm:$0xff]
        %v806 = vld [vmem:[%s237 + $0x10a] sm:$0xff]
        %v807 = vld [vmem:[%s237 + $0x112] sm:$0xff]
        %v808 = vld [vmem:[%s237 + $0x122] sm:$0xff]
        %v809 = vld [vmem:[%s237 + $0x12a] sm:$0xff]
        %v810 = vld [vmem:[%s237 + $0x13a] sm:$0xff]
        %v811 = vld [vmem:[%s237 + $0x142] sm:$0xff]
        %v812 = vld [vmem:[%s237 + $0x152] sm:$0xff]
        %v813 = vld [vmem:[%s237 + $0x15a] sm:$0xff]
        %v814 = vld [vmem:[%s237 + $0x16a] sm:$0xff]
        %v815 = vld [vmem:[%s237 + $0x172] sm:$0xff]
        %v816 = vld [vmem:[%s1 + $0x100] sm:$0xff]
        %v817 = vld [vmem:[%s1 + $0x108] sm:$0xff]
        %v818 = vld [vmem:[%s1 + $0x110] sm:$0xff]
        %v819 = vld [vmem:[%s1 + $0x118] sm:$0xff]
        %v820 = vld [vmem:[%s1 + $0x120] sm:$0xff]
        %v821 = vld [vmem:[%s1 + $0x128] sm:$0xff]
        %v822 = vld [vmem:[%s1 + $0x130] sm:$0xff]
        %v823 = vld [vmem:[%s1 + $0x138] sm:$0xff]
        %v824 = vld [vmem:[%s1 + $0x140] sm:$0xff]
        %v825 = vld [vmem:[%s1 + $0x148] sm:$0xff]
        %v826 = vld [vmem:[%s1 + $0x150] sm:$0xff]
        %v827 = vld [vmem:[%s1 + $0x158] sm:$0xff]
        %v828 = vld [vmem:[%s1 + $0x160] sm:$0xff]
        %v829 = vld [vmem:[%s1 + $0x168] sm:$0xff]
        %v830 = vld [vmem:[%s1 + $0x170] sm:$0xff]
        %v831 = vld [vmem:[%s1 + $0x178] sm:$0xff]
        %832 = vmatprep.subr.mxu0 0.0
        %833 = vmatpush1.msra.mxu0 %v816
        %834 = vmatprep.subr.mxu0 0.0
        %835 = vmatpush1.msra.mxu0 %v817
        %836 = vmatprep.subr.mxu0 0.0
        %837 = vmatpush1.msra.mxu0 %v818
        %838 = vmatprep.subr.mxu0 0.0
        %839 = vmatpush1.msra.mxu0 %v819
        %840 = vmatprep.subr.mxu0 0.0
        %841 = vmatpush1.msra.mxu0 %v820
        %842 = vmatprep.subr.mxu0 0.0
        %843 = vmatpush1.msra.mxu0 %v821
        %844 = vmatprep.subr.mxu0 0.0
        %845 = vmatpush1.msra.mxu0 %v822
        %846 = vmatprep.subr.mxu0 0.0
        %847 = vmatpush1.msra.mxu0 %v823
        %848 = vmatprep.subr.mxu0 0.0
        %849 = vmatpush1.msra.mxu0 %v824
        %850 = vmatprep.subr.mxu0 0.0
        %851 = vmatpush1.msra.mxu0 %v825
        %852 = vmatprep.subr.mxu0 0.0
        %853 = vmatpush1.msra.mxu0 %v826
        %854 = vmatprep.subr.mxu0 0.0
        %855 = vmatpush1.msra.mxu0 %v827
        %856 = vmatprep.subr.mxu0 0.0
        %857 = vmatpush1.msra.mxu0 %v828
        %858 = vmatprep.subr.mxu0 0.0
        %859 = vmatpush1.msra.mxu0 %v829
        %860 = vmatprep.subr.mxu0 0.0
        %861 = vmatpush1.msra.mxu0 %v830
        %862 = vmatprep.subr.mxu0 0.0
        %863 = vmatpush1.msra.mxu0 %v831
        %864 = vmatprep.subr.mxu0 0.0
        %865 = vmatpush1.msra.mxu0 0.0
        %866 = vmatprep.subr.mxu0 0.0
        %867 = vmatpush1.msra.mxu0 0.0
        %868 = vmatprep.subr.mxu0 0.0
        %869 = vmatpush1.msra.mxu0 0.0
        %870 = vmatprep.subr.mxu0 0.0
        %871 = vmatpush1.msra.mxu0 0.0
        %872 = vmatprep.subr.mxu0 0.0
        %873 = vmatpush1.msra.mxu0 0.0
        %874 = vmatprep.subr.mxu0 0.0
        %875 = vmatpush1.msra.mxu0 0.0
        %876 = vmatprep.subr.mxu0 0.0
        %877 = vmatpush1.msra.mxu0 0.0
        %878 = vmatprep.subr.mxu0 0.0
        %879 = vmatpush1.msra.mxu0 0.0
        %880 = vmatprep.subr.mxu0 0.0
        %881 = vmatpush1.msra.mxu0 0.0
        %882 = vmatprep.subr.mxu0 0.0
        %883 = vmatpush1.msra.mxu0 0.0
        %884 = vmatprep.subr.mxu0 0.0
        %885 = vmatpush1.msra.mxu0 0.0
        %886 = vmatprep.subr.mxu0 0.0
        %887 = vmatpush1.msra.mxu0 0.0
        %888 = vmatprep.subr.mxu0 0.0
        %889 = vmatpush1.msra.mxu0 0.0
        %890 = vmatprep.subr.mxu0 0.0
        %891 = vmatpush1.msra.mxu0 0.0
        %892 = vmatprep.subr.mxu0 0.0
        %893 = vmatpush1.msra.mxu0 0.0
        %894 = vmatprep.subr.mxu0 0.0
        %895 = vmatpush1.msra.mxu0 0.0
        %896 = vmatprep.mubr.f32.mxu0 0.0
        %897 = vmatmul.mubr.f32.gmra.mrb[0].mxu0 %v784
        %v898 = vpop.f32.mrb[0].mxu0
        %v899 = vadd.f32 0.0, %v898
        %v900 = vpop.f32.mrb[0].mxu0
        %901 = vmatprep.mubr.f32.mxu0 0.0
        %902 = vmatmul.mubr.f32.gmra.mrb[0].mxu0 %v785
        %v903 = vpop.f32.mrb[0].mxu0
        %v904 = vadd.f32 0.0, %v903
        %v905 = vpop.f32.mrb[0].mxu0
        %906 = vmatprep.mubr.f32.mxu0 0.0
        %907 = vmatmul.mubr.f32.gmra.mrb[0].mxu0 %v786
        %v908 = vpop.f32.mrb[0].mxu0
        %v909 = vadd.f32 0.0, %v908
        %v910 = vpop.f32.mrb[0].mxu0
        %911 = vmatprep.mubr.f32.mxu0 0.0
        %912 = vmatmul.mubr.f32.gmra.mrb[0].mxu0 %v787
        %v913 = vpop.f32.mrb[0].mxu0
        %v914 = vadd.f32 0.0, %v913
        %v915 = vpop.f32.mrb[0].mxu0
        %916 = vmatprep.mubr.f32.mxu0 0.0
        %917 = vmatmul.mubr.f32.gmra.mrb[0].mxu0 %v788
        %v918 = vpop.f32.mrb[0].mxu0
        %v919 = vadd.f32 0.0, %v918
        %v920 = vpop.f32.mrb[0].mxu0
        %921 = vmatprep.mubr.f32.mxu0 0.0
        %922 = vmatmul.mubr.f32.gmra.mrb[0].mxu0 %v789
        %v923 = vpop.f32.mrb[0].mxu0
        %v924 = vadd.f32 0.0, %v923
        %v925 = vpop.f32.mrb[0].mxu0
        %926 = vmatprep.mubr.f32.mxu0 0.0
        %927 = vmatmul.mubr.f32.gmra.mrb[0].mxu0 %v790
        %v928 = vpop.f32.mrb[0].mxu0
        %v929 = vadd.f32 0.0, %v928
        %v930 = vpop.f32.mrb[0].mxu0
        %931 = vmatprep.mubr.f32.mxu0 0.0
        %932 = vmatmul.mubr.f32.gmra.mrb[0].mxu0 %v791
        %v933 = vpop.f32.mrb[0].mxu0
        %v934 = vadd.f32 0.0, %v933
        %v935 = vpop.f32.mrb[0].mxu0
        %936 = vmatprep.mubr.f32.mxu0 0.0
        %937 = vmatmul.mubr.f32.gmra.mrb[0].mxu0 %v792
        %v938 = vpop.f32.mrb[0].mxu0
        %v939 = vadd.f32 0.0, %v938
        %v940 = vpop.f32.mrb[0].mxu0
        %941 = vmatprep.mubr.f32.mxu0 0.0
        %942 = vmatmul.mubr.f32.gmra.mrb[0].mxu0 %v793
        %v943 = vpop.f32.mrb[0].mxu0
        %v944 = vadd.f32 0.0, %v943
        %v945 = vpop.f32.mrb[0].mxu0
        %946 = vmatprep.mubr.f32.mxu0 0.0
        %947 = vmatmul.mubr.f32.gmra.mrb[0].mxu0 %v794
        %v948 = vpop.f32.mrb[0].mxu0
        %v949 = vadd.f32 0.0, %v948
        %v950 = vpop.f32.mrb[0].mxu0
        %951 = vmatprep.mubr.f32.mxu0 0.0
        %952 = vmatmul.mubr.f32.gmra.mrb[0].mxu0 %v795
        %v953 = vpop.f32.mrb[0].mxu0
        %v954 = vadd.f32 0.0, %v953
        %v955 = vpop.f32.mrb[0].mxu0
        %956 = vmatprep.mubr.f32.mxu0 0.0
        %957 = vmatmul.mubr.f32.gmra.mrb[0].mxu0 %v796
        %v958 = vpop.f32.mrb[0].mxu0
        %v959 = vadd.f32 0.0, %v958
        %v960 = vpop.f32.mrb[0].mxu0
        %961 = vmatprep.mubr.f32.mxu0 0.0
        %962 = vmatmul.mubr.f32.gmra.mrb[0].mxu0 %v797
        %v963 = vpop.f32.mrb[0].mxu0
        %v964 = vadd.f32 0.0, %v963
        %v965 = vpop.f32.mrb[0].mxu0
        %966 = vmatprep.mubr.f32.mxu0 0.0
        %967 = vmatmul.mubr.f32.gmra.mrb[0].mxu0 %v798
        %v968 = vpop.f32.mrb[0].mxu0
        %v969 = vadd.f32 0.0, %v968
        %v970 = vpop.f32.mrb[0].mxu0
        %971 = vmatprep.mubr.f32.mxu0 0.0
        %972 = vmatmul.mubr.f32.gmra.mrb[0].mxu0 %v799
        %v973 = vpop.f32.mrb[0].mxu0
        %v974 = vadd.f32 0.0, %v973
        %v975 = vpop.f32.mrb[0].mxu0
        %976 = vmatprep.mubr.f32.mxu0 0.0
        %977 = vmatmul.mubr.f32.gmra.mrb[0].mxu0 %v800
        %v978 = vpop.f32.mrb[0].mxu0
        %v979 = vadd.f32 0.0, %v978
        %v980 = vpop.f32.mrb[0].mxu0
        %981 = vmatprep.mubr.f32.mxu0 0.0
        %982 = vmatmul.mubr.f32.gmra.mrb[0].mxu0 %v801
        %v983 = vpop.f32.mrb[0].mxu0
        %v984 = vadd.f32 0.0, %v983
        %v985 = vpop.f32.mrb[0].mxu0
        %986 = vmatprep.mubr.f32.mxu0 0.0
        %987 = vmatmul.mubr.f32.gmra.mrb[0].mxu0 %v802
        %v988 = vpop.f32.mrb[0].mxu0
        %v989 = vadd.f32 0.0, %v988
        %v990 = vpop.f32.mrb[0].mxu0
        %991 = vmatprep.mubr.f32.mxu0 0.0
        %992 = vmatmul.mubr.f32.gmra.mrb[0].mxu0 %v803
        %v993 = vpop.f32.mrb[0].mxu0
        %v994 = vadd.f32 0.0, %v993
        %v995 = vpop.f32.mrb[0].mxu0
        %996 = vmatprep.mubr.f32.mxu0 0.0
        %997 = vmatmul.mubr.f32.gmra.mrb[0].mxu0 %v804
        %v998 = vpop.f32.mrb[0].mxu0
        %v999 = vadd.f32 0.0, %v998
        %v1000 = vpop.f32.mrb[0].mxu0
        %1001 = vmatprep.mubr.f32.mxu0 0.0
        %1002 = vmatmul.mubr.f32.gmra.mrb[0].mxu0 %v805
        %v1003 = vpop.f32.mrb[0].mxu0
        %v1004 = vadd.f32 0.0, %v1003
        %v1005 = vpop.f32.mrb[0].mxu0
        %1006 = vmatprep.mubr.f32.mxu0 0.0
        %1007 = vmatmul.mubr.f32.gmra.mrb[0].mxu0 %v806
        %v1008 = vpop.f32.mrb[0].mxu0
        %v1009 = vadd.f32 0.0, %v1008
        %v1010 = vpop.f32.mrb[0].mxu0
        %1011 = vmatprep.mubr.f32.mxu0 0.0
        %1012 = vmatmul.mubr.f32.gmra.mrb[0].mxu0 %v807
        %v1013 = vpop.f32.mrb[0].mxu0
        %v1014 = vadd.f32 0.0, %v1013
        %v1015 = vpop.f32.mrb[0].mxu0
        %1016 = vmatprep.mubr.f32.mxu0 0.0
        %1017 = vmatmul.mubr.f32.gmra.mrb[0].mxu0 %v808
        %v1018 = vpop.f32.mrb[0].mxu0
        %v1019 = vadd.f32 0.0, %v1018
        %v1020 = vpop.f32.mrb[0].mxu0
        %1021 = vmatprep.mubr.f32.mxu0 0.0
        %1022 = vmatmul.mubr.f32.gmra.mrb[0].mxu0 %v809
        %v1023 = vpop.f32.mrb[0].mxu0
        %v1024 = vadd.f32 0.0, %v1023
        %v1025 = vpop.f32.mrb[0].mxu0
        %1026 = vmatprep.mubr.f32.mxu0 0.0
        %1027 = vmatmul.mubr.f32.gmra.mrb[0].mxu0 %v810
        %v1028 = vpop.f32.mrb[0].mxu0
        %v1029 = vadd.f32 0.0, %v1028
        %v1030 = vpop.f32.mrb[0].mxu0
        %1031 = vmatprep.mubr.f32.mxu0 0.0
        %1032 = vmatmul.mubr.f32.gmra.mrb[0].mxu0 %v811
        %v1033 = vpop.f32.mrb[0].mxu0
        %v1034 = vadd.f32 0.0, %v1033
        %v1035 = vpop.f32.mrb[0].mxu0
        %1036 = vmatprep.mubr.f32.mxu0 0.0
        %1037 = vmatmul.mubr.f32.gmra.mrb[0].mxu0 %v812
        %v1038 = vpop.f32.mrb[0].mxu0
        %v1039 = vadd.f32 0.0, %v1038
        %v1040 = vpop.f32.mrb[0].mxu0
        %1041 = vmatprep.mubr.f32.mxu0 0.0
        %1042 = vmatmul.mubr.f32.gmra.mrb[0].mxu0 %v813
        %v1043 = vpop.f32.mrb[0].mxu0
        %v1044 = vadd.f32 0.0, %v1043
        %v1045 = vpop.f32.mrb[0].mxu0
        %1046 = vmatprep.mubr.f32.mxu0 0.0
        %1047 = vmatmul.mubr.f32.gmra.mrb[0].mxu0 %v814
        %v1048 = vpop.f32.mrb[0].mxu0
        %v1049 = vadd.f32 0.0, %v1048
        %v1050 = vpop.f32.mrb[0].mxu0
        %1051 = vmatprep.mubr.f32.mxu0 0.0
        %1052 = vmatmul.mubr.f32.gmra.mrb[0].mxu0 %v815
        %v1053 = vpop.f32.mrb[0].mxu0
        %v1054 = vadd.f32 0.0, %v1053
        %v1055 = vpop.f32.mrb[0].mxu0
        %1056 = vdwg.mxu0
        %v1057 = vadd.f32 %v626, %v899
        %v1058 = vadd.f32 %v631, %v904
        %v1059 = vadd.f32 %v636, %v909
        %v1060 = vadd.f32 %v641, %v914
        %v1061 = vadd.f32 %v646, %v919
        %v1062 = vadd.f32 %v651, %v924
        %v1063 = vadd.f32 %v656, %v929
        %v1064 = vadd.f32 %v661, %v934
        %v1065 = vadd.f32 %v666, %v939
        %v1066 = vadd.f32 %v671, %v944
        %v1067 = vadd.f32 %v676, %v949
        %v1068 = vadd.f32 %v681, %v954
        %v1069 = vadd.f32 %v686, %v959
        %v1070 = vadd.f32 %v691, %v964
        %v1071 = vadd.f32 %v696, %v969
        %v1072 = vadd.f32 %v701, %v974
        %v1073 = vadd.f32 %v706, %v979
        %v1074 = vadd.f32 %v711, %v984
        %v1075 = vadd.f32 %v716, %v989
        %v1076 = vadd.f32 %v721, %v994
        %v1077 = vadd.f32 %v726, %v999
        %v1078 = vadd.f32 %v731, %v1004
        %v1079 = vadd.f32 %v736, %v1009
        %v1080 = vadd.f32 %v741, %v1014
        %v1081 = vadd.f32 %v746, %v1019
        %v1082 = vadd.f32 %v751, %v1024
        %v1083 = vadd.f32 %v756, %v1029
        %v1084 = vadd.f32 %v761, %v1034
        %v1085 = vadd.f32 %v766, %v1039
        %v1086 = vadd.f32 %v771, %v1044
        %v1087 = vadd.f32 %v776, %v1049
        %v1088 = vadd.f32 %v781, %v1054
        %s1089 = scalar_lea.vmem %s237, 24
        %v1090 = vld [vmem:[%s1089] sm:$0xff]
        %v1091 = vld [vmem:[%s1089 + $0x8] sm:$0xff]
        %v1092 = vld [vmem:[%s1089 + $0x18] sm:$0xff]
        %v1093 = vld [vmem:[%s1089 + $0x20] sm:$0xff]
        %v1094 = vld [vmem:[%s1089 + $0x30] sm:$0xff]
        %v1095 = vld [vmem:[%s1089 + $0x38] sm:$0xff]
        %v1096 = vld [vmem:[%s1089 + $0x48] sm:$0xff]
        %v1097 = vld [vmem:[%s1089 + $0x50] sm:$0xff]
        %v1098 = vld [vmem:[%s1089 + $0x60] sm:$0xff]
        %v1099 = vld [vmem:[%s1089 + $0x68] sm:$0xff]
        %v1100 = vld [vmem:[%s1089 + $0x78] sm:$0xff]
        %v1101 = vld [vmem:[%s1089 + $0x80] sm:$0xff]
        %v1102 = vld [vmem:[%s1089 + $0x90] sm:$0xff]
        %v1103 = vld [vmem:[%s1089 + $0x98] sm:$0xff]
        %v1104 = vld [vmem:[%s1089 + $0xa8] sm:$0xff]
        %v1105 = vld [vmem:[%s1089 + $0xb0] sm:$0xff]
        %v1106 = vld [vmem:[%s1089 + $0xc0] sm:$0xff]
        %v1107 = vld [vmem:[%s1089 + $0xc8] sm:$0xff]
        %v1108 = vld [vmem:[%s1089 + $0xd8] sm:$0xff]
        %v1109 = vld [vmem:[%s1089 + $0xe0] sm:$0xff]
        %v1110 = vld [vmem:[%s1089 + $0xf0] sm:$0xff]
        %v1111 = vld [vmem:[%s1089 + $0xf8] sm:$0xff]
        %v1112 = vld [vmem:[%s1089 + $0x108] sm:$0xff]
        %v1113 = vld [vmem:[%s1089 + $0x110] sm:$0xff]
        %v1114 = vld [vmem:[%s1089 + $0x120] sm:$0xff]
        %v1115 = vld [vmem:[%s1089 + $0x128] sm:$0xff]
        %v1116 = vld [vmem:[%s1089 + $0x138] sm:$0xff]
        %v1117 = vld [vmem:[%s1089 + $0x140] sm:$0xff]
        %v1118 = vld [vmem:[%s1089 + $0x150] sm:$0xff]
        %v1119 = vld [vmem:[%s1089 + $0x158] sm:$0xff]
        %v1120 = vld [vmem:[%s1089 + $0x168] sm:$0xff]
        %v1121 = vld [vmem:[%s1089 + $0x170] sm:$0xff]
        %v1122 = vld [vmem:[%s1 + $0x180] sm:$0xff]
        %v1123 = vld [vmem:[%s1 + $0x188] sm:$0xff]
        %v1124 = vld [vmem:[%s1 + $0x190] sm:$0xff]
        %v1125 = vld [vmem:[%s1 + $0x198] sm:$0xff]
        %v1126 = vld [vmem:[%s1 + $0x1a0] sm:$0xff]
        %v1127 = vld [vmem:[%s1 + $0x1a8] sm:$0xff]
        %v1128 = vld [vmem:[%s1 + $0x1b0] sm:$0xff]
        %v1129 = vld [vmem:[%s1 + $0x1b8] sm:$0xff]
        %v1130 = vld [vmem:[%s1 + $0x1c0] sm:$0xff]
        %v1131 = vld [vmem:[%s1 + $0x1c8] sm:$0xff]
        %v1132 = vld [vmem:[%s1 + $0x1d0] sm:$0xff]
        %v1133 = vld [vmem:[%s1 + $0x1d8] sm:$0xff]
        %v1134 = vld [vmem:[%s1 + $0x1e0] sm:$0xff]
        %v1135 = vld [vmem:[%s1 + $0x1e8] sm:$0xff]
        %v1136 = vld [vmem:[%s1 + $0x1f0] sm:$0xff]
        %v1137 = vld [vmem:[%s1 + $0x1f8] sm:$0xff]
        %1138 = vmatprep.subr.mxu0 0.0
        %1139 = vmatpush1.msra.mxu0 %v1122
        %1140 = vmatprep.subr.mxu0 0.0
        %1141 = vmatpush1.msra.mxu0 %v1123
        %1142 = vmatprep.subr.mxu0 0.0
        %1143 = vmatpush1.msra.mxu0 %v1124
        %1144 = vmatprep.subr.mxu0 0.0
        %1145 = vmatpush1.msra.mxu0 %v1125
        %1146 = vmatprep.subr.mxu0 0.0
        %1147 = vmatpush1.msra.mxu0 %v1126
        %1148 = vmatprep.subr.mxu0 0.0
        %1149 = vmatpush1.msra.mxu0 %v1127
        %1150 = vmatprep.subr.mxu0 0.0
        %1151 = vmatpush1.msra.mxu0 %v1128
        %1152 = vmatprep.subr.mxu0 0.0
        %1153 = vmatpush1.msra.mxu0 %v1129
        %1154 = vmatprep.subr.mxu0 0.0
        %1155 = vmatpush1.msra.mxu0 %v1130
        %1156 = vmatprep.subr.mxu0 0.0
        %1157 = vmatpush1.msra.mxu0 %v1131
        %1158 = vmatprep.subr.mxu0 0.0
        %1159 = vmatpush1.msra.mxu0 %v1132
        %1160 = vmatprep.subr.mxu0 0.0
        %1161 = vmatpush1.msra.mxu0 %v1133
        %1162 = vmatprep.subr.mxu0 0.0
        %1163 = vmatpush1.msra.mxu0 %v1134
        %1164 = vmatprep.subr.mxu0 0.0
        %1165 = vmatpush1.msra.mxu0 %v1135
        %1166 = vmatprep.subr.mxu0 0.0
        %1167 = vmatpush1.msra.mxu0 %v1136
        %1168 = vmatprep.subr.mxu0 0.0
        %1169 = vmatpush1.msra.mxu0 %v1137
        %1170 = vmatprep.subr.mxu0 0.0
        %1171 = vmatpush1.msra.mxu0 0.0
        %1172 = vmatprep.subr.mxu0 0.0
        %1173 = vmatpush1.msra.mxu0 0.0
        %1174 = vmatprep.subr.mxu0 0.0
        %1175 = vmatpush1.msra.mxu0 0.0
        %1176 = vmatprep.subr.mxu0 0.0
        %1177 = vmatpush1.msra.mxu0 0.0
        %1178 = vmatprep.subr.mxu0 0.0
        %1179 = vmatpush1.msra.mxu0 0.0
        %1180 = vmatprep.subr.mxu0 0.0
        %1181 = vmatpush1.msra.mxu0 0.0
        %1182 = vmatprep.subr.mxu0 0.0
        %1183 = vmatpush1.msra.mxu0 0.0
        %1184 = vmatprep.subr.mxu0 0.0
        %1185 = vmatpush1.msra.mxu0 0.0
        %1186 = vmatprep.subr.mxu0 0.0
        %1187 = vmatpush1.msra.mxu0 0.0
        %1188 = vmatprep.subr.mxu0 0.0
        %1189 = vmatpush1.msra.mxu0 0.0
        %1190 = vmatprep.subr.mxu0 0.0
        %1191 = vmatpush1.msra.mxu0 0.0
        %1192 = vmatprep.subr.mxu0 0.0
        %1193 = vmatpush1.msra.mxu0 0.0
        %1194 = vmatprep.subr.mxu0 0.0
        %1195 = vmatpush1.msra.mxu0 0.0
        %1196 = vmatprep.subr.mxu0 0.0
        %1197 = vmatpush1.msra.mxu0 0.0
        %1198 = vmatprep.subr.mxu0 0.0
        %1199 = vmatpush1.msra.mxu0 0.0
        %1200 = vmatprep.subr.mxu0 0.0
        %1201 = vmatpush1.msra.mxu0 0.0
        %1202 = vmatprep.mubr.f32.mxu0 0.0
        %1203 = vmatmul.mubr.f32.gmra.mrb[0].mxu0 %v1090
        %v1204 = vpop.f32.mrb[0].mxu0
        %v1205 = vadd.f32 0.0, %v1204
        %v1206 = vpop.f32.mrb[0].mxu0
        %1207 = vmatprep.mubr.f32.mxu0 0.0
        %1208 = vmatmul.mubr.f32.gmra.mrb[0].mxu0 %v1091
        %v1209 = vpop.f32.mrb[0].mxu0
        %v1210 = vadd.f32 0.0, %v1209
        %v1211 = vpop.f32.mrb[0].mxu0
        %1212 = vmatprep.mubr.f32.mxu0 0.0
        %1213 = vmatmul.mubr.f32.gmra.mrb[0].mxu0 %v1092
        %v1214 = vpop.f32.mrb[0].mxu0
        %v1215 = vadd.f32 0.0, %v1214
        %v1216 = vpop.f32.mrb[0].mxu0
        %1217 = vmatprep.mubr.f32.mxu0 0.0
        %1218 = vmatmul.mubr.f32.gmra.mrb[0].mxu0 %v1093
        %v1219 = vpop.f32.mrb[0].mxu0
        %v1220 = vadd.f32 0.0, %v1219
        %v1221 = vpop.f32.mrb[0].mxu0
        %1222 = vmatprep.mubr.f32.mxu0 0.0
        %1223 = vmatmul.mubr.f32.gmra.mrb[0].mxu0 %v1094
        %v1224 = vpop.f32.mrb[0].mxu0
        %v1225 = vadd.f32 0.0, %v1224
        %v1226 = vpop.f32.mrb[0].mxu0
        %1227 = vmatprep.mubr.f32.mxu0 0.0
        %1228 = vmatmul.mubr.f32.gmra.mrb[0].mxu0 %v1095
        %v1229 = vpop.f32.mrb[0].mxu0
        %v1230 = vadd.f32 0.0, %v1229
        %v1231 = vpop.f32.mrb[0].mxu0
        %1232 = vmatprep.mubr.f32.mxu0 0.0
        %1233 = vmatmul.mubr.f32.gmra.mrb[0].mxu0 %v1096
        %v1234 = vpop.f32.mrb[0].mxu0
        %v1235 = vadd.f32 0.0, %v1234
        %v1236 = vpop.f32.mrb[0].mxu0
        %1237 = vmatprep.mubr.f32.mxu0 0.0
        %1238 = vmatmul.mubr.f32.gmra.mrb[0].mxu0 %v1097
        %v1239 = vpop.f32.mrb[0].mxu0
        %v1240 = vadd.f32 0.0, %v1239
        %v1241 = vpop.f32.mrb[0].mxu0
        %1242 = vmatprep.mubr.f32.mxu0 0.0
        %1243 = vmatmul.mubr.f32.gmra.mrb[0].mxu0 %v1098
        %v1244 = vpop.f32.mrb[0].mxu0
        %v1245 = vadd.f32 0.0, %v1244
        %v1246 = vpop.f32.mrb[0].mxu0
        %1247 = vmatprep.mubr.f32.mxu0 0.0
        %1248 = vmatmul.mubr.f32.gmra.mrb[0].mxu0 %v1099
        %v1249 = vpop.f32.mrb[0].mxu0
        %v1250 = vadd.f32 0.0, %v1249
        %v1251 = vpop.f32.mrb[0].mxu0
        %1252 = vmatprep.mubr.f32.mxu0 0.0
        %1253 = vmatmul.mubr.f32.gmra.mrb[0].mxu0 %v1100
        %v1254 = vpop.f32.mrb[0].mxu0
        %v1255 = vadd.f32 0.0, %v1254
        %v1256 = vpop.f32.mrb[0].mxu0
        %1257 = vmatprep.mubr.f32.mxu0 0.0
        %1258 = vmatmul.mubr.f32.gmra.mrb[0].mxu0 %v1101
        %v1259 = vpop.f32.mrb[0].mxu0
        %v1260 = vadd.f32 0.0, %v1259
        %v1261 = vpop.f32.mrb[0].mxu0
        %1262 = vmatprep.mubr.f32.mxu0 0.0
        %1263 = vmatmul.mubr.f32.gmra.mrb[0].mxu0 %v1102
        %v1264 = vpop.f32.mrb[0].mxu0
        %v1265 = vadd.f32 0.0, %v1264
        %v1266 = vpop.f32.mrb[0].mxu0
        %1267 = vmatprep.mubr.f32.mxu0 0.0
        %1268 = vmatmul.mubr.f32.gmra.mrb[0].mxu0 %v1103
        %v1269 = vpop.f32.mrb[0].mxu0
        %v1270 = vadd.f32 0.0, %v1269
        %v1271 = vpop.f32.mrb[0].mxu0
        %1272 = vmatprep.mubr.f32.mxu0 0.0
        %1273 = vmatmul.mubr.f32.gmra.mrb[0].mxu0 %v1104
        %v1274 = vpop.f32.mrb[0].mxu0
        %v1275 = vadd.f32 0.0, %v1274
        %v1276 = vpop.f32.mrb[0].mxu0
        %1277 = vmatprep.mubr.f32.mxu0 0.0
        %1278 = vmatmul.mubr.f32.gmra.mrb[0].mxu0 %v1105
        %v1279 = vpop.f32.mrb[0].mxu0
        %v1280 = vadd.f32 0.0, %v1279
        %v1281 = vpop.f32.mrb[0].mxu0
        %1282 = vmatprep.mubr.f32.mxu0 0.0
        %1283 = vmatmul.mubr.f32.gmra.mrb[0].mxu0 %v1106
        %v1284 = vpop.f32.mrb[0].mxu0
        %v1285 = vadd.f32 0.0, %v1284
        %v1286 = vpop.f32.mrb[0].mxu0
        %1287 = vmatprep.mubr.f32.mxu0 0.0
        %1288 = vmatmul.mubr.f32.gmra.mrb[0].mxu0 %v1107
        %v1289 = vpop.f32.mrb[0].mxu0
        %v1290 = vadd.f32 0.0, %v1289
        %v1291 = vpop.f32.mrb[0].mxu0
        %1292 = vmatprep.mubr.f32.mxu0 0.0
        %1293 = vmatmul.mubr.f32.gmra.mrb[0].mxu0 %v1108
        %v1294 = vpop.f32.mrb[0].mxu0
        %v1295 = vadd.f32 0.0, %v1294
        %v1296 = vpop.f32.mrb[0].mxu0
        %1297 = vmatprep.mubr.f32.mxu0 0.0
        %1298 = vmatmul.mubr.f32.gmra.mrb[0].mxu0 %v1109
        %v1299 = vpop.f32.mrb[0].mxu0
        %v1300 = vadd.f32 0.0, %v1299
        %v1301 = vpop.f32.mrb[0].mxu0
        %1302 = vmatprep.mubr.f32.mxu0 0.0
        %1303 = vmatmul.mubr.f32.gmra.mrb[0].mxu0 %v1110
        %v1304 = vpop.f32.mrb[0].mxu0
        %v1305 = vadd.f32 0.0, %v1304
        %v1306 = vpop.f32.mrb[0].mxu0
        %1307 = vmatprep.mubr.f32.mxu0 0.0
        %1308 = vmatmul.mubr.f32.gmra.mrb[0].mxu0 %v1111
        %v1309 = vpop.f32.mrb[0].mxu0
        %v1310 = vadd.f32 0.0, %v1309
        %v1311 = vpop.f32.mrb[0].mxu0
        %1312 = vmatprep.mubr.f32.mxu0 0.0
        %1313 = vmatmul.mubr.f32.gmra.mrb[0].mxu0 %v1112
        %v1314 = vpop.f32.mrb[0].mxu0
        %v1315 = vadd.f32 0.0, %v1314
        %v1316 = vpop.f32.mrb[0].mxu0
        %1317 = vmatprep.mubr.f32.mxu0 0.0
        %1318 = vmatmul.mubr.f32.gmra.mrb[0].mxu0 %v1113
        %v1319 = vpop.f32.mrb[0].mxu0
        %v1320 = vadd.f32 0.0, %v1319
        %v1321 = vpop.f32.mrb[0].mxu0
        %1322 = vmatprep.mubr.f32.mxu0 0.0
        %1323 = vmatmul.mubr.f32.gmra.mrb[0].mxu0 %v1114
        %v1324 = vpop.f32.mrb[0].mxu0
        %v1325 = vadd.f32 0.0, %v1324
        %v1326 = vpop.f32.mrb[0].mxu0
        %1327 = vmatprep.mubr.f32.mxu0 0.0
        %1328 = vmatmul.mubr.f32.gmra.mrb[0].mxu0 %v1115
        %v1329 = vpop.f32.mrb[0].mxu0
        %v1330 = vadd.f32 0.0, %v1329
        %v1331 = vpop.f32.mrb[0].mxu0
        %1332 = vmatprep.mubr.f32.mxu0 0.0
        %1333 = vmatmul.mubr.f32.gmra.mrb[0].mxu0 %v1116
        %v1334 = vpop.f32.mrb[0].mxu0
        %v1335 = vadd.f32 0.0, %v1334
        %v1336 = vpop.f32.mrb[0].mxu0
        %1337 = vmatprep.mubr.f32.mxu0 0.0
        %1338 = vmatmul.mubr.f32.gmra.mrb[0].mxu0 %v1117
        %v1339 = vpop.f32.mrb[0].mxu0
        %v1340 = vadd.f32 0.0, %v1339
        %v1341 = vpop.f32.mrb[0].mxu0
        %1342 = vmatprep.mubr.f32.mxu0 0.0
        %1343 = vmatmul.mubr.f32.gmra.mrb[0].mxu0 %v1118
        %v1344 = vpop.f32.mrb[0].mxu0
        %v1345 = vadd.f32 0.0, %v1344
        %v1346 = vpop.f32.mrb[0].mxu0
        %1347 = vmatprep.mubr.f32.mxu0 0.0
        %1348 = vmatmul.mubr.f32.gmra.mrb[0].mxu0 %v1119
        %v1349 = vpop.f32.mrb[0].mxu0
        %v1350 = vadd.f32 0.0, %v1349
        %v1351 = vpop.f32.mrb[0].mxu0
        %1352 = vmatprep.mubr.f32.mxu0 0.0
        %1353 = vmatmul.mubr.f32.gmra.mrb[0].mxu0 %v1120
        %v1354 = vpop.f32.mrb[0].mxu0
        %v1355 = vadd.f32 0.0, %v1354
        %v1356 = vpop.f32.mrb[0].mxu0
        %1357 = vmatprep.mubr.f32.mxu0 0.0
        %1358 = vmatmul.mubr.f32.gmra.mrb[0].mxu0 %v1121
        %v1359 = vpop.f32.mrb[0].mxu0
        %v1360 = vadd.f32 0.0, %v1359
        %v1361 = vpop.f32.mrb[0].mxu0
        %1362 = vdwg.mxu0
        %v1363 = vadd.f32 %v1057, %v1205
        %v1364 = vadd.f32 %v1058, %v1210
        %v1365 = vadd.f32 %v1059, %v1215
        %v1366 = vadd.f32 %v1060, %v1220
        %v1367 = vadd.f32 %v1061, %v1225
        %v1368 = vadd.f32 %v1062, %v1230
        %v1369 = vadd.f32 %v1063, %v1235
        %v1370 = vadd.f32 %v1064, %v1240
        %v1371 = vadd.f32 %v1065, %v1245
        %v1372 = vadd.f32 %v1066, %v1250
        %v1373 = vadd.f32 %v1067, %v1255
        %v1374 = vadd.f32 %v1068, %v1260
        %v1375 = vadd.f32 %v1069, %v1265
        %v1376 = vadd.f32 %v1070, %v1270
        %v1377 = vadd.f32 %v1071, %v1275
        %v1378 = vadd.f32 %v1072, %v1280
        %v1379 = vadd.f32 %v1073, %v1285
        %v1380 = vadd.f32 %v1074, %v1290
        %v1381 = vadd.f32 %v1075, %v1295
        %v1382 = vadd.f32 %v1076, %v1300
        %v1383 = vadd.f32 %v1077, %v1305
        %v1384 = vadd.f32 %v1078, %v1310
        %v1385 = vadd.f32 %v1079, %v1315
        %v1386 = vadd.f32 %v1080, %v1320
        %v1387 = vadd.f32 %v1081, %v1325
        %v1388 = vadd.f32 %v1082, %v1330
        %v1389 = vadd.f32 %v1083, %v1335
        %v1390 = vadd.f32 %v1084, %v1340
        %v1391 = vadd.f32 %v1085, %v1345
        %v1392 = vadd.f32 %v1086, %v1350
        %v1393 = vadd.f32 %v1087, %v1355
        %v1394 = vadd.f32 %v1088, %v1360
        %v1395 = vld [vmem:[%s1089 + $0x1] sm:$0xff]
        %v1396 = vld [vmem:[%s1089 + $0x9] sm:$0xff]
        %v1397 = vld [vmem:[%s1089 + $0x19] sm:$0xff]
        %v1398 = vld [vmem:[%s1089 + $0x21] sm:$0xff]
        %v1399 = vld [vmem:[%s1089 + $0x31] sm:$0xff]
        %v1400 = vld [vmem:[%s1089 + $0x39] sm:$0xff]
        %v1401 = vld [vmem:[%s1089 + $0x49] sm:$0xff]
        %v1402 = vld [vmem:[%s1089 + $0x51] sm:$0xff]
        %v1403 = vld [vmem:[%s1089 + $0x61] sm:$0xff]
        %v1404 = vld [vmem:[%s1089 + $0x69] sm:$0xff]
        %v1405 = vld [vmem:[%s1089 + $0x79] sm:$0xff]
        %v1406 = vld [vmem:[%s1089 + $0x81] sm:$0xff]
        %v1407 = vld [vmem:[%s1089 + $0x91] sm:$0xff]
        %v1408 = vld [vmem:[%s1089 + $0x99] sm:$0xff]
        %v1409 = vld [vmem:[%s1089 + $0xa9] sm:$0xff]
        %v1410 = vld [vmem:[%s1089 + $0xb1] sm:$0xff]
        %v1411 = vld [vmem:[%s1089 + $0xc1] sm:$0xff]
        %v1412 = vld [vmem:[%s1089 + $0xc9] sm:$0xff]
        %v1413 = vld [vmem:[%s1089 + $0xd9] sm:$0xff]
        %v1414 = vld [vmem:[%s1089 + $0xe1] sm:$0xff]
        %v1415 = vld [vmem:[%s1089 + $0xf1] sm:$0xff]
        %v1416 = vld [vmem:[%s1089 + $0xf9] sm:$0xff]
        %v1417 = vld [vmem:[%s1089 + $0x109] sm:$0xff]
        %v1418 = vld [vmem:[%s1089 + $0x111] sm:$0xff]
        %v1419 = vld [vmem:[%s1089 + $0x121] sm:$0xff]
        %v1420 = vld [vmem:[%s1089 + $0x129] sm:$0xff]
        %v1421 = vld [vmem:[%s1089 + $0x139] sm:$0xff]
        %v1422 = vld [vmem:[%s1089 + $0x141] sm:$0xff]
        %v1423 = vld [vmem:[%s1089 + $0x151] sm:$0xff]
        %v1424 = vld [vmem:[%s1089 + $0x159] sm:$0xff]
        %v1425 = vld [vmem:[%s1089 + $0x169] sm:$0xff]
        %v1426 = vld [vmem:[%s1089 + $0x171] sm:$0xff]
        %v1427 = vld [vmem:[%s1 + $0x200] sm:$0xff]
        %v1428 = vld [vmem:[%s1 + $0x208] sm:$0xff]
        %v1429 = vld [vmem:[%s1 + $0x210] sm:$0xff]
        %v1430 = vld [vmem:[%s1 + $0x218] sm:$0xff]
        %v1431 = vld [vmem:[%s1 + $0x220] sm:$0xff]
        %v1432 = vld [vmem:[%s1 + $0x228] sm:$0xff]
        %v1433 = vld [vmem:[%s1 + $0x230] sm:$0xff]
        %v1434 = vld [vmem:[%s1 + $0x238] sm:$0xff]
        %v1435 = vld [vmem:[%s1 + $0x240] sm:$0xff]
        %v1436 = vld [vmem:[%s1 + $0x248] sm:$0xff]
        %v1437 = vld [vmem:[%s1 + $0x250] sm:$0xff]
        %v1438 = vld [vmem:[%s1 + $0x258] sm:$0xff]
        %v1439 = vld [vmem:[%s1 + $0x260] sm:$0xff]
        %v1440 = vld [vmem:[%s1 + $0x268] sm:$0xff]
        %v1441 = vld [vmem:[%s1 + $0x270] sm:$0xff]
        %v1442 = vld [vmem:[%s1 + $0x278] sm:$0xff]
        %1443 = vmatprep.subr.mxu0 0.0
        %1444 = vmatpush1.msra.mxu0 %v1427
        %1445 = vmatprep.subr.mxu0 0.0
        %1446 = vmatpush1.msra.mxu0 %v1428
        %1447 = vmatprep.subr.mxu0 0.0
        %1448 = vmatpush1.msra.mxu0 %v1429
        %1449 = vmatprep.subr.mxu0 0.0
        %1450 = vmatpush1.msra.mxu0 %v1430
        %1451 = vmatprep.subr.mxu0 0.0
        %1452 = vmatpush1.msra.mxu0 %v1431
        %1453 = vmatprep.subr.mxu0 0.0
        %1454 = vmatpush1.msra.mxu0 %v1432
        %1455 = vmatprep.subr.mxu0 0.0
        %1456 = vmatpush1.msra.mxu0 %v1433
        %1457 = vmatprep.subr.mxu0 0.0
        %1458 = vmatpush1.msra.mxu0 %v1434
        %1459 = vmatprep.subr.mxu0 0.0
        %1460 = vmatpush1.msra.mxu0 %v1435
        %1461 = vmatprep.subr.mxu0 0.0
        %1462 = vmatpush1.msra.mxu0 %v1436
        %1463 = vmatprep.subr.mxu0 0.0
        %1464 = vmatpush1.msra.mxu0 %v1437
        %1465 = vmatprep.subr.mxu0 0.0
        %1466 = vmatpush1.msra.mxu0 %v1438
        %1467 = vmatprep.subr.mxu0 0.0
        %1468 = vmatpush1.msra.mxu0 %v1439
        %1469 = vmatprep.subr.mxu0 0.0
        %1470 = vmatpush1.msra.mxu0 %v1440
        %1471 = vmatprep.subr.mxu0 0.0
        %1472 = vmatpush1.msra.mxu0 %v1441
        %1473 = vmatprep.subr.mxu0 0.0
        %1474 = vmatpush1.msra.mxu0 %v1442
        %1475 = vmatprep.subr.mxu0 0.0
        %1476 = vmatpush1.msra.mxu0 0.0
        %1477 = vmatprep.subr.mxu0 0.0
        %1478 = vmatpush1.msra.mxu0 0.0
        %1479 = vmatprep.subr.mxu0 0.0
        %1480 = vmatpush1.msra.mxu0 0.0
        %1481 = vmatprep.subr.mxu0 0.0
        %1482 = vmatpush1.msra.mxu0 0.0
        %1483 = vmatprep.subr.mxu0 0.0
        %1484 = vmatpush1.msra.mxu0 0.0
        %1485 = vmatprep.subr.mxu0 0.0
        %1486 = vmatpush1.msra.mxu0 0.0
        %1487 = vmatprep.subr.mxu0 0.0
        %1488 = vmatpush1.msra.mxu0 0.0
        %1489 = vmatprep.subr.mxu0 0.0
        %1490 = vmatpush1.msra.mxu0 0.0
        %1491 = vmatprep.subr.mxu0 0.0
        %1492 = vmatpush1.msra.mxu0 0.0
        %1493 = vmatprep.subr.mxu0 0.0
        %1494 = vmatpush1.msra.mxu0 0.0
        %1495 = vmatprep.subr.mxu0 0.0
        %1496 = vmatpush1.msra.mxu0 0.0
        %1497 = vmatprep.subr.mxu0 0.0
        %1498 = vmatpush1.msra.mxu0 0.0
        %1499 = vmatprep.subr.mxu0 0.0
        %1500 = vmatpush1.msra.mxu0 0.0
        %1501 = vmatprep.subr.mxu0 0.0
        %1502 = vmatpush1.msra.mxu0 0.0
        %1503 = vmatprep.subr.mxu0 0.0
        %1504 = vmatpush1.msra.mxu0 0.0
        %1505 = vmatprep.subr.mxu0 0.0
        %1506 = vmatpush1.msra.mxu0 0.0
        %1507 = vmatprep.mubr.f32.mxu0 0.0
        %1508 = vmatmul.mubr.f32.gmra.mrb[0].mxu0 %v1395
        %v1509 = vpop.f32.mrb[0].mxu0
        %v1510 = vadd.f32 0.0, %v1509
        %v1511 = vpop.f32.mrb[0].mxu0
        %1512 = vmatprep.mubr.f32.mxu0 0.0
        %1513 = vmatmul.mubr.f32.gmra.mrb[0].mxu0 %v1396
        %v1514 = vpop.f32.mrb[0].mxu0
        %v1515 = vadd.f32 0.0, %v1514
        %v1516 = vpop.f32.mrb[0].mxu0
        %1517 = vmatprep.mubr.f32.mxu0 0.0
        %1518 = vmatmul.mubr.f32.gmra.mrb[0].mxu0 %v1397
        %v1519 = vpop.f32.mrb[0].mxu0
        %v1520 = vadd.f32 0.0, %v1519
        %v1521 = vpop.f32.mrb[0].mxu0
        %1522 = vmatprep.mubr.f32.mxu0 0.0
        %1523 = vmatmul.mubr.f32.gmra.mrb[0].mxu0 %v1398
        %v1524 = vpop.f32.mrb[0].mxu0
        %v1525 = vadd.f32 0.0, %v1524
        %v1526 = vpop.f32.mrb[0].mxu0
        %1527 = vmatprep.mubr.f32.mxu0 0.0
        %1528 = vmatmul.mubr.f32.gmra.mrb[0].mxu0 %v1399
        %v1529 = vpop.f32.mrb[0].mxu0
        %v1530 = vadd.f32 0.0, %v1529
        %v1531 = vpop.f32.mrb[0].mxu0
        %1532 = vmatprep.mubr.f32.mxu0 0.0
        %1533 = vmatmul.mubr.f32.gmra.mrb[0].mxu0 %v1400
        %v1534 = vpop.f32.mrb[0].mxu0
        %v1535 = vadd.f32 0.0, %v1534
        %v1536 = vpop.f32.mrb[0].mxu0
        %1537 = vmatprep.mubr.f32.mxu0 0.0
        %1538 = vmatmul.mubr.f32.gmra.mrb[0].mxu0 %v1401
        %v1539 = vpop.f32.mrb[0].mxu0
        %v1540 = vadd.f32 0.0, %v1539
        %v1541 = vpop.f32.mrb[0].mxu0
        %1542 = vmatprep.mubr.f32.mxu0 0.0
        %1543 = vmatmul.mubr.f32.gmra.mrb[0].mxu0 %v1402
        %v1544 = vpop.f32.mrb[0].mxu0
        %v1545 = vadd.f32 0.0, %v1544
        %v1546 = vpop.f32.mrb[0].mxu0
        %1547 = vmatprep.mubr.f32.mxu0 0.0
        %1548 = vmatmul.mubr.f32.gmra.mrb[0].mxu0 %v1403
        %v1549 = vpop.f32.mrb[0].mxu0
        %v1550 = vadd.f32 0.0, %v1549
        %v1551 = vpop.f32.mrb[0].mxu0
        %1552 = vmatprep.mubr.f32.mxu0 0.0
        %1553 = vmatmul.mubr.f32.gmra.mrb[0].mxu0 %v1404
        %v1554 = vpop.f32.mrb[0].mxu0
        %v1555 = vadd.f32 0.0, %v1554
        %v1556 = vpop.f32.mrb[0].mxu0
        %1557 = vmatprep.mubr.f32.mxu0 0.0
        %1558 = vmatmul.mubr.f32.gmra.mrb[0].mxu0 %v1405
        %v1559 = vpop.f32.mrb[0].mxu0
        %v1560 = vadd.f32 0.0, %v1559
        %v1561 = vpop.f32.mrb[0].mxu0
        %1562 = vmatprep.mubr.f32.mxu0 0.0
        %1563 = vmatmul.mubr.f32.gmra.mrb[0].mxu0 %v1406
        %v1564 = vpop.f32.mrb[0].mxu0
        %v1565 = vadd.f32 0.0, %v1564
        %v1566 = vpop.f32.mrb[0].mxu0
        %1567 = vmatprep.mubr.f32.mxu0 0.0
        %1568 = vmatmul.mubr.f32.gmra.mrb[0].mxu0 %v1407
        %v1569 = vpop.f32.mrb[0].mxu0
        %v1570 = vadd.f32 0.0, %v1569
        %v1571 = vpop.f32.mrb[0].mxu0
        %1572 = vmatprep.mubr.f32.mxu0 0.0
        %1573 = vmatmul.mubr.f32.gmra.mrb[0].mxu0 %v1408
        %v1574 = vpop.f32.mrb[0].mxu0
        %v1575 = vadd.f32 0.0, %v1574
        %v1576 = vpop.f32.mrb[0].mxu0
        %1577 = vmatprep.mubr.f32.mxu0 0.0
        %1578 = vmatmul.mubr.f32.gmra.mrb[0].mxu0 %v1409
        %v1579 = vpop.f32.mrb[0].mxu0
        %v1580 = vadd.f32 0.0, %v1579
        %v1581 = vpop.f32.mrb[0].mxu0
        %1582 = vmatprep.mubr.f32.mxu0 0.0
        %1583 = vmatmul.mubr.f32.gmra.mrb[0].mxu0 %v1410
        %v1584 = vpop.f32.mrb[0].mxu0
        %v1585 = vadd.f32 0.0, %v1584
        %v1586 = vpop.f32.mrb[0].mxu0
        %1587 = vmatprep.mubr.f32.mxu0 0.0
        %1588 = vmatmul.mubr.f32.gmra.mrb[0].mxu0 %v1411
        %v1589 = vpop.f32.mrb[0].mxu0
        %v1590 = vadd.f32 0.0, %v1589
        %v1591 = vpop.f32.mrb[0].mxu0
        %1592 = vmatprep.mubr.f32.mxu0 0.0
        %1593 = vmatmul.mubr.f32.gmra.mrb[0].mxu0 %v1412
        %v1594 = vpop.f32.mrb[0].mxu0
        %v1595 = vadd.f32 0.0, %v1594
        %v1596 = vpop.f32.mrb[0].mxu0
        %1597 = vmatprep.mubr.f32.mxu0 0.0
        %1598 = vmatmul.mubr.f32.gmra.mrb[0].mxu0 %v1413
        %v1599 = vpop.f32.mrb[0].mxu0
        %v1600 = vadd.f32 0.0, %v1599
        %v1601 = vpop.f32.mrb[0].mxu0
        %1602 = vmatprep.mubr.f32.mxu0 0.0
        %1603 = vmatmul.mubr.f32.gmra.mrb[0].mxu0 %v1414
        %v1604 = vpop.f32.mrb[0].mxu0
        %v1605 = vadd.f32 0.0, %v1604
        %v1606 = vpop.f32.mrb[0].mxu0
        %1607 = vmatprep.mubr.f32.mxu0 0.0
        %1608 = vmatmul.mubr.f32.gmra.mrb[0].mxu0 %v1415
        %v1609 = vpop.f32.mrb[0].mxu0
        %v1610 = vadd.f32 0.0, %v1609
        %v1611 = vpop.f32.mrb[0].mxu0
        %1612 = vmatprep.mubr.f32.mxu0 0.0
        %1613 = vmatmul.mubr.f32.gmra.mrb[0].mxu0 %v1416
        %v1614 = vpop.f32.mrb[0].mxu0
        %v1615 = vadd.f32 0.0, %v1614
        %v1616 = vpop.f32.mrb[0].mxu0
        %1617 = vmatprep.mubr.f32.mxu0 0.0
        %1618 = vmatmul.mubr.f32.gmra.mrb[0].mxu0 %v1417
        %v1619 = vpop.f32.mrb[0].mxu0
        %v1620 = vadd.f32 0.0, %v1619
        %v1621 = vpop.f32.mrb[0].mxu0
        %1622 = vmatprep.mubr.f32.mxu0 0.0
        %1623 = vmatmul.mubr.f32.gmra.mrb[0].mxu0 %v1418
        %v1624 = vpop.f32.mrb[0].mxu0
        %v1625 = vadd.f32 0.0, %v1624
        %v1626 = vpop.f32.mrb[0].mxu0
        %1627 = vmatprep.mubr.f32.mxu0 0.0
        %1628 = vmatmul.mubr.f32.gmra.mrb[0].mxu0 %v1419
        %v1629 = vpop.f32.mrb[0].mxu0
        %v1630 = vadd.f32 0.0, %v1629
        %v1631 = vpop.f32.mrb[0].mxu0
        %1632 = vmatprep.mubr.f32.mxu0 0.0
        %1633 = vmatmul.mubr.f32.gmra.mrb[0].mxu0 %v1420
        %v1634 = vpop.f32.mrb[0].mxu0
        %v1635 = vadd.f32 0.0, %v1634
        %v1636 = vpop.f32.mrb[0].mxu0
        %1637 = vmatprep.mubr.f32.mxu0 0.0
        %1638 = vmatmul.mubr.f32.gmra.mrb[0].mxu0 %v1421
        %v1639 = vpop.f32.mrb[0].mxu0
        %v1640 = vadd.f32 0.0, %v1639
        %v1641 = vpop.f32.mrb[0].mxu0
        %1642 = vmatprep.mubr.f32.mxu0 0.0
        %1643 = vmatmul.mubr.f32.gmra.mrb[0].mxu0 %v1422
        %v1644 = vpop.f32.mrb[0].mxu0
        %v1645 = vadd.f32 0.0, %v1644
        %v1646 = vpop.f32.mrb[0].mxu0
        %1647 = vmatprep.mubr.f32.mxu0 0.0
        %1648 = vmatmul.mubr.f32.gmra.mrb[0].mxu0 %v1423
        %v1649 = vpop.f32.mrb[0].mxu0
        %v1650 = vadd.f32 0.0, %v1649
        %v1651 = vpop.f32.mrb[0].mxu0
        %1652 = vmatprep.mubr.f32.mxu0 0.0
        %1653 = vmatmul.mubr.f32.gmra.mrb[0].mxu0 %v1424
        %v1654 = vpop.f32.mrb[0].mxu0
        %v1655 = vadd.f32 0.0, %v1654
        %v1656 = vpop.f32.mrb[0].mxu0
        %1657 = vmatprep.mubr.f32.mxu0 0.0
        %1658 = vmatmul.mubr.f32.gmra.mrb[0].mxu0 %v1425
        %v1659 = vpop.f32.mrb[0].mxu0
        %v1660 = vadd.f32 0.0, %v1659
        %v1661 = vpop.f32.mrb[0].mxu0
        %1662 = vmatprep.mubr.f32.mxu0 0.0
        %1663 = vmatmul.mubr.f32.gmra.mrb[0].mxu0 %v1426
        %v1664 = vpop.f32.mrb[0].mxu0
        %v1665 = vadd.f32 0.0, %v1664
        %v1666 = vpop.f32.mrb[0].mxu0
        %1667 = vdwg.mxu0
        %v1668 = vadd.f32 %v1363, %v1510
        %v1669 = vadd.f32 %v1364, %v1515
        %v1670 = vadd.f32 %v1365, %v1520
        %v1671 = vadd.f32 %v1366, %v1525
        %v1672 = vadd.f32 %v1367, %v1530
        %v1673 = vadd.f32 %v1368, %v1535
        %v1674 = vadd.f32 %v1369, %v1540
        %v1675 = vadd.f32 %v1370, %v1545
        %v1676 = vadd.f32 %v1371, %v1550
        %v1677 = vadd.f32 %v1372, %v1555
        %v1678 = vadd.f32 %v1373, %v1560
        %v1679 = vadd.f32 %v1374, %v1565
        %v1680 = vadd.f32 %v1375, %v1570
        %v1681 = vadd.f32 %v1376, %v1575
        %v1682 = vadd.f32 %v1377, %v1580
        %v1683 = vadd.f32 %v1378, %v1585
        %v1684 = vadd.f32 %v1379, %v1590
        %v1685 = vadd.f32 %v1380, %v1595
        %v1686 = vadd.f32 %v1381, %v1600
        %v1687 = vadd.f32 %v1382, %v1605
        %v1688 = vadd.f32 %v1383, %v1610
        %v1689 = vadd.f32 %v1384, %v1615
        %v1690 = vadd.f32 %v1385, %v1620
        %v1691 = vadd.f32 %v1386, %v1625
        %v1692 = vadd.f32 %v1387, %v1630
        %v1693 = vadd.f32 %v1388, %v1635
        %v1694 = vadd.f32 %v1389, %v1640
        %v1695 = vadd.f32 %v1390, %v1645
        %v1696 = vadd.f32 %v1391, %v1650
        %v1697 = vadd.f32 %v1392, %v1655
        %v1698 = vadd.f32 %v1393, %v1660
        %v1699 = vadd.f32 %v1394, %v1665
        %v1700 = vld [vmem:[%s1089 + $0x2] sm:$0xff]
        %v1701 = vld [vmem:[%s1089 + $0xa] sm:$0xff]
        %v1702 = vld [vmem:[%s1089 + $0x1a] sm:$0xff]
        %v1703 = vld [vmem:[%s1089 + $0x22] sm:$0xff]
        %v1704 = vld [vmem:[%s1089 + $0x32] sm:$0xff]
        %v1705 = vld [vmem:[%s1089 + $0x3a] sm:$0xff]
        %v1706 = vld [vmem:[%s1089 + $0x4a] sm:$0xff]
        %v1707 = vld [vmem:[%s1089 + $0x52] sm:$0xff]
        %v1708 = vld [vmem:[%s1089 + $0x62] sm:$0xff]
        %v1709 = vld [vmem:[%s1089 + $0x6a] sm:$0xff]
        %v1710 = vld [vmem:[%s1089 + $0x7a] sm:$0xff]
        %v1711 = vld [vmem:[%s1089 + $0x82] sm:$0xff]
        %v1712 = vld [vmem:[%s1089 + $0x92] sm:$0xff]
        %v1713 = vld [vmem:[%s1089 + $0x9a] sm:$0xff]
        %v1714 = vld [vmem:[%s1089 + $0xaa] sm:$0xff]
        %v1715 = vld [vmem:[%s1089 + $0xb2] sm:$0xff]
        %v1716 = vld [vmem:[%s1089 + $0xc2] sm:$0xff]
        %v1717 = vld [vmem:[%s1089 + $0xca] sm:$0xff]
        %v1718 = vld [vmem:[%s1089 + $0xda] sm:$0xff]
        %v1719 = vld [vmem:[%s1089 + $0xe2] sm:$0xff]
        %v1720 = vld [vmem:[%s1089 + $0xf2] sm:$0xff]
        %v1721 = vld [vmem:[%s1089 + $0xfa] sm:$0xff]
        %v1722 = vld [vmem:[%s1089 + $0x10a] sm:$0xff]
        %v1723 = vld [vmem:[%s1089 + $0x112] sm:$0xff]
        %v1724 = vld [vmem:[%s1089 + $0x122] sm:$0xff]
        %v1725 = vld [vmem:[%s1089 + $0x12a] sm:$0xff]
        %v1726 = vld [vmem:[%s1089 + $0x13a] sm:$0xff]
        %v1727 = vld [vmem:[%s1089 + $0x142] sm:$0xff]
        %v1728 = vld [vmem:[%s1089 + $0x152] sm:$0xff]
        %v1729 = vld [vmem:[%s1089 + $0x15a] sm:$0xff]
        %v1730 = vld [vmem:[%s1089 + $0x16a] sm:$0xff]
        %v1731 = vld [vmem:[%s1089 + $0x172] sm:$0xff]
        %v1732 = vld [vmem:[%s1 + $0x280] sm:$0xff]
        %v1733 = vld [vmem:[%s1 + $0x288] sm:$0xff]
        %v1734 = vld [vmem:[%s1 + $0x290] sm:$0xff]
        %v1735 = vld [vmem:[%s1 + $0x298] sm:$0xff]
        %v1736 = vld [vmem:[%s1 + $0x2a0] sm:$0xff]
        %v1737 = vld [vmem:[%s1 + $0x2a8] sm:$0xff]
        %v1738 = vld [vmem:[%s1 + $0x2b0] sm:$0xff]
        %v1739 = vld [vmem:[%s1 + $0x2b8] sm:$0xff]
        %v1740 = vld [vmem:[%s1 + $0x2c0] sm:$0xff]
        %v1741 = vld [vmem:[%s1 + $0x2c8] sm:$0xff]
        %v1742 = vld [vmem:[%s1 + $0x2d0] sm:$0xff]
        %v1743 = vld [vmem:[%s1 + $0x2d8] sm:$0xff]
        %v1744 = vld [vmem:[%s1 + $0x2e0] sm:$0xff]
        %v1745 = vld [vmem:[%s1 + $0x2e8] sm:$0xff]
        %v1746 = vld [vmem:[%s1 + $0x2f0] sm:$0xff]
        %v1747 = vld [vmem:[%s1 + $0x2f8] sm:$0xff]
        %1748 = vmatprep.subr.mxu0 0.0
        %1749 = vmatpush1.msra.mxu0 %v1732
        %1750 = vmatprep.subr.mxu0 0.0
        %1751 = vmatpush1.msra.mxu0 %v1733
        %1752 = vmatprep.subr.mxu0 0.0
        %1753 = vmatpush1.msra.mxu0 %v1734
        %1754 = vmatprep.subr.mxu0 0.0
        %1755 = vmatpush1.msra.mxu0 %v1735
        %1756 = vmatprep.subr.mxu0 0.0
        %1757 = vmatpush1.msra.mxu0 %v1736
        %1758 = vmatprep.subr.mxu0 0.0
        %1759 = vmatpush1.msra.mxu0 %v1737
        %1760 = vmatprep.subr.mxu0 0.0
        %1761 = vmatpush1.msra.mxu0 %v1738
        %1762 = vmatprep.subr.mxu0 0.0
        %1763 = vmatpush1.msra.mxu0 %v1739
        %1764 = vmatprep.subr.mxu0 0.0
        %1765 = vmatpush1.msra.mxu0 %v1740
        %1766 = vmatprep.subr.mxu0 0.0
        %1767 = vmatpush1.msra.mxu0 %v1741
        %1768 = vmatprep.subr.mxu0 0.0
        %1769 = vmatpush1.msra.mxu0 %v1742
        %1770 = vmatprep.subr.mxu0 0.0
        %1771 = vmatpush1.msra.mxu0 %v1743
        %1772 = vmatprep.subr.mxu0 0.0
        %1773 = vmatpush1.msra.mxu0 %v1744
        %1774 = vmatprep.subr.mxu0 0.0
        %1775 = vmatpush1.msra.mxu0 %v1745
        %1776 = vmatprep.subr.mxu0 0.0
        %1777 = vmatpush1.msra.mxu0 %v1746
        %1778 = vmatprep.subr.mxu0 0.0
        %1779 = vmatpush1.msra.mxu0 %v1747
        %1780 = vmatprep.subr.mxu0 0.0
        %1781 = vmatpush1.msra.mxu0 0.0
        %1782 = vmatprep.subr.mxu0 0.0
        %1783 = vmatpush1.msra.mxu0 0.0
        %1784 = vmatprep.subr.mxu0 0.0
        %1785 = vmatpush1.msra.mxu0 0.0
        %1786 = vmatprep.subr.mxu0 0.0
        %1787 = vmatpush1.msra.mxu0 0.0
        %1788 = vmatprep.subr.mxu0 0.0
        %1789 = vmatpush1.msra.mxu0 0.0
        %1790 = vmatprep.subr.mxu0 0.0
        %1791 = vmatpush1.msra.mxu0 0.0
        %1792 = vmatprep.subr.mxu0 0.0
        %1793 = vmatpush1.msra.mxu0 0.0
        %1794 = vmatprep.subr.mxu0 0.0
        %1795 = vmatpush1.msra.mxu0 0.0
        %1796 = vmatprep.subr.mxu0 0.0
        %1797 = vmatpush1.msra.mxu0 0.0
        %1798 = vmatprep.subr.mxu0 0.0
        %1799 = vmatpush1.msra.mxu0 0.0
        %1800 = vmatprep.subr.mxu0 0.0
        %1801 = vmatpush1.msra.mxu0 0.0
        %1802 = vmatprep.subr.mxu0 0.0
        %1803 = vmatpush1.msra.mxu0 0.0
        %1804 = vmatprep.subr.mxu0 0.0
        %1805 = vmatpush1.msra.mxu0 0.0
        %1806 = vmatprep.subr.mxu0 0.0
        %1807 = vmatpush1.msra.mxu0 0.0
        %1808 = vmatprep.subr.mxu0 0.0
        %1809 = vmatpush1.msra.mxu0 0.0
        %1810 = vmatprep.subr.mxu0 0.0
        %1811 = vmatpush1.msra.mxu0 0.0
        %1812 = vmatprep.mubr.f32.mxu0 0.0
        %1813 = vmatmul.mubr.f32.gmra.mrb[0].mxu0 %v1700
        %v1814 = vpop.f32.mrb[0].mxu0
        %v1815 = vadd.f32 0.0, %v1814
        %v1816 = vpop.f32.mrb[0].mxu0
        %1817 = vmatprep.mubr.f32.mxu0 0.0
        %1818 = vmatmul.mubr.f32.gmra.mrb[0].mxu0 %v1701
        %v1819 = vpop.f32.mrb[0].mxu0
        %v1820 = vadd.f32 0.0, %v1819
        %v1821 = vpop.f32.mrb[0].mxu0
        %1822 = vmatprep.mubr.f32.mxu0 0.0
        %1823 = vmatmul.mubr.f32.gmra.mrb[0].mxu0 %v1702
        %v1824 = vpop.f32.mrb[0].mxu0
        %v1825 = vadd.f32 0.0, %v1824
        %v1826 = vpop.f32.mrb[0].mxu0
        %1827 = vmatprep.mubr.f32.mxu0 0.0
        %1828 = vmatmul.mubr.f32.gmra.mrb[0].mxu0 %v1703
        %v1829 = vpop.f32.mrb[0].mxu0
        %v1830 = vadd.f32 0.0, %v1829
        %v1831 = vpop.f32.mrb[0].mxu0
        %1832 = vmatprep.mubr.f32.mxu0 0.0
        %1833 = vmatmul.mubr.f32.gmra.mrb[0].mxu0 %v1704
        %v1834 = vpop.f32.mrb[0].mxu0
        %v1835 = vadd.f32 0.0, %v1834
        %v1836 = vpop.f32.mrb[0].mxu0
        %1837 = vmatprep.mubr.f32.mxu0 0.0
        %1838 = vmatmul.mubr.f32.gmra.mrb[0].mxu0 %v1705
        %v1839 = vpop.f32.mrb[0].mxu0
        %v1840 = vadd.f32 0.0, %v1839
        %v1841 = vpop.f32.mrb[0].mxu0
        %1842 = vmatprep.mubr.f32.mxu0 0.0
        %1843 = vmatmul.mubr.f32.gmra.mrb[0].mxu0 %v1706
        %v1844 = vpop.f32.mrb[0].mxu0
        %v1845 = vadd.f32 0.0, %v1844
        %v1846 = vpop.f32.mrb[0].mxu0
        %1847 = vmatprep.mubr.f32.mxu0 0.0
        %1848 = vmatmul.mubr.f32.gmra.mrb[0].mxu0 %v1707
        %v1849 = vpop.f32.mrb[0].mxu0
        %v1850 = vadd.f32 0.0, %v1849
        %v1851 = vpop.f32.mrb[0].mxu0
        %1852 = vmatprep.mubr.f32.mxu0 0.0
        %1853 = vmatmul.mubr.f32.gmra.mrb[0].mxu0 %v1708
        %v1854 = vpop.f32.mrb[0].mxu0
        %v1855 = vadd.f32 0.0, %v1854
        %v1856 = vpop.f32.mrb[0].mxu0
        %1857 = vmatprep.mubr.f32.mxu0 0.0
        %1858 = vmatmul.mubr.f32.gmra.mrb[0].mxu0 %v1709
        %v1859 = vpop.f32.mrb[0].mxu0
        %v1860 = vadd.f32 0.0, %v1859
        %v1861 = vpop.f32.mrb[0].mxu0
        %1862 = vmatprep.mubr.f32.mxu0 0.0
        %1863 = vmatmul.mubr.f32.gmra.mrb[0].mxu0 %v1710
        %v1864 = vpop.f32.mrb[0].mxu0
        %v1865 = vadd.f32 0.0, %v1864
        %v1866 = vpop.f32.mrb[0].mxu0
        %1867 = vmatprep.mubr.f32.mxu0 0.0
        %1868 = vmatmul.mubr.f32.gmra.mrb[0].mxu0 %v1711
        %v1869 = vpop.f32.mrb[0].mxu0
        %v1870 = vadd.f32 0.0, %v1869
        %v1871 = vpop.f32.mrb[0].mxu0
        %1872 = vmatprep.mubr.f32.mxu0 0.0
        %1873 = vmatmul.mubr.f32.gmra.mrb[0].mxu0 %v1712
        %v1874 = vpop.f32.mrb[0].mxu0
        %v1875 = vadd.f32 0.0, %v1874
        %v1876 = vpop.f32.mrb[0].mxu0
        %1877 = vmatprep.mubr.f32.mxu0 0.0
        %1878 = vmatmul.mubr.f32.gmra.mrb[0].mxu0 %v1713
        %v1879 = vpop.f32.mrb[0].mxu0
        %v1880 = vadd.f32 0.0, %v1879
        %v1881 = vpop.f32.mrb[0].mxu0
        %1882 = vmatprep.mubr.f32.mxu0 0.0
        %1883 = vmatmul.mubr.f32.gmra.mrb[0].mxu0 %v1714
        %v1884 = vpop.f32.mrb[0].mxu0
        %v1885 = vadd.f32 0.0, %v1884
        %v1886 = vpop.f32.mrb[0].mxu0
        %1887 = vmatprep.mubr.f32.mxu0 0.0
        %1888 = vmatmul.mubr.f32.gmra.mrb[0].mxu0 %v1715
        %v1889 = vpop.f32.mrb[0].mxu0
        %v1890 = vadd.f32 0.0, %v1889
        %v1891 = vpop.f32.mrb[0].mxu0
        %1892 = vmatprep.mubr.f32.mxu0 0.0
        %1893 = vmatmul.mubr.f32.gmra.mrb[0].mxu0 %v1716
        %v1894 = vpop.f32.mrb[0].mxu0
        %v1895 = vadd.f32 0.0, %v1894
        %v1896 = vpop.f32.mrb[0].mxu0
        %1897 = vmatprep.mubr.f32.mxu0 0.0
        %1898 = vmatmul.mubr.f32.gmra.mrb[0].mxu0 %v1717
        %v1899 = vpop.f32.mrb[0].mxu0
        %v1900 = vadd.f32 0.0, %v1899
        %v1901 = vpop.f32.mrb[0].mxu0
        %1902 = vmatprep.mubr.f32.mxu0 0.0
        %1903 = vmatmul.mubr.f32.gmra.mrb[0].mxu0 %v1718
        %v1904 = vpop.f32.mrb[0].mxu0
        %v1905 = vadd.f32 0.0, %v1904
        %v1906 = vpop.f32.mrb[0].mxu0
        %1907 = vmatprep.mubr.f32.mxu0 0.0
        %1908 = vmatmul.mubr.f32.gmra.mrb[0].mxu0 %v1719
        %v1909 = vpop.f32.mrb[0].mxu0
        %v1910 = vadd.f32 0.0, %v1909
        %v1911 = vpop.f32.mrb[0].mxu0
        %1912 = vmatprep.mubr.f32.mxu0 0.0
        %1913 = vmatmul.mubr.f32.gmra.mrb[0].mxu0 %v1720
        %v1914 = vpop.f32.mrb[0].mxu0
        %v1915 = vadd.f32 0.0, %v1914
        %v1916 = vpop.f32.mrb[0].mxu0
        %1917 = vmatprep.mubr.f32.mxu0 0.0
        %1918 = vmatmul.mubr.f32.gmra.mrb[0].mxu0 %v1721
        %v1919 = vpop.f32.mrb[0].mxu0
        %v1920 = vadd.f32 0.0, %v1919
        %v1921 = vpop.f32.mrb[0].mxu0
        %1922 = vmatprep.mubr.f32.mxu0 0.0
        %1923 = vmatmul.mubr.f32.gmra.mrb[0].mxu0 %v1722
        %v1924 = vpop.f32.mrb[0].mxu0
        %v1925 = vadd.f32 0.0, %v1924
        %v1926 = vpop.f32.mrb[0].mxu0
        %1927 = vmatprep.mubr.f32.mxu0 0.0
        %1928 = vmatmul.mubr.f32.gmra.mrb[0].mxu0 %v1723
        %v1929 = vpop.f32.mrb[0].mxu0
        %v1930 = vadd.f32 0.0, %v1929
        %v1931 = vpop.f32.mrb[0].mxu0
        %1932 = vmatprep.mubr.f32.mxu0 0.0
        %1933 = vmatmul.mubr.f32.gmra.mrb[0].mxu0 %v1724
        %v1934 = vpop.f32.mrb[0].mxu0
        %v1935 = vadd.f32 0.0, %v1934
        %v1936 = vpop.f32.mrb[0].mxu0
        %1937 = vmatprep.mubr.f32.mxu0 0.0
        %1938 = vmatmul.mubr.f32.gmra.mrb[0].mxu0 %v1725
        %v1939 = vpop.f32.mrb[0].mxu0
        %v1940 = vadd.f32 0.0, %v1939
        %v1941 = vpop.f32.mrb[0].mxu0
        %1942 = vmatprep.mubr.f32.mxu0 0.0
        %1943 = vmatmul.mubr.f32.gmra.mrb[0].mxu0 %v1726
        %v1944 = vpop.f32.mrb[0].mxu0
        %v1945 = vadd.f32 0.0, %v1944
        %v1946 = vpop.f32.mrb[0].mxu0
        %1947 = vmatprep.mubr.f32.mxu0 0.0
        %1948 = vmatmul.mubr.f32.gmra.mrb[0].mxu0 %v1727
        %v1949 = vpop.f32.mrb[0].mxu0
        %v1950 = vadd.f32 0.0, %v1949
        %v1951 = vpop.f32.mrb[0].mxu0
        %1952 = vmatprep.mubr.f32.mxu0 0.0
        %1953 = vmatmul.mubr.f32.gmra.mrb[0].mxu0 %v1728
        %v1954 = vpop.f32.mrb[0].mxu0
        %v1955 = vadd.f32 0.0, %v1954
        %v1956 = vpop.f32.mrb[0].mxu0
        %1957 = vmatprep.mubr.f32.mxu0 0.0
        %1958 = vmatmul.mubr.f32.gmra.mrb[0].mxu0 %v1729
        %v1959 = vpop.f32.mrb[0].mxu0
        %v1960 = vadd.f32 0.0, %v1959
        %v1961 = vpop.f32.mrb[0].mxu0
        %1962 = vmatprep.mubr.f32.mxu0 0.0
        %1963 = vmatmul.mubr.f32.gmra.mrb[0].mxu0 %v1730
        %v1964 = vpop.f32.mrb[0].mxu0
        %v1965 = vadd.f32 0.0, %v1964
        %v1966 = vpop.f32.mrb[0].mxu0
        %1967 = vmatprep.mubr.f32.mxu0 0.0
        %1968 = vmatmul.mubr.f32.gmra.mrb[0].mxu0 %v1731
        %v1969 = vpop.f32.mrb[0].mxu0
        %v1970 = vadd.f32 0.0, %v1969
        %v1971 = vpop.f32.mrb[0].mxu0
        %1972 = vdwg.mxu0
        %v1973 = vadd.f32 %v1668, %v1815
        %v1974 = vadd.f32 %v1669, %v1820
        %v1975 = vadd.f32 %v1670, %v1825
        %v1976 = vadd.f32 %v1671, %v1830
        %v1977 = vadd.f32 %v1672, %v1835
        %v1978 = vadd.f32 %v1673, %v1840
        %v1979 = vadd.f32 %v1674, %v1845
        %v1980 = vadd.f32 %v1675, %v1850
        %v1981 = vadd.f32 %v1676, %v1855
        %v1982 = vadd.f32 %v1677, %v1860
        %v1983 = vadd.f32 %v1678, %v1865
        %v1984 = vadd.f32 %v1679, %v1870
        %v1985 = vadd.f32 %v1680, %v1875
        %v1986 = vadd.f32 %v1681, %v1880
        %v1987 = vadd.f32 %v1682, %v1885
        %v1988 = vadd.f32 %v1683, %v1890
        %v1989 = vadd.f32 %v1684, %v1895
        %v1990 = vadd.f32 %v1685, %v1900
        %v1991 = vadd.f32 %v1686, %v1905
        %v1992 = vadd.f32 %v1687, %v1910
        %v1993 = vadd.f32 %v1688, %v1915
        %v1994 = vadd.f32 %v1689, %v1920
        %v1995 = vadd.f32 %v1690, %v1925
        %v1996 = vadd.f32 %v1691, %v1930
        %v1997 = vadd.f32 %v1692, %v1935
        %v1998 = vadd.f32 %v1693, %v1940
        %v1999 = vadd.f32 %v1694, %v1945
        %v2000 = vadd.f32 %v1695, %v1950
        %v2001 = vadd.f32 %v1696, %v1955
        %v2002 = vadd.f32 %v1697, %v1960
        %v2003 = vadd.f32 %v1698, %v1965
        %v2004 = vadd.f32 %v1699, %v1970
        %s2005 = scalar_lea.vmem %s237, 48
        %v2006 = vld [vmem:[%s2005] sm:$0xff]
        %v2007 = vld [vmem:[%s2005 + $0x8] sm:$0xff]
        %v2008 = vld [vmem:[%s2005 + $0x18] sm:$0xff]
        %v2009 = vld [vmem:[%s2005 + $0x20] sm:$0xff]
        %v2010 = vld [vmem:[%s2005 + $0x30] sm:$0xff]
        %v2011 = vld [vmem:[%s2005 + $0x38] sm:$0xff]
        %v2012 = vld [vmem:[%s2005 + $0x48] sm:$0xff]
        %v2013 = vld [vmem:[%s2005 + $0x50] sm:$0xff]
        %v2014 = vld [vmem:[%s2005 + $0x60] sm:$0xff]
        %v2015 = vld [vmem:[%s2005 + $0x68] sm:$0xff]
        %v2016 = vld [vmem:[%s2005 + $0x78] sm:$0xff]
        %v2017 = vld [vmem:[%s2005 + $0x80] sm:$0xff]
        %v2018 = vld [vmem:[%s2005 + $0x90] sm:$0xff]
        %v2019 = vld [vmem:[%s2005 + $0x98] sm:$0xff]
        %v2020 = vld [vmem:[%s2005 + $0xa8] sm:$0xff]
        %v2021 = vld [vmem:[%s2005 + $0xb0] sm:$0xff]
        %v2022 = vld [vmem:[%s2005 + $0xc0] sm:$0xff]
        %v2023 = vld [vmem:[%s2005 + $0xc8] sm:$0xff]
        %v2024 = vld [vmem:[%s2005 + $0xd8] sm:$0xff]
        %v2025 = vld [vmem:[%s2005 + $0xe0] sm:$0xff]
        %v2026 = vld [vmem:[%s2005 + $0xf0] sm:$0xff]
        %v2027 = vld [vmem:[%s2005 + $0xf8] sm:$0xff]
        %v2028 = vld [vmem:[%s2005 + $0x108] sm:$0xff]
        %v2029 = vld [vmem:[%s2005 + $0x110] sm:$0xff]
        %v2030 = vld [vmem:[%s2005 + $0x120] sm:$0xff]
        %v2031 = vld [vmem:[%s2005 + $0x128] sm:$0xff]
        %v2032 = vld [vmem:[%s2005 + $0x138] sm:$0xff]
        %v2033 = vld [vmem:[%s2005 + $0x140] sm:$0xff]
        %v2034 = vld [vmem:[%s2005 + $0x150] sm:$0xff]
        %v2035 = vld [vmem:[%s2005 + $0x158] sm:$0xff]
        %v2036 = vld [vmem:[%s2005 + $0x168] sm:$0xff]
        %v2037 = vld [vmem:[%s2005 + $0x170] sm:$0xff]
        %v2038 = vld [vmem:[%s1 + $0x300] sm:$0xff]
        %v2039 = vld [vmem:[%s1 + $0x308] sm:$0xff]
        %v2040 = vld [vmem:[%s1 + $0x310] sm:$0xff]
        %v2041 = vld [vmem:[%s1 + $0x318] sm:$0xff]
        %v2042 = vld [vmem:[%s1 + $0x320] sm:$0xff]
        %v2043 = vld [vmem:[%s1 + $0x328] sm:$0xff]
        %v2044 = vld [vmem:[%s1 + $0x330] sm:$0xff]
        %v2045 = vld [vmem:[%s1 + $0x338] sm:$0xff]
        %v2046 = vld [vmem:[%s1 + $0x340] sm:$0xff]
        %v2047 = vld [vmem:[%s1 + $0x348] sm:$0xff]
        %v2048 = vld [vmem:[%s1 + $0x350] sm:$0xff]
        %v2049 = vld [vmem:[%s1 + $0x358] sm:$0xff]
        %v2050 = vld [vmem:[%s1 + $0x360] sm:$0xff]
        %v2051 = vld [vmem:[%s1 + $0x368] sm:$0xff]
        %v2052 = vld [vmem:[%s1 + $0x370] sm:$0xff]
        %v2053 = vld [vmem:[%s1 + $0x378] sm:$0xff]
        %2054 = vmatprep.subr.mxu0 0.0
        %2055 = vmatpush1.msra.mxu0 %v2038
        %2056 = vmatprep.subr.mxu0 0.0
        %2057 = vmatpush1.msra.mxu0 %v2039
        %2058 = vmatprep.subr.mxu0 0.0
        %2059 = vmatpush1.msra.mxu0 %v2040
        %2060 = vmatprep.subr.mxu0 0.0
        %2061 = vmatpush1.msra.mxu0 %v2041
        %2062 = vmatprep.subr.mxu0 0.0
        %2063 = vmatpush1.msra.mxu0 %v2042
        %2064 = vmatprep.subr.mxu0 0.0
        %2065 = vmatpush1.msra.mxu0 %v2043
        %2066 = vmatprep.subr.mxu0 0.0
        %2067 = vmatpush1.msra.mxu0 %v2044
        %2068 = vmatprep.subr.mxu0 0.0
        %2069 = vmatpush1.msra.mxu0 %v2045
        %2070 = vmatprep.subr.mxu0 0.0
        %2071 = vmatpush1.msra.mxu0 %v2046
        %2072 = vmatprep.subr.mxu0 0.0
        %2073 = vmatpush1.msra.mxu0 %v2047
        %2074 = vmatprep.subr.mxu0 0.0
        %2075 = vmatpush1.msra.mxu0 %v2048
        %2076 = vmatprep.subr.mxu0 0.0
        %2077 = vmatpush1.msra.mxu0 %v2049
        %2078 = vmatprep.subr.mxu0 0.0
        %2079 = vmatpush1.msra.mxu0 %v2050
        %2080 = vmatprep.subr.mxu0 0.0
        %2081 = vmatpush1.msra.mxu0 %v2051
        %2082 = vmatprep.subr.mxu0 0.0
        %2083 = vmatpush1.msra.mxu0 %v2052
        %2084 = vmatprep.subr.mxu0 0.0
        %2085 = vmatpush1.msra.mxu0 %v2053
        %2086 = vmatprep.subr.mxu0 0.0
        %2087 = vmatpush1.msra.mxu0 0.0
        %2088 = vmatprep.subr.mxu0 0.0
        %2089 = vmatpush1.msra.mxu0 0.0
        %2090 = vmatprep.subr.mxu0 0.0
        %2091 = vmatpush1.msra.mxu0 0.0
        %2092 = vmatprep.subr.mxu0 0.0
        %2093 = vmatpush1.msra.mxu0 0.0
        %2094 = vmatprep.subr.mxu0 0.0
        %2095 = vmatpush1.msra.mxu0 0.0
        %2096 = vmatprep.subr.mxu0 0.0
        %2097 = vmatpush1.msra.mxu0 0.0
        %2098 = vmatprep.subr.mxu0 0.0
        %2099 = vmatpush1.msra.mxu0 0.0
        %2100 = vmatprep.subr.mxu0 0.0
        %2101 = vmatpush1.msra.mxu0 0.0
        %2102 = vmatprep.subr.mxu0 0.0
        %2103 = vmatpush1.msra.mxu0 0.0
        %2104 = vmatprep.subr.mxu0 0.0
        %2105 = vmatpush1.msra.mxu0 0.0
        %2106 = vmatprep.subr.mxu0 0.0
        %2107 = vmatpush1.msra.mxu0 0.0
        %2108 = vmatprep.subr.mxu0 0.0
        %2109 = vmatpush1.msra.mxu0 0.0
        %2110 = vmatprep.subr.mxu0 0.0
        %2111 = vmatpush1.msra.mxu0 0.0
        %2112 = vmatprep.subr.mxu0 0.0
        %2113 = vmatpush1.msra.mxu0 0.0
        %2114 = vmatprep.subr.mxu0 0.0
        %2115 = vmatpush1.msra.mxu0 0.0
        %2116 = vmatprep.subr.mxu0 0.0
        %2117 = vmatpush1.msra.mxu0 0.0
        %2118 = vmatprep.mubr.f32.mxu0 0.0
        %2119 = vmatmul.mubr.f32.gmra.mrb[0].mxu0 %v2006
        %v2120 = vpop.f32.mrb[0].mxu0
        %v2121 = vadd.f32 0.0, %v2120
        %v2122 = vpop.f32.mrb[0].mxu0
        %2123 = vmatprep.mubr.f32.mxu0 0.0
        %2124 = vmatmul.mubr.f32.gmra.mrb[0].mxu0 %v2007
        %v2125 = vpop.f32.mrb[0].mxu0
        %v2126 = vadd.f32 0.0, %v2125
        %v2127 = vpop.f32.mrb[0].mxu0
        %2128 = vmatprep.mubr.f32.mxu0 0.0
        %2129 = vmatmul.mubr.f32.gmra.mrb[0].mxu0 %v2008
        %v2130 = vpop.f32.mrb[0].mxu0
        %v2131 = vadd.f32 0.0, %v2130
        %v2132 = vpop.f32.mrb[0].mxu0
        %2133 = vmatprep.mubr.f32.mxu0 0.0
        %2134 = vmatmul.mubr.f32.gmra.mrb[0].mxu0 %v2009
        %v2135 = vpop.f32.mrb[0].mxu0
        %v2136 = vadd.f32 0.0, %v2135
        %v2137 = vpop.f32.mrb[0].mxu0
        %2138 = vmatprep.mubr.f32.mxu0 0.0
        %2139 = vmatmul.mubr.f32.gmra.mrb[0].mxu0 %v2010
        %v2140 = vpop.f32.mrb[0].mxu0
        %v2141 = vadd.f32 0.0, %v2140
        %v2142 = vpop.f32.mrb[0].mxu0
        %2143 = vmatprep.mubr.f32.mxu0 0.0
        %2144 = vmatmul.mubr.f32.gmra.mrb[0].mxu0 %v2011
        %v2145 = vpop.f32.mrb[0].mxu0
        %v2146 = vadd.f32 0.0, %v2145
        %v2147 = vpop.f32.mrb[0].mxu0
        %2148 = vmatprep.mubr.f32.mxu0 0.0
        %2149 = vmatmul.mubr.f32.gmra.mrb[0].mxu0 %v2012
        %v2150 = vpop.f32.mrb[0].mxu0
        %v2151 = vadd.f32 0.0, %v2150
        %v2152 = vpop.f32.mrb[0].mxu0
        %2153 = vmatprep.mubr.f32.mxu0 0.0
        %2154 = vmatmul.mubr.f32.gmra.mrb[0].mxu0 %v2013
        %v2155 = vpop.f32.mrb[0].mxu0
        %v2156 = vadd.f32 0.0, %v2155
        %v2157 = vpop.f32.mrb[0].mxu0
        %2158 = vmatprep.mubr.f32.mxu0 0.0
        %2159 = vmatmul.mubr.f32.gmra.mrb[0].mxu0 %v2014
        %v2160 = vpop.f32.mrb[0].mxu0
        %v2161 = vadd.f32 0.0, %v2160
        %v2162 = vpop.f32.mrb[0].mxu0
        %2163 = vmatprep.mubr.f32.mxu0 0.0
        %2164 = vmatmul.mubr.f32.gmra.mrb[0].mxu0 %v2015
        %v2165 = vpop.f32.mrb[0].mxu0
        %v2166 = vadd.f32 0.0, %v2165
        %v2167 = vpop.f32.mrb[0].mxu0
        %2168 = vmatprep.mubr.f32.mxu0 0.0
        %2169 = vmatmul.mubr.f32.gmra.mrb[0].mxu0 %v2016
        %v2170 = vpop.f32.mrb[0].mxu0
        %v2171 = vadd.f32 0.0, %v2170
        %v2172 = vpop.f32.mrb[0].mxu0
        %2173 = vmatprep.mubr.f32.mxu0 0.0
        %2174 = vmatmul.mubr.f32.gmra.mrb[0].mxu0 %v2017
        %v2175 = vpop.f32.mrb[0].mxu0
        %v2176 = vadd.f32 0.0, %v2175
        %v2177 = vpop.f32.mrb[0].mxu0
        %2178 = vmatprep.mubr.f32.mxu0 0.0
        %2179 = vmatmul.mubr.f32.gmra.mrb[0].mxu0 %v2018
        %v2180 = vpop.f32.mrb[0].mxu0
        %v2181 = vadd.f32 0.0, %v2180
        %v2182 = vpop.f32.mrb[0].mxu0
        %2183 = vmatprep.mubr.f32.mxu0 0.0
        %2184 = vmatmul.mubr.f32.gmra.mrb[0].mxu0 %v2019
        %v2185 = vpop.f32.mrb[0].mxu0
        %v2186 = vadd.f32 0.0, %v2185
        %v2187 = vpop.f32.mrb[0].mxu0
        %2188 = vmatprep.mubr.f32.mxu0 0.0
        %2189 = vmatmul.mubr.f32.gmra.mrb[0].mxu0 %v2020
        %v2190 = vpop.f32.mrb[0].mxu0
        %v2191 = vadd.f32 0.0, %v2190
        %v2192 = vpop.f32.mrb[0].mxu0
        %2193 = vmatprep.mubr.f32.mxu0 0.0
        %2194 = vmatmul.mubr.f32.gmra.mrb[0].mxu0 %v2021
        %v2195 = vpop.f32.mrb[0].mxu0
        %v2196 = vadd.f32 0.0, %v2195
        %v2197 = vpop.f32.mrb[0].mxu0
        %2198 = vmatprep.mubr.f32.mxu0 0.0
        %2199 = vmatmul.mubr.f32.gmra.mrb[0].mxu0 %v2022
        %v2200 = vpop.f32.mrb[0].mxu0
        %v2201 = vadd.f32 0.0, %v2200
        %v2202 = vpop.f32.mrb[0].mxu0
        %2203 = vmatprep.mubr.f32.mxu0 0.0
        %2204 = vmatmul.mubr.f32.gmra.mrb[0].mxu0 %v2023
        %v2205 = vpop.f32.mrb[0].mxu0
        %v2206 = vadd.f32 0.0, %v2205
        %v2207 = vpop.f32.mrb[0].mxu0
        %2208 = vmatprep.mubr.f32.mxu0 0.0
        %2209 = vmatmul.mubr.f32.gmra.mrb[0].mxu0 %v2024
        %v2210 = vpop.f32.mrb[0].mxu0
        %v2211 = vadd.f32 0.0, %v2210
        %v2212 = vpop.f32.mrb[0].mxu0
        %2213 = vmatprep.mubr.f32.mxu0 0.0
        %2214 = vmatmul.mubr.f32.gmra.mrb[0].mxu0 %v2025
        %v2215 = vpop.f32.mrb[0].mxu0
        %v2216 = vadd.f32 0.0, %v2215
        %v2217 = vpop.f32.mrb[0].mxu0
        %2218 = vmatprep.mubr.f32.mxu0 0.0
        %2219 = vmatmul.mubr.f32.gmra.mrb[0].mxu0 %v2026
        %v2220 = vpop.f32.mrb[0].mxu0
        %v2221 = vadd.f32 0.0, %v2220
        %v2222 = vpop.f32.mrb[0].mxu0
        %2223 = vmatprep.mubr.f32.mxu0 0.0
        %2224 = vmatmul.mubr.f32.gmra.mrb[0].mxu0 %v2027
        %v2225 = vpop.f32.mrb[0].mxu0
        %v2226 = vadd.f32 0.0, %v2225
        %v2227 = vpop.f32.mrb[0].mxu0
        %2228 = vmatprep.mubr.f32.mxu0 0.0
        %2229 = vmatmul.mubr.f32.gmra.mrb[0].mxu0 %v2028
        %v2230 = vpop.f32.mrb[0].mxu0
        %v2231 = vadd.f32 0.0, %v2230
        %v2232 = vpop.f32.mrb[0].mxu0
        %2233 = vmatprep.mubr.f32.mxu0 0.0
        %2234 = vmatmul.mubr.f32.gmra.mrb[0].mxu0 %v2029
        %v2235 = vpop.f32.mrb[0].mxu0
        %v2236 = vadd.f32 0.0, %v2235
        %v2237 = vpop.f32.mrb[0].mxu0
        %2238 = vmatprep.mubr.f32.mxu0 0.0
        %2239 = vmatmul.mubr.f32.gmra.mrb[0].mxu0 %v2030
        %v2240 = vpop.f32.mrb[0].mxu0
        %v2241 = vadd.f32 0.0, %v2240
        %v2242 = vpop.f32.mrb[0].mxu0
        %2243 = vmatprep.mubr.f32.mxu0 0.0
        %2244 = vmatmul.mubr.f32.gmra.mrb[0].mxu0 %v2031
        %v2245 = vpop.f32.mrb[0].mxu0
        %v2246 = vadd.f32 0.0, %v2245
        %v2247 = vpop.f32.mrb[0].mxu0
        %2248 = vmatprep.mubr.f32.mxu0 0.0
        %2249 = vmatmul.mubr.f32.gmra.mrb[0].mxu0 %v2032
        %v2250 = vpop.f32.mrb[0].mxu0
        %v2251 = vadd.f32 0.0, %v2250
        %v2252 = vpop.f32.mrb[0].mxu0
        %2253 = vmatprep.mubr.f32.mxu0 0.0
        %2254 = vmatmul.mubr.f32.gmra.mrb[0].mxu0 %v2033
        %v2255 = vpop.f32.mrb[0].mxu0
        %v2256 = vadd.f32 0.0, %v2255
        %v2257 = vpop.f32.mrb[0].mxu0
        %2258 = vmatprep.mubr.f32.mxu0 0.0
        %2259 = vmatmul.mubr.f32.gmra.mrb[0].mxu0 %v2034
        %v2260 = vpop.f32.mrb[0].mxu0
        %v2261 = vadd.f32 0.0, %v2260
        %v2262 = vpop.f32.mrb[0].mxu0
        %2263 = vmatprep.mubr.f32.mxu0 0.0
        %2264 = vmatmul.mubr.f32.gmra.mrb[0].mxu0 %v2035
        %v2265 = vpop.f32.mrb[0].mxu0
        %v2266 = vadd.f32 0.0, %v2265
        %v2267 = vpop.f32.mrb[0].mxu0
        %2268 = vmatprep.mubr.f32.mxu0 0.0
        %2269 = vmatmul.mubr.f32.gmra.mrb[0].mxu0 %v2036
        %v2270 = vpop.f32.mrb[0].mxu0
        %v2271 = vadd.f32 0.0, %v2270
        %v2272 = vpop.f32.mrb[0].mxu0
        %2273 = vmatprep.mubr.f32.mxu0 0.0
        %2274 = vmatmul.mubr.f32.gmra.mrb[0].mxu0 %v2037
        %v2275 = vpop.f32.mrb[0].mxu0
        %v2276 = vadd.f32 0.0, %v2275
        %v2277 = vpop.f32.mrb[0].mxu0
        %2278 = vdwg.mxu0
        %v2279 = vadd.f32 %v1973, %v2121
        %v2280 = vadd.f32 %v1974, %v2126
        %v2281 = vadd.f32 %v1975, %v2131
        %v2282 = vadd.f32 %v1976, %v2136
        %v2283 = vadd.f32 %v1977, %v2141
        %v2284 = vadd.f32 %v1978, %v2146
        %v2285 = vadd.f32 %v1979, %v2151
        %v2286 = vadd.f32 %v1980, %v2156
        %v2287 = vadd.f32 %v1981, %v2161
        %v2288 = vadd.f32 %v1982, %v2166
        %v2289 = vadd.f32 %v1983, %v2171
        %v2290 = vadd.f32 %v1984, %v2176
        %v2291 = vadd.f32 %v1985, %v2181
        %v2292 = vadd.f32 %v1986, %v2186
        %v2293 = vadd.f32 %v1987, %v2191
        %v2294 = vadd.f32 %v1988, %v2196
        %v2295 = vadd.f32 %v1989, %v2201
        %v2296 = vadd.f32 %v1990, %v2206
        %v2297 = vadd.f32 %v1991, %v2211
        %v2298 = vadd.f32 %v1992, %v2216
        %v2299 = vadd.f32 %v1993, %v2221
        %v2300 = vadd.f32 %v1994, %v2226
        %v2301 = vadd.f32 %v1995, %v2231
        %v2302 = vadd.f32 %v1996, %v2236
        %v2303 = vadd.f32 %v1997, %v2241
        %v2304 = vadd.f32 %v1998, %v2246
        %v2305 = vadd.f32 %v1999, %v2251
        %v2306 = vadd.f32 %v2000, %v2256
        %v2307 = vadd.f32 %v2001, %v2261
        %v2308 = vadd.f32 %v2002, %v2266
        %v2309 = vadd.f32 %v2003, %v2271
        %v2310 = vadd.f32 %v2004, %v2276
        %v2311 = vld [vmem:[%s2005 + $0x1] sm:$0xff]
        %v2312 = vld [vmem:[%s2005 + $0x9] sm:$0xff]
        %v2313 = vld [vmem:[%s2005 + $0x19] sm:$0xff]
        %v2314 = vld [vmem:[%s2005 + $0x21] sm:$0xff]
        %v2315 = vld [vmem:[%s2005 + $0x31] sm:$0xff]
        %v2316 = vld [vmem:[%s2005 + $0x39] sm:$0xff]
        %v2317 = vld [vmem:[%s2005 + $0x49] sm:$0xff]
        %v2318 = vld [vmem:[%s2005 + $0x51] sm:$0xff]
        %v2319 = vld [vmem:[%s2005 + $0x61] sm:$0xff]
        %v2320 = vld [vmem:[%s2005 + $0x69] sm:$0xff]
        %v2321 = vld [vmem:[%s2005 + $0x79] sm:$0xff]
        %v2322 = vld [vmem:[%s2005 + $0x81] sm:$0xff]
        %v2323 = vld [vmem:[%s2005 + $0x91] sm:$0xff]
        %v2324 = vld [vmem:[%s2005 + $0x99] sm:$0xff]
        %v2325 = vld [vmem:[%s2005 + $0xa9] sm:$0xff]
        %v2326 = vld [vmem:[%s2005 + $0xb1] sm:$0xff]
        %v2327 = vld [vmem:[%s2005 + $0xc1] sm:$0xff]
        %v2328 = vld [vmem:[%s2005 + $0xc9] sm:$0xff]
        %v2329 = vld [vmem:[%s2005 + $0xd9] sm:$0xff]
        %v2330 = vld [vmem:[%s2005 + $0xe1] sm:$0xff]
        %v2331 = vld [vmem:[%s2005 + $0xf1] sm:$0xff]
        %v2332 = vld [vmem:[%s2005 + $0xf9] sm:$0xff]
        %v2333 = vld [vmem:[%s2005 + $0x109] sm:$0xff]
        %v2334 = vld [vmem:[%s2005 + $0x111] sm:$0xff]
        %v2335 = vld [vmem:[%s2005 + $0x121] sm:$0xff]
        %v2336 = vld [vmem:[%s2005 + $0x129] sm:$0xff]
        %v2337 = vld [vmem:[%s2005 + $0x139] sm:$0xff]
        %v2338 = vld [vmem:[%s2005 + $0x141] sm:$0xff]
        %v2339 = vld [vmem:[%s2005 + $0x151] sm:$0xff]
        %v2340 = vld [vmem:[%s2005 + $0x159] sm:$0xff]
        %v2341 = vld [vmem:[%s2005 + $0x169] sm:$0xff]
        %v2342 = vld [vmem:[%s2005 + $0x171] sm:$0xff]
        %v2343 = vld [vmem:[%s1 + $0x380] sm:$0xff]
        %v2344 = vld [vmem:[%s1 + $0x388] sm:$0xff]
        %v2345 = vld [vmem:[%s1 + $0x390] sm:$0xff]
        %v2346 = vld [vmem:[%s1 + $0x398] sm:$0xff]
        %v2347 = vld [vmem:[%s1 + $0x3a0] sm:$0xff]
        %v2348 = vld [vmem:[%s1 + $0x3a8] sm:$0xff]
        %v2349 = vld [vmem:[%s1 + $0x3b0] sm:$0xff]
        %v2350 = vld [vmem:[%s1 + $0x3b8] sm:$0xff]
        %v2351 = vld [vmem:[%s1 + $0x3c0] sm:$0xff]
        %v2352 = vld [vmem:[%s1 + $0x3c8] sm:$0xff]
        %v2353 = vld [vmem:[%s1 + $0x3d0] sm:$0xff]
        %v2354 = vld [vmem:[%s1 + $0x3d8] sm:$0xff]
        %v2355 = vld [vmem:[%s1 + $0x3e0] sm:$0xff]
        %v2356 = vld [vmem:[%s1 + $0x3e8] sm:$0xff]
        %v2357 = vld [vmem:[%s1 + $0x3f0] sm:$0xff]
        %v2358 = vld [vmem:[%s1 + $0x3f8] sm:$0xff]
        %2359 = vmatprep.subr.mxu0 0.0
        %2360 = vmatpush1.msra.mxu0 %v2343
        %2361 = vmatprep.subr.mxu0 0.0
        %2362 = vmatpush1.msra.mxu0 %v2344
        %2363 = vmatprep.subr.mxu0 0.0
        %2364 = vmatpush1.msra.mxu0 %v2345
        %2365 = vmatprep.subr.mxu0 0.0
        %2366 = vmatpush1.msra.mxu0 %v2346
        %2367 = vmatprep.subr.mxu0 0.0
        %2368 = vmatpush1.msra.mxu0 %v2347
        %2369 = vmatprep.subr.mxu0 0.0
        %2370 = vmatpush1.msra.mxu0 %v2348
        %2371 = vmatprep.subr.mxu0 0.0
        %2372 = vmatpush1.msra.mxu0 %v2349
        %2373 = vmatprep.subr.mxu0 0.0
        %2374 = vmatpush1.msra.mxu0 %v2350
        %2375 = vmatprep.subr.mxu0 0.0
        %2376 = vmatpush1.msra.mxu0 %v2351
        %2377 = vmatprep.subr.mxu0 0.0
        %2378 = vmatpush1.msra.mxu0 %v2352
        %2379 = vmatprep.subr.mxu0 0.0
        %2380 = vmatpush1.msra.mxu0 %v2353
        %2381 = vmatprep.subr.mxu0 0.0
        %2382 = vmatpush1.msra.mxu0 %v2354
        %2383 = vmatprep.subr.mxu0 0.0
        %2384 = vmatpush1.msra.mxu0 %v2355
        %2385 = vmatprep.subr.mxu0 0.0
        %2386 = vmatpush1.msra.mxu0 %v2356
        %2387 = vmatprep.subr.mxu0 0.0
        %2388 = vmatpush1.msra.mxu0 %v2357
        %2389 = vmatprep.subr.mxu0 0.0
        %2390 = vmatpush1.msra.mxu0 %v2358
        %2391 = vmatprep.subr.mxu0 0.0
        %2392 = vmatpush1.msra.mxu0 0.0
        %2393 = vmatprep.subr.mxu0 0.0
        %2394 = vmatpush1.msra.mxu0 0.0
        %2395 = vmatprep.subr.mxu0 0.0
        %2396 = vmatpush1.msra.mxu0 0.0
        %2397 = vmatprep.subr.mxu0 0.0
        %2398 = vmatpush1.msra.mxu0 0.0
        %2399 = vmatprep.subr.mxu0 0.0
        %2400 = vmatpush1.msra.mxu0 0.0
        %2401 = vmatprep.subr.mxu0 0.0
        %2402 = vmatpush1.msra.mxu0 0.0
        %2403 = vmatprep.subr.mxu0 0.0
        %2404 = vmatpush1.msra.mxu0 0.0
        %2405 = vmatprep.subr.mxu0 0.0
        %2406 = vmatpush1.msra.mxu0 0.0
        %2407 = vmatprep.subr.mxu0 0.0
        %2408 = vmatpush1.msra.mxu0 0.0
        %2409 = vmatprep.subr.mxu0 0.0
        %2410 = vmatpush1.msra.mxu0 0.0
        %2411 = vmatprep.subr.mxu0 0.0
        %2412 = vmatpush1.msra.mxu0 0.0
        %2413 = vmatprep.subr.mxu0 0.0
        %2414 = vmatpush1.msra.mxu0 0.0
        %2415 = vmatprep.subr.mxu0 0.0
        %2416 = vmatpush1.msra.mxu0 0.0
        %2417 = vmatprep.subr.mxu0 0.0
        %2418 = vmatpush1.msra.mxu0 0.0
        %2419 = vmatprep.subr.mxu0 0.0
        %2420 = vmatpush1.msra.mxu0 0.0
        %2421 = vmatprep.subr.mxu0 0.0
        %2422 = vmatpush1.msra.mxu0 0.0
        %2423 = vmatprep.mubr.f32.mxu0 0.0
        %2424 = vmatmul.mubr.f32.gmra.mrb[0].mxu0 %v2311
        %v2425 = vpop.f32.mrb[0].mxu0
        %v2426 = vadd.f32 0.0, %v2425
        %v2427 = vpop.f32.mrb[0].mxu0
        %2428 = vmatprep.mubr.f32.mxu0 0.0
        %2429 = vmatmul.mubr.f32.gmra.mrb[0].mxu0 %v2312
        %v2430 = vpop.f32.mrb[0].mxu0
        %v2431 = vadd.f32 0.0, %v2430
        %v2432 = vpop.f32.mrb[0].mxu0
        %2433 = vmatprep.mubr.f32.mxu0 0.0
        %2434 = vmatmul.mubr.f32.gmra.mrb[0].mxu0 %v2313
        %v2435 = vpop.f32.mrb[0].mxu0
        %v2436 = vadd.f32 0.0, %v2435
        %v2437 = vpop.f32.mrb[0].mxu0
        %2438 = vmatprep.mubr.f32.mxu0 0.0
        %2439 = vmatmul.mubr.f32.gmra.mrb[0].mxu0 %v2314
        %v2440 = vpop.f32.mrb[0].mxu0
        %v2441 = vadd.f32 0.0, %v2440
        %v2442 = vpop.f32.mrb[0].mxu0
        %2443 = vmatprep.mubr.f32.mxu0 0.0
        %2444 = vmatmul.mubr.f32.gmra.mrb[0].mxu0 %v2315
        %v2445 = vpop.f32.mrb[0].mxu0
        %v2446 = vadd.f32 0.0, %v2445
        %v2447 = vpop.f32.mrb[0].mxu0
        %2448 = vmatprep.mubr.f32.mxu0 0.0
        %2449 = vmatmul.mubr.f32.gmra.mrb[0].mxu0 %v2316
        %v2450 = vpop.f32.mrb[0].mxu0
        %v2451 = vadd.f32 0.0, %v2450
        %v2452 = vpop.f32.mrb[0].mxu0
        %2453 = vmatprep.mubr.f32.mxu0 0.0
        %2454 = vmatmul.mubr.f32.gmra.mrb[0].mxu0 %v2317
        %v2455 = vpop.f32.mrb[0].mxu0
        %v2456 = vadd.f32 0.0, %v2455
        %v2457 = vpop.f32.mrb[0].mxu0
        %2458 = vmatprep.mubr.f32.mxu0 0.0
        %2459 = vmatmul.mubr.f32.gmra.mrb[0].mxu0 %v2318
        %v2460 = vpop.f32.mrb[0].mxu0
        %v2461 = vadd.f32 0.0, %v2460
        %v2462 = vpop.f32.mrb[0].mxu0
        %2463 = vmatprep.mubr.f32.mxu0 0.0
        %2464 = vmatmul.mubr.f32.gmra.mrb[0].mxu0 %v2319
        %v2465 = vpop.f32.mrb[0].mxu0
        %v2466 = vadd.f32 0.0, %v2465
        %v2467 = vpop.f32.mrb[0].mxu0
        %2468 = vmatprep.mubr.f32.mxu0 0.0
        %2469 = vmatmul.mubr.f32.gmra.mrb[0].mxu0 %v2320
        %v2470 = vpop.f32.mrb[0].mxu0
        %v2471 = vadd.f32 0.0, %v2470
        %v2472 = vpop.f32.mrb[0].mxu0
        %2473 = vmatprep.mubr.f32.mxu0 0.0
        %2474 = vmatmul.mubr.f32.gmra.mrb[0].mxu0 %v2321
        %v2475 = vpop.f32.mrb[0].mxu0
        %v2476 = vadd.f32 0.0, %v2475
        %v2477 = vpop.f32.mrb[0].mxu0
        %2478 = vmatprep.mubr.f32.mxu0 0.0
        %2479 = vmatmul.mubr.f32.gmra.mrb[0].mxu0 %v2322
        %v2480 = vpop.f32.mrb[0].mxu0
        %v2481 = vadd.f32 0.0, %v2480
        %v2482 = vpop.f32.mrb[0].mxu0
        %2483 = vmatprep.mubr.f32.mxu0 0.0
        %2484 = vmatmul.mubr.f32.gmra.mrb[0].mxu0 %v2323
        %v2485 = vpop.f32.mrb[0].mxu0
        %v2486 = vadd.f32 0.0, %v2485
        %v2487 = vpop.f32.mrb[0].mxu0
        %2488 = vmatprep.mubr.f32.mxu0 0.0
        %2489 = vmatmul.mubr.f32.gmra.mrb[0].mxu0 %v2324
        %v2490 = vpop.f32.mrb[0].mxu0
        %v2491 = vadd.f32 0.0, %v2490
        %v2492 = vpop.f32.mrb[0].mxu0
        %2493 = vmatprep.mubr.f32.mxu0 0.0
        %2494 = vmatmul.mubr.f32.gmra.mrb[0].mxu0 %v2325
        %v2495 = vpop.f32.mrb[0].mxu0
        %v2496 = vadd.f32 0.0, %v2495
        %v2497 = vpop.f32.mrb[0].mxu0
        %2498 = vmatprep.mubr.f32.mxu0 0.0
        %2499 = vmatmul.mubr.f32.gmra.mrb[0].mxu0 %v2326
        %v2500 = vpop.f32.mrb[0].mxu0
        %v2501 = vadd.f32 0.0, %v2500
        %v2502 = vpop.f32.mrb[0].mxu0
        %2503 = vmatprep.mubr.f32.mxu0 0.0
        %2504 = vmatmul.mubr.f32.gmra.mrb[0].mxu0 %v2327
        %v2505 = vpop.f32.mrb[0].mxu0
        %v2506 = vadd.f32 0.0, %v2505
        %v2507 = vpop.f32.mrb[0].mxu0
        %2508 = vmatprep.mubr.f32.mxu0 0.0
        %2509 = vmatmul.mubr.f32.gmra.mrb[0].mxu0 %v2328
        %v2510 = vpop.f32.mrb[0].mxu0
        %v2511 = vadd.f32 0.0, %v2510
        %v2512 = vpop.f32.mrb[0].mxu0
        %2513 = vmatprep.mubr.f32.mxu0 0.0
        %2514 = vmatmul.mubr.f32.gmra.mrb[0].mxu0 %v2329
        %v2515 = vpop.f32.mrb[0].mxu0
        %v2516 = vadd.f32 0.0, %v2515
        %v2517 = vpop.f32.mrb[0].mxu0
        %2518 = vmatprep.mubr.f32.mxu0 0.0
        %2519 = vmatmul.mubr.f32.gmra.mrb[0].mxu0 %v2330
        %v2520 = vpop.f32.mrb[0].mxu0
        %v2521 = vadd.f32 0.0, %v2520
        %v2522 = vpop.f32.mrb[0].mxu0
        %2523 = vmatprep.mubr.f32.mxu0 0.0
        %2524 = vmatmul.mubr.f32.gmra.mrb[0].mxu0 %v2331
        %v2525 = vpop.f32.mrb[0].mxu0
        %v2526 = vadd.f32 0.0, %v2525
        %v2527 = vpop.f32.mrb[0].mxu0
        %2528 = vmatprep.mubr.f32.mxu0 0.0
        %2529 = vmatmul.mubr.f32.gmra.mrb[0].mxu0 %v2332
        %v2530 = vpop.f32.mrb[0].mxu0
        %v2531 = vadd.f32 0.0, %v2530
        %v2532 = vpop.f32.mrb[0].mxu0
        %2533 = vmatprep.mubr.f32.mxu0 0.0
        %2534 = vmatmul.mubr.f32.gmra.mrb[0].mxu0 %v2333
        %v2535 = vpop.f32.mrb[0].mxu0
        %v2536 = vadd.f32 0.0, %v2535
        %v2537 = vpop.f32.mrb[0].mxu0
        %2538 = vmatprep.mubr.f32.mxu0 0.0
        %2539 = vmatmul.mubr.f32.gmra.mrb[0].mxu0 %v2334
        %v2540 = vpop.f32.mrb[0].mxu0
        %v2541 = vadd.f32 0.0, %v2540
        %v2542 = vpop.f32.mrb[0].mxu0
        %2543 = vmatprep.mubr.f32.mxu0 0.0
        %2544 = vmatmul.mubr.f32.gmra.mrb[0].mxu0 %v2335
        %v2545 = vpop.f32.mrb[0].mxu0
        %v2546 = vadd.f32 0.0, %v2545
        %v2547 = vpop.f32.mrb[0].mxu0
        %2548 = vmatprep.mubr.f32.mxu0 0.0
        %2549 = vmatmul.mubr.f32.gmra.mrb[0].mxu0 %v2336
        %v2550 = vpop.f32.mrb[0].mxu0
        %v2551 = vadd.f32 0.0, %v2550
        %v2552 = vpop.f32.mrb[0].mxu0
        %2553 = vmatprep.mubr.f32.mxu0 0.0
        %2554 = vmatmul.mubr.f32.gmra.mrb[0].mxu0 %v2337
        %v2555 = vpop.f32.mrb[0].mxu0
        %v2556 = vadd.f32 0.0, %v2555
        %v2557 = vpop.f32.mrb[0].mxu0
        %2558 = vmatprep.mubr.f32.mxu0 0.0
        %2559 = vmatmul.mubr.f32.gmra.mrb[0].mxu0 %v2338
        %v2560 = vpop.f32.mrb[0].mxu0
        %v2561 = vadd.f32 0.0, %v2560
        %v2562 = vpop.f32.mrb[0].mxu0
        %2563 = vmatprep.mubr.f32.mxu0 0.0
        %2564 = vmatmul.mubr.f32.gmra.mrb[0].mxu0 %v2339
        %v2565 = vpop.f32.mrb[0].mxu0
        %v2566 = vadd.f32 0.0, %v2565
        %v2567 = vpop.f32.mrb[0].mxu0
        %2568 = vmatprep.mubr.f32.mxu0 0.0
        %2569 = vmatmul.mubr.f32.gmra.mrb[0].mxu0 %v2340
        %v2570 = vpop.f32.mrb[0].mxu0
        %v2571 = vadd.f32 0.0, %v2570
        %v2572 = vpop.f32.mrb[0].mxu0
        %2573 = vmatprep.mubr.f32.mxu0 0.0
        %2574 = vmatmul.mubr.f32.gmra.mrb[0].mxu0 %v2341
        %v2575 = vpop.f32.mrb[0].mxu0
        %v2576 = vadd.f32 0.0, %v2575
        %v2577 = vpop.f32.mrb[0].mxu0
        %2578 = vmatprep.mubr.f32.mxu0 0.0
        %2579 = vmatmul.mubr.f32.gmra.mrb[0].mxu0 %v2342
        %v2580 = vpop.f32.mrb[0].mxu0
        %v2581 = vadd.f32 0.0, %v2580
        %v2582 = vpop.f32.mrb[0].mxu0
        %2583 = vdwg.mxu0
        %v2584 = vadd.f32 %v2279, %v2426
        %v2585 = vadd.f32 %v2280, %v2431
        %v2586 = vadd.f32 %v2281, %v2436
        %v2587 = vadd.f32 %v2282, %v2441
        %v2588 = vadd.f32 %v2283, %v2446
        %v2589 = vadd.f32 %v2284, %v2451
        %v2590 = vadd.f32 %v2285, %v2456
        %v2591 = vadd.f32 %v2286, %v2461
        %v2592 = vadd.f32 %v2287, %v2466
        %v2593 = vadd.f32 %v2288, %v2471
        %v2594 = vadd.f32 %v2289, %v2476
        %v2595 = vadd.f32 %v2290, %v2481
        %v2596 = vadd.f32 %v2291, %v2486
        %v2597 = vadd.f32 %v2292, %v2491
        %v2598 = vadd.f32 %v2293, %v2496
        %v2599 = vadd.f32 %v2294, %v2501
        %v2600 = vadd.f32 %v2295, %v2506
        %v2601 = vadd.f32 %v2296, %v2511
        %v2602 = vadd.f32 %v2297, %v2516
        %v2603 = vadd.f32 %v2298, %v2521
        %v2604 = vadd.f32 %v2299, %v2526
        %v2605 = vadd.f32 %v2300, %v2531
        %v2606 = vadd.f32 %v2301, %v2536
        %v2607 = vadd.f32 %v2302, %v2541
        %v2608 = vadd.f32 %v2303, %v2546
        %v2609 = vadd.f32 %v2304, %v2551
        %v2610 = vadd.f32 %v2305, %v2556
        %v2611 = vadd.f32 %v2306, %v2561
        %v2612 = vadd.f32 %v2307, %v2566
        %v2613 = vadd.f32 %v2308, %v2571
        %v2614 = vadd.f32 %v2309, %v2576
        %v2615 = vadd.f32 %v2310, %v2581
        %v2616 = vld [vmem:[%s2005 + $0x2] sm:$0xff]
        %v2617 = vld [vmem:[%s2005 + $0xa] sm:$0xff]
        %v2618 = vld [vmem:[%s2005 + $0x1a] sm:$0xff]
        %v2619 = vld [vmem:[%s2005 + $0x22] sm:$0xff]
        %v2620 = vld [vmem:[%s2005 + $0x32] sm:$0xff]
        %v2621 = vld [vmem:[%s2005 + $0x3a] sm:$0xff]
        %v2622 = vld [vmem:[%s2005 + $0x4a] sm:$0xff]
        %v2623 = vld [vmem:[%s2005 + $0x52] sm:$0xff]
        %v2624 = vld [vmem:[%s2005 + $0x62] sm:$0xff]
        %v2625 = vld [vmem:[%s2005 + $0x6a] sm:$0xff]
        %v2626 = vld [vmem:[%s2005 + $0x7a] sm:$0xff]
        %v2627 = vld [vmem:[%s2005 + $0x82] sm:$0xff]
        %v2628 = vld [vmem:[%s2005 + $0x92] sm:$0xff]
        %v2629 = vld [vmem:[%s2005 + $0x9a] sm:$0xff]
        %v2630 = vld [vmem:[%s2005 + $0xaa] sm:$0xff]
        %v2631 = vld [vmem:[%s2005 + $0xb2] sm:$0xff]
        %v2632 = vld [vmem:[%s2005 + $0xc2] sm:$0xff]
        %v2633 = vld [vmem:[%s2005 + $0xca] sm:$0xff]
        %v2634 = vld [vmem:[%s2005 + $0xda] sm:$0xff]
        %v2635 = vld [vmem:[%s2005 + $0xe2] sm:$0xff]
        %v2636 = vld [vmem:[%s2005 + $0xf2] sm:$0xff]
        %v2637 = vld [vmem:[%s2005 + $0xfa] sm:$0xff]
        %v2638 = vld [vmem:[%s2005 + $0x10a] sm:$0xff]
        %v2639 = vld [vmem:[%s2005 + $0x112] sm:$0xff]
        %v2640 = vld [vmem:[%s2005 + $0x122] sm:$0xff]
        %v2641 = vld [vmem:[%s2005 + $0x12a] sm:$0xff]
        %v2642 = vld [vmem:[%s2005 + $0x13a] sm:$0xff]
        %v2643 = vld [vmem:[%s2005 + $0x142] sm:$0xff]
        %v2644 = vld [vmem:[%s2005 + $0x152] sm:$0xff]
        %v2645 = vld [vmem:[%s2005 + $0x15a] sm:$0xff]
        %v2646 = vld [vmem:[%s2005 + $0x16a] sm:$0xff]
        %v2647 = vld [vmem:[%s2005 + $0x172] sm:$0xff]
        %v2648 = vld [vmem:[%s1 + $0x400] sm:$0xff]
        %v2649 = vld [vmem:[%s1 + $0x408] sm:$0xff]
        %v2650 = vld [vmem:[%s1 + $0x410] sm:$0xff]
        %v2651 = vld [vmem:[%s1 + $0x418] sm:$0xff]
        %v2652 = vld [vmem:[%s1 + $0x420] sm:$0xff]
        %v2653 = vld [vmem:[%s1 + $0x428] sm:$0xff]
        %v2654 = vld [vmem:[%s1 + $0x430] sm:$0xff]
        %v2655 = vld [vmem:[%s1 + $0x438] sm:$0xff]
        %v2656 = vld [vmem:[%s1 + $0x440] sm:$0xff]
        %v2657 = vld [vmem:[%s1 + $0x448] sm:$0xff]
        %v2658 = vld [vmem:[%s1 + $0x450] sm:$0xff]
        %v2659 = vld [vmem:[%s1 + $0x458] sm:$0xff]
        %v2660 = vld [vmem:[%s1 + $0x460] sm:$0xff]
        %v2661 = vld [vmem:[%s1 + $0x468] sm:$0xff]
        %v2662 = vld [vmem:[%s1 + $0x470] sm:$0xff]
        %v2663 = vld [vmem:[%s1 + $0x478] sm:$0xff]
        %2664 = vmatprep.subr.mxu0 0.0
        %2665 = vmatpush1.msra.mxu0 %v2648
        %2666 = vmatprep.subr.mxu0 0.0
        %2667 = vmatpush1.msra.mxu0 %v2649
        %2668 = vmatprep.subr.mxu0 0.0
        %2669 = vmatpush1.msra.mxu0 %v2650
        %2670 = vmatprep.subr.mxu0 0.0
        %2671 = vmatpush1.msra.mxu0 %v2651
        %2672 = vmatprep.subr.mxu0 0.0
        %2673 = vmatpush1.msra.mxu0 %v2652
        %2674 = vmatprep.subr.mxu0 0.0
        %2675 = vmatpush1.msra.mxu0 %v2653
        %2676 = vmatprep.subr.mxu0 0.0
        %2677 = vmatpush1.msra.mxu0 %v2654
        %2678 = vmatprep.subr.mxu0 0.0
        %2679 = vmatpush1.msra.mxu0 %v2655
        %2680 = vmatprep.subr.mxu0 0.0
        %2681 = vmatpush1.msra.mxu0 %v2656
        %2682 = vmatprep.subr.mxu0 0.0
        %2683 = vmatpush1.msra.mxu0 %v2657
        %2684 = vmatprep.subr.mxu0 0.0
        %2685 = vmatpush1.msra.mxu0 %v2658
        %2686 = vmatprep.subr.mxu0 0.0
        %2687 = vmatpush1.msra.mxu0 %v2659
        %2688 = vmatprep.subr.mxu0 0.0
        %2689 = vmatpush1.msra.mxu0 %v2660
        %2690 = vmatprep.subr.mxu0 0.0
        %2691 = vmatpush1.msra.mxu0 %v2661
        %2692 = vmatprep.subr.mxu0 0.0
        %2693 = vmatpush1.msra.mxu0 %v2662
        %2694 = vmatprep.subr.mxu0 0.0
        %2695 = vmatpush1.msra.mxu0 %v2663
        %2696 = vmatprep.subr.mxu0 0.0
        %2697 = vmatpush1.msra.mxu0 0.0
        %2698 = vmatprep.subr.mxu0 0.0
        %2699 = vmatpush1.msra.mxu0 0.0
        %2700 = vmatprep.subr.mxu0 0.0
        %2701 = vmatpush1.msra.mxu0 0.0
        %2702 = vmatprep.subr.mxu0 0.0
        %2703 = vmatpush1.msra.mxu0 0.0
        %2704 = vmatprep.subr.mxu0 0.0
        %2705 = vmatpush1.msra.mxu0 0.0
        %2706 = vmatprep.subr.mxu0 0.0
        %2707 = vmatpush1.msra.mxu0 0.0
        %2708 = vmatprep.subr.mxu0 0.0
        %2709 = vmatpush1.msra.mxu0 0.0
        %2710 = vmatprep.subr.mxu0 0.0
        %2711 = vmatpush1.msra.mxu0 0.0
        %2712 = vmatprep.subr.mxu0 0.0
        %2713 = vmatpush1.msra.mxu0 0.0
        %2714 = vmatprep.subr.mxu0 0.0
        %2715 = vmatpush1.msra.mxu0 0.0
        %2716 = vmatprep.subr.mxu0 0.0
        %2717 = vmatpush1.msra.mxu0 0.0
        %2718 = vmatprep.subr.mxu0 0.0
        %2719 = vmatpush1.msra.mxu0 0.0
        %2720 = vmatprep.subr.mxu0 0.0
        %2721 = vmatpush1.msra.mxu0 0.0
        %2722 = vmatprep.subr.mxu0 0.0
        %2723 = vmatpush1.msra.mxu0 0.0
        %2724 = vmatprep.subr.mxu0 0.0
        %2725 = vmatpush1.msra.mxu0 0.0
        %2726 = vmatprep.subr.mxu0 0.0
        %2727 = vmatpush1.msra.mxu0 0.0
        %2728 = vmatprep.mubr.f32.mxu0 0.0
        %2729 = vmatmul.mubr.f32.gmra.mrb[0].mxu0 %v2616
        %v2730 = vpop.f32.mrb[0].mxu0
        %v2731 = vadd.f32 0.0, %v2730
        %v2732 = vpop.f32.mrb[0].mxu0
        %2733 = vmatprep.mubr.f32.mxu0 0.0
        %2734 = vmatmul.mubr.f32.gmra.mrb[0].mxu0 %v2617
        %v2735 = vpop.f32.mrb[0].mxu0
        %v2736 = vadd.f32 0.0, %v2735
        %v2737 = vpop.f32.mrb[0].mxu0
        %2738 = vmatprep.mubr.f32.mxu0 0.0
        %2739 = vmatmul.mubr.f32.gmra.mrb[0].mxu0 %v2618
        %v2740 = vpop.f32.mrb[0].mxu0
        %v2741 = vadd.f32 0.0, %v2740
        %v2742 = vpop.f32.mrb[0].mxu0
        %2743 = vmatprep.mubr.f32.mxu0 0.0
        %2744 = vmatmul.mubr.f32.gmra.mrb[0].mxu0 %v2619
        %v2745 = vpop.f32.mrb[0].mxu0
        %v2746 = vadd.f32 0.0, %v2745
        %v2747 = vpop.f32.mrb[0].mxu0
        %2748 = vmatprep.mubr.f32.mxu0 0.0
        %2749 = vmatmul.mubr.f32.gmra.mrb[0].mxu0 %v2620
        %v2750 = vpop.f32.mrb[0].mxu0
        %v2751 = vadd.f32 0.0, %v2750
        %v2752 = vpop.f32.mrb[0].mxu0
        %2753 = vmatprep.mubr.f32.mxu0 0.0
        %2754 = vmatmul.mubr.f32.gmra.mrb[0].mxu0 %v2621
        %v2755 = vpop.f32.mrb[0].mxu0
        %v2756 = vadd.f32 0.0, %v2755
        %v2757 = vpop.f32.mrb[0].mxu0
        %2758 = vmatprep.mubr.f32.mxu0 0.0
        %2759 = vmatmul.mubr.f32.gmra.mrb[0].mxu0 %v2622
        %v2760 = vpop.f32.mrb[0].mxu0
        %v2761 = vadd.f32 0.0, %v2760
        %v2762 = vpop.f32.mrb[0].mxu0
        %2763 = vmatprep.mubr.f32.mxu0 0.0
        %2764 = vmatmul.mubr.f32.gmra.mrb[0].mxu0 %v2623
        %v2765 = vpop.f32.mrb[0].mxu0
        %v2766 = vadd.f32 0.0, %v2765
        %v2767 = vpop.f32.mrb[0].mxu0
        %2768 = vmatprep.mubr.f32.mxu0 0.0
        %2769 = vmatmul.mubr.f32.gmra.mrb[0].mxu0 %v2624
        %v2770 = vpop.f32.mrb[0].mxu0
        %v2771 = vadd.f32 0.0, %v2770
        %v2772 = vpop.f32.mrb[0].mxu0
        %2773 = vmatprep.mubr.f32.mxu0 0.0
        %2774 = vmatmul.mubr.f32.gmra.mrb[0].mxu0 %v2625
        %v2775 = vpop.f32.mrb[0].mxu0
        %v2776 = vadd.f32 0.0, %v2775
        %v2777 = vpop.f32.mrb[0].mxu0
        %2778 = vmatprep.mubr.f32.mxu0 0.0
        %2779 = vmatmul.mubr.f32.gmra.mrb[0].mxu0 %v2626
        %v2780 = vpop.f32.mrb[0].mxu0
        %v2781 = vadd.f32 0.0, %v2780
        %v2782 = vpop.f32.mrb[0].mxu0
        %2783 = vmatprep.mubr.f32.mxu0 0.0
        %2784 = vmatmul.mubr.f32.gmra.mrb[0].mxu0 %v2627
        %v2785 = vpop.f32.mrb[0].mxu0
        %v2786 = vadd.f32 0.0, %v2785
        %v2787 = vpop.f32.mrb[0].mxu0
        %2788 = vmatprep.mubr.f32.mxu0 0.0
        %2789 = vmatmul.mubr.f32.gmra.mrb[0].mxu0 %v2628
        %v2790 = vpop.f32.mrb[0].mxu0
        %v2791 = vadd.f32 0.0, %v2790
        %v2792 = vpop.f32.mrb[0].mxu0
        %2793 = vmatprep.mubr.f32.mxu0 0.0
        %2794 = vmatmul.mubr.f32.gmra.mrb[0].mxu0 %v2629
        %v2795 = vpop.f32.mrb[0].mxu0
        %v2796 = vadd.f32 0.0, %v2795
        %v2797 = vpop.f32.mrb[0].mxu0
        %2798 = vmatprep.mubr.f32.mxu0 0.0
        %2799 = vmatmul.mubr.f32.gmra.mrb[0].mxu0 %v2630
        %v2800 = vpop.f32.mrb[0].mxu0
        %v2801 = vadd.f32 0.0, %v2800
        %v2802 = vpop.f32.mrb[0].mxu0
        %2803 = vmatprep.mubr.f32.mxu0 0.0
        %2804 = vmatmul.mubr.f32.gmra.mrb[0].mxu0 %v2631
        %v2805 = vpop.f32.mrb[0].mxu0
        %v2806 = vadd.f32 0.0, %v2805
        %v2807 = vpop.f32.mrb[0].mxu0
        %2808 = vmatprep.mubr.f32.mxu0 0.0
        %2809 = vmatmul.mubr.f32.gmra.mrb[0].mxu0 %v2632
        %v2810 = vpop.f32.mrb[0].mxu0
        %v2811 = vadd.f32 0.0, %v2810
        %v2812 = vpop.f32.mrb[0].mxu0
        %2813 = vmatprep.mubr.f32.mxu0 0.0
        %2814 = vmatmul.mubr.f32.gmra.mrb[0].mxu0 %v2633
        %v2815 = vpop.f32.mrb[0].mxu0
        %v2816 = vadd.f32 0.0, %v2815
        %v2817 = vpop.f32.mrb[0].mxu0
        %2818 = vmatprep.mubr.f32.mxu0 0.0
        %2819 = vmatmul.mubr.f32.gmra.mrb[0].mxu0 %v2634
        %v2820 = vpop.f32.mrb[0].mxu0
        %v2821 = vadd.f32 0.0, %v2820
        %v2822 = vpop.f32.mrb[0].mxu0
        %2823 = vmatprep.mubr.f32.mxu0 0.0
        %2824 = vmatmul.mubr.f32.gmra.mrb[0].mxu0 %v2635
        %v2825 = vpop.f32.mrb[0].mxu0
        %v2826 = vadd.f32 0.0, %v2825
        %v2827 = vpop.f32.mrb[0].mxu0
        %2828 = vmatprep.mubr.f32.mxu0 0.0
        %2829 = vmatmul.mubr.f32.gmra.mrb[0].mxu0 %v2636
        %v2830 = vpop.f32.mrb[0].mxu0
        %v2831 = vadd.f32 0.0, %v2830
        %v2832 = vpop.f32.mrb[0].mxu0
        %2833 = vmatprep.mubr.f32.mxu0 0.0
        %2834 = vmatmul.mubr.f32.gmra.mrb[0].mxu0 %v2637
        %v2835 = vpop.f32.mrb[0].mxu0
        %v2836 = vadd.f32 0.0, %v2835
        %v2837 = vpop.f32.mrb[0].mxu0
        %2838 = vmatprep.mubr.f32.mxu0 0.0
        %2839 = vmatmul.mubr.f32.gmra.mrb[0].mxu0 %v2638
        %v2840 = vpop.f32.mrb[0].mxu0
        %v2841 = vadd.f32 0.0, %v2840
        %v2842 = vpop.f32.mrb[0].mxu0
        %2843 = vmatprep.mubr.f32.mxu0 0.0
        %2844 = vmatmul.mubr.f32.gmra.mrb[0].mxu0 %v2639
        %v2845 = vpop.f32.mrb[0].mxu0
        %v2846 = vadd.f32 0.0, %v2845
        %v2847 = vpop.f32.mrb[0].mxu0
        %2848 = vmatprep.mubr.f32.mxu0 0.0
        %2849 = vmatmul.mubr.f32.gmra.mrb[0].mxu0 %v2640
        %v2850 = vpop.f32.mrb[0].mxu0
        %v2851 = vadd.f32 0.0, %v2850
        %v2852 = vpop.f32.mrb[0].mxu0
        %2853 = vmatprep.mubr.f32.mxu0 0.0
        %2854 = vmatmul.mubr.f32.gmra.mrb[0].mxu0 %v2641
        %v2855 = vpop.f32.mrb[0].mxu0
        %v2856 = vadd.f32 0.0, %v2855
        %v2857 = vpop.f32.mrb[0].mxu0
        %2858 = vmatprep.mubr.f32.mxu0 0.0
        %2859 = vmatmul.mubr.f32.gmra.mrb[0].mxu0 %v2642
        %v2860 = vpop.f32.mrb[0].mxu0
        %v2861 = vadd.f32 0.0, %v2860
        %v2862 = vpop.f32.mrb[0].mxu0
        %2863 = vmatprep.mubr.f32.mxu0 0.0
        %2864 = vmatmul.mubr.f32.gmra.mrb[0].mxu0 %v2643
        %v2865 = vpop.f32.mrb[0].mxu0
        %v2866 = vadd.f32 0.0, %v2865
        %v2867 = vpop.f32.mrb[0].mxu0
        %2868 = vmatprep.mubr.f32.mxu0 0.0
        %2869 = vmatmul.mubr.f32.gmra.mrb[0].mxu0 %v2644
        %v2870 = vpop.f32.mrb[0].mxu0
        %v2871 = vadd.f32 0.0, %v2870
        %v2872 = vpop.f32.mrb[0].mxu0
        %2873 = vmatprep.mubr.f32.mxu0 0.0
        %2874 = vmatmul.mubr.f32.gmra.mrb[0].mxu0 %v2645
        %v2875 = vpop.f32.mrb[0].mxu0
        %v2876 = vadd.f32 0.0, %v2875
        %v2877 = vpop.f32.mrb[0].mxu0
        %2878 = vmatprep.mubr.f32.mxu0 0.0
        %2879 = vmatmul.mubr.f32.gmra.mrb[0].mxu0 %v2646
        %v2880 = vpop.f32.mrb[0].mxu0
        %v2881 = vadd.f32 0.0, %v2880
        %v2882 = vpop.f32.mrb[0].mxu0
        %2883 = vmatprep.mubr.f32.mxu0 0.0
        %2884 = vmatmul.mubr.f32.gmra.mrb[0].mxu0 %v2647
        %v2885 = vpop.f32.mrb[0].mxu0
        %v2886 = vadd.f32 0.0, %v2885
        %v2887 = vpop.f32.mrb[0].mxu0
        %2888 = vdwg.mxu0
        %v2889 = vadd.f32 %v2584, %v2731
        %v2890 = vadd.f32 %v2585, %v2736
        %v2891 = vadd.f32 %v2586, %v2741
        %v2892 = vadd.f32 %v2587, %v2746
        %v2893 = vadd.f32 %v2588, %v2751
        %v2894 = vadd.f32 %v2589, %v2756
        %v2895 = vadd.f32 %v2590, %v2761
        %v2896 = vadd.f32 %v2591, %v2766
        %v2897 = vadd.f32 %v2592, %v2771
        %v2898 = vadd.f32 %v2593, %v2776
        %v2899 = vadd.f32 %v2594, %v2781
        %v2900 = vadd.f32 %v2595, %v2786
        %v2901 = vadd.f32 %v2596, %v2791
        %v2902 = vadd.f32 %v2597, %v2796
        %v2903 = vadd.f32 %v2598, %v2801
        %v2904 = vadd.f32 %v2599, %v2806
        %v2905 = vadd.f32 %v2600, %v2811
        %v2906 = vadd.f32 %v2601, %v2816
        %v2907 = vadd.f32 %v2602, %v2821
        %v2908 = vadd.f32 %v2603, %v2826
        %v2909 = vadd.f32 %v2604, %v2831
        %v2910 = vadd.f32 %v2605, %v2836
        %v2911 = vadd.f32 %v2606, %v2841
        %v2912 = vadd.f32 %v2607, %v2846
        %v2913 = vadd.f32 %v2608, %v2851
        %v2914 = vadd.f32 %v2609, %v2856
        %v2915 = vadd.f32 %v2610, %v2861
        %v2916 = vadd.f32 %v2611, %v2866
        %v2917 = vadd.f32 %v2612, %v2871
        %v2918 = vadd.f32 %v2613, %v2876
        %v2919 = vadd.f32 %v2614, %v2881
        %v2920 = vadd.f32 %v2615, %v2886
        %v2921 = vld [vmem:[%s2] sm:$0x1]
        %v2923 = vlaneseq
        %v2924 = vshrl.u32 %v2923, 7
        %v2925 = vsub.s32 0, %v2924
        %v2926 = vrot.slane %v2921, %v2925
        %v2928 = vadd.f32 %v2889, %v2926
        %v2929 = vadd.f32 %v2890, %v2926
        %v2930 = vadd.f32 %v2891, %v2926
        %v2931 = vadd.f32 %v2892, %v2926
        %v2932 = vadd.f32 %v2893, %v2926
        %v2933 = vadd.f32 %v2894, %v2926
        %v2934 = vadd.f32 %v2895, %v2926
        %v2935 = vadd.f32 %v2896, %v2926
        %v2936 = vadd.f32 %v2897, %v2926
        %v2937 = vadd.f32 %v2898, %v2926
        %v2938 = vadd.f32 %v2899, %v2926
        %v2939 = vadd.f32 %v2900, %v2926
        %v2940 = vadd.f32 %v2901, %v2926
        %v2941 = vadd.f32 %v2902, %v2926
        %v2942 = vadd.f32 %v2903, %v2926
        %v2943 = vadd.f32 %v2904, %v2926
        %v2944 = vadd.f32 %v2905, %v2926
        %v2945 = vadd.f32 %v2906, %v2926
        %v2946 = vadd.f32 %v2907, %v2926
        %v2947 = vadd.f32 %v2908, %v2926
        %v2948 = vadd.f32 %v2909, %v2926
        %v2949 = vadd.f32 %v2910, %v2926
        %v2950 = vadd.f32 %v2911, %v2926
        %v2951 = vadd.f32 %v2912, %v2926
        %v2952 = vadd.f32 %v2913, %v2926
        %v2953 = vadd.f32 %v2914, %v2926
        %v2954 = vadd.f32 %v2915, %v2926
        %v2955 = vadd.f32 %v2916, %v2926
        %v2956 = vadd.f32 %v2917, %v2926
        %v2957 = vadd.f32 %v2918, %v2926
        %v2958 = vadd.f32 %v2919, %v2926
        %v2959 = vadd.f32 %v2920, %v2926
        %v2960 = vmax.f32 %v2928, 0.0
        %v2961 = vmax.f32 %v2929, 0.0
        %v2962 = vmax.f32 %v2930, 0.0
        %v2963 = vmax.f32 %v2931, 0.0
        %v2964 = vmax.f32 %v2932, 0.0
        %v2965 = vmax.f32 %v2933, 0.0
        %v2966 = vmax.f32 %v2934, 0.0
        %v2967 = vmax.f32 %v2935, 0.0
        %v2968 = vmax.f32 %v2936, 0.0
        %v2969 = vmax.f32 %v2937, 0.0
        %v2970 = vmax.f32 %v2938, 0.0
        %v2971 = vmax.f32 %v2939, 0.0
        %v2972 = vmax.f32 %v2940, 0.0
        %v2973 = vmax.f32 %v2941, 0.0
        %v2974 = vmax.f32 %v2942, 0.0
        %v2975 = vmax.f32 %v2943, 0.0
        %v2976 = vmax.f32 %v2944, 0.0
        %v2977 = vmax.f32 %v2945, 0.0
        %v2978 = vmax.f32 %v2946, 0.0
        %v2979 = vmax.f32 %v2947, 0.0
        %v2980 = vmax.f32 %v2948, 0.0
        %v2981 = vmax.f32 %v2949, 0.0
        %v2982 = vmax.f32 %v2950, 0.0
        %v2983 = vmax.f32 %v2951, 0.0
        %v2984 = vmax.f32 %v2952, 0.0
        %v2985 = vmax.f32 %v2953, 0.0
        %v2986 = vmax.f32 %v2954, 0.0
        %v2987 = vmax.f32 %v2955, 0.0
        %v2988 = vmax.f32 %v2956, 0.0
        %v2989 = vmax.f32 %v2957, 0.0
        %v2990 = vmax.f32 %v2958, 0.0
        %v2991 = vmax.f32 %v2959, 0.0
        %v2992 = vld [vmem:[%s4] sm:$0x1]
        %v2994 = vlaneseq
        %v2995 = vshrl.u32 %v2994, 7
        %v2996 = vsub.s32 0, %v2995
        %v2997 = vrot.slane %v2992, %v2996
        %v2999 = vadd.f32 %v1395, %v2997
        %v3000 = vadd.f32 %v1396, %v2997
        %v3001 = vadd.f32 %v1397, %v2997
        %v3002 = vadd.f32 %v1398, %v2997
        %v3003 = vadd.f32 %v1399, %v2997
        %v3004 = vadd.f32 %v1400, %v2997
        %v3005 = vadd.f32 %v1401, %v2997
        %v3006 = vadd.f32 %v1402, %v2997
        %v3007 = vadd.f32 %v1403, %v2997
        %v3008 = vadd.f32 %v1404, %v2997
        %v3009 = vadd.f32 %v1405, %v2997
        %v3010 = vadd.f32 %v1406, %v2997
        %v3011 = vadd.f32 %v1407, %v2997
        %v3012 = vadd.f32 %v1408, %v2997
        %v3013 = vadd.f32 %v1409, %v2997
        %v3014 = vadd.f32 %v1410, %v2997
        %v3015 = vadd.f32 %v1411, %v2997
        %v3016 = vadd.f32 %v1412, %v2997
        %v3017 = vadd.f32 %v1413, %v2997
        %v3018 = vadd.f32 %v1414, %v2997
        %v3019 = vadd.f32 %v1415, %v2997
        %v3020 = vadd.f32 %v1416, %v2997
        %v3021 = vadd.f32 %v1417, %v2997
        %v3022 = vadd.f32 %v1418, %v2997
        %v3023 = vadd.f32 %v1419, %v2997
        %v3024 = vadd.f32 %v1420, %v2997
        %v3025 = vadd.f32 %v1421, %v2997
        %v3026 = vadd.f32 %v1422, %v2997
        %v3027 = vadd.f32 %v1423, %v2997
        %v3028 = vadd.f32 %v1424, %v2997
        %v3029 = vadd.f32 %v1425, %v2997
        %v3030 = vadd.f32 %v1426, %v2997
        %3031 = vst [vmem:[#allocation2] sm:$0xff] 0.0
        %3032 = vst [vmem:[#allocation2 + $0x8] sm:$0xff] 0.0
        %3033 = vst [vmem:[#allocation2 + $0x10] sm:$0x3] 0.0
        %s3034 = scalar_lea.vmem [#allocation2], 408
        %3035 = vst [vmem:[%s3034] sm:$0xff] 0.0
        %3036 = vst [vmem:[%s3034 + $0x8] sm:$0xff] 0.0
        %3037 = vst [vmem:[%s3034 + $0x10] sm:$0x3] 0.0
        %3038 = vst [vmem:[#allocation2] sm:$0x1] 0.0
        %3039 = vst [vmem:[#allocation2 + $0x18] sm:$0x1] 0.0
        %3040 = vst [vmem:[#allocation2 + $0x30] sm:$0x1] 0.0
        %3041 = vst [vmem:[#allocation2 + $0x48] sm:$0x1] 0.0
        %3042 = vst [vmem:[#allocation2 + $0x60] sm:$0x1] 0.0
        %3043 = vst [vmem:[#allocation2 + $0x78] sm:$0x1] 0.0
        %3044 = vst [vmem:[#allocation2 + $0x90] sm:$0x1] 0.0
        %3045 = vst [vmem:[#allocation2 + $0xa8] sm:$0x1] 0.0
        %3046 = vst [vmem:[#allocation2 + $0xc0] sm:$0x1] 0.0
        %3047 = vst [vmem:[#allocation2 + $0xd8] sm:$0x1] 0.0
        %3048 = vst [vmem:[#allocation2 + $0xf0] sm:$0x1] 0.0
        %3049 = vst [vmem:[#allocation2 + $0x108] sm:$0x1] 0.0
        %3050 = vst [vmem:[#allocation2 + $0x120] sm:$0x1] 0.0
        %3051 = vst [vmem:[#allocation2 + $0x138] sm:$0x1] 0.0
        %3052 = vst [vmem:[#allocation2 + $0x150] sm:$0x1] 0.0
        %3053 = vst [vmem:[#allocation2 + $0x168] sm:$0x1] 0.0
        %3054 = vst [vmem:[#allocation2 + $0x180] sm:$0x1] 0.0
        %3055 = vst [vmem:[#allocation2 + $0x198] sm:$0x1] 0.0
        %3056 = vst [vmem:[#allocation2 + $0x11] sm:$0x1] 0.0
        %3057 = vst [vmem:[#allocation2 + $0x29] sm:$0x1] 0.0
        %3058 = vst [vmem:[#allocation2 + $0x41] sm:$0x1] 0.0
        %3059 = vst [vmem:[#allocation2 + $0x59] sm:$0x1] 0.0
        %3060 = vst [vmem:[#allocation2 + $0x71] sm:$0x1] 0.0
        %3061 = vst [vmem:[#allocation2 + $0x89] sm:$0x1] 0.0
        %3062 = vst [vmem:[#allocation2 + $0xa1] sm:$0x1] 0.0
        %3063 = vst [vmem:[#allocation2 + $0xb9] sm:$0x1] 0.0
        %3064 = vst [vmem:[#allocation2 + $0xd1] sm:$0x1] 0.0
        %3065 = vst [vmem:[#allocation2 + $0xe9] sm:$0x1] 0.0
        %3066 = vst [vmem:[#allocation2 + $0x101] sm:$0x1] 0.0
        %3067 = vst [vmem:[#allocation2 + $0x119] sm:$0x1] 0.0
        %3068 = vst [vmem:[#allocation2 + $0x131] sm:$0x1] 0.0
        %3069 = vst [vmem:[#allocation2 + $0x149] sm:$0x1] 0.0
        %3070 = vst [vmem:[#allocation2 + $0x161] sm:$0x1] 0.0
        %3071 = vst [vmem:[#allocation2 + $0x179] sm:$0x1] 0.0
        %3072 = vst [vmem:[#allocation2 + $0x191] sm:$0x1] 0.0
        %3073 = vst [vmem:[#allocation2 + $0x1a9] sm:$0x1] 0.0
        %s3074 = scalar_lea.vmem [#allocation2], 24
        %3075 = vst [vmem:[%s3074 + $0x1] sm:$0xff] %v2960
        %3076 = vst [vmem:[%s3074 + $0x9] sm:$0xff] %v2961
        %3077 = vst [vmem:[%s3074 + $0x19] sm:$0xff] %v2962
        %3078 = vst [vmem:[%s3074 + $0x21] sm:$0xff] %v2963
        %3079 = vst [vmem:[%s3074 + $0x31] sm:$0xff] %v2964
        %3080 = vst [vmem:[%s3074 + $0x39] sm:$0xff] %v2965
        %3081 = vst [vmem:[%s3074 + $0x49] sm:$0xff] %v2966
        %3082 = vst [vmem:[%s3074 + $0x51] sm:$0xff] %v2967
        %3083 = vst [vmem:[%s3074 + $0x61] sm:$0xff] %v2968
        %3084 = vst [vmem:[%s3074 + $0x69] sm:$0xff] %v2969
        %3085 = vst [vmem:[%s3074 + $0x79] sm:$0xff] %v2970
        %3086 = vst [vmem:[%s3074 + $0x81] sm:$0xff] %v2971
        %3087 = vst [vmem:[%s3074 + $0x91] sm:$0xff] %v2972
        %3088 = vst [vmem:[%s3074 + $0x99] sm:$0xff] %v2973
        %3089 = vst [vmem:[%s3074 + $0xa9] sm:$0xff] %v2974
        %3090 = vst [vmem:[%s3074 + $0xb1] sm:$0xff] %v2975
        %3091 = vst [vmem:[%s3074 + $0xc1] sm:$0xff] %v2976
        %3092 = vst [vmem:[%s3074 + $0xc9] sm:$0xff] %v2977
        %3093 = vst [vmem:[%s3074 + $0xd9] sm:$0xff] %v2978
        %3094 = vst [vmem:[%s3074 + $0xe1] sm:$0xff] %v2979
        %3095 = vst [vmem:[%s3074 + $0xf1] sm:$0xff] %v2980
        %3096 = vst [vmem:[%s3074 + $0xf9] sm:$0xff] %v2981
        %3097 = vst [vmem:[%s3074 + $0x109] sm:$0xff] %v2982
        %3098 = vst [vmem:[%s3074 + $0x111] sm:$0xff] %v2983
        %3099 = vst [vmem:[%s3074 + $0x121] sm:$0xff] %v2984
        %3100 = vst [vmem:[%s3074 + $0x129] sm:$0xff] %v2985
        %3101 = vst [vmem:[%s3074 + $0x139] sm:$0xff] %v2986
        %3102 = vst [vmem:[%s3074 + $0x141] sm:$0xff] %v2987
        %3103 = vst [vmem:[%s3074 + $0x151] sm:$0xff] %v2988
        %3104 = vst [vmem:[%s3074 + $0x159] sm:$0xff] %v2989
        %3105 = vst [vmem:[%s3074 + $0x169] sm:$0xff] %v2990
        %3106 = vst [vmem:[%s3074 + $0x171] sm:$0xff] %v2991
        %v3107 = vld [vmem:[#allocation2] sm:$0xff]
        %v3108 = vld [vmem:[#allocation2 + $0x8] sm:$0xff]
        %v3109 = vld [vmem:[#allocation2 + $0x18] sm:$0xff]
        %v3110 = vld [vmem:[#allocation2 + $0x20] sm:$0xff]
        %v3111 = vld [vmem:[#allocation2 + $0x30] sm:$0xff]
        %v3112 = vld [vmem:[#allocation2 + $0x38] sm:$0xff]
        %v3113 = vld [vmem:[#allocation2 + $0x48] sm:$0xff]
        %v3114 = vld [vmem:[#allocation2 + $0x50] sm:$0xff]
        %v3115 = vld [vmem:[#allocation2 + $0x60] sm:$0xff]
        %v3116 = vld [vmem:[#allocation2 + $0x68] sm:$0xff]
        %v3117 = vld [vmem:[#allocation2 + $0x78] sm:$0xff]
        %v3118 = vld [vmem:[#allocation2 + $0x80] sm:$0xff]
        %v3119 = vld [vmem:[#allocation2 + $0x90] sm:$0xff]
        %v3120 = vld [vmem:[#allocation2 + $0x98] sm:$0xff]
        %v3121 = vld [vmem:[#allocation2 + $0xa8] sm:$0xff]
        %v3122 = vld [vmem:[#allocation2 + $0xb0] sm:$0xff]
        %v3123 = vld [vmem:[#allocation2 + $0xc0] sm:$0xff]
        %v3124 = vld [vmem:[#allocation2 + $0xc8] sm:$0xff]
        %v3125 = vld [vmem:[#allocation2 + $0xd8] sm:$0xff]
        %v3126 = vld [vmem:[#allocation2 + $0xe0] sm:$0xff]
        %v3127 = vld [vmem:[#allocation2 + $0xf0] sm:$0xff]
        %v3128 = vld [vmem:[#allocation2 + $0xf8] sm:$0xff]
        %v3129 = vld [vmem:[#allocation2 + $0x108] sm:$0xff]
        %v3130 = vld [vmem:[#allocation2 + $0x110] sm:$0xff]
        %v3131 = vld [vmem:[#allocation2 + $0x120] sm:$0xff]
        %v3132 = vld [vmem:[#allocation2 + $0x128] sm:$0xff]
        %v3133 = vld [vmem:[#allocation2 + $0x138] sm:$0xff]
        %v3134 = vld [vmem:[#allocation2 + $0x140] sm:$0xff]
        %v3135 = vld [vmem:[#allocation2 + $0x150] sm:$0xff]
        %v3136 = vld [vmem:[#allocation2 + $0x158] sm:$0xff]
        %v3137 = vld [vmem:[#allocation2 + $0x168] sm:$0xff]
        %v3138 = vld [vmem:[#allocation2 + $0x170] sm:$0xff]
        %v3139 = vld [vmem:[#allocation3] sm:$0xff]
        %v3140 = vld [vmem:[#allocation3 + $0x8] sm:$0xff]
        %v3141 = vld [vmem:[#allocation3 + $0x10] sm:$0xff]
        %v3142 = vld [vmem:[#allocation3 + $0x18] sm:$0xff]
        %v3143 = vld [vmem:[#allocation3 + $0x20] sm:$0xff]
        %v3144 = vld [vmem:[#allocation3 + $0x28] sm:$0xff]
        %v3145 = vld [vmem:[#allocation3 + $0x30] sm:$0xff]
        %v3146 = vld [vmem:[#allocation3 + $0x38] sm:$0xff]
        %v3147 = vld [vmem:[#allocation3 + $0x40] sm:$0xff]
        %v3148 = vld [vmem:[#allocation3 + $0x48] sm:$0xff]
        %v3149 = vld [vmem:[#allocation3 + $0x50] sm:$0xff]
        %v3150 = vld [vmem:[#allocation3 + $0x58] sm:$0xff]
        %v3151 = vld [vmem:[#allocation3 + $0x60] sm:$0xff]
        %v3152 = vld [vmem:[#allocation3 + $0x68] sm:$0xff]
        %v3153 = vld [vmem:[#allocation3 + $0x70] sm:$0xff]
        %v3154 = vld [vmem:[#allocation3 + $0x78] sm:$0xff]
        %3155 = vmatprep.subr.mxu0 0.0
        %3156 = vmatpush1.msra.mxu0 %v3139
        %3157 = vmatprep.subr.mxu0 0.0
        %3158 = vmatpush1.msra.mxu0 %v3140
        %3159 = vmatprep.subr.mxu0 0.0
        %3160 = vmatpush1.msra.mxu0 %v3141
        %3161 = vmatprep.subr.mxu0 0.0
        %3162 = vmatpush1.msra.mxu0 %v3142
        %3163 = vmatprep.subr.mxu0 0.0
        %3164 = vmatpush1.msra.mxu0 %v3143
        %3165 = vmatprep.subr.mxu0 0.0
        %3166 = vmatpush1.msra.mxu0 %v3144
        %3167 = vmatprep.subr.mxu0 0.0
        %3168 = vmatpush1.msra.mxu0 %v3145
        %3169 = vmatprep.subr.mxu0 0.0
        %3170 = vmatpush1.msra.mxu0 %v3146
        %3171 = vmatprep.subr.mxu0 0.0
        %3172 = vmatpush1.msra.mxu0 %v3147
        %3173 = vmatprep.subr.mxu0 0.0
        %3174 = vmatpush1.msra.mxu0 %v3148
        %3175 = vmatprep.subr.mxu0 0.0
        %3176 = vmatpush1.msra.mxu0 %v3149
        %3177 = vmatprep.subr.mxu0 0.0
        %3178 = vmatpush1.msra.mxu0 %v3150
        %3179 = vmatprep.subr.mxu0 0.0
        %3180 = vmatpush1.msra.mxu0 %v3151
        %3181 = vmatprep.subr.mxu0 0.0
        %3182 = vmatpush1.msra.mxu0 %v3152
        %3183 = vmatprep.subr.mxu0 0.0
        %3184 = vmatpush1.msra.mxu0 %v3153
        %3185 = vmatprep.subr.mxu0 0.0
        %3186 = vmatpush1.msra.mxu0 %v3154
        %3187 = vmatprep.subr.mxu0 0.0
        %3188 = vmatpush1.msra.mxu0 0.0
        %3189 = vmatprep.subr.mxu0 0.0
        %3190 = vmatpush1.msra.mxu0 0.0
        %3191 = vmatprep.subr.mxu0 0.0
        %3192 = vmatpush1.msra.mxu0 0.0
        %3193 = vmatprep.subr.mxu0 0.0
        %3194 = vmatpush1.msra.mxu0 0.0
        %3195 = vmatprep.subr.mxu0 0.0
        %3196 = vmatpush1.msra.mxu0 0.0
        %3197 = vmatprep.subr.mxu0 0.0
        %3198 = vmatpush1.msra.mxu0 0.0
        %3199 = vmatprep.subr.mxu0 0.0
        %3200 = vmatpush1.msra.mxu0 0.0
        %3201 = vmatprep.subr.mxu0 0.0
        %3202 = vmatpush1.msra.mxu0 0.0
        %3203 = vmatprep.subr.mxu0 0.0
        %3204 = vmatpush1.msra.mxu0 0.0
        %3205 = vmatprep.subr.mxu0 0.0
        %3206 = vmatpush1.msra.mxu0 0.0
        %3207 = vmatprep.subr.mxu0 0.0
        %3208 = vmatpush1.msra.mxu0 0.0
        %3209 = vmatprep.subr.mxu0 0.0
        %3210 = vmatpush1.msra.mxu0 0.0
        %3211 = vmatprep.subr.mxu0 0.0
        %3212 = vmatpush1.msra.mxu0 0.0
        %3213 = vmatprep.subr.mxu0 0.0
        %3214 = vmatpush1.msra.mxu0 0.0
        %3215 = vmatprep.subr.mxu0 0.0
        %3216 = vmatpush1.msra.mxu0 0.0
        %3217 = vmatprep.subr.mxu0 0.0
        %3218 = vmatpush1.msra.mxu0 0.0
        %3219 = vmatprep.mubr.f32.mxu0 0.0
        %3220 = vmatmul.mubr.f32.gmra.mrb[0].mxu0 %v3107
        %v3221 = vpop.f32.mrb[0].mxu0
        %v3222 = vadd.f32 0.0, %v3221
        %v3223 = vpop.f32.mrb[0].mxu0
        %3224 = vmatprep.mubr.f32.mxu0 0.0
        %3225 = vmatmul.mubr.f32.gmra.mrb[0].mxu0 %v3108
        %v3226 = vpop.f32.mrb[0].mxu0
        %v3227 = vadd.f32 0.0, %v3226
        %v3228 = vpop.f32.mrb[0].mxu0
        %3229 = vmatprep.mubr.f32.mxu0 0.0
        %3230 = vmatmul.mubr.f32.gmra.mrb[0].mxu0 %v3109
        %v3231 = vpop.f32.mrb[0].mxu0
        %v3232 = vadd.f32 0.0, %v3231
        %v3233 = vpop.f32.mrb[0].mxu0
        %3234 = vmatprep.mubr.f32.mxu0 0.0
        %3235 = vmatmul.mubr.f32.gmra.mrb[0].mxu0 %v3110
        %v3236 = vpop.f32.mrb[0].mxu0
        %v3237 = vadd.f32 0.0, %v3236
        %v3238 = vpop.f32.mrb[0].mxu0
        %3239 = vmatprep.mubr.f32.mxu0 0.0
        %3240 = vmatmul.mubr.f32.gmra.mrb[0].mxu0 %v3111
        %v3241 = vpop.f32.mrb[0].mxu0
        %v3242 = vadd.f32 0.0, %v3241
        %v3243 = vpop.f32.mrb[0].mxu0
        %3244 = vmatprep.mubr.f32.mxu0 0.0
        %3245 = vmatmul.mubr.f32.gmra.mrb[0].mxu0 %v3112
        %v3246 = vpop.f32.mrb[0].mxu0
        %v3247 = vadd.f32 0.0, %v3246
        %v3248 = vpop.f32.mrb[0].mxu0
        %3249 = vmatprep.mubr.f32.mxu0 0.0
        %3250 = vmatmul.mubr.f32.gmra.mrb[0].mxu0 %v3113
        %v3251 = vpop.f32.mrb[0].mxu0
        %v3252 = vadd.f32 0.0, %v3251
        %v3253 = vpop.f32.mrb[0].mxu0
        %3254 = vmatprep.mubr.f32.mxu0 0.0
        %3255 = vmatmul.mubr.f32.gmra.mrb[0].mxu0 %v3114
        %v3256 = vpop.f32.mrb[0].mxu0
        %v3257 = vadd.f32 0.0, %v3256
        %v3258 = vpop.f32.mrb[0].mxu0
        %3259 = vmatprep.mubr.f32.mxu0 0.0
        %3260 = vmatmul.mubr.f32.gmra.mrb[0].mxu0 %v3115
        %v3261 = vpop.f32.mrb[0].mxu0
        %v3262 = vadd.f32 0.0, %v3261
        %v3263 = vpop.f32.mrb[0].mxu0
        %3264 = vmatprep.mubr.f32.mxu0 0.0
        %3265 = vmatmul.mubr.f32.gmra.mrb[0].mxu0 %v3116
        %v3266 = vpop.f32.mrb[0].mxu0
        %v3267 = vadd.f32 0.0, %v3266
        %v3268 = vpop.f32.mrb[0].mxu0
        %3269 = vmatprep.mubr.f32.mxu0 0.0
        %3270 = vmatmul.mubr.f32.gmra.mrb[0].mxu0 %v3117
        %v3271 = vpop.f32.mrb[0].mxu0
        %v3272 = vadd.f32 0.0, %v3271
        %v3273 = vpop.f32.mrb[0].mxu0
        %3274 = vmatprep.mubr.f32.mxu0 0.0
        %3275 = vmatmul.mubr.f32.gmra.mrb[0].mxu0 %v3118
        %v3276 = vpop.f32.mrb[0].mxu0
        %v3277 = vadd.f32 0.0, %v3276
        %v3278 = vpop.f32.mrb[0].mxu0
        %3279 = vmatprep.mubr.f32.mxu0 0.0
        %3280 = vmatmul.mubr.f32.gmra.mrb[0].mxu0 %v3119
        %v3281 = vpop.f32.mrb[0].mxu0
        %v3282 = vadd.f32 0.0, %v3281
        %v3283 = vpop.f32.mrb[0].mxu0
        %3284 = vmatprep.mubr.f32.mxu0 0.0
        %3285 = vmatmul.mubr.f32.gmra.mrb[0].mxu0 %v3120
        %v3286 = vpop.f32.mrb[0].mxu0
        %v3287 = vadd.f32 0.0, %v3286
        %v3288 = vpop.f32.mrb[0].mxu0
        %3289 = vmatprep.mubr.f32.mxu0 0.0
        %3290 = vmatmul.mubr.f32.gmra.mrb[0].mxu0 %v3121
        %v3291 = vpop.f32.mrb[0].mxu0
        %v3292 = vadd.f32 0.0, %v3291
        %v3293 = vpop.f32.mrb[0].mxu0
        %3294 = vmatprep.mubr.f32.mxu0 0.0
        %3295 = vmatmul.mubr.f32.gmra.mrb[0].mxu0 %v3122
        %v3296 = vpop.f32.mrb[0].mxu0
        %v3297 = vadd.f32 0.0, %v3296
        %v3298 = vpop.f32.mrb[0].mxu0
        %3299 = vmatprep.mubr.f32.mxu0 0.0
        %3300 = vmatmul.mubr.f32.gmra.mrb[0].mxu0 %v3123
        %v3301 = vpop.f32.mrb[0].mxu0
        %v3302 = vadd.f32 0.0, %v3301
        %v3303 = vpop.f32.mrb[0].mxu0
        %3304 = vmatprep.mubr.f32.mxu0 0.0
        %3305 = vmatmul.mubr.f32.gmra.mrb[0].mxu0 %v3124
        %v3306 = vpop.f32.mrb[0].mxu0
        %v3307 = vadd.f32 0.0, %v3306
        %v3308 = vpop.f32.mrb[0].mxu0
        %3309 = vmatprep.mubr.f32.mxu0 0.0
        %3310 = vmatmul.mubr.f32.gmra.mrb[0].mxu0 %v3125
        %v3311 = vpop.f32.mrb[0].mxu0
        %v3312 = vadd.f32 0.0, %v3311
        %v3313 = vpop.f32.mrb[0].mxu0
        %3314 = vmatprep.mubr.f32.mxu0 0.0
        %3315 = vmatmul.mubr.f32.gmra.mrb[0].mxu0 %v3126
        %v3316 = vpop.f32.mrb[0].mxu0
        %v3317 = vadd.f32 0.0, %v3316
        %v3318 = vpop.f32.mrb[0].mxu0
        %3319 = vmatprep.mubr.f32.mxu0 0.0
        %3320 = vmatmul.mubr.f32.gmra.mrb[0].mxu0 %v3127
        %v3321 = vpop.f32.mrb[0].mxu0
        %v3322 = vadd.f32 0.0, %v3321
        %v3323 = vpop.f32.mrb[0].mxu0
        %3324 = vmatprep.mubr.f32.mxu0 0.0
        %3325 = vmatmul.mubr.f32.gmra.mrb[0].mxu0 %v3128
        %v3326 = vpop.f32.mrb[0].mxu0
        %v3327 = vadd.f32 0.0, %v3326
        %v3328 = vpop.f32.mrb[0].mxu0
        %3329 = vmatprep.mubr.f32.mxu0 0.0
        %3330 = vmatmul.mubr.f32.gmra.mrb[0].mxu0 %v3129
        %v3331 = vpop.f32.mrb[0].mxu0
        %v3332 = vadd.f32 0.0, %v3331
        %v3333 = vpop.f32.mrb[0].mxu0
        %3334 = vmatprep.mubr.f32.mxu0 0.0
        %3335 = vmatmul.mubr.f32.gmra.mrb[0].mxu0 %v3130
        %v3336 = vpop.f32.mrb[0].mxu0
        %v3337 = vadd.f32 0.0, %v3336
        %v3338 = vpop.f32.mrb[0].mxu0
        %3339 = vmatprep.mubr.f32.mxu0 0.0
        %3340 = vmatmul.mubr.f32.gmra.mrb[0].mxu0 %v3131
        %v3341 = vpop.f32.mrb[0].mxu0
        %v3342 = vadd.f32 0.0, %v3341
        %v3343 = vpop.f32.mrb[0].mxu0
        %3344 = vmatprep.mubr.f32.mxu0 0.0
        %3345 = vmatmul.mubr.f32.gmra.mrb[0].mxu0 %v3132
        %v3346 = vpop.f32.mrb[0].mxu0
        %v3347 = vadd.f32 0.0, %v3346
        %v3348 = vpop.f32.mrb[0].mxu0
        %3349 = vmatprep.mubr.f32.mxu0 0.0
        %3350 = vmatmul.mubr.f32.gmra.mrb[0].mxu0 %v3133
        %v3351 = vpop.f32.mrb[0].mxu0
        %v3352 = vadd.f32 0.0, %v3351
        %v3353 = vpop.f32.mrb[0].mxu0
        %3354 = vmatprep.mubr.f32.mxu0 0.0
        %3355 = vmatmul.mubr.f32.gmra.mrb[0].mxu0 %v3134
        %v3356 = vpop.f32.mrb[0].mxu0
        %v3357 = vadd.f32 0.0, %v3356
        %v3358 = vpop.f32.mrb[0].mxu0
        %3359 = vmatprep.mubr.f32.mxu0 0.0
        %3360 = vmatmul.mubr.f32.gmra.mrb[0].mxu0 %v3135
        %v3361 = vpop.f32.mrb[0].mxu0
        %v3362 = vadd.f32 0.0, %v3361
        %v3363 = vpop.f32.mrb[0].mxu0
        %3364 = vmatprep.mubr.f32.mxu0 0.0
        %3365 = vmatmul.mubr.f32.gmra.mrb[0].mxu0 %v3136
        %v3366 = vpop.f32.mrb[0].mxu0
        %v3367 = vadd.f32 0.0, %v3366
        %v3368 = vpop.f32.mrb[0].mxu0
        %3369 = vmatprep.mubr.f32.mxu0 0.0
        %3370 = vmatmul.mubr.f32.gmra.mrb[0].mxu0 %v3137
        %v3371 = vpop.f32.mrb[0].mxu0
        %v3372 = vadd.f32 0.0, %v3371
        %v3373 = vpop.f32.mrb[0].mxu0
        %3374 = vmatprep.mubr.f32.mxu0 0.0
        %3375 = vmatmul.mubr.f32.gmra.mrb[0].mxu0 %v3138
        %v3376 = vpop.f32.mrb[0].mxu0
        %v3377 = vadd.f32 0.0, %v3376
        %v3378 = vpop.f32.mrb[0].mxu0
        %3379 = vdwg.mxu0
        %v3380 = vadd.f32 %v2999, %v3222
        %v3381 = vadd.f32 %v3000, %v3227
        %v3382 = vadd.f32 %v3001, %v3232
        %v3383 = vadd.f32 %v3002, %v3237
        %v3384 = vadd.f32 %v3003, %v3242
        %v3385 = vadd.f32 %v3004, %v3247
        %v3386 = vadd.f32 %v3005, %v3252
        %v3387 = vadd.f32 %v3006, %v3257
        %v3388 = vadd.f32 %v3007, %v3262
        %v3389 = vadd.f32 %v3008, %v3267
        %v3390 = vadd.f32 %v3009, %v3272
        %v3391 = vadd.f32 %v3010, %v3277
        %v3392 = vadd.f32 %v3011, %v3282
        %v3393 = vadd.f32 %v3012, %v3287
        %v3394 = vadd.f32 %v3013, %v3292
        %v3395 = vadd.f32 %v3014, %v3297
        %v3396 = vadd.f32 %v3015, %v3302
        %v3397 = vadd.f32 %v3016, %v3307
        %v3398 = vadd.f32 %v3017, %v3312
        %v3399 = vadd.f32 %v3018, %v3317
        %v3400 = vadd.f32 %v3019, %v3322
        %v3401 = vadd.f32 %v3020, %v3327
        %v3402 = vadd.f32 %v3021, %v3332
        %v3403 = vadd.f32 %v3022, %v3337
        %v3404 = vadd.f32 %v3023, %v3342
        %v3405 = vadd.f32 %v3024, %v3347
        %v3406 = vadd.f32 %v3025, %v3352
        %v3407 = vadd.f32 %v3026, %v3357
        %v3408 = vadd.f32 %v3027, %v3362
        %v3409 = vadd.f32 %v3028, %v3367
        %v3410 = vadd.f32 %v3029, %v3372
        %v3411 = vadd.f32 %v3030, %v3377
        %v3412 = vld [vmem:[#allocation2 + $0x1] sm:$0xff]
        %v3413 = vld [vmem:[#allocation2 + $0x9] sm:$0xff]
        %v3414 = vld [vmem:[#allocation2 + $0x19] sm:$0xff]
        %v3415 = vld [vmem:[#allocation2 + $0x21] sm:$0xff]
        %v3416 = vld [vmem:[#allocation2 + $0x31] sm:$0xff]
        %v3417 = vld [vmem:[#allocation2 + $0x39] sm:$0xff]
        %v3418 = vld [vmem:[#allocation2 + $0x49] sm:$0xff]
        %v3419 = vld [vmem:[#allocation2 + $0x51] sm:$0xff]
        %v3420 = vld [vmem:[#allocation2 + $0x61] sm:$0xff]
        %v3421 = vld [vmem:[#allocation2 + $0x69] sm:$0xff]
        %v3422 = vld [vmem:[#allocation2 + $0x79] sm:$0xff]
        %v3423 = vld [vmem:[#allocation2 + $0x81] sm:$0xff]
        %v3424 = vld [vmem:[#allocation2 + $0x91] sm:$0xff]
        %v3425 = vld [vmem:[#allocation2 + $0x99] sm:$0xff]
        %v3426 = vld [vmem:[#allocation2 + $0xa9] sm:$0xff]
        %v3427 = vld [vmem:[#allocation2 + $0xb1] sm:$0xff]
        %v3428 = vld [vmem:[#allocation2 + $0xc1] sm:$0xff]
        %v3429 = vld [vmem:[#allocation2 + $0xc9] sm:$0xff]
        %v3430 = vld [vmem:[#allocation2 + $0xd9] sm:$0xff]
        %v3431 = vld [vmem:[#allocation2 + $0xe1] sm:$0xff]
        %v3432 = vld [vmem:[#allocation2 + $0xf1] sm:$0xff]
        %v3433 = vld [vmem:[#allocation2 + $0xf9] sm:$0xff]
        %v3434 = vld [vmem:[#allocation2 + $0x109] sm:$0xff]
        %v3435 = vld [vmem:[#allocation2 + $0x111] sm:$0xff]
        %v3436 = vld [vmem:[#allocation2 + $0x121] sm:$0xff]
        %v3437 = vld [vmem:[#allocation2 + $0x129] sm:$0xff]
        %v3438 = vld [vmem:[#allocation2 + $0x139] sm:$0xff]
        %v3439 = vld [vmem:[#allocation2 + $0x141] sm:$0xff]
        %v3440 = vld [vmem:[#allocation2 + $0x151] sm:$0xff]
        %v3441 = vld [vmem:[#allocation2 + $0x159] sm:$0xff]
        %v3442 = vld [vmem:[#allocation2 + $0x169] sm:$0xff]
        %v3443 = vld [vmem:[#allocation2 + $0x171] sm:$0xff]
        %v3444 = vld [vmem:[#allocation3 + $0x80] sm:$0xff]
        %v3445 = vld [vmem:[#allocation3 + $0x88] sm:$0xff]
        %v3446 = vld [vmem:[#allocation3 + $0x90] sm:$0xff]
        %v3447 = vld [vmem:[#allocation3 + $0x98] sm:$0xff]
        %v3448 = vld [vmem:[#allocation3 + $0xa0] sm:$0xff]
        %v3449 = vld [vmem:[#allocation3 + $0xa8] sm:$0xff]
        %v3450 = vld [vmem:[#allocation3 + $0xb0] sm:$0xff]
        %v3451 = vld [vmem:[#allocation3 + $0xb8] sm:$0xff]
        %v3452 = vld [vmem:[#allocation3 + $0xc0] sm:$0xff]
        %v3453 = vld [vmem:[#allocation3 + $0xc8] sm:$0xff]
        %v3454 = vld [vmem:[#allocation3 + $0xd0] sm:$0xff]
        %v3455 = vld [vmem:[#allocation3 + $0xd8] sm:$0xff]
        %v3456 = vld [vmem:[#allocation3 + $0xe0] sm:$0xff]
        %v3457 = vld [vmem:[#allocation3 + $0xe8] sm:$0xff]
        %v3458 = vld [vmem:[#allocation3 + $0xf0] sm:$0xff]
        %v3459 = vld [vmem:[#allocation3 + $0xf8] sm:$0xff]
        %3460 = vmatprep.subr.mxu0 0.0
        %3461 = vmatpush1.msra.mxu0 %v3444
        %3462 = vmatprep.subr.mxu0 0.0
        %3463 = vmatpush1.msra.mxu0 %v3445
        %3464 = vmatprep.subr.mxu0 0.0
        %3465 = vmatpush1.msra.mxu0 %v3446
        %3466 = vmatprep.subr.mxu0 0.0
        %3467 = vmatpush1.msra.mxu0 %v3447
        %3468 = vmatprep.subr.mxu0 0.0
        %3469 = vmatpush1.msra.mxu0 %v3448
        %3470 = vmatprep.subr.mxu0 0.0
        %3471 = vmatpush1.msra.mxu0 %v3449
        %3472 = vmatprep.subr.mxu0 0.0
        %3473 = vmatpush1.msra.mxu0 %v3450
        %3474 = vmatprep.subr.mxu0 0.0
        %3475 = vmatpush1.msra.mxu0 %v3451
        %3476 = vmatprep.subr.mxu0 0.0
        %3477 = vmatpush1.msra.mxu0 %v3452
        %3478 = vmatprep.subr.mxu0 0.0
        %3479 = vmatpush1.msra.mxu0 %v3453
        %3480 = vmatprep.subr.mxu0 0.0
        %3481 = vmatpush1.msra.mxu0 %v3454
        %3482 = vmatprep.subr.mxu0 0.0
        %3483 = vmatpush1.msra.mxu0 %v3455
        %3484 = vmatprep.subr.mxu0 0.0
        %3485 = vmatpush1.msra.mxu0 %v3456
        %3486 = vmatprep.subr.mxu0 0.0
        %3487 = vmatpush1.msra.mxu0 %v3457
        %3488 = vmatprep.subr.mxu0 0.0
        %3489 = vmatpush1.msra.mxu0 %v3458
        %3490 = vmatprep.subr.mxu0 0.0
        %3491 = vmatpush1.msra.mxu0 %v3459
        %3492 = vmatprep.subr.mxu0 0.0
        %3493 = vmatpush1.msra.mxu0 0.0
        %3494 = vmatprep.subr.mxu0 0.0
        %3495 = vmatpush1.msra.mxu0 0.0
        %3496 = vmatprep.subr.mxu0 0.0
        %3497 = vmatpush1.msra.mxu0 0.0
        %3498 = vmatprep.subr.mxu0 0.0
        %3499 = vmatpush1.msra.mxu0 0.0
        %3500 = vmatprep.subr.mxu0 0.0
        %3501 = vmatpush1.msra.mxu0 0.0
        %3502 = vmatprep.subr.mxu0 0.0
        %3503 = vmatpush1.msra.mxu0 0.0
        %3504 = vmatprep.subr.mxu0 0.0
        %3505 = vmatpush1.msra.mxu0 0.0
        %3506 = vmatprep.subr.mxu0 0.0
        %3507 = vmatpush1.msra.mxu0 0.0
        %3508 = vmatprep.subr.mxu0 0.0
        %3509 = vmatpush1.msra.mxu0 0.0
        %3510 = vmatprep.subr.mxu0 0.0
        %3511 = vmatpush1.msra.mxu0 0.0
        %3512 = vmatprep.subr.mxu0 0.0
        %3513 = vmatpush1.msra.mxu0 0.0
        %3514 = vmatprep.subr.mxu0 0.0
        %3515 = vmatpush1.msra.mxu0 0.0
        %3516 = vmatprep.subr.mxu0 0.0
        %3517 = vmatpush1.msra.mxu0 0.0
        %3518 = vmatprep.subr.mxu0 0.0
        %3519 = vmatpush1.msra.mxu0 0.0
        %3520 = vmatprep.subr.mxu0 0.0
        %3521 = vmatpush1.msra.mxu0 0.0
        %3522 = vmatprep.subr.mxu0 0.0
        %3523 = vmatpush1.msra.mxu0 0.0
        %3524 = vmatprep.mubr.f32.mxu0 0.0
        %3525 = vmatmul.mubr.f32.gmra.mrb[0].mxu0 %v3412
        %v3526 = vpop.f32.mrb[0].mxu0
        %v3527 = vadd.f32 0.0, %v3526
        %v3528 = vpop.f32.mrb[0].mxu0
        %3529 = vmatprep.mubr.f32.mxu0 0.0
        %3530 = vmatmul.mubr.f32.gmra.mrb[0].mxu0 %v3413
        %v3531 = vpop.f32.mrb[0].mxu0
        %v3532 = vadd.f32 0.0, %v3531
        %v3533 = vpop.f32.mrb[0].mxu0
        %3534 = vmatprep.mubr.f32.mxu0 0.0
        %3535 = vmatmul.mubr.f32.gmra.mrb[0].mxu0 %v3414
        %v3536 = vpop.f32.mrb[0].mxu0
        %v3537 = vadd.f32 0.0, %v3536
        %v3538 = vpop.f32.mrb[0].mxu0
        %3539 = vmatprep.mubr.f32.mxu0 0.0
        %3540 = vmatmul.mubr.f32.gmra.mrb[0].mxu0 %v3415
        %v3541 = vpop.f32.mrb[0].mxu0
        %v3542 = vadd.f32 0.0, %v3541
        %v3543 = vpop.f32.mrb[0].mxu0
        %3544 = vmatprep.mubr.f32.mxu0 0.0
        %3545 = vmatmul.mubr.f32.gmra.mrb[0].mxu0 %v3416
        %v3546 = vpop.f32.mrb[0].mxu0
        %v3547 = vadd.f32 0.0, %v3546
        %v3548 = vpop.f32.mrb[0].mxu0
        %3549 = vmatprep.mubr.f32.mxu0 0.0
        %3550 = vmatmul.mubr.f32.gmra.mrb[0].mxu0 %v3417
        %v3551 = vpop.f32.mrb[0].mxu0
        %v3552 = vadd.f32 0.0, %v3551
        %v3553 = vpop.f32.mrb[0].mxu0
        %3554 = vmatprep.mubr.f32.mxu0 0.0
        %3555 = vmatmul.mubr.f32.gmra.mrb[0].mxu0 %v3418
        %v3556 = vpop.f32.mrb[0].mxu0
        %v3557 = vadd.f32 0.0, %v3556
        %v3558 = vpop.f32.mrb[0].mxu0
        %3559 = vmatprep.mubr.f32.mxu0 0.0
        %3560 = vmatmul.mubr.f32.gmra.mrb[0].mxu0 %v3419
        %v3561 = vpop.f32.mrb[0].mxu0
        %v3562 = vadd.f32 0.0, %v3561
        %v3563 = vpop.f32.mrb[0].mxu0
        %3564 = vmatprep.mubr.f32.mxu0 0.0
        %3565 = vmatmul.mubr.f32.gmra.mrb[0].mxu0 %v3420
        %v3566 = vpop.f32.mrb[0].mxu0
        %v3567 = vadd.f32 0.0, %v3566
        %v3568 = vpop.f32.mrb[0].mxu0
        %3569 = vmatprep.mubr.f32.mxu0 0.0
        %3570 = vmatmul.mubr.f32.gmra.mrb[0].mxu0 %v3421
        %v3571 = vpop.f32.mrb[0].mxu0
        %v3572 = vadd.f32 0.0, %v3571
        %v3573 = vpop.f32.mrb[0].mxu0
        %3574 = vmatprep.mubr.f32.mxu0 0.0
        %3575 = vmatmul.mubr.f32.gmra.mrb[0].mxu0 %v3422
        %v3576 = vpop.f32.mrb[0].mxu0
        %v3577 = vadd.f32 0.0, %v3576
        %v3578 = vpop.f32.mrb[0].mxu0
        %3579 = vmatprep.mubr.f32.mxu0 0.0
        %3580 = vmatmul.mubr.f32.gmra.mrb[0].mxu0 %v3423
        %v3581 = vpop.f32.mrb[0].mxu0
        %v3582 = vadd.f32 0.0, %v3581
        %v3583 = vpop.f32.mrb[0].mxu0
        %3584 = vmatprep.mubr.f32.mxu0 0.0
        %3585 = vmatmul.mubr.f32.gmra.mrb[0].mxu0 %v3424
        %v3586 = vpop.f32.mrb[0].mxu0
        %v3587 = vadd.f32 0.0, %v3586
        %v3588 = vpop.f32.mrb[0].mxu0
        %3589 = vmatprep.mubr.f32.mxu0 0.0
        %3590 = vmatmul.mubr.f32.gmra.mrb[0].mxu0 %v3425
        %v3591 = vpop.f32.mrb[0].mxu0
        %v3592 = vadd.f32 0.0, %v3591
        %v3593 = vpop.f32.mrb[0].mxu0
        %3594 = vmatprep.mubr.f32.mxu0 0.0
        %3595 = vmatmul.mubr.f32.gmra.mrb[0].mxu0 %v3426
        %v3596 = vpop.f32.mrb[0].mxu0
        %v3597 = vadd.f32 0.0, %v3596
        %v3598 = vpop.f32.mrb[0].mxu0
        %3599 = vmatprep.mubr.f32.mxu0 0.0
        %3600 = vmatmul.mubr.f32.gmra.mrb[0].mxu0 %v3427
        %v3601 = vpop.f32.mrb[0].mxu0
        %v3602 = vadd.f32 0.0, %v3601
        %v3603 = vpop.f32.mrb[0].mxu0
        %3604 = vmatprep.mubr.f32.mxu0 0.0
        %3605 = vmatmul.mubr.f32.gmra.mrb[0].mxu0 %v3428
        %v3606 = vpop.f32.mrb[0].mxu0
        %v3607 = vadd.f32 0.0, %v3606
        %v3608 = vpop.f32.mrb[0].mxu0
        %3609 = vmatprep.mubr.f32.mxu0 0.0
        %3610 = vmatmul.mubr.f32.gmra.mrb[0].mxu0 %v3429
        %v3611 = vpop.f32.mrb[0].mxu0
        %v3612 = vadd.f32 0.0, %v3611
        %v3613 = vpop.f32.mrb[0].mxu0
        %3614 = vmatprep.mubr.f32.mxu0 0.0
        %3615 = vmatmul.mubr.f32.gmra.mrb[0].mxu0 %v3430
        %v3616 = vpop.f32.mrb[0].mxu0
        %v3617 = vadd.f32 0.0, %v3616
        %v3618 = vpop.f32.mrb[0].mxu0
        %3619 = vmatprep.mubr.f32.mxu0 0.0
        %3620 = vmatmul.mubr.f32.gmra.mrb[0].mxu0 %v3431
        %v3621 = vpop.f32.mrb[0].mxu0
        %v3622 = vadd.f32 0.0, %v3621
        %v3623 = vpop.f32.mrb[0].mxu0
        %3624 = vmatprep.mubr.f32.mxu0 0.0
        %3625 = vmatmul.mubr.f32.gmra.mrb[0].mxu0 %v3432
        %v3626 = vpop.f32.mrb[0].mxu0
        %v3627 = vadd.f32 0.0, %v3626
        %v3628 = vpop.f32.mrb[0].mxu0
        %3629 = vmatprep.mubr.f32.mxu0 0.0
        %3630 = vmatmul.mubr.f32.gmra.mrb[0].mxu0 %v3433
        %v3631 = vpop.f32.mrb[0].mxu0
        %v3632 = vadd.f32 0.0, %v3631
        %v3633 = vpop.f32.mrb[0].mxu0
        %3634 = vmatprep.mubr.f32.mxu0 0.0
        %3635 = vmatmul.mubr.f32.gmra.mrb[0].mxu0 %v3434
        %v3636 = vpop.f32.mrb[0].mxu0
        %v3637 = vadd.f32 0.0, %v3636
        %v3638 = vpop.f32.mrb[0].mxu0
        %3639 = vmatprep.mubr.f32.mxu0 0.0
        %3640 = vmatmul.mubr.f32.gmra.mrb[0].mxu0 %v3435
        %v3641 = vpop.f32.mrb[0].mxu0
        %v3642 = vadd.f32 0.0, %v3641
        %v3643 = vpop.f32.mrb[0].mxu0
        %3644 = vmatprep.mubr.f32.mxu0 0.0
        %3645 = vmatmul.mubr.f32.gmra.mrb[0].mxu0 %v3436
        %v3646 = vpop.f32.mrb[0].mxu0
        %v3647 = vadd.f32 0.0, %v3646
        %v3648 = vpop.f32.mrb[0].mxu0
        %3649 = vmatprep.mubr.f32.mxu0 0.0
        %3650 = vmatmul.mubr.f32.gmra.mrb[0].mxu0 %v3437
        %v3651 = vpop.f32.mrb[0].mxu0
        %v3652 = vadd.f32 0.0, %v3651
        %v3653 = vpop.f32.mrb[0].mxu0
        %3654 = vmatprep.mubr.f32.mxu0 0.0
        %3655 = vmatmul.mubr.f32.gmra.mrb[0].mxu0 %v3438
        %v3656 = vpop.f32.mrb[0].mxu0
        %v3657 = vadd.f32 0.0, %v3656
        %v3658 = vpop.f32.mrb[0].mxu0
        %3659 = vmatprep.mubr.f32.mxu0 0.0
        %3660 = vmatmul.mubr.f32.gmra.mrb[0].mxu0 %v3439
        %v3661 = vpop.f32.mrb[0].mxu0
        %v3662 = vadd.f32 0.0, %v3661
        %v3663 = vpop.f32.mrb[0].mxu0
        %3664 = vmatprep.mubr.f32.mxu0 0.0
        %3665 = vmatmul.mubr.f32.gmra.mrb[0].mxu0 %v3440
        %v3666 = vpop.f32.mrb[0].mxu0
        %v3667 = vadd.f32 0.0, %v3666
        %v3668 = vpop.f32.mrb[0].mxu0
        %3669 = vmatprep.mubr.f32.mxu0 0.0
        %3670 = vmatmul.mubr.f32.gmra.mrb[0].mxu0 %v3441
        %v3671 = vpop.f32.mrb[0].mxu0
        %v3672 = vadd.f32 0.0, %v3671
        %v3673 = vpop.f32.mrb[0].mxu0
        %3674 = vmatprep.mubr.f32.mxu0 0.0
        %3675 = vmatmul.mubr.f32.gmra.mrb[0].mxu0 %v3442
        %v3676 = vpop.f32.mrb[0].mxu0
        %v3677 = vadd.f32 0.0, %v3676
        %v3678 = vpop.f32.mrb[0].mxu0
        %3679 = vmatprep.mubr.f32.mxu0 0.0
        %3680 = vmatmul.mubr.f32.gmra.mrb[0].mxu0 %v3443
        %v3681 = vpop.f32.mrb[0].mxu0
        %v3682 = vadd.f32 0.0, %v3681
        %v3683 = vpop.f32.mrb[0].mxu0
        %3684 = vdwg.mxu0
        %v3685 = vadd.f32 %v3380, %v3527
        %v3686 = vadd.f32 %v3381, %v3532
        %v3687 = vadd.f32 %v3382, %v3537
        %v3688 = vadd.f32 %v3383, %v3542
        %v3689 = vadd.f32 %v3384, %v3547
        %v3690 = vadd.f32 %v3385, %v3552
        %v3691 = vadd.f32 %v3386, %v3557
        %v3692 = vadd.f32 %v3387, %v3562
        %v3693 = vadd.f32 %v3388, %v3567
        %v3694 = vadd.f32 %v3389, %v3572
        %v3695 = vadd.f32 %v3390, %v3577
        %v3696 = vadd.f32 %v3391, %v3582
        %v3697 = vadd.f32 %v3392, %v3587
        %v3698 = vadd.f32 %v3393, %v3592
        %v3699 = vadd.f32 %v3394, %v3597
        %v3700 = vadd.f32 %v3395, %v3602
        %v3701 = vadd.f32 %v3396, %v3607
        %v3702 = vadd.f32 %v3397, %v3612
        %v3703 = vadd.f32 %v3398, %v3617
        %v3704 = vadd.f32 %v3399, %v3622
        %v3705 = vadd.f32 %v3400, %v3627
        %v3706 = vadd.f32 %v3401, %v3632
        %v3707 = vadd.f32 %v3402, %v3637
        %v3708 = vadd.f32 %v3403, %v3642
        %v3709 = vadd.f32 %v3404, %v3647
        %v3710 = vadd.f32 %v3405, %v3652
        %v3711 = vadd.f32 %v3406, %v3657
        %v3712 = vadd.f32 %v3407, %v3662
        %v3713 = vadd.f32 %v3408, %v3667
        %v3714 = vadd.f32 %v3409, %v3672
        %v3715 = vadd.f32 %v3410, %v3677
        %v3716 = vadd.f32 %v3411, %v3682
        %v3717 = vld [vmem:[#allocation2 + $0x2] sm:$0xff]
        %v3718 = vld [vmem:[#allocation2 + $0xa] sm:$0xff]
        %v3719 = vld [vmem:[#allocation2 + $0x1a] sm:$0xff]
        %v3720 = vld [vmem:[#allocation2 + $0x22] sm:$0xff]
        %v3721 = vld [vmem:[#allocation2 + $0x32] sm:$0xff]
        %v3722 = vld [vmem:[#allocation2 + $0x3a] sm:$0xff]
        %v3723 = vld [vmem:[#allocation2 + $0x4a] sm:$0xff]
        %v3724 = vld [vmem:[#allocation2 + $0x52] sm:$0xff]
        %v3725 = vld [vmem:[#allocation2 + $0x62] sm:$0xff]
        %v3726 = vld [vmem:[#allocation2 + $0x6a] sm:$0xff]
        %v3727 = vld [vmem:[#allocation2 + $0x7a] sm:$0xff]
        %v3728 = vld [vmem:[#allocation2 + $0x82] sm:$0xff]
        %v3729 = vld [vmem:[#allocation2 + $0x92] sm:$0xff]
        %v3730 = vld [vmem:[#allocation2 + $0x9a] sm:$0xff]
        %v3731 = vld [vmem:[#allocation2 + $0xaa] sm:$0xff]
        %v3732 = vld [vmem:[#allocation2 + $0xb2] sm:$0xff]
        %v3733 = vld [vmem:[#allocation2 + $0xc2] sm:$0xff]
        %v3734 = vld [vmem:[#allocation2 + $0xca] sm:$0xff]
        %v3735 = vld [vmem:[#allocation2 + $0xda] sm:$0xff]
        %v3736 = vld [vmem:[#allocation2 + $0xe2] sm:$0xff]
        %v3737 = vld [vmem:[#allocation2 + $0xf2] sm:$0xff]
        %v3738 = vld [vmem:[#allocation2 + $0xfa] sm:$0xff]
        %v3739 = vld [vmem:[#allocation2 + $0x10a] sm:$0xff]
        %v3740 = vld [vmem:[#allocation2 + $0x112] sm:$0xff]
        %v3741 = vld [vmem:[#allocation2 + $0x122] sm:$0xff]
        %v3742 = vld [vmem:[#allocation2 + $0x12a] sm:$0xff]
        %v3743 = vld [vmem:[#allocation2 + $0x13a] sm:$0xff]
        %v3744 = vld [vmem:[#allocation2 + $0x142] sm:$0xff]
        %v3745 = vld [vmem:[#allocation2 + $0x152] sm:$0xff]
        %v3746 = vld [vmem:[#allocation2 + $0x15a] sm:$0xff]
        %v3747 = vld [vmem:[#allocation2 + $0x16a] sm:$0xff]
        %v3748 = vld [vmem:[#allocation2 + $0x172] sm:$0xff]
        %v3749 = vld [vmem:[#allocation3 + $0x100] sm:$0xff]
        %v3750 = vld [vmem:[#allocation3 + $0x108] sm:$0xff]
        %v3751 = vld [vmem:[#allocation3 + $0x110] sm:$0xff]
        %v3752 = vld [vmem:[#allocation3 + $0x118] sm:$0xff]
        %v3753 = vld [vmem:[#allocation3 + $0x120] sm:$0xff]
        %v3754 = vld [vmem:[#allocation3 + $0x128] sm:$0xff]
        %v3755 = vld [vmem:[#allocation3 + $0x130] sm:$0xff]
        %v3756 = vld [vmem:[#allocation3 + $0x138] sm:$0xff]
        %v3757 = vld [vmem:[#allocation3 + $0x140] sm:$0xff]
        %v3758 = vld [vmem:[#allocation3 + $0x148] sm:$0xff]
        %v3759 = vld [vmem:[#allocation3 + $0x150] sm:$0xff]
        %v3760 = vld [vmem:[#allocation3 + $0x158] sm:$0xff]
        %v3761 = vld [vmem:[#allocation3 + $0x160] sm:$0xff]
        %v3762 = vld [vmem:[#allocation3 + $0x168] sm:$0xff]
        %v3763 = vld [vmem:[#allocation3 + $0x170] sm:$0xff]
        %v3764 = vld [vmem:[#allocation3 + $0x178] sm:$0xff]
        %3765 = vmatprep.subr.mxu0 0.0
        %3766 = vmatpush1.msra.mxu0 %v3749
        %3767 = vmatprep.subr.mxu0 0.0
        %3768 = vmatpush1.msra.mxu0 %v3750
        %3769 = vmatprep.subr.mxu0 0.0
        %3770 = vmatpush1.msra.mxu0 %v3751
        %3771 = vmatprep.subr.mxu0 0.0
        %3772 = vmatpush1.msra.mxu0 %v3752
        %3773 = vmatprep.subr.mxu0 0.0
        %3774 = vmatpush1.msra.mxu0 %v3753
        %3775 = vmatprep.subr.mxu0 0.0
        %3776 = vmatpush1.msra.mxu0 %v3754
        %3777 = vmatprep.subr.mxu0 0.0
        %3778 = vmatpush1.msra.mxu0 %v3755
        %3779 = vmatprep.subr.mxu0 0.0
        %3780 = vmatpush1.msra.mxu0 %v3756
        %3781 = vmatprep.subr.mxu0 0.0
        %3782 = vmatpush1.msra.mxu0 %v3757
        %3783 = vmatprep.subr.mxu0 0.0
        %3784 = vmatpush1.msra.mxu0 %v3758
        %3785 = vmatprep.subr.mxu0 0.0
        %3786 = vmatpush1.msra.mxu0 %v3759
        %3787 = vmatprep.subr.mxu0 0.0
        %3788 = vmatpush1.msra.mxu0 %v3760
        %3789 = vmatprep.subr.mxu0 0.0
        %3790 = vmatpush1.msra.mxu0 %v3761
        %3791 = vmatprep.subr.mxu0 0.0
        %3792 = vmatpush1.msra.mxu0 %v3762
        %3793 = vmatprep.subr.mxu0 0.0
        %3794 = vmatpush1.msra.mxu0 %v3763
        %3795 = vmatprep.subr.mxu0 0.0
        %3796 = vmatpush1.msra.mxu0 %v3764
        %3797 = vmatprep.subr.mxu0 0.0
        %3798 = vmatpush1.msra.mxu0 0.0
        %3799 = vmatprep.subr.mxu0 0.0
        %3800 = vmatpush1.msra.mxu0 0.0
        %3801 = vmatprep.subr.mxu0 0.0
        %3802 = vmatpush1.msra.mxu0 0.0
        %3803 = vmatprep.subr.mxu0 0.0
        %3804 = vmatpush1.msra.mxu0 0.0
        %3805 = vmatprep.subr.mxu0 0.0
        %3806 = vmatpush1.msra.mxu0 0.0
        %3807 = vmatprep.subr.mxu0 0.0
        %3808 = vmatpush1.msra.mxu0 0.0
        %3809 = vmatprep.subr.mxu0 0.0
        %3810 = vmatpush1.msra.mxu0 0.0
        %3811 = vmatprep.subr.mxu0 0.0
        %3812 = vmatpush1.msra.mxu0 0.0
        %3813 = vmatprep.subr.mxu0 0.0
        %3814 = vmatpush1.msra.mxu0 0.0
        %3815 = vmatprep.subr.mxu0 0.0
        %3816 = vmatpush1.msra.mxu0 0.0
        %3817 = vmatprep.subr.mxu0 0.0
        %3818 = vmatpush1.msra.mxu0 0.0
        %3819 = vmatprep.subr.mxu0 0.0
        %3820 = vmatpush1.msra.mxu0 0.0
        %3821 = vmatprep.subr.mxu0 0.0
        %3822 = vmatpush1.msra.mxu0 0.0
        %3823 = vmatprep.subr.mxu0 0.0
        %3824 = vmatpush1.msra.mxu0 0.0
        %3825 = vmatprep.subr.mxu0 0.0
        %3826 = vmatpush1.msra.mxu0 0.0
        %3827 = vmatprep.subr.mxu0 0.0
        %3828 = vmatpush1.msra.mxu0 0.0
        %3829 = vmatprep.mubr.f32.mxu0 0.0
        %3830 = vmatmul.mubr.f32.gmra.mrb[0].mxu0 %v3717
        %v3831 = vpop.f32.mrb[0].mxu0
        %v3832 = vadd.f32 0.0, %v3831
        %v3833 = vpop.f32.mrb[0].mxu0
        %3834 = vmatprep.mubr.f32.mxu0 0.0
        %3835 = vmatmul.mubr.f32.gmra.mrb[0].mxu0 %v3718
        %v3836 = vpop.f32.mrb[0].mxu0
        %v3837 = vadd.f32 0.0, %v3836
        %v3838 = vpop.f32.mrb[0].mxu0
        %3839 = vmatprep.mubr.f32.mxu0 0.0
        %3840 = vmatmul.mubr.f32.gmra.mrb[0].mxu0 %v3719
        %v3841 = vpop.f32.mrb[0].mxu0
        %v3842 = vadd.f32 0.0, %v3841
        %v3843 = vpop.f32.mrb[0].mxu0
        %3844 = vmatprep.mubr.f32.mxu0 0.0
        %3845 = vmatmul.mubr.f32.gmra.mrb[0].mxu0 %v3720
        %v3846 = vpop.f32.mrb[0].mxu0
        %v3847 = vadd.f32 0.0, %v3846
        %v3848 = vpop.f32.mrb[0].mxu0
        %3849 = vmatprep.mubr.f32.mxu0 0.0
        %3850 = vmatmul.mubr.f32.gmra.mrb[0].mxu0 %v3721
        %v3851 = vpop.f32.mrb[0].mxu0
        %v3852 = vadd.f32 0.0, %v3851
        %v3853 = vpop.f32.mrb[0].mxu0
        %3854 = vmatprep.mubr.f32.mxu0 0.0
        %3855 = vmatmul.mubr.f32.gmra.mrb[0].mxu0 %v3722
        %v3856 = vpop.f32.mrb[0].mxu0
        %v3857 = vadd.f32 0.0, %v3856
        %v3858 = vpop.f32.mrb[0].mxu0
        %3859 = vmatprep.mubr.f32.mxu0 0.0
        %3860 = vmatmul.mubr.f32.gmra.mrb[0].mxu0 %v3723
        %v3861 = vpop.f32.mrb[0].mxu0
        %v3862 = vadd.f32 0.0, %v3861
        %v3863 = vpop.f32.mrb[0].mxu0
        %3864 = vmatprep.mubr.f32.mxu0 0.0
        %3865 = vmatmul.mubr.f32.gmra.mrb[0].mxu0 %v3724
        %v3866 = vpop.f32.mrb[0].mxu0
        %v3867 = vadd.f32 0.0, %v3866
        %v3868 = vpop.f32.mrb[0].mxu0
        %3869 = vmatprep.mubr.f32.mxu0 0.0
        %3870 = vmatmul.mubr.f32.gmra.mrb[0].mxu0 %v3725
        %v3871 = vpop.f32.mrb[0].mxu0
        %v3872 = vadd.f32 0.0, %v3871
        %v3873 = vpop.f32.mrb[0].mxu0
        %3874 = vmatprep.mubr.f32.mxu0 0.0
        %3875 = vmatmul.mubr.f32.gmra.mrb[0].mxu0 %v3726
        %v3876 = vpop.f32.mrb[0].mxu0
        %v3877 = vadd.f32 0.0, %v3876
        %v3878 = vpop.f32.mrb[0].mxu0
        %3879 = vmatprep.mubr.f32.mxu0 0.0
        %3880 = vmatmul.mubr.f32.gmra.mrb[0].mxu0 %v3727
        %v3881 = vpop.f32.mrb[0].mxu0
        %v3882 = vadd.f32 0.0, %v3881
        %v3883 = vpop.f32.mrb[0].mxu0
        %3884 = vmatprep.mubr.f32.mxu0 0.0
        %3885 = vmatmul.mubr.f32.gmra.mrb[0].mxu0 %v3728
        %v3886 = vpop.f32.mrb[0].mxu0
        %v3887 = vadd.f32 0.0, %v3886
        %v3888 = vpop.f32.mrb[0].mxu0
        %3889 = vmatprep.mubr.f32.mxu0 0.0
        %3890 = vmatmul.mubr.f32.gmra.mrb[0].mxu0 %v3729
        %v3891 = vpop.f32.mrb[0].mxu0
        %v3892 = vadd.f32 0.0, %v3891
        %v3893 = vpop.f32.mrb[0].mxu0
        %3894 = vmatprep.mubr.f32.mxu0 0.0
        %3895 = vmatmul.mubr.f32.gmra.mrb[0].mxu0 %v3730
        %v3896 = vpop.f32.mrb[0].mxu0
        %v3897 = vadd.f32 0.0, %v3896
        %v3898 = vpop.f32.mrb[0].mxu0
        %3899 = vmatprep.mubr.f32.mxu0 0.0
        %3900 = vmatmul.mubr.f32.gmra.mrb[0].mxu0 %v3731
        %v3901 = vpop.f32.mrb[0].mxu0
        %v3902 = vadd.f32 0.0, %v3901
        %v3903 = vpop.f32.mrb[0].mxu0
        %3904 = vmatprep.mubr.f32.mxu0 0.0
        %3905 = vmatmul.mubr.f32.gmra.mrb[0].mxu0 %v3732
        %v3906 = vpop.f32.mrb[0].mxu0
        %v3907 = vadd.f32 0.0, %v3906
        %v3908 = vpop.f32.mrb[0].mxu0
        %3909 = vmatprep.mubr.f32.mxu0 0.0
        %3910 = vmatmul.mubr.f32.gmra.mrb[0].mxu0 %v3733
        %v3911 = vpop.f32.mrb[0].mxu0
        %v3912 = vadd.f32 0.0, %v3911
        %v3913 = vpop.f32.mrb[0].mxu0
        %3914 = vmatprep.mubr.f32.mxu0 0.0
        %3915 = vmatmul.mubr.f32.gmra.mrb[0].mxu0 %v3734
        %v3916 = vpop.f32.mrb[0].mxu0
        %v3917 = vadd.f32 0.0, %v3916
        %v3918 = vpop.f32.mrb[0].mxu0
        %3919 = vmatprep.mubr.f32.mxu0 0.0
        %3920 = vmatmul.mubr.f32.gmra.mrb[0].mxu0 %v3735
        %v3921 = vpop.f32.mrb[0].mxu0
        %v3922 = vadd.f32 0.0, %v3921
        %v3923 = vpop.f32.mrb[0].mxu0
        %3924 = vmatprep.mubr.f32.mxu0 0.0
        %3925 = vmatmul.mubr.f32.gmra.mrb[0].mxu0 %v3736
        %v3926 = vpop.f32.mrb[0].mxu0
        %v3927 = vadd.f32 0.0, %v3926
        %v3928 = vpop.f32.mrb[0].mxu0
        %3929 = vmatprep.mubr.f32.mxu0 0.0
        %3930 = vmatmul.mubr.f32.gmra.mrb[0].mxu0 %v3737
        %v3931 = vpop.f32.mrb[0].mxu0
        %v3932 = vadd.f32 0.0, %v3931
        %v3933 = vpop.f32.mrb[0].mxu0
        %3934 = vmatprep.mubr.f32.mxu0 0.0
        %3935 = vmatmul.mubr.f32.gmra.mrb[0].mxu0 %v3738
        %v3936 = vpop.f32.mrb[0].mxu0
        %v3937 = vadd.f32 0.0, %v3936
        %v3938 = vpop.f32.mrb[0].mxu0
        %3939 = vmatprep.mubr.f32.mxu0 0.0
        %3940 = vmatmul.mubr.f32.gmra.mrb[0].mxu0 %v3739
        %v3941 = vpop.f32.mrb[0].mxu0
        %v3942 = vadd.f32 0.0, %v3941
        %v3943 = vpop.f32.mrb[0].mxu0
        %3944 = vmatprep.mubr.f32.mxu0 0.0
        %3945 = vmatmul.mubr.f32.gmra.mrb[0].mxu0 %v3740
        %v3946 = vpop.f32.mrb[0].mxu0
        %v3947 = vadd.f32 0.0, %v3946
        %v3948 = vpop.f32.mrb[0].mxu0
        %3949 = vmatprep.mubr.f32.mxu0 0.0
        %3950 = vmatmul.mubr.f32.gmra.mrb[0].mxu0 %v3741
        %v3951 = vpop.f32.mrb[0].mxu0
        %v3952 = vadd.f32 0.0, %v3951
        %v3953 = vpop.f32.mrb[0].mxu0
        %3954 = vmatprep.mubr.f32.mxu0 0.0
        %3955 = vmatmul.mubr.f32.gmra.mrb[0].mxu0 %v3742
        %v3956 = vpop.f32.mrb[0].mxu0
        %v3957 = vadd.f32 0.0, %v3956
        %v3958 = vpop.f32.mrb[0].mxu0
        %3959 = vmatprep.mubr.f32.mxu0 0.0
        %3960 = vmatmul.mubr.f32.gmra.mrb[0].mxu0 %v3743
        %v3961 = vpop.f32.mrb[0].mxu0
        %v3962 = vadd.f32 0.0, %v3961
        %v3963 = vpop.f32.mrb[0].mxu0
        %3964 = vmatprep.mubr.f32.mxu0 0.0
        %3965 = vmatmul.mubr.f32.gmra.mrb[0].mxu0 %v3744
        %v3966 = vpop.f32.mrb[0].mxu0
        %v3967 = vadd.f32 0.0, %v3966
        %v3968 = vpop.f32.mrb[0].mxu0
        %3969 = vmatprep.mubr.f32.mxu0 0.0
        %3970 = vmatmul.mubr.f32.gmra.mrb[0].mxu0 %v3745
        %v3971 = vpop.f32.mrb[0].mxu0
        %v3972 = vadd.f32 0.0, %v3971
        %v3973 = vpop.f32.mrb[0].mxu0
        %3974 = vmatprep.mubr.f32.mxu0 0.0
        %3975 = vmatmul.mubr.f32.gmra.mrb[0].mxu0 %v3746
        %v3976 = vpop.f32.mrb[0].mxu0
        %v3977 = vadd.f32 0.0, %v3976
        %v3978 = vpop.f32.mrb[0].mxu0
        %3979 = vmatprep.mubr.f32.mxu0 0.0
        %3980 = vmatmul.mubr.f32.gmra.mrb[0].mxu0 %v3747
        %v3981 = vpop.f32.mrb[0].mxu0
        %v3982 = vadd.f32 0.0, %v3981
        %v3983 = vpop.f32.mrb[0].mxu0
        %3984 = vmatprep.mubr.f32.mxu0 0.0
        %3985 = vmatmul.mubr.f32.gmra.mrb[0].mxu0 %v3748
        %v3986 = vpop.f32.mrb[0].mxu0
        %v3987 = vadd.f32 0.0, %v3986
        %v3988 = vpop.f32.mrb[0].mxu0
        %3989 = vdwg.mxu0
        %v3990 = vadd.f32 %v3685, %v3832
        %v3991 = vadd.f32 %v3686, %v3837
        %v3992 = vadd.f32 %v3687, %v3842
        %v3993 = vadd.f32 %v3688, %v3847
        %v3994 = vadd.f32 %v3689, %v3852
        %v3995 = vadd.f32 %v3690, %v3857
        %v3996 = vadd.f32 %v3691, %v3862
        %v3997 = vadd.f32 %v3692, %v3867
        %v3998 = vadd.f32 %v3693, %v3872
        %v3999 = vadd.f32 %v3694, %v3877
        %v4000 = vadd.f32 %v3695, %v3882
        %v4001 = vadd.f32 %v3696, %v3887
        %v4002 = vadd.f32 %v3697, %v3892
        %v4003 = vadd.f32 %v3698, %v3897
        %v4004 = vadd.f32 %v3699, %v3902
        %v4005 = vadd.f32 %v3700, %v3907
        %v4006 = vadd.f32 %v3701, %v3912
        %v4007 = vadd.f32 %v3702, %v3917
        %v4008 = vadd.f32 %v3703, %v3922
        %v4009 = vadd.f32 %v3704, %v3927
        %v4010 = vadd.f32 %v3705, %v3932
        %v4011 = vadd.f32 %v3706, %v3937
        %v4012 = vadd.f32 %v3707, %v3942
        %v4013 = vadd.f32 %v3708, %v3947
        %v4014 = vadd.f32 %v3709, %v3952
        %v4015 = vadd.f32 %v3710, %v3957
        %v4016 = vadd.f32 %v3711, %v3962
        %v4017 = vadd.f32 %v3712, %v3967
        %v4018 = vadd.f32 %v3713, %v3972
        %v4019 = vadd.f32 %v3714, %v3977
        %v4020 = vadd.f32 %v3715, %v3982
        %v4021 = vadd.f32 %v3716, %v3987
        %v4022 = vld [vmem:[%s3074] sm:$0xff]
        %v4023 = vld [vmem:[%s3074 + $0x8] sm:$0xff]
        %v4024 = vld [vmem:[%s3074 + $0x18] sm:$0xff]
        %v4025 = vld [vmem:[%s3074 + $0x20] sm:$0xff]
        %v4026 = vld [vmem:[%s3074 + $0x30] sm:$0xff]
        %v4027 = vld [vmem:[%s3074 + $0x38] sm:$0xff]
        %v4028 = vld [vmem:[%s3074 + $0x48] sm:$0xff]
        %v4029 = vld [vmem:[%s3074 + $0x50] sm:$0xff]
        %v4030 = vld [vmem:[%s3074 + $0x60] sm:$0xff]
        %v4031 = vld [vmem:[%s3074 + $0x68] sm:$0xff]
        %v4032 = vld [vmem:[%s3074 + $0x78] sm:$0xff]
        %v4033 = vld [vmem:[%s3074 + $0x80] sm:$0xff]
        %v4034 = vld [vmem:[%s3074 + $0x90] sm:$0xff]
        %v4035 = vld [vmem:[%s3074 + $0x98] sm:$0xff]
        %v4036 = vld [vmem:[%s3074 + $0xa8] sm:$0xff]
        %v4037 = vld [vmem:[%s3074 + $0xb0] sm:$0xff]
        %v4038 = vld [vmem:[%s3074 + $0xc0] sm:$0xff]
        %v4039 = vld [vmem:[%s3074 + $0xc8] sm:$0xff]
        %v4040 = vld [vmem:[%s3074 + $0xd8] sm:$0xff]
        %v4041 = vld [vmem:[%s3074 + $0xe0] sm:$0xff]
        %v4042 = vld [vmem:[%s3074 + $0xf0] sm:$0xff]
        %v4043 = vld [vmem:[%s3074 + $0xf8] sm:$0xff]
        %v4044 = vld [vmem:[%s3074 + $0x108] sm:$0xff]
        %v4045 = vld [vmem:[%s3074 + $0x110] sm:$0xff]
        %v4046 = vld [vmem:[%s3074 + $0x120] sm:$0xff]
        %v4047 = vld [vmem:[%s3074 + $0x128] sm:$0xff]
        %v4048 = vld [vmem:[%s3074 + $0x138] sm:$0xff]
        %v4049 = vld [vmem:[%s3074 + $0x140] sm:$0xff]
        %v4050 = vld [vmem:[%s3074 + $0x150] sm:$0xff]
        %v4051 = vld [vmem:[%s3074 + $0x158] sm:$0xff]
        %v4052 = vld [vmem:[%s3074 + $0x168] sm:$0xff]
        %v4053 = vld [vmem:[%s3074 + $0x170] sm:$0xff]
        %v4054 = vld [vmem:[#allocation3 + $0x180] sm:$0xff]
        %v4055 = vld [vmem:[#allocation3 + $0x188] sm:$0xff]
        %v4056 = vld [vmem:[#allocation3 + $0x190] sm:$0xff]
        %v4057 = vld [vmem:[#allocation3 + $0x198] sm:$0xff]
        %v4058 = vld [vmem:[#allocation3 + $0x1a0] sm:$0xff]
        %v4059 = vld [vmem:[#allocation3 + $0x1a8] sm:$0xff]
        %v4060 = vld [vmem:[#allocation3 + $0x1b0] sm:$0xff]
        %v4061 = vld [vmem:[#allocation3 + $0x1b8] sm:$0xff]
        %v4062 = vld [vmem:[#allocation3 + $0x1c0] sm:$0xff]
        %v4063 = vld [vmem:[#allocation3 + $0x1c8] sm:$0xff]
        %v4064 = vld [vmem:[#allocation3 + $0x1d0] sm:$0xff]
        %v4065 = vld [vmem:[#allocation3 + $0x1d8] sm:$0xff]
        %v4066 = vld [vmem:[#allocation3 + $0x1e0] sm:$0xff]
        %v4067 = vld [vmem:[#allocation3 + $0x1e8] sm:$0xff]
        %v4068 = vld [vmem:[#allocation3 + $0x1f0] sm:$0xff]
        %v4069 = vld [vmem:[#allocation3 + $0x1f8] sm:$0xff]
        %4070 = vmatprep.subr.mxu0 0.0
        %4071 = vmatpush1.msra.mxu0 %v4054
        %4072 = vmatprep.subr.mxu0 0.0
        %4073 = vmatpush1.msra.mxu0 %v4055
        %4074 = vmatprep.subr.mxu0 0.0
        %4075 = vmatpush1.msra.mxu0 %v4056
        %4076 = vmatprep.subr.mxu0 0.0
        %4077 = vmatpush1.msra.mxu0 %v4057
        %4078 = vmatprep.subr.mxu0 0.0
        %4079 = vmatpush1.msra.mxu0 %v4058
        %4080 = vmatprep.subr.mxu0 0.0
        %4081 = vmatpush1.msra.mxu0 %v4059
        %4082 = vmatprep.subr.mxu0 0.0
        %4083 = vmatpush1.msra.mxu0 %v4060
        %4084 = vmatprep.subr.mxu0 0.0
        %4085 = vmatpush1.msra.mxu0 %v4061
        %4086 = vmatprep.subr.mxu0 0.0
        %4087 = vmatpush1.msra.mxu0 %v4062
        %4088 = vmatprep.subr.mxu0 0.0
        %4089 = vmatpush1.msra.mxu0 %v4063
        %4090 = vmatprep.subr.mxu0 0.0
        %4091 = vmatpush1.msra.mxu0 %v4064
        %4092 = vmatprep.subr.mxu0 0.0
        %4093 = vmatpush1.msra.mxu0 %v4065
        %4094 = vmatprep.subr.mxu0 0.0
        %4095 = vmatpush1.msra.mxu0 %v4066
        %4096 = vmatprep.subr.mxu0 0.0
        %4097 = vmatpush1.msra.mxu0 %v4067
        %4098 = vmatprep.subr.mxu0 0.0
        %4099 = vmatpush1.msra.mxu0 %v4068
        %4100 = vmatprep.subr.mxu0 0.0
        %4101 = vmatpush1.msra.mxu0 %v4069
        %4102 = vmatprep.subr.mxu0 0.0
        %4103 = vmatpush1.msra.mxu0 0.0
        %4104 = vmatprep.subr.mxu0 0.0
        %4105 = vmatpush1.msra.mxu0 0.0
        %4106 = vmatprep.subr.mxu0 0.0
        %4107 = vmatpush1.msra.mxu0 0.0
        %4108 = vmatprep.subr.mxu0 0.0
        %4109 = vmatpush1.msra.mxu0 0.0
        %4110 = vmatprep.subr.mxu0 0.0
        %4111 = vmatpush1.msra.mxu0 0.0
        %4112 = vmatprep.subr.mxu0 0.0
        %4113 = vmatpush1.msra.mxu0 0.0
        %4114 = vmatprep.subr.mxu0 0.0
        %4115 = vmatpush1.msra.mxu0 0.0
        %4116 = vmatprep.subr.mxu0 0.0
        %4117 = vmatpush1.msra.mxu0 0.0
        %4118 = vmatprep.subr.mxu0 0.0
        %4119 = vmatpush1.msra.mxu0 0.0
        %4120 = vmatprep.subr.mxu0 0.0
        %4121 = vmatpush1.msra.mxu0 0.0
        %4122 = vmatprep.subr.mxu0 0.0
        %4123 = vmatpush1.msra.mxu0 0.0
        %4124 = vmatprep.subr.mxu0 0.0
        %4125 = vmatpush1.msra.mxu0 0.0
        %4126 = vmatprep.subr.mxu0 0.0
        %4127 = vmatpush1.msra.mxu0 0.0
        %4128 = vmatprep.subr.mxu0 0.0
        %4129 = vmatpush1.msra.mxu0 0.0
        %4130 = vmatprep.subr.mxu0 0.0
        %4131 = vmatpush1.msra.mxu0 0.0
        %4132 = vmatprep.subr.mxu0 0.0
        %4133 = vmatpush1.msra.mxu0 0.0
        %4134 = vmatprep.mubr.f32.mxu0 0.0
        %4135 = vmatmul.mubr.f32.gmra.mrb[0].mxu0 %v4022
        %v4136 = vpop.f32.mrb[0].mxu0
        %v4137 = vadd.f32 0.0, %v4136
        %v4138 = vpop.f32.mrb[0].mxu0
        %4139 = vmatprep.mubr.f32.mxu0 0.0
        %4140 = vmatmul.mubr.f32.gmra.mrb[0].mxu0 %v4023
        %v4141 = vpop.f32.mrb[0].mxu0
        %v4142 = vadd.f32 0.0, %v4141
        %v4143 = vpop.f32.mrb[0].mxu0
        %4144 = vmatprep.mubr.f32.mxu0 0.0
        %4145 = vmatmul.mubr.f32.gmra.mrb[0].mxu0 %v4024
        %v4146 = vpop.f32.mrb[0].mxu0
        %v4147 = vadd.f32 0.0, %v4146
        %v4148 = vpop.f32.mrb[0].mxu0
        %4149 = vmatprep.mubr.f32.mxu0 0.0
        %4150 = vmatmul.mubr.f32.gmra.mrb[0].mxu0 %v4025
        %v4151 = vpop.f32.mrb[0].mxu0
        %v4152 = vadd.f32 0.0, %v4151
        %v4153 = vpop.f32.mrb[0].mxu0
        %4154 = vmatprep.mubr.f32.mxu0 0.0
        %4155 = vmatmul.mubr.f32.gmra.mrb[0].mxu0 %v4026
        %v4156 = vpop.f32.mrb[0].mxu0
        %v4157 = vadd.f32 0.0, %v4156
        %v4158 = vpop.f32.mrb[0].mxu0
        %4159 = vmatprep.mubr.f32.mxu0 0.0
        %4160 = vmatmul.mubr.f32.gmra.mrb[0].mxu0 %v4027
        %v4161 = vpop.f32.mrb[0].mxu0
        %v4162 = vadd.f32 0.0, %v4161
        %v4163 = vpop.f32.mrb[0].mxu0
        %4164 = vmatprep.mubr.f32.mxu0 0.0
        %4165 = vmatmul.mubr.f32.gmra.mrb[0].mxu0 %v4028
        %v4166 = vpop.f32.mrb[0].mxu0
        %v4167 = vadd.f32 0.0, %v4166
        %v4168 = vpop.f32.mrb[0].mxu0
        %4169 = vmatprep.mubr.f32.mxu0 0.0
        %4170 = vmatmul.mubr.f32.gmra.mrb[0].mxu0 %v4029
        %v4171 = vpop.f32.mrb[0].mxu0
        %v4172 = vadd.f32 0.0, %v4171
        %v4173 = vpop.f32.mrb[0].mxu0
        %4174 = vmatprep.mubr.f32.mxu0 0.0
        %4175 = vmatmul.mubr.f32.gmra.mrb[0].mxu0 %v4030
        %v4176 = vpop.f32.mrb[0].mxu0
        %v4177 = vadd.f32 0.0, %v4176
        %v4178 = vpop.f32.mrb[0].mxu0
        %4179 = vmatprep.mubr.f32.mxu0 0.0
        %4180 = vmatmul.mubr.f32.gmra.mrb[0].mxu0 %v4031
        %v4181 = vpop.f32.mrb[0].mxu0
        %v4182 = vadd.f32 0.0, %v4181
        %v4183 = vpop.f32.mrb[0].mxu0
        %4184 = vmatprep.mubr.f32.mxu0 0.0
        %4185 = vmatmul.mubr.f32.gmra.mrb[0].mxu0 %v4032
        %v4186 = vpop.f32.mrb[0].mxu0
        %v4187 = vadd.f32 0.0, %v4186
        %v4188 = vpop.f32.mrb[0].mxu0
        %4189 = vmatprep.mubr.f32.mxu0 0.0
        %4190 = vmatmul.mubr.f32.gmra.mrb[0].mxu0 %v4033
        %v4191 = vpop.f32.mrb[0].mxu0
        %v4192 = vadd.f32 0.0, %v4191
        %v4193 = vpop.f32.mrb[0].mxu0
        %4194 = vmatprep.mubr.f32.mxu0 0.0
        %4195 = vmatmul.mubr.f32.gmra.mrb[0].mxu0 %v4034
        %v4196 = vpop.f32.mrb[0].mxu0
        %v4197 = vadd.f32 0.0, %v4196
        %v4198 = vpop.f32.mrb[0].mxu0
        %4199 = vmatprep.mubr.f32.mxu0 0.0
        %4200 = vmatmul.mubr.f32.gmra.mrb[0].mxu0 %v4035
        %v4201 = vpop.f32.mrb[0].mxu0
        %v4202 = vadd.f32 0.0, %v4201
        %v4203 = vpop.f32.mrb[0].mxu0
        %4204 = vmatprep.mubr.f32.mxu0 0.0
        %4205 = vmatmul.mubr.f32.gmra.mrb[0].mxu0 %v4036
        %v4206 = vpop.f32.mrb[0].mxu0
        %v4207 = vadd.f32 0.0, %v4206
        %v4208 = vpop.f32.mrb[0].mxu0
        %4209 = vmatprep.mubr.f32.mxu0 0.0
        %4210 = vmatmul.mubr.f32.gmra.mrb[0].mxu0 %v4037
        %v4211 = vpop.f32.mrb[0].mxu0
        %v4212 = vadd.f32 0.0, %v4211
        %v4213 = vpop.f32.mrb[0].mxu0
        %4214 = vmatprep.mubr.f32.mxu0 0.0
        %4215 = vmatmul.mubr.f32.gmra.mrb[0].mxu0 %v4038
        %v4216 = vpop.f32.mrb[0].mxu0
        %v4217 = vadd.f32 0.0, %v4216
        %v4218 = vpop.f32.mrb[0].mxu0
        %4219 = vmatprep.mubr.f32.mxu0 0.0
        %4220 = vmatmul.mubr.f32.gmra.mrb[0].mxu0 %v4039
        %v4221 = vpop.f32.mrb[0].mxu0
        %v4222 = vadd.f32 0.0, %v4221
        %v4223 = vpop.f32.mrb[0].mxu0
        %4224 = vmatprep.mubr.f32.mxu0 0.0
        %4225 = vmatmul.mubr.f32.gmra.mrb[0].mxu0 %v4040
        %v4226 = vpop.f32.mrb[0].mxu0
        %v4227 = vadd.f32 0.0, %v4226
        %v4228 = vpop.f32.mrb[0].mxu0
        %4229 = vmatprep.mubr.f32.mxu0 0.0
        %4230 = vmatmul.mubr.f32.gmra.mrb[0].mxu0 %v4041
        %v4231 = vpop.f32.mrb[0].mxu0
        %v4232 = vadd.f32 0.0, %v4231
        %v4233 = vpop.f32.mrb[0].mxu0
        %4234 = vmatprep.mubr.f32.mxu0 0.0
        %4235 = vmatmul.mubr.f32.gmra.mrb[0].mxu0 %v4042
        %v4236 = vpop.f32.mrb[0].mxu0
        %v4237 = vadd.f32 0.0, %v4236
        %v4238 = vpop.f32.mrb[0].mxu0
        %4239 = vmatprep.mubr.f32.mxu0 0.0
        %4240 = vmatmul.mubr.f32.gmra.mrb[0].mxu0 %v4043
        %v4241 = vpop.f32.mrb[0].mxu0
        %v4242 = vadd.f32 0.0, %v4241
        %v4243 = vpop.f32.mrb[0].mxu0
        %4244 = vmatprep.mubr.f32.mxu0 0.0
        %4245 = vmatmul.mubr.f32.gmra.mrb[0].mxu0 %v4044
        %v4246 = vpop.f32.mrb[0].mxu0
        %v4247 = vadd.f32 0.0, %v4246
        %v4248 = vpop.f32.mrb[0].mxu0
        %4249 = vmatprep.mubr.f32.mxu0 0.0
        %4250 = vmatmul.mubr.f32.gmra.mrb[0].mxu0 %v4045
        %v4251 = vpop.f32.mrb[0].mxu0
        %v4252 = vadd.f32 0.0, %v4251
        %v4253 = vpop.f32.mrb[0].mxu0
        %4254 = vmatprep.mubr.f32.mxu0 0.0
        %4255 = vmatmul.mubr.f32.gmra.mrb[0].mxu0 %v4046
        %v4256 = vpop.f32.mrb[0].mxu0
        %v4257 = vadd.f32 0.0, %v4256
        %v4258 = vpop.f32.mrb[0].mxu0
        %4259 = vmatprep.mubr.f32.mxu0 0.0
        %4260 = vmatmul.mubr.f32.gmra.mrb[0].mxu0 %v4047
        %v4261 = vpop.f32.mrb[0].mxu0
        %v4262 = vadd.f32 0.0, %v4261
        %v4263 = vpop.f32.mrb[0].mxu0
        %4264 = vmatprep.mubr.f32.mxu0 0.0
        %4265 = vmatmul.mubr.f32.gmra.mrb[0].mxu0 %v4048
        %v4266 = vpop.f32.mrb[0].mxu0
        %v4267 = vadd.f32 0.0, %v4266
        %v4268 = vpop.f32.mrb[0].mxu0
        %4269 = vmatprep.mubr.f32.mxu0 0.0
        %4270 = vmatmul.mubr.f32.gmra.mrb[0].mxu0 %v4049
        %v4271 = vpop.f32.mrb[0].mxu0
        %v4272 = vadd.f32 0.0, %v4271
        %v4273 = vpop.f32.mrb[0].mxu0
        %4274 = vmatprep.mubr.f32.mxu0 0.0
        %4275 = vmatmul.mubr.f32.gmra.mrb[0].mxu0 %v4050
        %v4276 = vpop.f32.mrb[0].mxu0
        %v4277 = vadd.f32 0.0, %v4276
        %v4278 = vpop.f32.mrb[0].mxu0
        %4279 = vmatprep.mubr.f32.mxu0 0.0
        %4280 = vmatmul.mubr.f32.gmra.mrb[0].mxu0 %v4051
        %v4281 = vpop.f32.mrb[0].mxu0
        %v4282 = vadd.f32 0.0, %v4281
        %v4283 = vpop.f32.mrb[0].mxu0
        %4284 = vmatprep.mubr.f32.mxu0 0.0
        %4285 = vmatmul.mubr.f32.gmra.mrb[0].mxu0 %v4052
        %v4286 = vpop.f32.mrb[0].mxu0
        %v4287 = vadd.f32 0.0, %v4286
        %v4288 = vpop.f32.mrb[0].mxu0
        %4289 = vmatprep.mubr.f32.mxu0 0.0
        %4290 = vmatmul.mubr.f32.gmra.mrb[0].mxu0 %v4053
        %v4291 = vpop.f32.mrb[0].mxu0
        %v4292 = vadd.f32 0.0, %v4291
        %v4293 = vpop.f32.mrb[0].mxu0
        %4294 = vdwg.mxu0
        %v4295 = vadd.f32 %v3990, %v4137
        %v4296 = vadd.f32 %v3991, %v4142
        %v4297 = vadd.f32 %v3992, %v4147
        %v4298 = vadd.f32 %v3993, %v4152
        %v4299 = vadd.f32 %v3994, %v4157
        %v4300 = vadd.f32 %v3995, %v4162
        %v4301 = vadd.f32 %v3996, %v4167
        %v4302 = vadd.f32 %v3997, %v4172
        %v4303 = vadd.f32 %v3998, %v4177
        %v4304 = vadd.f32 %v3999, %v4182
        %v4305 = vadd.f32 %v4000, %v4187
        %v4306 = vadd.f32 %v4001, %v4192
        %v4307 = vadd.f32 %v4002, %v4197
        %v4308 = vadd.f32 %v4003, %v4202
        %v4309 = vadd.f32 %v4004, %v4207
        %v4310 = vadd.f32 %v4005, %v4212
        %v4311 = vadd.f32 %v4006, %v4217
        %v4312 = vadd.f32 %v4007, %v4222
        %v4313 = vadd.f32 %v4008, %v4227
        %v4314 = vadd.f32 %v4009, %v4232
        %v4315 = vadd.f32 %v4010, %v4237
        %v4316 = vadd.f32 %v4011, %v4242
        %v4317 = vadd.f32 %v4012, %v4247
        %v4318 = vadd.f32 %v4013, %v4252
        %v4319 = vadd.f32 %v4014, %v4257
        %v4320 = vadd.f32 %v4015, %v4262
        %v4321 = vadd.f32 %v4016, %v4267
        %v4322 = vadd.f32 %v4017, %v4272
        %v4323 = vadd.f32 %v4018, %v4277
        %v4324 = vadd.f32 %v4019, %v4282
        %v4325 = vadd.f32 %v4020, %v4287
        %v4326 = vadd.f32 %v4021, %v4292
        %v4327 = vld [vmem:[%s3074 + $0x1] sm:$0xff]
        %v4328 = vld [vmem:[%s3074 + $0x9] sm:$0xff]
        %v4329 = vld [vmem:[%s3074 + $0x19] sm:$0xff]
        %v4330 = vld [vmem:[%s3074 + $0x21] sm:$0xff]
        %v4331 = vld [vmem:[%s3074 + $0x31] sm:$0xff]
        %v4332 = vld [vmem:[%s3074 + $0x39] sm:$0xff]
        %v4333 = vld [vmem:[%s3074 + $0x49] sm:$0xff]
        %v4334 = vld [vmem:[%s3074 + $0x51] sm:$0xff]
        %v4335 = vld [vmem:[%s3074 + $0x61] sm:$0xff]
        %v4336 = vld [vmem:[%s3074 + $0x69] sm:$0xff]
        %v4337 = vld [vmem:[%s3074 + $0x79] sm:$0xff]
        %v4338 = vld [vmem:[%s3074 + $0x81] sm:$0xff]
        %v4339 = vld [vmem:[%s3074 + $0x91] sm:$0xff]
        %v4340 = vld [vmem:[%s3074 + $0x99] sm:$0xff]
        %v4341 = vld [vmem:[%s3074 + $0xa9] sm:$0xff]
        %v4342 = vld [vmem:[%s3074 + $0xb1] sm:$0xff]
        %v4343 = vld [vmem:[%s3074 + $0xc1] sm:$0xff]
        %v4344 = vld [vmem:[%s3074 + $0xc9] sm:$0xff]
        %v4345 = vld [vmem:[%s3074 + $0xd9] sm:$0xff]
        %v4346 = vld [vmem:[%s3074 + $0xe1] sm:$0xff]
        %v4347 = vld [vmem:[%s3074 + $0xf1] sm:$0xff]
        %v4348 = vld [vmem:[%s3074 + $0xf9] sm:$0xff]
        %v4349 = vld [vmem:[%s3074 + $0x109] sm:$0xff]
        %v4350 = vld [vmem:[%s3074 + $0x111] sm:$0xff]
        %v4351 = vld [vmem:[%s3074 + $0x121] sm:$0xff]
        %v4352 = vld [vmem:[%s3074 + $0x129] sm:$0xff]
        %v4353 = vld [vmem:[%s3074 + $0x139] sm:$0xff]
        %v4354 = vld [vmem:[%s3074 + $0x141] sm:$0xff]
        %v4355 = vld [vmem:[%s3074 + $0x151] sm:$0xff]
        %v4356 = vld [vmem:[%s3074 + $0x159] sm:$0xff]
        %v4357 = vld [vmem:[%s3074 + $0x169] sm:$0xff]
        %v4358 = vld [vmem:[%s3074 + $0x171] sm:$0xff]
        %v4359 = vld [vmem:[#allocation3 + $0x200] sm:$0xff]
        %v4360 = vld [vmem:[#allocation3 + $0x208] sm:$0xff]
        %v4361 = vld [vmem:[#allocation3 + $0x210] sm:$0xff]
        %v4362 = vld [vmem:[#allocation3 + $0x218] sm:$0xff]
        %v4363 = vld [vmem:[#allocation3 + $0x220] sm:$0xff]
        %v4364 = vld [vmem:[#allocation3 + $0x228] sm:$0xff]
        %v4365 = vld [vmem:[#allocation3 + $0x230] sm:$0xff]
        %v4366 = vld [vmem:[#allocation3 + $0x238] sm:$0xff]
        %v4367 = vld [vmem:[#allocation3 + $0x240] sm:$0xff]
        %v4368 = vld [vmem:[#allocation3 + $0x248] sm:$0xff]
        %v4369 = vld [vmem:[#allocation3 + $0x250] sm:$0xff]
        %v4370 = vld [vmem:[#allocation3 + $0x258] sm:$0xff]
        %v4371 = vld [vmem:[#allocation3 + $0x260] sm:$0xff]
        %v4372 = vld [vmem:[#allocation3 + $0x268] sm:$0xff]
        %v4373 = vld [vmem:[#allocation3 + $0x270] sm:$0xff]
        %v4374 = vld [vmem:[#allocation3 + $0x278] sm:$0xff]
        %4375 = vmatprep.subr.mxu0 0.0
        %4376 = vmatpush1.msra.mxu0 %v4359
        %4377 = vmatprep.subr.mxu0 0.0
        %4378 = vmatpush1.msra.mxu0 %v4360
        %4379 = vmatprep.subr.mxu0 0.0
        %4380 = vmatpush1.msra.mxu0 %v4361
        %4381 = vmatprep.subr.mxu0 0.0
        %4382 = vmatpush1.msra.mxu0 %v4362
        %4383 = vmatprep.subr.mxu0 0.0
        %4384 = vmatpush1.msra.mxu0 %v4363
        %4385 = vmatprep.subr.mxu0 0.0
        %4386 = vmatpush1.msra.mxu0 %v4364
        %4387 = vmatprep.subr.mxu0 0.0
        %4388 = vmatpush1.msra.mxu0 %v4365
        %4389 = vmatprep.subr.mxu0 0.0
        %4390 = vmatpush1.msra.mxu0 %v4366
        %4391 = vmatprep.subr.mxu0 0.0
        %4392 = vmatpush1.msra.mxu0 %v4367
        %4393 = vmatprep.subr.mxu0 0.0
        %4394 = vmatpush1.msra.mxu0 %v4368
        %4395 = vmatprep.subr.mxu0 0.0
        %4396 = vmatpush1.msra.mxu0 %v4369
        %4397 = vmatprep.subr.mxu0 0.0
        %4398 = vmatpush1.msra.mxu0 %v4370
        %4399 = vmatprep.subr.mxu0 0.0
        %4400 = vmatpush1.msra.mxu0 %v4371
        %4401 = vmatprep.subr.mxu0 0.0
        %4402 = vmatpush1.msra.mxu0 %v4372
        %4403 = vmatprep.subr.mxu0 0.0
        %4404 = vmatpush1.msra.mxu0 %v4373
        %4405 = vmatprep.subr.mxu0 0.0
        %4406 = vmatpush1.msra.mxu0 %v4374
        %4407 = vmatprep.subr.mxu0 0.0
        %4408 = vmatpush1.msra.mxu0 0.0
        %4409 = vmatprep.subr.mxu0 0.0
        %4410 = vmatpush1.msra.mxu0 0.0
        %4411 = vmatprep.subr.mxu0 0.0
        %4412 = vmatpush1.msra.mxu0 0.0
        %4413 = vmatprep.subr.mxu0 0.0
        %4414 = vmatpush1.msra.mxu0 0.0
        %4415 = vmatprep.subr.mxu0 0.0
        %4416 = vmatpush1.msra.mxu0 0.0
        %4417 = vmatprep.subr.mxu0 0.0
        %4418 = vmatpush1.msra.mxu0 0.0
        %4419 = vmatprep.subr.mxu0 0.0
        %4420 = vmatpush1.msra.mxu0 0.0
        %4421 = vmatprep.subr.mxu0 0.0
        %4422 = vmatpush1.msra.mxu0 0.0
        %4423 = vmatprep.subr.mxu0 0.0
        %4424 = vmatpush1.msra.mxu0 0.0
        %4425 = vmatprep.subr.mxu0 0.0
        %4426 = vmatpush1.msra.mxu0 0.0
        %4427 = vmatprep.subr.mxu0 0.0
        %4428 = vmatpush1.msra.mxu0 0.0
        %4429 = vmatprep.subr.mxu0 0.0
        %4430 = vmatpush1.msra.mxu0 0.0
        %4431 = vmatprep.subr.mxu0 0.0
        %4432 = vmatpush1.msra.mxu0 0.0
        %4433 = vmatprep.subr.mxu0 0.0
        %4434 = vmatpush1.msra.mxu0 0.0
        %4435 = vmatprep.subr.mxu0 0.0
        %4436 = vmatpush1.msra.mxu0 0.0
        %4437 = vmatprep.subr.mxu0 0.0
        %4438 = vmatpush1.msra.mxu0 0.0
        %4439 = vmatprep.mubr.f32.mxu0 0.0
        %4440 = vmatmul.mubr.f32.gmra.mrb[0].mxu0 %v4327
        %v4441 = vpop.f32.mrb[0].mxu0
        %v4442 = vadd.f32 0.0, %v4441
        %v4443 = vpop.f32.mrb[0].mxu0
        %4444 = vmatprep.mubr.f32.mxu0 0.0
        %4445 = vmatmul.mubr.f32.gmra.mrb[0].mxu0 %v4328
        %v4446 = vpop.f32.mrb[0].mxu0
        %v4447 = vadd.f32 0.0, %v4446
        %v4448 = vpop.f32.mrb[0].mxu0
        %4449 = vmatprep.mubr.f32.mxu0 0.0
        %4450 = vmatmul.mubr.f32.gmra.mrb[0].mxu0 %v4329
        %v4451 = vpop.f32.mrb[0].mxu0
        %v4452 = vadd.f32 0.0, %v4451
        %v4453 = vpop.f32.mrb[0].mxu0
        %4454 = vmatprep.mubr.f32.mxu0 0.0
        %4455 = vmatmul.mubr.f32.gmra.mrb[0].mxu0 %v4330
        %v4456 = vpop.f32.mrb[0].mxu0
        %v4457 = vadd.f32 0.0, %v4456
        %v4458 = vpop.f32.mrb[0].mxu0
        %4459 = vmatprep.mubr.f32.mxu0 0.0
        %4460 = vmatmul.mubr.f32.gmra.mrb[0].mxu0 %v4331
        %v4461 = vpop.f32.mrb[0].mxu0
        %v4462 = vadd.f32 0.0, %v4461
        %v4463 = vpop.f32.mrb[0].mxu0
        %4464 = vmatprep.mubr.f32.mxu0 0.0
        %4465 = vmatmul.mubr.f32.gmra.mrb[0].mxu0 %v4332
        %v4466 = vpop.f32.mrb[0].mxu0
        %v4467 = vadd.f32 0.0, %v4466
        %v4468 = vpop.f32.mrb[0].mxu0
        %4469 = vmatprep.mubr.f32.mxu0 0.0
        %4470 = vmatmul.mubr.f32.gmra.mrb[0].mxu0 %v4333
        %v4471 = vpop.f32.mrb[0].mxu0
        %v4472 = vadd.f32 0.0, %v4471
        %v4473 = vpop.f32.mrb[0].mxu0
        %4474 = vmatprep.mubr.f32.mxu0 0.0
        %4475 = vmatmul.mubr.f32.gmra.mrb[0].mxu0 %v4334
        %v4476 = vpop.f32.mrb[0].mxu0
        %v4477 = vadd.f32 0.0, %v4476
        %v4478 = vpop.f32.mrb[0].mxu0
        %4479 = vmatprep.mubr.f32.mxu0 0.0
        %4480 = vmatmul.mubr.f32.gmra.mrb[0].mxu0 %v4335
        %v4481 = vpop.f32.mrb[0].mxu0
        %v4482 = vadd.f32 0.0, %v4481
        %v4483 = vpop.f32.mrb[0].mxu0
        %4484 = vmatprep.mubr.f32.mxu0 0.0
        %4485 = vmatmul.mubr.f32.gmra.mrb[0].mxu0 %v4336
        %v4486 = vpop.f32.mrb[0].mxu0
        %v4487 = vadd.f32 0.0, %v4486
        %v4488 = vpop.f32.mrb[0].mxu0
        %4489 = vmatprep.mubr.f32.mxu0 0.0
        %4490 = vmatmul.mubr.f32.gmra.mrb[0].mxu0 %v4337
        %v4491 = vpop.f32.mrb[0].mxu0
        %v4492 = vadd.f32 0.0, %v4491
        %v4493 = vpop.f32.mrb[0].mxu0
        %4494 = vmatprep.mubr.f32.mxu0 0.0
        %4495 = vmatmul.mubr.f32.gmra.mrb[0].mxu0 %v4338
        %v4496 = vpop.f32.mrb[0].mxu0
        %v4497 = vadd.f32 0.0, %v4496
        %v4498 = vpop.f32.mrb[0].mxu0
        %4499 = vmatprep.mubr.f32.mxu0 0.0
        %4500 = vmatmul.mubr.f32.gmra.mrb[0].mxu0 %v4339
        %v4501 = vpop.f32.mrb[0].mxu0
        %v4502 = vadd.f32 0.0, %v4501
        %v4503 = vpop.f32.mrb[0].mxu0
        %4504 = vmatprep.mubr.f32.mxu0 0.0
        %4505 = vmatmul.mubr.f32.gmra.mrb[0].mxu0 %v4340
        %v4506 = vpop.f32.mrb[0].mxu0
        %v4507 = vadd.f32 0.0, %v4506
        %v4508 = vpop.f32.mrb[0].mxu0
        %4509 = vmatprep.mubr.f32.mxu0 0.0
        %4510 = vmatmul.mubr.f32.gmra.mrb[0].mxu0 %v4341
        %v4511 = vpop.f32.mrb[0].mxu0
        %v4512 = vadd.f32 0.0, %v4511
        %v4513 = vpop.f32.mrb[0].mxu0
        %4514 = vmatprep.mubr.f32.mxu0 0.0
        %4515 = vmatmul.mubr.f32.gmra.mrb[0].mxu0 %v4342
        %v4516 = vpop.f32.mrb[0].mxu0
        %v4517 = vadd.f32 0.0, %v4516
        %v4518 = vpop.f32.mrb[0].mxu0
        %4519 = vmatprep.mubr.f32.mxu0 0.0
        %4520 = vmatmul.mubr.f32.gmra.mrb[0].mxu0 %v4343
        %v4521 = vpop.f32.mrb[0].mxu0
        %v4522 = vadd.f32 0.0, %v4521
        %v4523 = vpop.f32.mrb[0].mxu0
        %4524 = vmatprep.mubr.f32.mxu0 0.0
        %4525 = vmatmul.mubr.f32.gmra.mrb[0].mxu0 %v4344
        %v4526 = vpop.f32.mrb[0].mxu0
        %v4527 = vadd.f32 0.0, %v4526
        %v4528 = vpop.f32.mrb[0].mxu0
        %4529 = vmatprep.mubr.f32.mxu0 0.0
        %4530 = vmatmul.mubr.f32.gmra.mrb[0].mxu0 %v4345
        %v4531 = vpop.f32.mrb[0].mxu0
        %v4532 = vadd.f32 0.0, %v4531
        %v4533 = vpop.f32.mrb[0].mxu0
        %4534 = vmatprep.mubr.f32.mxu0 0.0
        %4535 = vmatmul.mubr.f32.gmra.mrb[0].mxu0 %v4346
        %v4536 = vpop.f32.mrb[0].mxu0
        %v4537 = vadd.f32 0.0, %v4536
        %v4538 = vpop.f32.mrb[0].mxu0
        %4539 = vmatprep.mubr.f32.mxu0 0.0
        %4540 = vmatmul.mubr.f32.gmra.mrb[0].mxu0 %v4347
        %v4541 = vpop.f32.mrb[0].mxu0
        %v4542 = vadd.f32 0.0, %v4541
        %v4543 = vpop.f32.mrb[0].mxu0
        %4544 = vmatprep.mubr.f32.mxu0 0.0
        %4545 = vmatmul.mubr.f32.gmra.mrb[0].mxu0 %v4348
        %v4546 = vpop.f32.mrb[0].mxu0
        %v4547 = vadd.f32 0.0, %v4546
        %v4548 = vpop.f32.mrb[0].mxu0
        %4549 = vmatprep.mubr.f32.mxu0 0.0
        %4550 = vmatmul.mubr.f32.gmra.mrb[0].mxu0 %v4349
        %v4551 = vpop.f32.mrb[0].mxu0
        %v4552 = vadd.f32 0.0, %v4551
        %v4553 = vpop.f32.mrb[0].mxu0
        %4554 = vmatprep.mubr.f32.mxu0 0.0
        %4555 = vmatmul.mubr.f32.gmra.mrb[0].mxu0 %v4350
        %v4556 = vpop.f32.mrb[0].mxu0
        %v4557 = vadd.f32 0.0, %v4556
        %v4558 = vpop.f32.mrb[0].mxu0
        %4559 = vmatprep.mubr.f32.mxu0 0.0
        %4560 = vmatmul.mubr.f32.gmra.mrb[0].mxu0 %v4351
        %v4561 = vpop.f32.mrb[0].mxu0
        %v4562 = vadd.f32 0.0, %v4561
        %v4563 = vpop.f32.mrb[0].mxu0
        %4564 = vmatprep.mubr.f32.mxu0 0.0
        %4565 = vmatmul.mubr.f32.gmra.mrb[0].mxu0 %v4352
        %v4566 = vpop.f32.mrb[0].mxu0
        %v4567 = vadd.f32 0.0, %v4566
        %v4568 = vpop.f32.mrb[0].mxu0
        %4569 = vmatprep.mubr.f32.mxu0 0.0
        %4570 = vmatmul.mubr.f32.gmra.mrb[0].mxu0 %v4353
        %v4571 = vpop.f32.mrb[0].mxu0
        %v4572 = vadd.f32 0.0, %v4571
        %v4573 = vpop.f32.mrb[0].mxu0
        %4574 = vmatprep.mubr.f32.mxu0 0.0
        %4575 = vmatmul.mubr.f32.gmra.mrb[0].mxu0 %v4354
        %v4576 = vpop.f32.mrb[0].mxu0
        %v4577 = vadd.f32 0.0, %v4576
        %v4578 = vpop.f32.mrb[0].mxu0
        %4579 = vmatprep.mubr.f32.mxu0 0.0
        %4580 = vmatmul.mubr.f32.gmra.mrb[0].mxu0 %v4355
        %v4581 = vpop.f32.mrb[0].mxu0
        %v4582 = vadd.f32 0.0, %v4581
        %v4583 = vpop.f32.mrb[0].mxu0
        %4584 = vmatprep.mubr.f32.mxu0 0.0
        %4585 = vmatmul.mubr.f32.gmra.mrb[0].mxu0 %v4356
        %v4586 = vpop.f32.mrb[0].mxu0
        %v4587 = vadd.f32 0.0, %v4586
        %v4588 = vpop.f32.mrb[0].mxu0
        %4589 = vmatprep.mubr.f32.mxu0 0.0
        %4590 = vmatmul.mubr.f32.gmra.mrb[0].mxu0 %v4357
        %v4591 = vpop.f32.mrb[0].mxu0
        %v4592 = vadd.f32 0.0, %v4591
        %v4593 = vpop.f32.mrb[0].mxu0
        %4594 = vmatprep.mubr.f32.mxu0 0.0
        %4595 = vmatmul.mubr.f32.gmra.mrb[0].mxu0 %v4358
        %v4596 = vpop.f32.mrb[0].mxu0
        %v4597 = vadd.f32 0.0, %v4596
        %v4598 = vpop.f32.mrb[0].mxu0
        %4599 = vdwg.mxu0
        %v4600 = vadd.f32 %v4295, %v4442
        %v4601 = vadd.f32 %v4296, %v4447
        %v4602 = vadd.f32 %v4297, %v4452
        %v4603 = vadd.f32 %v4298, %v4457
        %v4604 = vadd.f32 %v4299, %v4462
        %v4605 = vadd.f32 %v4300, %v4467
        %v4606 = vadd.f32 %v4301, %v4472
        %v4607 = vadd.f32 %v4302, %v4477
        %v4608 = vadd.f32 %v4303, %v4482
        %v4609 = vadd.f32 %v4304, %v4487
        %v4610 = vadd.f32 %v4305, %v4492
        %v4611 = vadd.f32 %v4306, %v4497
        %v4612 = vadd.f32 %v4307, %v4502
        %v4613 = vadd.f32 %v4308, %v4507
        %v4614 = vadd.f32 %v4309, %v4512
        %v4615 = vadd.f32 %v4310, %v4517
        %v4616 = vadd.f32 %v4311, %v4522
        %v4617 = vadd.f32 %v4312, %v4527
        %v4618 = vadd.f32 %v4313, %v4532
        %v4619 = vadd.f32 %v4314, %v4537
        %v4620 = vadd.f32 %v4315, %v4542
        %v4621 = vadd.f32 %v4316, %v4547
        %v4622 = vadd.f32 %v4317, %v4552
        %v4623 = vadd.f32 %v4318, %v4557
        %v4624 = vadd.f32 %v4319, %v4562
        %v4625 = vadd.f32 %v4320, %v4567
        %v4626 = vadd.f32 %v4321, %v4572
        %v4627 = vadd.f32 %v4322, %v4577
        %v4628 = vadd.f32 %v4323, %v4582
        %v4629 = vadd.f32 %v4324, %v4587
        %v4630 = vadd.f32 %v4325, %v4592
        %v4631 = vadd.f32 %v4326, %v4597
        %v4632 = vld [vmem:[%s3074 + $0x2] sm:$0xff]
        %v4633 = vld [vmem:[%s3074 + $0xa] sm:$0xff]
        %v4634 = vld [vmem:[%s3074 + $0x1a] sm:$0xff]
        %v4635 = vld [vmem:[%s3074 + $0x22] sm:$0xff]
        %v4636 = vld [vmem:[%s3074 + $0x32] sm:$0xff]
        %v4637 = vld [vmem:[%s3074 + $0x3a] sm:$0xff]
        %v4638 = vld [vmem:[%s3074 + $0x4a] sm:$0xff]
        %v4639 = vld [vmem:[%s3074 + $0x52] sm:$0xff]
        %v4640 = vld [vmem:[%s3074 + $0x62] sm:$0xff]
        %v4641 = vld [vmem:[%s3074 + $0x6a] sm:$0xff]
        %v4642 = vld [vmem:[%s3074 + $0x7a] sm:$0xff]
        %v4643 = vld [vmem:[%s3074 + $0x82] sm:$0xff]
        %v4644 = vld [vmem:[%s3074 + $0x92] sm:$0xff]
        %v4645 = vld [vmem:[%s3074 + $0x9a] sm:$0xff]
        %v4646 = vld [vmem:[%s3074 + $0xaa] sm:$0xff]
        %v4647 = vld [vmem:[%s3074 + $0xb2] sm:$0xff]
        %v4648 = vld [vmem:[%s3074 + $0xc2] sm:$0xff]
        %v4649 = vld [vmem:[%s3074 + $0xca] sm:$0xff]
        %v4650 = vld [vmem:[%s3074 + $0xda] sm:$0xff]
        %v4651 = vld [vmem:[%s3074 + $0xe2] sm:$0xff]
        %v4652 = vld [vmem:[%s3074 + $0xf2] sm:$0xff]
        %v4653 = vld [vmem:[%s3074 + $0xfa] sm:$0xff]
        %v4654 = vld [vmem:[%s3074 + $0x10a] sm:$0xff]
        %v4655 = vld [vmem:[%s3074 + $0x112] sm:$0xff]
        %v4656 = vld [vmem:[%s3074 + $0x122] sm:$0xff]
        %v4657 = vld [vmem:[%s3074 + $0x12a] sm:$0xff]
        %v4658 = vld [vmem:[%s3074 + $0x13a] sm:$0xff]
        %v4659 = vld [vmem:[%s3074 + $0x142] sm:$0xff]
        %v4660 = vld [vmem:[%s3074 + $0x152] sm:$0xff]
        %v4661 = vld [vmem:[%s3074 + $0x15a] sm:$0xff]
        %v4662 = vld [vmem:[%s3074 + $0x16a] sm:$0xff]
        %v4663 = vld [vmem:[%s3074 + $0x172] sm:$0xff]
        %v4664 = vld [vmem:[#allocation3 + $0x280] sm:$0xff]
        %v4665 = vld [vmem:[#allocation3 + $0x288] sm:$0xff]
        %v4666 = vld [vmem:[#allocation3 + $0x290] sm:$0xff]
        %v4667 = vld [vmem:[#allocation3 + $0x298] sm:$0xff]
        %v4668 = vld [vmem:[#allocation3 + $0x2a0] sm:$0xff]
        %v4669 = vld [vmem:[#allocation3 + $0x2a8] sm:$0xff]
        %v4670 = vld [vmem:[#allocation3 + $0x2b0] sm:$0xff]
        %v4671 = vld [vmem:[#allocation3 + $0x2b8] sm:$0xff]
        %v4672 = vld [vmem:[#allocation3 + $0x2c0] sm:$0xff]
        %v4673 = vld [vmem:[#allocation3 + $0x2c8] sm:$0xff]
        %v4674 = vld [vmem:[#allocation3 + $0x2d0] sm:$0xff]
        %v4675 = vld [vmem:[#allocation3 + $0x2d8] sm:$0xff]
        %v4676 = vld [vmem:[#allocation3 + $0x2e0] sm:$0xff]
        %v4677 = vld [vmem:[#allocation3 + $0x2e8] sm:$0xff]
        %v4678 = vld [vmem:[#allocation3 + $0x2f0] sm:$0xff]
        %v4679 = vld [vmem:[#allocation3 + $0x2f8] sm:$0xff]
        %4680 = vmatprep.subr.mxu0 0.0
        %4681 = vmatpush1.msra.mxu0 %v4664
        %4682 = vmatprep.subr.mxu0 0.0
        %4683 = vmatpush1.msra.mxu0 %v4665
        %4684 = vmatprep.subr.mxu0 0.0
        %4685 = vmatpush1.msra.mxu0 %v4666
        %4686 = vmatprep.subr.mxu0 0.0
        %4687 = vmatpush1.msra.mxu0 %v4667
        %4688 = vmatprep.subr.mxu0 0.0
        %4689 = vmatpush1.msra.mxu0 %v4668
        %4690 = vmatprep.subr.mxu0 0.0
        %4691 = vmatpush1.msra.mxu0 %v4669
        %4692 = vmatprep.subr.mxu0 0.0
        %4693 = vmatpush1.msra.mxu0 %v4670
        %4694 = vmatprep.subr.mxu0 0.0
        %4695 = vmatpush1.msra.mxu0 %v4671
        %4696 = vmatprep.subr.mxu0 0.0
        %4697 = vmatpush1.msra.mxu0 %v4672
        %4698 = vmatprep.subr.mxu0 0.0
        %4699 = vmatpush1.msra.mxu0 %v4673
        %4700 = vmatprep.subr.mxu0 0.0
        %4701 = vmatpush1.msra.mxu0 %v4674
        %4702 = vmatprep.subr.mxu0 0.0
        %4703 = vmatpush1.msra.mxu0 %v4675
        %4704 = vmatprep.subr.mxu0 0.0
        %4705 = vmatpush1.msra.mxu0 %v4676
        %4706 = vmatprep.subr.mxu0 0.0
        %4707 = vmatpush1.msra.mxu0 %v4677
        %4708 = vmatprep.subr.mxu0 0.0
        %4709 = vmatpush1.msra.mxu0 %v4678
        %4710 = vmatprep.subr.mxu0 0.0
        %4711 = vmatpush1.msra.mxu0 %v4679
        %4712 = vmatprep.subr.mxu0 0.0
        %4713 = vmatpush1.msra.mxu0 0.0
        %4714 = vmatprep.subr.mxu0 0.0
        %4715 = vmatpush1.msra.mxu0 0.0
        %4716 = vmatprep.subr.mxu0 0.0
        %4717 = vmatpush1.msra.mxu0 0.0
        %4718 = vmatprep.subr.mxu0 0.0
        %4719 = vmatpush1.msra.mxu0 0.0
        %4720 = vmatprep.subr.mxu0 0.0
        %4721 = vmatpush1.msra.mxu0 0.0
        %4722 = vmatprep.subr.mxu0 0.0
        %4723 = vmatpush1.msra.mxu0 0.0
        %4724 = vmatprep.subr.mxu0 0.0
        %4725 = vmatpush1.msra.mxu0 0.0
        %4726 = vmatprep.subr.mxu0 0.0
        %4727 = vmatpush1.msra.mxu0 0.0
        %4728 = vmatprep.subr.mxu0 0.0
        %4729 = vmatpush1.msra.mxu0 0.0
        %4730 = vmatprep.subr.mxu0 0.0
        %4731 = vmatpush1.msra.mxu0 0.0
        %4732 = vmatprep.subr.mxu0 0.0
        %4733 = vmatpush1.msra.mxu0 0.0
        %4734 = vmatprep.subr.mxu0 0.0
        %4735 = vmatpush1.msra.mxu0 0.0
        %4736 = vmatprep.subr.mxu0 0.0
        %4737 = vmatpush1.msra.mxu0 0.0
        %4738 = vmatprep.subr.mxu0 0.0
        %4739 = vmatpush1.msra.mxu0 0.0
        %4740 = vmatprep.subr.mxu0 0.0
        %4741 = vmatpush1.msra.mxu0 0.0
        %4742 = vmatprep.subr.mxu0 0.0
        %4743 = vmatpush1.msra.mxu0 0.0
        %4744 = vmatprep.mubr.f32.mxu0 0.0
        %4745 = vmatmul.mubr.f32.gmra.mrb[0].mxu0 %v4632
        %v4746 = vpop.f32.mrb[0].mxu0
        %v4747 = vadd.f32 0.0, %v4746
        %v4748 = vpop.f32.mrb[0].mxu0
        %4749 = vmatprep.mubr.f32.mxu0 0.0
        %4750 = vmatmul.mubr.f32.gmra.mrb[0].mxu0 %v4633
        %v4751 = vpop.f32.mrb[0].mxu0
        %v4752 = vadd.f32 0.0, %v4751
        %v4753 = vpop.f32.mrb[0].mxu0
        %4754 = vmatprep.mubr.f32.mxu0 0.0
        %4755 = vmatmul.mubr.f32.gmra.mrb[0].mxu0 %v4634
        %v4756 = vpop.f32.mrb[0].mxu0
        %v4757 = vadd.f32 0.0, %v4756
        %v4758 = vpop.f32.mrb[0].mxu0
        %4759 = vmatprep.mubr.f32.mxu0 0.0
        %4760 = vmatmul.mubr.f32.gmra.mrb[0].mxu0 %v4635
        %v4761 = vpop.f32.mrb[0].mxu0
        %v4762 = vadd.f32 0.0, %v4761
        %v4763 = vpop.f32.mrb[0].mxu0
        %4764 = vmatprep.mubr.f32.mxu0 0.0
        %4765 = vmatmul.mubr.f32.gmra.mrb[0].mxu0 %v4636
        %v4766 = vpop.f32.mrb[0].mxu0
        %v4767 = vadd.f32 0.0, %v4766
        %v4768 = vpop.f32.mrb[0].mxu0
        %4769 = vmatprep.mubr.f32.mxu0 0.0
        %4770 = vmatmul.mubr.f32.gmra.mrb[0].mxu0 %v4637
        %v4771 = vpop.f32.mrb[0].mxu0
        %v4772 = vadd.f32 0.0, %v4771
        %v4773 = vpop.f32.mrb[0].mxu0
        %4774 = vmatprep.mubr.f32.mxu0 0.0
        %4775 = vmatmul.mubr.f32.gmra.mrb[0].mxu0 %v4638
        %v4776 = vpop.f32.mrb[0].mxu0
        %v4777 = vadd.f32 0.0, %v4776
        %v4778 = vpop.f32.mrb[0].mxu0
        %4779 = vmatprep.mubr.f32.mxu0 0.0
        %4780 = vmatmul.mubr.f32.gmra.mrb[0].mxu0 %v4639
        %v4781 = vpop.f32.mrb[0].mxu0
        %v4782 = vadd.f32 0.0, %v4781
        %v4783 = vpop.f32.mrb[0].mxu0
        %4784 = vmatprep.mubr.f32.mxu0 0.0
        %4785 = vmatmul.mubr.f32.gmra.mrb[0].mxu0 %v4640
        %v4786 = vpop.f32.mrb[0].mxu0
        %v4787 = vadd.f32 0.0, %v4786
        %v4788 = vpop.f32.mrb[0].mxu0
        %4789 = vmatprep.mubr.f32.mxu0 0.0
        %4790 = vmatmul.mubr.f32.gmra.mrb[0].mxu0 %v4641
        %v4791 = vpop.f32.mrb[0].mxu0
        %v4792 = vadd.f32 0.0, %v4791
        %v4793 = vpop.f32.mrb[0].mxu0
        %4794 = vmatprep.mubr.f32.mxu0 0.0
        %4795 = vmatmul.mubr.f32.gmra.mrb[0].mxu0 %v4642
        %v4796 = vpop.f32.mrb[0].mxu0
        %v4797 = vadd.f32 0.0, %v4796
        %v4798 = vpop.f32.mrb[0].mxu0
        %4799 = vmatprep.mubr.f32.mxu0 0.0
        %4800 = vmatmul.mubr.f32.gmra.mrb[0].mxu0 %v4643
        %v4801 = vpop.f32.mrb[0].mxu0
        %v4802 = vadd.f32 0.0, %v4801
        %v4803 = vpop.f32.mrb[0].mxu0
        %4804 = vmatprep.mubr.f32.mxu0 0.0
        %4805 = vmatmul.mubr.f32.gmra.mrb[0].mxu0 %v4644
        %v4806 = vpop.f32.mrb[0].mxu0
        %v4807 = vadd.f32 0.0, %v4806
        %v4808 = vpop.f32.mrb[0].mxu0
        %4809 = vmatprep.mubr.f32.mxu0 0.0
        %4810 = vmatmul.mubr.f32.gmra.mrb[0].mxu0 %v4645
        %v4811 = vpop.f32.mrb[0].mxu0
        %v4812 = vadd.f32 0.0, %v4811
        %v4813 = vpop.f32.mrb[0].mxu0
        %4814 = vmatprep.mubr.f32.mxu0 0.0
        %4815 = vmatmul.mubr.f32.gmra.mrb[0].mxu0 %v4646
        %v4816 = vpop.f32.mrb[0].mxu0
        %v4817 = vadd.f32 0.0, %v4816
        %v4818 = vpop.f32.mrb[0].mxu0
        %4819 = vmatprep.mubr.f32.mxu0 0.0
        %4820 = vmatmul.mubr.f32.gmra.mrb[0].mxu0 %v4647
        %v4821 = vpop.f32.mrb[0].mxu0
        %v4822 = vadd.f32 0.0, %v4821
        %v4823 = vpop.f32.mrb[0].mxu0
        %4824 = vmatprep.mubr.f32.mxu0 0.0
        %4825 = vmatmul.mubr.f32.gmra.mrb[0].mxu0 %v4648
        %v4826 = vpop.f32.mrb[0].mxu0
        %v4827 = vadd.f32 0.0, %v4826
        %v4828 = vpop.f32.mrb[0].mxu0
        %4829 = vmatprep.mubr.f32.mxu0 0.0
        %4830 = vmatmul.mubr.f32.gmra.mrb[0].mxu0 %v4649
        %v4831 = vpop.f32.mrb[0].mxu0
        %v4832 = vadd.f32 0.0, %v4831
        %v4833 = vpop.f32.mrb[0].mxu0
        %4834 = vmatprep.mubr.f32.mxu0 0.0
        %4835 = vmatmul.mubr.f32.gmra.mrb[0].mxu0 %v4650
        %v4836 = vpop.f32.mrb[0].mxu0
        %v4837 = vadd.f32 0.0, %v4836
        %v4838 = vpop.f32.mrb[0].mxu0
        %4839 = vmatprep.mubr.f32.mxu0 0.0
        %4840 = vmatmul.mubr.f32.gmra.mrb[0].mxu0 %v4651
        %v4841 = vpop.f32.mrb[0].mxu0
        %v4842 = vadd.f32 0.0, %v4841
        %v4843 = vpop.f32.mrb[0].mxu0
        %4844 = vmatprep.mubr.f32.mxu0 0.0
        %4845 = vmatmul.mubr.f32.gmra.mrb[0].mxu0 %v4652
        %v4846 = vpop.f32.mrb[0].mxu0
        %v4847 = vadd.f32 0.0, %v4846
        %v4848 = vpop.f32.mrb[0].mxu0
        %4849 = vmatprep.mubr.f32.mxu0 0.0
        %4850 = vmatmul.mubr.f32.gmra.mrb[0].mxu0 %v4653
        %v4851 = vpop.f32.mrb[0].mxu0
        %v4852 = vadd.f32 0.0, %v4851
        %v4853 = vpop.f32.mrb[0].mxu0
        %4854 = vmatprep.mubr.f32.mxu0 0.0
        %4855 = vmatmul.mubr.f32.gmra.mrb[0].mxu0 %v4654
        %v4856 = vpop.f32.mrb[0].mxu0
        %v4857 = vadd.f32 0.0, %v4856
        %v4858 = vpop.f32.mrb[0].mxu0
        %4859 = vmatprep.mubr.f32.mxu0 0.0
        %4860 = vmatmul.mubr.f32.gmra.mrb[0].mxu0 %v4655
        %v4861 = vpop.f32.mrb[0].mxu0
        %v4862 = vadd.f32 0.0, %v4861
        %v4863 = vpop.f32.mrb[0].mxu0
        %4864 = vmatprep.mubr.f32.mxu0 0.0
        %4865 = vmatmul.mubr.f32.gmra.mrb[0].mxu0 %v4656
        %v4866 = vpop.f32.mrb[0].mxu0
        %v4867 = vadd.f32 0.0, %v4866
        %v4868 = vpop.f32.mrb[0].mxu0
        %4869 = vmatprep.mubr.f32.mxu0 0.0
        %4870 = vmatmul.mubr.f32.gmra.mrb[0].mxu0 %v4657
        %v4871 = vpop.f32.mrb[0].mxu0
        %v4872 = vadd.f32 0.0, %v4871
        %v4873 = vpop.f32.mrb[0].mxu0
        %4874 = vmatprep.mubr.f32.mxu0 0.0
        %4875 = vmatmul.mubr.f32.gmra.mrb[0].mxu0 %v4658
        %v4876 = vpop.f32.mrb[0].mxu0
        %v4877 = vadd.f32 0.0, %v4876
        %v4878 = vpop.f32.mrb[0].mxu0
        %4879 = vmatprep.mubr.f32.mxu0 0.0
        %4880 = vmatmul.mubr.f32.gmra.mrb[0].mxu0 %v4659
        %v4881 = vpop.f32.mrb[0].mxu0
        %v4882 = vadd.f32 0.0, %v4881
        %v4883 = vpop.f32.mrb[0].mxu0
        %4884 = vmatprep.mubr.f32.mxu0 0.0
        %4885 = vmatmul.mubr.f32.gmra.mrb[0].mxu0 %v4660
        %v4886 = vpop.f32.mrb[0].mxu0
        %v4887 = vadd.f32 0.0, %v4886
        %v4888 = vpop.f32.mrb[0].mxu0
        %4889 = vmatprep.mubr.f32.mxu0 0.0
        %4890 = vmatmul.mubr.f32.gmra.mrb[0].mxu0 %v4661
        %v4891 = vpop.f32.mrb[0].mxu0
        %v4892 = vadd.f32 0.0, %v4891
        %v4893 = vpop.f32.mrb[0].mxu0
        %4894 = vmatprep.mubr.f32.mxu0 0.0
        %4895 = vmatmul.mubr.f32.gmra.mrb[0].mxu0 %v4662
        %v4896 = vpop.f32.mrb[0].mxu0
        %v4897 = vadd.f32 0.0, %v4896
        %v4898 = vpop.f32.mrb[0].mxu0
        %4899 = vmatprep.mubr.f32.mxu0 0.0
        %4900 = vmatmul.mubr.f32.gmra.mrb[0].mxu0 %v4663
        %v4901 = vpop.f32.mrb[0].mxu0
        %v4902 = vadd.f32 0.0, %v4901
        %v4903 = vpop.f32.mrb[0].mxu0
        %4904 = vdwg.mxu0
        %v4905 = vadd.f32 %v4600, %v4747
        %v4906 = vadd.f32 %v4601, %v4752
        %v4907 = vadd.f32 %v4602, %v4757
        %v4908 = vadd.f32 %v4603, %v4762
        %v4909 = vadd.f32 %v4604, %v4767
        %v4910 = vadd.f32 %v4605, %v4772
        %v4911 = vadd.f32 %v4606, %v4777
        %v4912 = vadd.f32 %v4607, %v4782
        %v4913 = vadd.f32 %v4608, %v4787
        %v4914 = vadd.f32 %v4609, %v4792
        %v4915 = vadd.f32 %v4610, %v4797
        %v4916 = vadd.f32 %v4611, %v4802
        %v4917 = vadd.f32 %v4612, %v4807
        %v4918 = vadd.f32 %v4613, %v4812
        %v4919 = vadd.f32 %v4614, %v4817
        %v4920 = vadd.f32 %v4615, %v4822
        %v4921 = vadd.f32 %v4616, %v4827
        %v4922 = vadd.f32 %v4617, %v4832
        %v4923 = vadd.f32 %v4618, %v4837
        %v4924 = vadd.f32 %v4619, %v4842
        %v4925 = vadd.f32 %v4620, %v4847
        %v4926 = vadd.f32 %v4621, %v4852
        %v4927 = vadd.f32 %v4622, %v4857
        %v4928 = vadd.f32 %v4623, %v4862
        %v4929 = vadd.f32 %v4624, %v4867
        %v4930 = vadd.f32 %v4625, %v4872
        %v4931 = vadd.f32 %v4626, %v4877
        %v4932 = vadd.f32 %v4627, %v4882
        %v4933 = vadd.f32 %v4628, %v4887
        %v4934 = vadd.f32 %v4629, %v4892
        %v4935 = vadd.f32 %v4630, %v4897
        %v4936 = vadd.f32 %v4631, %v4902
        %s4937 = scalar_lea.vmem [#allocation2], 48
        %v4938 = vld [vmem:[%s4937] sm:$0xff]
        %v4939 = vld [vmem:[%s4937 + $0x8] sm:$0xff]
        %v4940 = vld [vmem:[%s4937 + $0x18] sm:$0xff]
        %v4941 = vld [vmem:[%s4937 + $0x20] sm:$0xff]
        %v4942 = vld [vmem:[%s4937 + $0x30] sm:$0xff]
        %v4943 = vld [vmem:[%s4937 + $0x38] sm:$0xff]
        %v4944 = vld [vmem:[%s4937 + $0x48] sm:$0xff]
        %v4945 = vld [vmem:[%s4937 + $0x50] sm:$0xff]
        %v4946 = vld [vmem:[%s4937 + $0x60] sm:$0xff]
        %v4947 = vld [vmem:[%s4937 + $0x68] sm:$0xff]
        %v4948 = vld [vmem:[%s4937 + $0x78] sm:$0xff]
        %v4949 = vld [vmem:[%s4937 + $0x80] sm:$0xff]
        %v4950 = vld [vmem:[%s4937 + $0x90] sm:$0xff]
        %v4951 = vld [vmem:[%s4937 + $0x98] sm:$0xff]
        %v4952 = vld [vmem:[%s4937 + $0xa8] sm:$0xff]
        %v4953 = vld [vmem:[%s4937 + $0xb0] sm:$0xff]
        %v4954 = vld [vmem:[%s4937 + $0xc0] sm:$0xff]
        %v4955 = vld [vmem:[%s4937 + $0xc8] sm:$0xff]
        %v4956 = vld [vmem:[%s4937 + $0xd8] sm:$0xff]
        %v4957 = vld [vmem:[%s4937 + $0xe0] sm:$0xff]
        %v4958 = vld [vmem:[%s4937 + $0xf0] sm:$0xff]
        %v4959 = vld [vmem:[%s4937 + $0xf8] sm:$0xff]
        %v4960 = vld [vmem:[%s4937 + $0x108] sm:$0xff]
        %v4961 = vld [vmem:[%s4937 + $0x110] sm:$0xff]
        %v4962 = vld [vmem:[%s4937 + $0x120] sm:$0xff]
        %v4963 = vld [vmem:[%s4937 + $0x128] sm:$0xff]
        %v4964 = vld [vmem:[%s4937 + $0x138] sm:$0xff]
        %v4965 = vld [vmem:[%s4937 + $0x140] sm:$0xff]
        %v4966 = vld [vmem:[%s4937 + $0x150] sm:$0xff]
        %v4967 = vld [vmem:[%s4937 + $0x158] sm:$0xff]
        %v4968 = vld [vmem:[%s4937 + $0x168] sm:$0xff]
        %v4969 = vld [vmem:[%s4937 + $0x170] sm:$0xff]
        %v4970 = vld [vmem:[#allocation3 + $0x300] sm:$0xff]
        %v4971 = vld [vmem:[#allocation3 + $0x308] sm:$0xff]
        %v4972 = vld [vmem:[#allocation3 + $0x310] sm:$0xff]
        %v4973 = vld [vmem:[#allocation3 + $0x318] sm:$0xff]
        %v4974 = vld [vmem:[#allocation3 + $0x320] sm:$0xff]
        %v4975 = vld [vmem:[#allocation3 + $0x328] sm:$0xff]
        %v4976 = vld [vmem:[#allocation3 + $0x330] sm:$0xff]
        %v4977 = vld [vmem:[#allocation3 + $0x338] sm:$0xff]
        %v4978 = vld [vmem:[#allocation3 + $0x340] sm:$0xff]
        %v4979 = vld [vmem:[#allocation3 + $0x348] sm:$0xff]
        %v4980 = vld [vmem:[#allocation3 + $0x350] sm:$0xff]
        %v4981 = vld [vmem:[#allocation3 + $0x358] sm:$0xff]
        %v4982 = vld [vmem:[#allocation3 + $0x360] sm:$0xff]
        %v4983 = vld [vmem:[#allocation3 + $0x368] sm:$0xff]
        %v4984 = vld [vmem:[#allocation3 + $0x370] sm:$0xff]
        %v4985 = vld [vmem:[#allocation3 + $0x378] sm:$0xff]
        %4986 = vmatprep.subr.mxu0 0.0
        %4987 = vmatpush1.msra.mxu0 %v4970
        %4988 = vmatprep.subr.mxu0 0.0
        %4989 = vmatpush1.msra.mxu0 %v4971
        %4990 = vmatprep.subr.mxu0 0.0
        %4991 = vmatpush1.msra.mxu0 %v4972
        %4992 = vmatprep.subr.mxu0 0.0
        %4993 = vmatpush1.msra.mxu0 %v4973
        %4994 = vmatprep.subr.mxu0 0.0
        %4995 = vmatpush1.msra.mxu0 %v4974
        %4996 = vmatprep.subr.mxu0 0.0
        %4997 = vmatpush1.msra.mxu0 %v4975
        %4998 = vmatprep.subr.mxu0 0.0
        %4999 = vmatpush1.msra.mxu0 %v4976
        %5000 = vmatprep.subr.mxu0 0.0
        %5001 = vmatpush1.msra.mxu0 %v4977
        %5002 = vmatprep.subr.mxu0 0.0
        %5003 = vmatpush1.msra.mxu0 %v4978
        %5004 = vmatprep.subr.mxu0 0.0
        %5005 = vmatpush1.msra.mxu0 %v4979
        %5006 = vmatprep.subr.mxu0 0.0
        %5007 = vmatpush1.msra.mxu0 %v4980
        %5008 = vmatprep.subr.mxu0 0.0
        %5009 = vmatpush1.msra.mxu0 %v4981
        %5010 = vmatprep.subr.mxu0 0.0
        %5011 = vmatpush1.msra.mxu0 %v4982
        %5012 = vmatprep.subr.mxu0 0.0
        %5013 = vmatpush1.msra.mxu0 %v4983
        %5014 = vmatprep.subr.mxu0 0.0
        %5015 = vmatpush1.msra.mxu0 %v4984
        %5016 = vmatprep.subr.mxu0 0.0
        %5017 = vmatpush1.msra.mxu0 %v4985
        %5018 = vmatprep.subr.mxu0 0.0
        %5019 = vmatpush1.msra.mxu0 0.0
        %5020 = vmatprep.subr.mxu0 0.0
        %5021 = vmatpush1.msra.mxu0 0.0
        %5022 = vmatprep.subr.mxu0 0.0
        %5023 = vmatpush1.msra.mxu0 0.0
        %5024 = vmatprep.subr.mxu0 0.0
        %5025 = vmatpush1.msra.mxu0 0.0
        %5026 = vmatprep.subr.mxu0 0.0
        %5027 = vmatpush1.msra.mxu0 0.0
        %5028 = vmatprep.subr.mxu0 0.0
        %5029 = vmatpush1.msra.mxu0 0.0
        %5030 = vmatprep.subr.mxu0 0.0
        %5031 = vmatpush1.msra.mxu0 0.0
        %5032 = vmatprep.subr.mxu0 0.0
        %5033 = vmatpush1.msra.mxu0 0.0
        %5034 = vmatprep.subr.mxu0 0.0
        %5035 = vmatpush1.msra.mxu0 0.0
        %5036 = vmatprep.subr.mxu0 0.0
        %5037 = vmatpush1.msra.mxu0 0.0
        %5038 = vmatprep.subr.mxu0 0.0
        %5039 = vmatpush1.msra.mxu0 0.0
        %5040 = vmatprep.subr.mxu0 0.0
        %5041 = vmatpush1.msra.mxu0 0.0
        %5042 = vmatprep.subr.mxu0 0.0
        %5043 = vmatpush1.msra.mxu0 0.0
        %5044 = vmatprep.subr.mxu0 0.0
        %5045 = vmatpush1.msra.mxu0 0.0
        %5046 = vmatprep.subr.mxu0 0.0
        %5047 = vmatpush1.msra.mxu0 0.0
        %5048 = vmatprep.subr.mxu0 0.0
        %5049 = vmatpush1.msra.mxu0 0.0
        %5050 = vmatprep.mubr.f32.mxu0 0.0
        %5051 = vmatmul.mubr.f32.gmra.mrb[0].mxu0 %v4938
        %v5052 = vpop.f32.mrb[0].mxu0
        %v5053 = vadd.f32 0.0, %v5052
        %v5054 = vpop.f32.mrb[0].mxu0
        %5055 = vmatprep.mubr.f32.mxu0 0.0
        %5056 = vmatmul.mubr.f32.gmra.mrb[0].mxu0 %v4939
        %v5057 = vpop.f32.mrb[0].mxu0
        %v5058 = vadd.f32 0.0, %v5057
        %v5059 = vpop.f32.mrb[0].mxu0
        %5060 = vmatprep.mubr.f32.mxu0 0.0
        %5061 = vmatmul.mubr.f32.gmra.mrb[0].mxu0 %v4940
        %v5062 = vpop.f32.mrb[0].mxu0
        %v5063 = vadd.f32 0.0, %v5062
        %v5064 = vpop.f32.mrb[0].mxu0
        %5065 = vmatprep.mubr.f32.mxu0 0.0
        %5066 = vmatmul.mubr.f32.gmra.mrb[0].mxu0 %v4941
        %v5067 = vpop.f32.mrb[0].mxu0
        %v5068 = vadd.f32 0.0, %v5067
        %v5069 = vpop.f32.mrb[0].mxu0
        %5070 = vmatprep.mubr.f32.mxu0 0.0
        %5071 = vmatmul.mubr.f32.gmra.mrb[0].mxu0 %v4942
        %v5072 = vpop.f32.mrb[0].mxu0
        %v5073 = vadd.f32 0.0, %v5072
        %v5074 = vpop.f32.mrb[0].mxu0
        %5075 = vmatprep.mubr.f32.mxu0 0.0
        %5076 = vmatmul.mubr.f32.gmra.mrb[0].mxu0 %v4943
        %v5077 = vpop.f32.mrb[0].mxu0
        %v5078 = vadd.f32 0.0, %v5077
        %v5079 = vpop.f32.mrb[0].mxu0
        %5080 = vmatprep.mubr.f32.mxu0 0.0
        %5081 = vmatmul.mubr.f32.gmra.mrb[0].mxu0 %v4944
        %v5082 = vpop.f32.mrb[0].mxu0
        %v5083 = vadd.f32 0.0, %v5082
        %v5084 = vpop.f32.mrb[0].mxu0
        %5085 = vmatprep.mubr.f32.mxu0 0.0
        %5086 = vmatmul.mubr.f32.gmra.mrb[0].mxu0 %v4945
        %v5087 = vpop.f32.mrb[0].mxu0
        %v5088 = vadd.f32 0.0, %v5087
        %v5089 = vpop.f32.mrb[0].mxu0
        %5090 = vmatprep.mubr.f32.mxu0 0.0
        %5091 = vmatmul.mubr.f32.gmra.mrb[0].mxu0 %v4946
        %v5092 = vpop.f32.mrb[0].mxu0
        %v5093 = vadd.f32 0.0, %v5092
        %v5094 = vpop.f32.mrb[0].mxu0
        %5095 = vmatprep.mubr.f32.mxu0 0.0
        %5096 = vmatmul.mubr.f32.gmra.mrb[0].mxu0 %v4947
        %v5097 = vpop.f32.mrb[0].mxu0
        %v5098 = vadd.f32 0.0, %v5097
        %v5099 = vpop.f32.mrb[0].mxu0
        %5100 = vmatprep.mubr.f32.mxu0 0.0
        %5101 = vmatmul.mubr.f32.gmra.mrb[0].mxu0 %v4948
        %v5102 = vpop.f32.mrb[0].mxu0
        %v5103 = vadd.f32 0.0, %v5102
        %v5104 = vpop.f32.mrb[0].mxu0
        %5105 = vmatprep.mubr.f32.mxu0 0.0
        %5106 = vmatmul.mubr.f32.gmra.mrb[0].mxu0 %v4949
        %v5107 = vpop.f32.mrb[0].mxu0
        %v5108 = vadd.f32 0.0, %v5107
        %v5109 = vpop.f32.mrb[0].mxu0
        %5110 = vmatprep.mubr.f32.mxu0 0.0
        %5111 = vmatmul.mubr.f32.gmra.mrb[0].mxu0 %v4950
        %v5112 = vpop.f32.mrb[0].mxu0
        %v5113 = vadd.f32 0.0, %v5112
        %v5114 = vpop.f32.mrb[0].mxu0
        %5115 = vmatprep.mubr.f32.mxu0 0.0
        %5116 = vmatmul.mubr.f32.gmra.mrb[0].mxu0 %v4951
        %v5117 = vpop.f32.mrb[0].mxu0
        %v5118 = vadd.f32 0.0, %v5117
        %v5119 = vpop.f32.mrb[0].mxu0
        %5120 = vmatprep.mubr.f32.mxu0 0.0
        %5121 = vmatmul.mubr.f32.gmra.mrb[0].mxu0 %v4952
        %v5122 = vpop.f32.mrb[0].mxu0
        %v5123 = vadd.f32 0.0, %v5122
        %v5124 = vpop.f32.mrb[0].mxu0
        %5125 = vmatprep.mubr.f32.mxu0 0.0
        %5126 = vmatmul.mubr.f32.gmra.mrb[0].mxu0 %v4953
        %v5127 = vpop.f32.mrb[0].mxu0
        %v5128 = vadd.f32 0.0, %v5127
        %v5129 = vpop.f32.mrb[0].mxu0
        %5130 = vmatprep.mubr.f32.mxu0 0.0
        %5131 = vmatmul.mubr.f32.gmra.mrb[0].mxu0 %v4954
        %v5132 = vpop.f32.mrb[0].mxu0
        %v5133 = vadd.f32 0.0, %v5132
        %v5134 = vpop.f32.mrb[0].mxu0
        %5135 = vmatprep.mubr.f32.mxu0 0.0
        %5136 = vmatmul.mubr.f32.gmra.mrb[0].mxu0 %v4955
        %v5137 = vpop.f32.mrb[0].mxu0
        %v5138 = vadd.f32 0.0, %v5137
        %v5139 = vpop.f32.mrb[0].mxu0
        %5140 = vmatprep.mubr.f32.mxu0 0.0
        %5141 = vmatmul.mubr.f32.gmra.mrb[0].mxu0 %v4956
        %v5142 = vpop.f32.mrb[0].mxu0
        %v5143 = vadd.f32 0.0, %v5142
        %v5144 = vpop.f32.mrb[0].mxu0
        %5145 = vmatprep.mubr.f32.mxu0 0.0
        %5146 = vmatmul.mubr.f32.gmra.mrb[0].mxu0 %v4957
        %v5147 = vpop.f32.mrb[0].mxu0
        %v5148 = vadd.f32 0.0, %v5147
        %v5149 = vpop.f32.mrb[0].mxu0
        %5150 = vmatprep.mubr.f32.mxu0 0.0
        %5151 = vmatmul.mubr.f32.gmra.mrb[0].mxu0 %v4958
        %v5152 = vpop.f32.mrb[0].mxu0
        %v5153 = vadd.f32 0.0, %v5152
        %v5154 = vpop.f32.mrb[0].mxu0
        %5155 = vmatprep.mubr.f32.mxu0 0.0
        %5156 = vmatmul.mubr.f32.gmra.mrb[0].mxu0 %v4959
        %v5157 = vpop.f32.mrb[0].mxu0
        %v5158 = vadd.f32 0.0, %v5157
        %v5159 = vpop.f32.mrb[0].mxu0
        %5160 = vmatprep.mubr.f32.mxu0 0.0
        %5161 = vmatmul.mubr.f32.gmra.mrb[0].mxu0 %v4960
        %v5162 = vpop.f32.mrb[0].mxu0
        %v5163 = vadd.f32 0.0, %v5162
        %v5164 = vpop.f32.mrb[0].mxu0
        %5165 = vmatprep.mubr.f32.mxu0 0.0
        %5166 = vmatmul.mubr.f32.gmra.mrb[0].mxu0 %v4961
        %v5167 = vpop.f32.mrb[0].mxu0
        %v5168 = vadd.f32 0.0, %v5167
        %v5169 = vpop.f32.mrb[0].mxu0
        %5170 = vmatprep.mubr.f32.mxu0 0.0
        %5171 = vmatmul.mubr.f32.gmra.mrb[0].mxu0 %v4962
        %v5172 = vpop.f32.mrb[0].mxu0
        %v5173 = vadd.f32 0.0, %v5172
        %v5174 = vpop.f32.mrb[0].mxu0
        %5175 = vmatprep.mubr.f32.mxu0 0.0
        %5176 = vmatmul.mubr.f32.gmra.mrb[0].mxu0 %v4963
        %v5177 = vpop.f32.mrb[0].mxu0
        %v5178 = vadd.f32 0.0, %v5177
        %v5179 = vpop.f32.mrb[0].mxu0
        %5180 = vmatprep.mubr.f32.mxu0 0.0
        %5181 = vmatmul.mubr.f32.gmra.mrb[0].mxu0 %v4964
        %v5182 = vpop.f32.mrb[0].mxu0
        %v5183 = vadd.f32 0.0, %v5182
        %v5184 = vpop.f32.mrb[0].mxu0
        %5185 = vmatprep.mubr.f32.mxu0 0.0
        %5186 = vmatmul.mubr.f32.gmra.mrb[0].mxu0 %v4965
        %v5187 = vpop.f32.mrb[0].mxu0
        %v5188 = vadd.f32 0.0, %v5187
        %v5189 = vpop.f32.mrb[0].mxu0
        %5190 = vmatprep.mubr.f32.mxu0 0.0
        %5191 = vmatmul.mubr.f32.gmra.mrb[0].mxu0 %v4966
        %v5192 = vpop.f32.mrb[0].mxu0
        %v5193 = vadd.f32 0.0, %v5192
        %v5194 = vpop.f32.mrb[0].mxu0
        %5195 = vmatprep.mubr.f32.mxu0 0.0
        %5196 = vmatmul.mubr.f32.gmra.mrb[0].mxu0 %v4967
        %v5197 = vpop.f32.mrb[0].mxu0
        %v5198 = vadd.f32 0.0, %v5197
        %v5199 = vpop.f32.mrb[0].mxu0
        %5200 = vmatprep.mubr.f32.mxu0 0.0
        %5201 = vmatmul.mubr.f32.gmra.mrb[0].mxu0 %v4968
        %v5202 = vpop.f32.mrb[0].mxu0
        %v5203 = vadd.f32 0.0, %v5202
        %v5204 = vpop.f32.mrb[0].mxu0
        %5205 = vmatprep.mubr.f32.mxu0 0.0
        %5206 = vmatmul.mubr.f32.gmra.mrb[0].mxu0 %v4969
        %v5207 = vpop.f32.mrb[0].mxu0
        %v5208 = vadd.f32 0.0, %v5207
        %v5209 = vpop.f32.mrb[0].mxu0
        %5210 = vdwg.mxu0
        %v5211 = vadd.f32 %v4905, %v5053
        %v5212 = vadd.f32 %v4906, %v5058
        %v5213 = vadd.f32 %v4907, %v5063
        %v5214 = vadd.f32 %v4908, %v5068
        %v5215 = vadd.f32 %v4909, %v5073
        %v5216 = vadd.f32 %v4910, %v5078
        %v5217 = vadd.f32 %v4911, %v5083
        %v5218 = vadd.f32 %v4912, %v5088
        %v5219 = vadd.f32 %v4913, %v5093
        %v5220 = vadd.f32 %v4914, %v5098
        %v5221 = vadd.f32 %v4915, %v5103
        %v5222 = vadd.f32 %v4916, %v5108
        %v5223 = vadd.f32 %v4917, %v5113
        %v5224 = vadd.f32 %v4918, %v5118
        %v5225 = vadd.f32 %v4919, %v5123
        %v5226 = vadd.f32 %v4920, %v5128
        %v5227 = vadd.f32 %v4921, %v5133
        %v5228 = vadd.f32 %v4922, %v5138
        %v5229 = vadd.f32 %v4923, %v5143
        %v5230 = vadd.f32 %v4924, %v5148
        %v5231 = vadd.f32 %v4925, %v5153
        %v5232 = vadd.f32 %v4926, %v5158
        %v5233 = vadd.f32 %v4927, %v5163
        %v5234 = vadd.f32 %v4928, %v5168
        %v5235 = vadd.f32 %v4929, %v5173
        %v5236 = vadd.f32 %v4930, %v5178
        %v5237 = vadd.f32 %v4931, %v5183
        %v5238 = vadd.f32 %v4932, %v5188
        %v5239 = vadd.f32 %v4933, %v5193
        %v5240 = vadd.f32 %v4934, %v5198
        %v5241 = vadd.f32 %v4935, %v5203
        %v5242 = vadd.f32 %v4936, %v5208
        %v5243 = vld [vmem:[%s4937 + $0x1] sm:$0xff]
        %v5244 = vld [vmem:[%s4937 + $0x9] sm:$0xff]
        %v5245 = vld [vmem:[%s4937 + $0x19] sm:$0xff]
        %v5246 = vld [vmem:[%s4937 + $0x21] sm:$0xff]
        %v5247 = vld [vmem:[%s4937 + $0x31] sm:$0xff]
        %v5248 = vld [vmem:[%s4937 + $0x39] sm:$0xff]
        %v5249 = vld [vmem:[%s4937 + $0x49] sm:$0xff]
        %v5250 = vld [vmem:[%s4937 + $0x51] sm:$0xff]
        %v5251 = vld [vmem:[%s4937 + $0x61] sm:$0xff]
        %v5252 = vld [vmem:[%s4937 + $0x69] sm:$0xff]
        %v5253 = vld [vmem:[%s4937 + $0x79] sm:$0xff]
        %v5254 = vld [vmem:[%s4937 + $0x81] sm:$0xff]
        %v5255 = vld [vmem:[%s4937 + $0x91] sm:$0xff]
        %v5256 = vld [vmem:[%s4937 + $0x99] sm:$0xff]
        %v5257 = vld [vmem:[%s4937 + $0xa9] sm:$0xff]
        %v5258 = vld [vmem:[%s4937 + $0xb1] sm:$0xff]
        %v5259 = vld [vmem:[%s4937 + $0xc1] sm:$0xff]
        %v5260 = vld [vmem:[%s4937 + $0xc9] sm:$0xff]
        %v5261 = vld [vmem:[%s4937 + $0xd9] sm:$0xff]
        %v5262 = vld [vmem:[%s4937 + $0xe1] sm:$0xff]
        %v5263 = vld [vmem:[%s4937 + $0xf1] sm:$0xff]
        %v5264 = vld [vmem:[%s4937 + $0xf9] sm:$0xff]
        %v5265 = vld [vmem:[%s4937 + $0x109] sm:$0xff]
        %v5266 = vld [vmem:[%s4937 + $0x111] sm:$0xff]
        %v5267 = vld [vmem:[%s4937 + $0x121] sm:$0xff]
        %v5268 = vld [vmem:[%s4937 + $0x129] sm:$0xff]
        %v5269 = vld [vmem:[%s4937 + $0x139] sm:$0xff]
        %v5270 = vld [vmem:[%s4937 + $0x141] sm:$0xff]
        %v5271 = vld [vmem:[%s4937 + $0x151] sm:$0xff]
        %v5272 = vld [vmem:[%s4937 + $0x159] sm:$0xff]
        %v5273 = vld [vmem:[%s4937 + $0x169] sm:$0xff]
        %v5274 = vld [vmem:[%s4937 + $0x171] sm:$0xff]
        %v5275 = vld [vmem:[#allocation3 + $0x380] sm:$0xff]
        %v5276 = vld [vmem:[#allocation3 + $0x388] sm:$0xff]
        %v5277 = vld [vmem:[#allocation3 + $0x390] sm:$0xff]
        %v5278 = vld [vmem:[#allocation3 + $0x398] sm:$0xff]
        %v5279 = vld [vmem:[#allocation3 + $0x3a0] sm:$0xff]
        %v5280 = vld [vmem:[#allocation3 + $0x3a8] sm:$0xff]
        %v5281 = vld [vmem:[#allocation3 + $0x3b0] sm:$0xff]
        %v5282 = vld [vmem:[#allocation3 + $0x3b8] sm:$0xff]
        %v5283 = vld [vmem:[#allocation3 + $0x3c0] sm:$0xff]
        %v5284 = vld [vmem:[#allocation3 + $0x3c8] sm:$0xff]
        %v5285 = vld [vmem:[#allocation3 + $0x3d0] sm:$0xff]
        %v5286 = vld [vmem:[#allocation3 + $0x3d8] sm:$0xff]
        %v5287 = vld [vmem:[#allocation3 + $0x3e0] sm:$0xff]
        %v5288 = vld [vmem:[#allocation3 + $0x3e8] sm:$0xff]
        %v5289 = vld [vmem:[#allocation3 + $0x3f0] sm:$0xff]
        %v5290 = vld [vmem:[#allocation3 + $0x3f8] sm:$0xff]
        %5291 = vmatprep.subr.mxu0 0.0
        %5292 = vmatpush1.msra.mxu0 %v5275
        %5293 = vmatprep.subr.mxu0 0.0
        %5294 = vmatpush1.msra.mxu0 %v5276
        %5295 = vmatprep.subr.mxu0 0.0
        %5296 = vmatpush1.msra.mxu0 %v5277
        %5297 = vmatprep.subr.mxu0 0.0
        %5298 = vmatpush1.msra.mxu0 %v5278
        %5299 = vmatprep.subr.mxu0 0.0
        %5300 = vmatpush1.msra.mxu0 %v5279
        %5301 = vmatprep.subr.mxu0 0.0
        %5302 = vmatpush1.msra.mxu0 %v5280
        %5303 = vmatprep.subr.mxu0 0.0
        %5304 = vmatpush1.msra.mxu0 %v5281
        %5305 = vmatprep.subr.mxu0 0.0
        %5306 = vmatpush1.msra.mxu0 %v5282
        %5307 = vmatprep.subr.mxu0 0.0
        %5308 = vmatpush1.msra.mxu0 %v5283
        %5309 = vmatprep.subr.mxu0 0.0
        %5310 = vmatpush1.msra.mxu0 %v5284
        %5311 = vmatprep.subr.mxu0 0.0
        %5312 = vmatpush1.msra.mxu0 %v5285
        %5313 = vmatprep.subr.mxu0 0.0
        %5314 = vmatpush1.msra.mxu0 %v5286
        %5315 = vmatprep.subr.mxu0 0.0
        %5316 = vmatpush1.msra.mxu0 %v5287
        %5317 = vmatprep.subr.mxu0 0.0
        %5318 = vmatpush1.msra.mxu0 %v5288
        %5319 = vmatprep.subr.mxu0 0.0
        %5320 = vmatpush1.msra.mxu0 %v5289
        %5321 = vmatprep.subr.mxu0 0.0
        %5322 = vmatpush1.msra.mxu0 %v5290
        %5323 = vmatprep.subr.mxu0 0.0
        %5324 = vmatpush1.msra.mxu0 0.0
        %5325 = vmatprep.subr.mxu0 0.0
        %5326 = vmatpush1.msra.mxu0 0.0
        %5327 = vmatprep.subr.mxu0 0.0
        %5328 = vmatpush1.msra.mxu0 0.0
        %5329 = vmatprep.subr.mxu0 0.0
        %5330 = vmatpush1.msra.mxu0 0.0
        %5331 = vmatprep.subr.mxu0 0.0
        %5332 = vmatpush1.msra.mxu0 0.0
        %5333 = vmatprep.subr.mxu0 0.0
        %5334 = vmatpush1.msra.mxu0 0.0
        %5335 = vmatprep.subr.mxu0 0.0
        %5336 = vmatpush1.msra.mxu0 0.0
        %5337 = vmatprep.subr.mxu0 0.0
        %5338 = vmatpush1.msra.mxu0 0.0
        %5339 = vmatprep.subr.mxu0 0.0
        %5340 = vmatpush1.msra.mxu0 0.0
        %5341 = vmatprep.subr.mxu0 0.0
        %5342 = vmatpush1.msra.mxu0 0.0
        %5343 = vmatprep.subr.mxu0 0.0
        %5344 = vmatpush1.msra.mxu0 0.0
        %5345 = vmatprep.subr.mxu0 0.0
        %5346 = vmatpush1.msra.mxu0 0.0
        %5347 = vmatprep.subr.mxu0 0.0
        %5348 = vmatpush1.msra.mxu0 0.0
        %5349 = vmatprep.subr.mxu0 0.0
        %5350 = vmatpush1.msra.mxu0 0.0
        %5351 = vmatprep.subr.mxu0 0.0
        %5352 = vmatpush1.msra.mxu0 0.0
        %5353 = vmatprep.subr.mxu0 0.0
        %5354 = vmatpush1.msra.mxu0 0.0
        %5355 = vmatprep.mubr.f32.mxu0 0.0
        %5356 = vmatmul.mubr.f32.gmra.mrb[0].mxu0 %v5243
        %v5357 = vpop.f32.mrb[0].mxu0
        %v5358 = vadd.f32 0.0, %v5357
        %v5359 = vpop.f32.mrb[0].mxu0
        %5360 = vmatprep.mubr.f32.mxu0 0.0
        %5361 = vmatmul.mubr.f32.gmra.mrb[0].mxu0 %v5244
        %v5362 = vpop.f32.mrb[0].mxu0
        %v5363 = vadd.f32 0.0, %v5362
        %v5364 = vpop.f32.mrb[0].mxu0
        %5365 = vmatprep.mubr.f32.mxu0 0.0
        %5366 = vmatmul.mubr.f32.gmra.mrb[0].mxu0 %v5245
        %v5367 = vpop.f32.mrb[0].mxu0
        %v5368 = vadd.f32 0.0, %v5367
        %v5369 = vpop.f32.mrb[0].mxu0
        %5370 = vmatprep.mubr.f32.mxu0 0.0
        %5371 = vmatmul.mubr.f32.gmra.mrb[0].mxu0 %v5246
        %v5372 = vpop.f32.mrb[0].mxu0
        %v5373 = vadd.f32 0.0, %v5372
        %v5374 = vpop.f32.mrb[0].mxu0
        %5375 = vmatprep.mubr.f32.mxu0 0.0
        %5376 = vmatmul.mubr.f32.gmra.mrb[0].mxu0 %v5247
        %v5377 = vpop.f32.mrb[0].mxu0
        %v5378 = vadd.f32 0.0, %v5377
        %v5379 = vpop.f32.mrb[0].mxu0
        %5380 = vmatprep.mubr.f32.mxu0 0.0
        %5381 = vmatmul.mubr.f32.gmra.mrb[0].mxu0 %v5248
        %v5382 = vpop.f32.mrb[0].mxu0
        %v5383 = vadd.f32 0.0, %v5382
        %v5384 = vpop.f32.mrb[0].mxu0
        %5385 = vmatprep.mubr.f32.mxu0 0.0
        %5386 = vmatmul.mubr.f32.gmra.mrb[0].mxu0 %v5249
        %v5387 = vpop.f32.mrb[0].mxu0
        %v5388 = vadd.f32 0.0, %v5387
        %v5389 = vpop.f32.mrb[0].mxu0
        %5390 = vmatprep.mubr.f32.mxu0 0.0
        %5391 = vmatmul.mubr.f32.gmra.mrb[0].mxu0 %v5250
        %v5392 = vpop.f32.mrb[0].mxu0
        %v5393 = vadd.f32 0.0, %v5392
        %v5394 = vpop.f32.mrb[0].mxu0
        %5395 = vmatprep.mubr.f32.mxu0 0.0
        %5396 = vmatmul.mubr.f32.gmra.mrb[0].mxu0 %v5251
        %v5397 = vpop.f32.mrb[0].mxu0
        %v5398 = vadd.f32 0.0, %v5397
        %v5399 = vpop.f32.mrb[0].mxu0
        %5400 = vmatprep.mubr.f32.mxu0 0.0
        %5401 = vmatmul.mubr.f32.gmra.mrb[0].mxu0 %v5252
        %v5402 = vpop.f32.mrb[0].mxu0
        %v5403 = vadd.f32 0.0, %v5402
        %v5404 = vpop.f32.mrb[0].mxu0
        %5405 = vmatprep.mubr.f32.mxu0 0.0
        %5406 = vmatmul.mubr.f32.gmra.mrb[0].mxu0 %v5253
        %v5407 = vpop.f32.mrb[0].mxu0
        %v5408 = vadd.f32 0.0, %v5407
        %v5409 = vpop.f32.mrb[0].mxu0
        %5410 = vmatprep.mubr.f32.mxu0 0.0
        %5411 = vmatmul.mubr.f32.gmra.mrb[0].mxu0 %v5254
        %v5412 = vpop.f32.mrb[0].mxu0
        %v5413 = vadd.f32 0.0, %v5412
        %v5414 = vpop.f32.mrb[0].mxu0
        %5415 = vmatprep.mubr.f32.mxu0 0.0
        %5416 = vmatmul.mubr.f32.gmra.mrb[0].mxu0 %v5255
        %v5417 = vpop.f32.mrb[0].mxu0
        %v5418 = vadd.f32 0.0, %v5417
        %v5419 = vpop.f32.mrb[0].mxu0
        %5420 = vmatprep.mubr.f32.mxu0 0.0
        %5421 = vmatmul.mubr.f32.gmra.mrb[0].mxu0 %v5256
        %v5422 = vpop.f32.mrb[0].mxu0
        %v5423 = vadd.f32 0.0, %v5422
        %v5424 = vpop.f32.mrb[0].mxu0
        %5425 = vmatprep.mubr.f32.mxu0 0.0
        %5426 = vmatmul.mubr.f32.gmra.mrb[0].mxu0 %v5257
        %v5427 = vpop.f32.mrb[0].mxu0
        %v5428 = vadd.f32 0.0, %v5427
        %v5429 = vpop.f32.mrb[0].mxu0
        %5430 = vmatprep.mubr.f32.mxu0 0.0
        %5431 = vmatmul.mubr.f32.gmra.mrb[0].mxu0 %v5258
        %v5432 = vpop.f32.mrb[0].mxu0
        %v5433 = vadd.f32 0.0, %v5432
        %v5434 = vpop.f32.mrb[0].mxu0
        %5435 = vmatprep.mubr.f32.mxu0 0.0
        %5436 = vmatmul.mubr.f32.gmra.mrb[0].mxu0 %v5259
        %v5437 = vpop.f32.mrb[0].mxu0
        %v5438 = vadd.f32 0.0, %v5437
        %v5439 = vpop.f32.mrb[0].mxu0
        %5440 = vmatprep.mubr.f32.mxu0 0.0
        %5441 = vmatmul.mubr.f32.gmra.mrb[0].mxu0 %v5260
        %v5442 = vpop.f32.mrb[0].mxu0
        %v5443 = vadd.f32 0.0, %v5442
        %v5444 = vpop.f32.mrb[0].mxu0
        %5445 = vmatprep.mubr.f32.mxu0 0.0
        %5446 = vmatmul.mubr.f32.gmra.mrb[0].mxu0 %v5261
        %v5447 = vpop.f32.mrb[0].mxu0
        %v5448 = vadd.f32 0.0, %v5447
        %v5449 = vpop.f32.mrb[0].mxu0
        %5450 = vmatprep.mubr.f32.mxu0 0.0
        %5451 = vmatmul.mubr.f32.gmra.mrb[0].mxu0 %v5262
        %v5452 = vpop.f32.mrb[0].mxu0
        %v5453 = vadd.f32 0.0, %v5452
        %v5454 = vpop.f32.mrb[0].mxu0
        %5455 = vmatprep.mubr.f32.mxu0 0.0
        %5456 = vmatmul.mubr.f32.gmra.mrb[0].mxu0 %v5263
        %v5457 = vpop.f32.mrb[0].mxu0
        %v5458 = vadd.f32 0.0, %v5457
        %v5459 = vpop.f32.mrb[0].mxu0
        %5460 = vmatprep.mubr.f32.mxu0 0.0
        %5461 = vmatmul.mubr.f32.gmra.mrb[0].mxu0 %v5264
        %v5462 = vpop.f32.mrb[0].mxu0
        %v5463 = vadd.f32 0.0, %v5462
        %v5464 = vpop.f32.mrb[0].mxu0
        %5465 = vmatprep.mubr.f32.mxu0 0.0
        %5466 = vmatmul.mubr.f32.gmra.mrb[0].mxu0 %v5265
        %v5467 = vpop.f32.mrb[0].mxu0
        %v5468 = vadd.f32 0.0, %v5467
        %v5469 = vpop.f32.mrb[0].mxu0
        %5470 = vmatprep.mubr.f32.mxu0 0.0
        %5471 = vmatmul.mubr.f32.gmra.mrb[0].mxu0 %v5266
        %v5472 = vpop.f32.mrb[0].mxu0
        %v5473 = vadd.f32 0.0, %v5472
        %v5474 = vpop.f32.mrb[0].mxu0
        %5475 = vmatprep.mubr.f32.mxu0 0.0
        %5476 = vmatmul.mubr.f32.gmra.mrb[0].mxu0 %v5267
        %v5477 = vpop.f32.mrb[0].mxu0
        %v5478 = vadd.f32 0.0, %v5477
        %v5479 = vpop.f32.mrb[0].mxu0
        %5480 = vmatprep.mubr.f32.mxu0 0.0
        %5481 = vmatmul.mubr.f32.gmra.mrb[0].mxu0 %v5268
        %v5482 = vpop.f32.mrb[0].mxu0
        %v5483 = vadd.f32 0.0, %v5482
        %v5484 = vpop.f32.mrb[0].mxu0
        %5485 = vmatprep.mubr.f32.mxu0 0.0
        %5486 = vmatmul.mubr.f32.gmra.mrb[0].mxu0 %v5269
        %v5487 = vpop.f32.mrb[0].mxu0
        %v5488 = vadd.f32 0.0, %v5487
        %v5489 = vpop.f32.mrb[0].mxu0
        %5490 = vmatprep.mubr.f32.mxu0 0.0
        %5491 = vmatmul.mubr.f32.gmra.mrb[0].mxu0 %v5270
        %v5492 = vpop.f32.mrb[0].mxu0
        %v5493 = vadd.f32 0.0, %v5492
        %v5494 = vpop.f32.mrb[0].mxu0
        %5495 = vmatprep.mubr.f32.mxu0 0.0
        %5496 = vmatmul.mubr.f32.gmra.mrb[0].mxu0 %v5271
        %v5497 = vpop.f32.mrb[0].mxu0
        %v5498 = vadd.f32 0.0, %v5497
        %v5499 = vpop.f32.mrb[0].mxu0
        %5500 = vmatprep.mubr.f32.mxu0 0.0
        %5501 = vmatmul.mubr.f32.gmra.mrb[0].mxu0 %v5272
        %v5502 = vpop.f32.mrb[0].mxu0
        %v5503 = vadd.f32 0.0, %v5502
        %v5504 = vpop.f32.mrb[0].mxu0
        %5505 = vmatprep.mubr.f32.mxu0 0.0
        %5506 = vmatmul.mubr.f32.gmra.mrb[0].mxu0 %v5273
        %v5507 = vpop.f32.mrb[0].mxu0
        %v5508 = vadd.f32 0.0, %v5507
        %v5509 = vpop.f32.mrb[0].mxu0
        %5510 = vmatprep.mubr.f32.mxu0 0.0
        %5511 = vmatmul.mubr.f32.gmra.mrb[0].mxu0 %v5274
        %v5512 = vpop.f32.mrb[0].mxu0
        %v5513 = vadd.f32 0.0, %v5512
        %v5514 = vpop.f32.mrb[0].mxu0
        %5515 = vdwg.mxu0
        %v5516 = vadd.f32 %v5211, %v5358
        %v5517 = vadd.f32 %v5212, %v5363
        %v5518 = vadd.f32 %v5213, %v5368
        %v5519 = vadd.f32 %v5214, %v5373
        %v5520 = vadd.f32 %v5215, %v5378
        %v5521 = vadd.f32 %v5216, %v5383
        %v5522 = vadd.f32 %v5217, %v5388
        %v5523 = vadd.f32 %v5218, %v5393
        %v5524 = vadd.f32 %v5219, %v5398
        %v5525 = vadd.f32 %v5220, %v5403
        %v5526 = vadd.f32 %v5221, %v5408
        %v5527 = vadd.f32 %v5222, %v5413
        %v5528 = vadd.f32 %v5223, %v5418
        %v5529 = vadd.f32 %v5224, %v5423
        %v5530 = vadd.f32 %v5225, %v5428
        %v5531 = vadd.f32 %v5226, %v5433
        %v5532 = vadd.f32 %v5227, %v5438
        %v5533 = vadd.f32 %v5228, %v5443
        %v5534 = vadd.f32 %v5229, %v5448
        %v5535 = vadd.f32 %v5230, %v5453
        %v5536 = vadd.f32 %v5231, %v5458
        %v5537 = vadd.f32 %v5232, %v5463
        %v5538 = vadd.f32 %v5233, %v5468
        %v5539 = vadd.f32 %v5234, %v5473
        %v5540 = vadd.f32 %v5235, %v5478
        %v5541 = vadd.f32 %v5236, %v5483
        %v5542 = vadd.f32 %v5237, %v5488
        %v5543 = vadd.f32 %v5238, %v5493
        %v5544 = vadd.f32 %v5239, %v5498
        %v5545 = vadd.f32 %v5240, %v5503
        %v5546 = vadd.f32 %v5241, %v5508
        %v5547 = vadd.f32 %v5242, %v5513
        %v5548 = vld [vmem:[%s4937 + $0x2] sm:$0xff]
        %v5549 = vld [vmem:[%s4937 + $0xa] sm:$0xff]
        %v5550 = vld [vmem:[%s4937 + $0x1a] sm:$0xff]
        %v5551 = vld [vmem:[%s4937 + $0x22] sm:$0xff]
        %v5552 = vld [vmem:[%s4937 + $0x32] sm:$0xff]
        %v5553 = vld [vmem:[%s4937 + $0x3a] sm:$0xff]
        %v5554 = vld [vmem:[%s4937 + $0x4a] sm:$0xff]
        %v5555 = vld [vmem:[%s4937 + $0x52] sm:$0xff]
        %v5556 = vld [vmem:[%s4937 + $0x62] sm:$0xff]
        %v5557 = vld [vmem:[%s4937 + $0x6a] sm:$0xff]
        %v5558 = vld [vmem:[%s4937 + $0x7a] sm:$0xff]
        %v5559 = vld [vmem:[%s4937 + $0x82] sm:$0xff]
        %v5560 = vld [vmem:[%s4937 + $0x92] sm:$0xff]
        %v5561 = vld [vmem:[%s4937 + $0x9a] sm:$0xff]
        %v5562 = vld [vmem:[%s4937 + $0xaa] sm:$0xff]
        %v5563 = vld [vmem:[%s4937 + $0xb2] sm:$0xff]
        %v5564 = vld [vmem:[%s4937 + $0xc2] sm:$0xff]
        %v5565 = vld [vmem:[%s4937 + $0xca] sm:$0xff]
        %v5566 = vld [vmem:[%s4937 + $0xda] sm:$0xff]
        %v5567 = vld [vmem:[%s4937 + $0xe2] sm:$0xff]
        %v5568 = vld [vmem:[%s4937 + $0xf2] sm:$0xff]
        %v5569 = vld [vmem:[%s4937 + $0xfa] sm:$0xff]
        %v5570 = vld [vmem:[%s4937 + $0x10a] sm:$0xff]
        %v5571 = vld [vmem:[%s4937 + $0x112] sm:$0xff]
        %v5572 = vld [vmem:[%s4937 + $0x122] sm:$0xff]
        %v5573 = vld [vmem:[%s4937 + $0x12a] sm:$0xff]
        %v5574 = vld [vmem:[%s4937 + $0x13a] sm:$0xff]
        %v5575 = vld [vmem:[%s4937 + $0x142] sm:$0xff]
        %v5576 = vld [vmem:[%s4937 + $0x152] sm:$0xff]
        %v5577 = vld [vmem:[%s4937 + $0x15a] sm:$0xff]
        %v5578 = vld [vmem:[%s4937 + $0x16a] sm:$0xff]
        %v5579 = vld [vmem:[%s4937 + $0x172] sm:$0xff]
        %v5580 = vld [vmem:[#allocation3 + $0x400] sm:$0xff]
        %v5581 = vld [vmem:[#allocation3 + $0x408] sm:$0xff]
        %v5582 = vld [vmem:[#allocation3 + $0x410] sm:$0xff]
        %v5583 = vld [vmem:[#allocation3 + $0x418] sm:$0xff]
        %v5584 = vld [vmem:[#allocation3 + $0x420] sm:$0xff]
        %v5585 = vld [vmem:[#allocation3 + $0x428] sm:$0xff]
        %v5586 = vld [vmem:[#allocation3 + $0x430] sm:$0xff]
        %v5587 = vld [vmem:[#allocation3 + $0x438] sm:$0xff]
        %v5588 = vld [vmem:[#allocation3 + $0x440] sm:$0xff]
        %v5589 = vld [vmem:[#allocation3 + $0x448] sm:$0xff]
        %v5590 = vld [vmem:[#allocation3 + $0x450] sm:$0xff]
        %v5591 = vld [vmem:[#allocation3 + $0x458] sm:$0xff]
        %v5592 = vld [vmem:[#allocation3 + $0x460] sm:$0xff]
        %v5593 = vld [vmem:[#allocation3 + $0x468] sm:$0xff]
        %v5594 = vld [vmem:[#allocation3 + $0x470] sm:$0xff]
        %v5595 = vld [vmem:[#allocation3 + $0x478] sm:$0xff]
        %5596 = vmatprep.subr.mxu0 0.0
        %5597 = vmatpush1.msra.mxu0 %v5580
        %5598 = vmatprep.subr.mxu0 0.0
        %5599 = vmatpush1.msra.mxu0 %v5581
        %5600 = vmatprep.subr.mxu0 0.0
        %5601 = vmatpush1.msra.mxu0 %v5582
        %5602 = vmatprep.subr.mxu0 0.0
        %5603 = vmatpush1.msra.mxu0 %v5583
        %5604 = vmatprep.subr.mxu0 0.0
        %5605 = vmatpush1.msra.mxu0 %v5584
        %5606 = vmatprep.subr.mxu0 0.0
        %5607 = vmatpush1.msra.mxu0 %v5585
        %5608 = vmatprep.subr.mxu0 0.0
        %5609 = vmatpush1.msra.mxu0 %v5586
        %5610 = vmatprep.subr.mxu0 0.0
        %5611 = vmatpush1.msra.mxu0 %v5587
        %5612 = vmatprep.subr.mxu0 0.0
        %5613 = vmatpush1.msra.mxu0 %v5588
        %5614 = vmatprep.subr.mxu0 0.0
        %5615 = vmatpush1.msra.mxu0 %v5589
        %5616 = vmatprep.subr.mxu0 0.0
        %5617 = vmatpush1.msra.mxu0 %v5590
        %5618 = vmatprep.subr.mxu0 0.0
        %5619 = vmatpush1.msra.mxu0 %v5591
        %5620 = vmatprep.subr.mxu0 0.0
        %5621 = vmatpush1.msra.mxu0 %v5592
        %5622 = vmatprep.subr.mxu0 0.0
        %5623 = vmatpush1.msra.mxu0 %v5593
        %5624 = vmatprep.subr.mxu0 0.0
        %5625 = vmatpush1.msra.mxu0 %v5594
        %5626 = vmatprep.subr.mxu0 0.0
        %5627 = vmatpush1.msra.mxu0 %v5595
        %5628 = vmatprep.subr.mxu0 0.0
        %5629 = vmatpush1.msra.mxu0 0.0
        %5630 = vmatprep.subr.mxu0 0.0
        %5631 = vmatpush1.msra.mxu0 0.0
        %5632 = vmatprep.subr.mxu0 0.0
        %5633 = vmatpush1.msra.mxu0 0.0
        %5634 = vmatprep.subr.mxu0 0.0
        %5635 = vmatpush1.msra.mxu0 0.0
        %5636 = vmatprep.subr.mxu0 0.0
        %5637 = vmatpush1.msra.mxu0 0.0
        %5638 = vmatprep.subr.mxu0 0.0
        %5639 = vmatpush1.msra.mxu0 0.0
        %5640 = vmatprep.subr.mxu0 0.0
        %5641 = vmatpush1.msra.mxu0 0.0
        %5642 = vmatprep.subr.mxu0 0.0
        %5643 = vmatpush1.msra.mxu0 0.0
        %5644 = vmatprep.subr.mxu0 0.0
        %5645 = vmatpush1.msra.mxu0 0.0
        %5646 = vmatprep.subr.mxu0 0.0
        %5647 = vmatpush1.msra.mxu0 0.0
        %5648 = vmatprep.subr.mxu0 0.0
        %5649 = vmatpush1.msra.mxu0 0.0
        %5650 = vmatprep.subr.mxu0 0.0
        %5651 = vmatpush1.msra.mxu0 0.0
        %5652 = vmatprep.subr.mxu0 0.0
        %5653 = vmatpush1.msra.mxu0 0.0
        %5654 = vmatprep.subr.mxu0 0.0
        %5655 = vmatpush1.msra.mxu0 0.0
        %5656 = vmatprep.subr.mxu0 0.0
        %5657 = vmatpush1.msra.mxu0 0.0
        %5658 = vmatprep.subr.mxu0 0.0
        %5659 = vmatpush1.msra.mxu0 0.0
        %5660 = vmatprep.mubr.f32.mxu0 0.0
        %5661 = vmatmul.mubr.f32.gmra.mrb[0].mxu0 %v5548
        %v5662 = vpop.f32.mrb[0].mxu0
        %v5663 = vadd.f32 0.0, %v5662
        %v5664 = vpop.f32.mrb[0].mxu0
        %5665 = vmatprep.mubr.f32.mxu0 0.0
        %5666 = vmatmul.mubr.f32.gmra.mrb[0].mxu0 %v5549
        %v5667 = vpop.f32.mrb[0].mxu0
        %v5668 = vadd.f32 0.0, %v5667
        %v5669 = vpop.f32.mrb[0].mxu0
        %5670 = vmatprep.mubr.f32.mxu0 0.0
        %5671 = vmatmul.mubr.f32.gmra.mrb[0].mxu0 %v5550
        %v5672 = vpop.f32.mrb[0].mxu0
        %v5673 = vadd.f32 0.0, %v5672
        %v5674 = vpop.f32.mrb[0].mxu0
        %5675 = vmatprep.mubr.f32.mxu0 0.0
        %5676 = vmatmul.mubr.f32.gmra.mrb[0].mxu0 %v5551
        %v5677 = vpop.f32.mrb[0].mxu0
        %v5678 = vadd.f32 0.0, %v5677
        %v5679 = vpop.f32.mrb[0].mxu0
        %5680 = vmatprep.mubr.f32.mxu0 0.0
        %5681 = vmatmul.mubr.f32.gmra.mrb[0].mxu0 %v5552
        %v5682 = vpop.f32.mrb[0].mxu0
        %v5683 = vadd.f32 0.0, %v5682
        %v5684 = vpop.f32.mrb[0].mxu0
        %5685 = vmatprep.mubr.f32.mxu0 0.0
        %5686 = vmatmul.mubr.f32.gmra.mrb[0].mxu0 %v5553
        %v5687 = vpop.f32.mrb[0].mxu0
        %v5688 = vadd.f32 0.0, %v5687
        %v5689 = vpop.f32.mrb[0].mxu0
        %5690 = vmatprep.mubr.f32.mxu0 0.0
        %5691 = vmatmul.mubr.f32.gmra.mrb[0].mxu0 %v5554
        %v5692 = vpop.f32.mrb[0].mxu0
        %v5693 = vadd.f32 0.0, %v5692
        %v5694 = vpop.f32.mrb[0].mxu0
        %5695 = vmatprep.mubr.f32.mxu0 0.0
        %5696 = vmatmul.mubr.f32.gmra.mrb[0].mxu0 %v5555
        %v5697 = vpop.f32.mrb[0].mxu0
        %v5698 = vadd.f32 0.0, %v5697
        %v5699 = vpop.f32.mrb[0].mxu0
        %5700 = vmatprep.mubr.f32.mxu0 0.0
        %5701 = vmatmul.mubr.f32.gmra.mrb[0].mxu0 %v5556
        %v5702 = vpop.f32.mrb[0].mxu0
        %v5703 = vadd.f32 0.0, %v5702
        %v5704 = vpop.f32.mrb[0].mxu0
        %5705 = vmatprep.mubr.f32.mxu0 0.0
        %5706 = vmatmul.mubr.f32.gmra.mrb[0].mxu0 %v5557
        %v5707 = vpop.f32.mrb[0].mxu0
        %v5708 = vadd.f32 0.0, %v5707
        %v5709 = vpop.f32.mrb[0].mxu0
        %5710 = vmatprep.mubr.f32.mxu0 0.0
        %5711 = vmatmul.mubr.f32.gmra.mrb[0].mxu0 %v5558
        %v5712 = vpop.f32.mrb[0].mxu0
        %v5713 = vadd.f32 0.0, %v5712
        %v5714 = vpop.f32.mrb[0].mxu0
        %5715 = vmatprep.mubr.f32.mxu0 0.0
        %5716 = vmatmul.mubr.f32.gmra.mrb[0].mxu0 %v5559
        %v5717 = vpop.f32.mrb[0].mxu0
        %v5718 = vadd.f32 0.0, %v5717
        %v5719 = vpop.f32.mrb[0].mxu0
        %5720 = vmatprep.mubr.f32.mxu0 0.0
        %5721 = vmatmul.mubr.f32.gmra.mrb[0].mxu0 %v5560
        %v5722 = vpop.f32.mrb[0].mxu0
        %v5723 = vadd.f32 0.0, %v5722
        %v5724 = vpop.f32.mrb[0].mxu0
        %5725 = vmatprep.mubr.f32.mxu0 0.0
        %5726 = vmatmul.mubr.f32.gmra.mrb[0].mxu0 %v5561
        %v5727 = vpop.f32.mrb[0].mxu0
        %v5728 = vadd.f32 0.0, %v5727
        %v5729 = vpop.f32.mrb[0].mxu0
        %5730 = vmatprep.mubr.f32.mxu0 0.0
        %5731 = vmatmul.mubr.f32.gmra.mrb[0].mxu0 %v5562
        %v5732 = vpop.f32.mrb[0].mxu0
        %v5733 = vadd.f32 0.0, %v5732
        %v5734 = vpop.f32.mrb[0].mxu0
        %5735 = vmatprep.mubr.f32.mxu0 0.0
        %5736 = vmatmul.mubr.f32.gmra.mrb[0].mxu0 %v5563
        %v5737 = vpop.f32.mrb[0].mxu0
        %v5738 = vadd.f32 0.0, %v5737
        %v5739 = vpop.f32.mrb[0].mxu0
        %5740 = vmatprep.mubr.f32.mxu0 0.0
        %5741 = vmatmul.mubr.f32.gmra.mrb[0].mxu0 %v5564
        %v5742 = vpop.f32.mrb[0].mxu0
        %v5743 = vadd.f32 0.0, %v5742
        %v5744 = vpop.f32.mrb[0].mxu0
        %5745 = vmatprep.mubr.f32.mxu0 0.0
        %5746 = vmatmul.mubr.f32.gmra.mrb[0].mxu0 %v5565
        %v5747 = vpop.f32.mrb[0].mxu0
        %v5748 = vadd.f32 0.0, %v5747
        %v5749 = vpop.f32.mrb[0].mxu0
        %5750 = vmatprep.mubr.f32.mxu0 0.0
        %5751 = vmatmul.mubr.f32.gmra.mrb[0].mxu0 %v5566
        %v5752 = vpop.f32.mrb[0].mxu0
        %v5753 = vadd.f32 0.0, %v5752
        %v5754 = vpop.f32.mrb[0].mxu0
        %5755 = vmatprep.mubr.f32.mxu0 0.0
        %5756 = vmatmul.mubr.f32.gmra.mrb[0].mxu0 %v5567
        %v5757 = vpop.f32.mrb[0].mxu0
        %v5758 = vadd.f32 0.0, %v5757
        %v5759 = vpop.f32.mrb[0].mxu0
        %5760 = vmatprep.mubr.f32.mxu0 0.0
        %5761 = vmatmul.mubr.f32.gmra.mrb[0].mxu0 %v5568
        %v5762 = vpop.f32.mrb[0].mxu0
        %v5763 = vadd.f32 0.0, %v5762
        %v5764 = vpop.f32.mrb[0].mxu0
        %5765 = vmatprep.mubr.f32.mxu0 0.0
        %5766 = vmatmul.mubr.f32.gmra.mrb[0].mxu0 %v5569
        %v5767 = vpop.f32.mrb[0].mxu0
        %v5768 = vadd.f32 0.0, %v5767
        %v5769 = vpop.f32.mrb[0].mxu0
        %5770 = vmatprep.mubr.f32.mxu0 0.0
        %5771 = vmatmul.mubr.f32.gmra.mrb[0].mxu0 %v5570
        %v5772 = vpop.f32.mrb[0].mxu0
        %v5773 = vadd.f32 0.0, %v5772
        %v5774 = vpop.f32.mrb[0].mxu0
        %5775 = vmatprep.mubr.f32.mxu0 0.0
        %5776 = vmatmul.mubr.f32.gmra.mrb[0].mxu0 %v5571
        %v5777 = vpop.f32.mrb[0].mxu0
        %v5778 = vadd.f32 0.0, %v5777
        %v5779 = vpop.f32.mrb[0].mxu0
        %5780 = vmatprep.mubr.f32.mxu0 0.0
        %5781 = vmatmul.mubr.f32.gmra.mrb[0].mxu0 %v5572
        %v5782 = vpop.f32.mrb[0].mxu0
        %v5783 = vadd.f32 0.0, %v5782
        %v5784 = vpop.f32.mrb[0].mxu0
        %5785 = vmatprep.mubr.f32.mxu0 0.0
        %5786 = vmatmul.mubr.f32.gmra.mrb[0].mxu0 %v5573
        %v5787 = vpop.f32.mrb[0].mxu0
        %v5788 = vadd.f32 0.0, %v5787
        %v5789 = vpop.f32.mrb[0].mxu0
        %5790 = vmatprep.mubr.f32.mxu0 0.0
        %5791 = vmatmul.mubr.f32.gmra.mrb[0].mxu0 %v5574
        %v5792 = vpop.f32.mrb[0].mxu0
        %v5793 = vadd.f32 0.0, %v5792
        %v5794 = vpop.f32.mrb[0].mxu0
        %5795 = vmatprep.mubr.f32.mxu0 0.0
        %5796 = vmatmul.mubr.f32.gmra.mrb[0].mxu0 %v5575
        %v5797 = vpop.f32.mrb[0].mxu0
        %v5798 = vadd.f32 0.0, %v5797
        %v5799 = vpop.f32.mrb[0].mxu0
        %5800 = vmatprep.mubr.f32.mxu0 0.0
        %5801 = vmatmul.mubr.f32.gmra.mrb[0].mxu0 %v5576
        %v5802 = vpop.f32.mrb[0].mxu0
        %v5803 = vadd.f32 0.0, %v5802
        %v5804 = vpop.f32.mrb[0].mxu0
        %5805 = vmatprep.mubr.f32.mxu0 0.0
        %5806 = vmatmul.mubr.f32.gmra.mrb[0].mxu0 %v5577
        %v5807 = vpop.f32.mrb[0].mxu0
        %v5808 = vadd.f32 0.0, %v5807
        %v5809 = vpop.f32.mrb[0].mxu0
        %5810 = vmatprep.mubr.f32.mxu0 0.0
        %5811 = vmatmul.mubr.f32.gmra.mrb[0].mxu0 %v5578
        %v5812 = vpop.f32.mrb[0].mxu0
        %v5813 = vadd.f32 0.0, %v5812
        %v5814 = vpop.f32.mrb[0].mxu0
        %5815 = vmatprep.mubr.f32.mxu0 0.0
        %5816 = vmatmul.mubr.f32.gmra.mrb[0].mxu0 %v5579
        %v5817 = vpop.f32.mrb[0].mxu0
        %v5818 = vadd.f32 0.0, %v5817
        %v5819 = vpop.f32.mrb[0].mxu0
        %5820 = vdwg.mxu0
        %v5821 = vadd.f32 %v5516, %v5663
        %v5822 = vadd.f32 %v5517, %v5668
        %v5823 = vadd.f32 %v5518, %v5673
        %v5824 = vadd.f32 %v5519, %v5678
        %v5825 = vadd.f32 %v5520, %v5683
        %v5826 = vadd.f32 %v5521, %v5688
        %v5827 = vadd.f32 %v5522, %v5693
        %v5828 = vadd.f32 %v5523, %v5698
        %v5829 = vadd.f32 %v5524, %v5703
        %v5830 = vadd.f32 %v5525, %v5708
        %v5831 = vadd.f32 %v5526, %v5713
        %v5832 = vadd.f32 %v5527, %v5718
        %v5833 = vadd.f32 %v5528, %v5723
        %v5834 = vadd.f32 %v5529, %v5728
        %v5835 = vadd.f32 %v5530, %v5733
        %v5836 = vadd.f32 %v5531, %v5738
        %v5837 = vadd.f32 %v5532, %v5743
        %v5838 = vadd.f32 %v5533, %v5748
        %v5839 = vadd.f32 %v5534, %v5753
        %v5840 = vadd.f32 %v5535, %v5758
        %v5841 = vadd.f32 %v5536, %v5763
        %v5842 = vadd.f32 %v5537, %v5768
        %v5843 = vadd.f32 %v5538, %v5773
        %v5844 = vadd.f32 %v5539, %v5778
        %v5845 = vadd.f32 %v5540, %v5783
        %v5846 = vadd.f32 %v5541, %v5788
        %v5847 = vadd.f32 %v5542, %v5793
        %v5848 = vadd.f32 %v5543, %v5798
        %v5849 = vadd.f32 %v5544, %v5803
        %v5850 = vadd.f32 %v5545, %v5808
        %v5851 = vadd.f32 %v5546, %v5813
        %v5852 = vadd.f32 %v5547, %v5818
        %v5853 = vmax.f32 %v5821, 0.0
        %v5854 = vmax.f32 %v5822, 0.0
        %v5855 = vmax.f32 %v5823, 0.0
        %v5856 = vmax.f32 %v5824, 0.0
        %v5857 = vmax.f32 %v5825, 0.0
        %v5858 = vmax.f32 %v5826, 0.0
        %v5859 = vmax.f32 %v5827, 0.0
        %v5860 = vmax.f32 %v5828, 0.0
        %v5861 = vmax.f32 %v5829, 0.0
        %v5862 = vmax.f32 %v5830, 0.0
        %v5863 = vmax.f32 %v5831, 0.0
        %v5864 = vmax.f32 %v5832, 0.0
        %v5865 = vmax.f32 %v5833, 0.0
        %v5866 = vmax.f32 %v5834, 0.0
        %v5867 = vmax.f32 %v5835, 0.0
        %v5868 = vmax.f32 %v5836, 0.0
        %v5869 = vmax.f32 %v5837, 0.0
        %v5870 = vmax.f32 %v5838, 0.0
        %v5871 = vmax.f32 %v5839, 0.0
        %v5872 = vmax.f32 %v5840, 0.0
        %v5873 = vmax.f32 %v5841, 0.0
        %v5874 = vmax.f32 %v5842, 0.0
        %v5875 = vmax.f32 %v5843, 0.0
        %v5876 = vmax.f32 %v5844, 0.0
        %v5877 = vmax.f32 %v5845, 0.0
        %v5878 = vmax.f32 %v5846, 0.0
        %v5879 = vmax.f32 %v5847, 0.0
        %v5880 = vmax.f32 %v5848, 0.0
        %v5881 = vmax.f32 %v5849, 0.0
        %v5882 = vmax.f32 %v5850, 0.0
        %v5883 = vmax.f32 %v5851, 0.0
        %v5884 = vmax.f32 %v5852, 0.0
        %5885 = vst [vmem:[%s232] sm:$0xff] %v5853
        %5886 = vst [vmem:[%s232 + $0x8] sm:$0xff] %v5854
        %5887 = vst [vmem:[%s232 + $0x10] sm:$0xff] %v5855
        %5888 = vst [vmem:[%s232 + $0x18] sm:$0xff] %v5856
        %5889 = vst [vmem:[%s232 + $0x20] sm:$0xff] %v5857
        %5890 = vst [vmem:[%s232 + $0x28] sm:$0xff] %v5858
        %5891 = vst [vmem:[%s232 + $0x30] sm:$0xff] %v5859
        %5892 = vst [vmem:[%s232 + $0x38] sm:$0xff] %v5860
        %5893 = vst [vmem:[%s232 + $0x40] sm:$0xff] %v5861
        %5894 = vst [vmem:[%s232 + $0x48] sm:$0xff] %v5862
        %5895 = vst [vmem:[%s232 + $0x50] sm:$0xff] %v5863
        %5896 = vst [vmem:[%s232 + $0x58] sm:$0xff] %v5864
        %5897 = vst [vmem:[%s232 + $0x60] sm:$0xff] %v5865
        %5898 = vst [vmem:[%s232 + $0x68] sm:$0xff] %v5866
        %5899 = vst [vmem:[%s232 + $0x70] sm:$0xff] %v5867
        %5900 = vst [vmem:[%s232 + $0x78] sm:$0xff] %v5868
        %5901 = vst [vmem:[%s232 + $0x80] sm:$0xff] %v5869
        %5902 = vst [vmem:[%s232 + $0x88] sm:$0xff] %v5870
        %5903 = vst [vmem:[%s232 + $0x90] sm:$0xff] %v5871
        %5904 = vst [vmem:[%s232 + $0x98] sm:$0xff] %v5872
        %5905 = vst [vmem:[%s232 + $0xa0] sm:$0xff] %v5873
        %5906 = vst [vmem:[%s232 + $0xa8] sm:$0xff] %v5874
        %5907 = vst [vmem:[%s232 + $0xb0] sm:$0xff] %v5875
        %5908 = vst [vmem:[%s232 + $0xb8] sm:$0xff] %v5876
        %5909 = vst [vmem:[%s232 + $0xc0] sm:$0xff] %v5877
        %5910 = vst [vmem:[%s232 + $0xc8] sm:$0xff] %v5878
        %5911 = vst [vmem:[%s232 + $0xd0] sm:$0xff] %v5879
        %5912 = vst [vmem:[%s232 + $0xd8] sm:$0xff] %v5880
        %5913 = vst [vmem:[%s232 + $0xe0] sm:$0xff] %v5881
        %5914 = vst [vmem:[%s232 + $0xe8] sm:$0xff] %v5882
        %5915 = vst [vmem:[%s232 + $0xf0] sm:$0xff] %v5883
        %5916 = vst [vmem:[%s232 + $0xf8] sm:$0xff] %v5884
        %s5917 = sand.u32 %s138, 1
        %s5918 = scalar_lea.sflag [#allocation5], %s5917
        %s5919 = sand.u32 %s138, 1
        %s5920 = smul.addr %s5919, 256
        %s5921 = scalar_lea.vmem [#allocation6], %s5920
        // Predicated region
        $region45: #{tpu_custom_call.1} parent=39 // pred_check
          %p5922 = pneg %p148
        $region46: #{tpu_custom_call.1} parent=39 // pred_check_branch
          %5924 = sbr.rel (%p5922) target = $region48
        $region47: #{tpu_custom_call.1} parent=39 // pred_region
          %s5926 = ssub.s32 4096, 4096
          %5927 = vsyncadd %s5918, %s5926
          %s5928 = smul.addr %s20, 32
          %s5929 = smul.addr %s5928, 128
          %s5930 = scalar_lea.hbm %s5, %s5929
          %s5931 = sshll.u32 %s5921, 4
          %s5932 = int_to_ptr.vmem [resolvable:$true] %s5931
          %5937 = dma.vmem_to_hbm [thread:$0]  %s5932, 4096, %s5930, %s5918, 128, 128, 8
        $region48: #{tpu_custom_call.1} parent=39 // pred_fallthru
          _
      $region40: #{tpu_custom_call.1} parent=5 // pred_fallthru
        _
      %p5938 = scmp.le.s32.totalorder 2, %s15
      // Predicated region
      $region49: #{tpu_custom_call.1} parent=5 // pred_check
        %p5939 = pneg %p5938
      $region50: #{tpu_custom_call.1} parent=5 // pred_check_branch
        %5941 = sbr.rel (%p5939) target = $region52
      $region51: #{tpu_custom_call.1} parent=5 // pred_region
        %s5942 = ssub.s32 %s15, 2
        // Predicated region
        $region53: #{tpu_custom_call.1} parent=51 // pred_check
          %p5943 = pneg %p154
        $region54: #{tpu_custom_call.1} parent=51 // pred_check_branch
          %5945 = sbr.rel (%p5943) target = $region56
        $region55: #{tpu_custom_call.1} parent=51 // pred_region
          %s5946 = sand.u32 %s139, 1
          %s5947 = scalar_lea.sflag [#allocation5], %s5946
          %s5948 = sand.u32 %s139, 1
          %s5949 = smul.addr %s5948, 256
          %s5950 = scalar_lea.vmem [#allocation6], %s5949
          %5951 = dma.done %s5947, 4096
        $region56: #{tpu_custom_call.1} parent=51 // pred_fallthru
          _
      $region52: #{tpu_custom_call.1} parent=5 // pred_fallthru
        _
    $region6: #{tpu_custom_call.1} parent=1 // loop_footer
      %s19 = sadd.s32 1, %s15
    $region7: #{tpu_custom_call.1} parent=1 // loop_footer_branch
      %14 = sbr.rel target = $region3
    $region8: #{tpu_custom_call.1} parent=1 // loop_exit
      _
    %5952 = vsyncpa [#allocation4], 1
    %s5953 = scalar_lea.sflag [#allocation4], 1
    %5954 = vsyncpa %s5953, 1
    %5955 = vsyncpa [#allocation5], 1
    %s5956 = scalar_lea.sflag [#allocation5], 1
    %5957 = vsyncpa %s5956, 1

</llo_original>
